<compile_context>
chip_gen: v6e
topology: v6e:2x2x1
jax: 0.10.0
libtpu: 0.0.40
codegen_flags: <defaults>
</compile_context>

<pallas_src>
import functools

import numpy as np
import jax
import jax.numpy as jnp
from jax.experimental import pallas as pl
from jax.experimental.pallas import tpu as pltpu


# ----------------------------------------------------------------------------
# Precompute: diffusion bases and folded/fused operators (plain JAX, runs once)
# ----------------------------------------------------------------------------
def build_diffusion_basis(supports, max_diffusion_step):
    """Apply the PyTorch Chebyshev-style recursion to the identity matrix.

    Matches the reference exactly, including the fact that x0 is *not* reset
    between supports (carried over, as in the PyTorch code).
    Returns P of shape (M, N, N), M = S*K + 1, so that mats[m] = P[m] @ feat.
    """
    S, N, _ = supports.shape
    eye = jnp.eye(N, dtype=jnp.float32)
    mats = [eye]
    x0 = eye
    if max_diffusion_step > 0:
        for s in range(S):
            sup = supports[s]
            x1 = sup @ x0
            mats.append(x1)
            for _ in range(2, max_diffusion_step + 1):
                x2 = 2.0 * (sup @ x1) - x0
                mats.append(x2)
                x1, x0 = x2, x1
    return jnp.stack(mats, axis=0)


def _combine(P, w_fmo):
    """K[(n',f),(n,o)] = sum_m P[m,n,n'] * w[f,m,o]  -> (N*Fp, N*out)."""
    M, N, _ = P.shape
    Fp, _, out = w_fmo.shape
    K = jnp.einsum("mnq,fmo->qfno", P, w_fmo)
    return K.reshape(N * Fp, N * out)


def build_cell_operators_fused(P, lp, din, hid_dim, node_num):
    """Fold diffusion bases into the torch-layout weights and pre-concatenate the
    gate operators so the kernel needs only 2 matmuls per layer.

    Returns [K_ru (bf16), K_c (bf16), b_ru (f32), b_c (f32)] where
      K_ru : (N*din + N*H, 2*N*H)   rows = [x-part ; h-part], cols = [r | u]
      K_c  : (N*din + N*H, N*H)
    """
    M, N, _ = P.shape
    H = hid_dim
    F = din + H
    # torch weight layout: row index = f * M + m
    wg = lp["w_gate"].reshape(F, M, 2 * H)
    wc = lp["w_cand"].reshape(F, M, H)
    kxr = _combine(P, wg[:din, :, :H])
    khr = _combine(P, wg[din:, :, :H])
    kxu = _combine(P, wg[:din, :, H:])
    khu = _combine(P, wg[din:, :, H:])
    kxc = _combine(P, wc[:din, :, :])
    khc = _combine(P, wc[din:, :, :])
    k_ru = jnp.concatenate(
        [jnp.concatenate([kxr, kxu], axis=1),
         jnp.concatenate([khr, khu], axis=1)], axis=0).astype(jnp.bfloat16)
    k_c = jnp.concatenate([kxc, khc], axis=0).astype(jnp.bfloat16)
    b_ru = jnp.concatenate(
        [jnp.tile(lp["b_gate"][:H], N),
         jnp.tile(lp["b_gate"][H:], N)]).reshape(1, 2 * N * H).astype(jnp.float32)
    b_c = jnp.tile(lp["b_cand"], N).reshape(1, N * H).astype(jnp.float32)
    return [k_ru, k_c, b_ru, b_c]


def build_proj_operator(wp, bp, node_num):
    """Block-diagonal projection operator: (N*H, N*O) bf16, plus tiled f32 bias."""
    H, O = wp.shape
    N = node_num
    kp = jnp.einsum("nq,jo->qjno", jnp.eye(N, dtype=jnp.float32), wp)
    kp = kp.reshape(N * H, N * O).astype(jnp.bfloat16)
    bp_t = jnp.tile(bp.reshape(-1), N).reshape(1, N * O).astype(jnp.float32)
    return kp, bp_t


# ----------------------------------------------------------------------------
# Fused Pallas kernel: entire decoder (time loop + all layers + projection)
# ----------------------------------------------------------------------------
def _decoder_kernel(tf_ref, x_ref, h0_ref, *refs, num_layers, seq_len):
    param_refs = refs[:-1]
    out_ref = refs[-1]
    L = num_layers
    T = seq_len

    # outputs[0] stays zero (as in the PyTorch code)
    out_ref[0] = jnp.zeros(out_ref.shape[1:], out_ref.dtype)

    # Recurrent state / current input carried as values across the unrolled loop
    # (f32 throughout; only the matmul operands are bf16).
    h = [h0_ref[l] for l in range(L)]            # each (B, N*H) f32
    cur = x_ref[0]                               # (B, N*Din) f32

    for t in range(1, T):
        for l in range(L):
            k_ru, k_c, b_ru, b_c = param_refs[4 * l:4 * l + 4]
            hl = h[l]
            nh = hl.shape[-1]                    # N*H (lane-aligned, 128-multiple)
            # r and u in ONE matmul: concat([x, h]) @ [[Kx_r Kx_u],[Kh_r Kh_u]]
            lhs_ru = jnp.concatenate([cur, hl], axis=1).astype(jnp.bfloat16)
            ru = jax.nn.sigmoid(
                jnp.dot(lhs_ru, k_ru[...], preferred_element_type=jnp.float32)
                + b_ru[...])
            r = ru[:, :nh]
            u = ru[:, nh:]
            # candidate in one matmul: concat([x, r*h]) @ [[Kx_c],[Kh_c]]
            lhs_c = jnp.concatenate([cur, r * hl], axis=1).astype(jnp.bfloat16)
            c = jnp.tanh(
                jnp.dot(lhs_c, k_c[...], preferred_element_type=jnp.float32)
                + b_c[...])
            h_new = u * hl + (1.0 - u) * c
            h[l] = h_new
            cur = h_new                          # next layer's input

        # folded block-diagonal projection of the last layer's hidden state
        kp = param_refs[4 * L]
        bp = param_refs[4 * L + 1]
        out = jnp.dot(cur.astype(jnp.bfloat16), kp[...],
                      preferred_element_type=jnp.float32) + bp[...]
        out_ref[t] = out

        # teacher forcing: next current_input = inputs[t] if tf[t] else output
        # (single vselect; int broadcast + compare avoids scalar-i1 splat)
        tf_vec = jnp.full(out.shape, tf_ref[t], dtype=jnp.int32)
        cur = jnp.where(tf_vec > 0, x_ref[t], out)


def dcgru_decoder_forward(inputs, supports, initial_hidden_state, params_raw,
                          tf_flags, *, node_num, input_dim, hid_dim, output_dim,
                          max_diffusion_step):
    """inputs: (T, B, N*input_dim), initial_hidden_state: (L, B, N*H).

    Returns (T, B, N*output_dim); outputs[0] stays zero (as in the PyTorch code).
    """
    T, B, _ = inputs.shape
    N, H, O = node_num, hid_dim, output_dim
    L = len(params_raw)
    assert input_dim == output_dim, "decoder feeds its output back as next input"

    # --- one-time precompute (constant across the whole sequence) ---
    P = build_diffusion_basis(supports, max_diffusion_step)
    flat_params = []
    for l in range(L):
        din = input_dim if l == 0 else H
        flat_params += build_cell_operators_fused(P, params_raw[l], din, H, N)
    kp, bp = build_proj_operator(params_raw[-1]["wp"], params_raw[-1]["bp"], N)
    flat_params += [kp, bp]

    vmem = pltpu.MemorySpace.VMEM
    smem = pltpu.MemorySpace.SMEM
    in_specs = [pl.BlockSpec(memory_space=smem),   # tf_flags (T,) int32
                pl.BlockSpec(memory_space=vmem),   # inputs   (T, B, N*Din)
                pl.BlockSpec(memory_space=vmem)]   # h0       (L, B, N*H)
    in_specs += [pl.BlockSpec(memory_space=vmem) for _ in flat_params]

    kernel = functools.partial(_decoder_kernel, num_layers=L, seq_len=T)
    return pl.pallas_call(
        kernel,
        out_shape=jax.ShapeDtypeStruct((T, B, N * O), jnp.float32),
        in_specs=in_specs,
        out_specs=pl.BlockSpec(memory_space=vmem),
    )(tf_flags.astype(jnp.int32), inputs, initial_hidden_state, *flat_params)


# ----------------------------------------------------------------------------
# Pure-JAX reference mirroring the PyTorch tensor ops exactly (for checking)
# ----------------------------------------------------------------------------
def _dconv_ref(x_flat, state_flat, supports, weight, biases, node_num, K, out_dim):
    B = x_flat.shape[0]
    N = node_num
    xi = x_flat.reshape(B, N, -1)
    st = state_flat.reshape(B, N, -1)
    xs = jnp.concatenate([xi, st], axis=2)                 # (B, N, F)
    F = xs.shape[2]
    x0 = jnp.transpose(xs, (1, 2, 0)).reshape(N, F * B)
    mats = [x0]
    x0c = x0
    if K > 0:
        for s in range(supports.shape[0]):
            sup = supports[s]
            x1 = sup @ x0c
            mats.append(x1)
            for _ in range(2, K + 1):
                x2 = 2.0 * (sup @ x1) - x0c
                mats.append(x2)
                x1, x0c = x2, x1        # x0 carries over to the next support (as in torch)
    M = len(mats)
    x = jnp.stack(mats, 0).reshape(M, N, F, B)
    x = jnp.transpose(x, (3, 1, 2, 0)).reshape(B * N, F * M)
    out = x @ weight + biases
    return out.reshape(B, N * out_dim)


def _cell_ref(x_flat, h_flat, supports, p, node_num, hid_dim, K):
    N, H = node_num, hid_dim
    B = x_flat.shape[0]
    value = jax.nn.sigmoid(
        _dconv_ref(x_flat, h_flat, supports, p["w_gate"], p["b_gate"], N, K, 2 * H))
    value = value.reshape(B, N, 2 * H)
    r = value[..., :H].reshape(B, N * H)
    u = value[..., H:].reshape(B, N * H)
    c = jnp.tanh(_dconv_ref(x_flat, r * h_flat, supports, p["w_cand"], p["b_cand"],
                            N, K, H))
    new_h = u * h_flat + (1.0 - u) * c
    if "wp" in p:
        out = (new_h.reshape(B * N, H) @ p["wp"] + p["bp"].reshape(-1)).reshape(B, -1)
    else:
        out = new_h
    return out, new_h


def dcgru_decoder_ref(inputs, supports, initial_hidden_state, params, tf_flags,
                      *, node_num, hid_dim, output_dim, max_diffusion_step):
    T, B = inputs.shape[0], inputs.shape[1]
    N, O = node_num, output_dim
    L = len(params)
    hidden = [initial_hidden_state[l] for l in range(L)]
    outputs = [jnp.zeros((B, N * O), jnp.float32)]
    current_input = inputs[0]
    output = jnp.zeros((B, N * O), jnp.float32)
    for t in range(1, T):
        next_hidden = []
        for l in range(L):
            output, new_h = _cell_ref(current_input, hidden[l], supports,
                                      params[l], N, hid_dim, max_diffusion_step)
            current_input = output
            next_hidden.append(new_h)
        hidden = next_hidden
        outputs.append(output)
        current_input = jnp.where(tf_flags[t] > 0, inputs[t], output)
    return jnp.stack(outputs, axis=0)


# ----------------------------------------------------------------------------
# Deterministic parameter init (shapes follow the PyTorch module __init__)
# ----------------------------------------------------------------------------
def _xavier_normal(key, shape, gain=1.414):
    fan_in, fan_out = shape[1], shape[0]     # torch convention for 2-D tensors
    std = gain * np.sqrt(2.0 / (fan_in + fan_out))
    return (std * jax.random.normal(key, shape, dtype=jnp.float32)).astype(jnp.float32)


def init_params(key, node_num, input_dim, hid_dim, output_dim,
                max_diffusion_step, supports_len, num_rnn_layers):
    M = supports_len * max_diffusion_step + 1
    params = []
    for l in range(num_rnn_layers):
        din = input_dim if l == 0 else hid_dim
        F = din + hid_dim
        key, kg, kc, kbg, kbc = jax.random.split(key, 5)
        p = {
            "w_gate": _xavier_normal(kg, (F * M, 2 * hid_dim)),
            "w_cand": _xavier_normal(kc, (F * M, hid_dim)),
            # torch inits these to 0; use small random values to exercise the path
            "b_gate": 0.1 * jax.random.normal(kbg, (2 * hid_dim,), jnp.float32),
            "b_cand": 0.1 * jax.random.normal(kbc, (hid_dim,), jnp.float32),
        }
        if l == num_rnn_layers - 1:           # nn.Linear(hid_dim, output_dim)
            key, kw, kb = jax.random.split(key, 3)
            bound = 1.0 / np.sqrt(hid_dim)
            p["wp"] = jax.random.uniform(kw, (hid_dim, output_dim), jnp.float32,
                                         -bound, bound)
            p["bp"] = jax.random.uniform(kb, (output_dim,), jnp.float32,
                                         -bound, bound)
        params.append(p)
    return params


# ----------------------------------------------------------------------------
if __name__ == "__main__":
    node_num = 16
    input_dim = 2          # decoder feeds its output back -> input_dim == output_dim
    hid_dim = 8
    output_dim = 2
    max_diffusion_step = 2
    num_rnn_layers = 2
    supports_len = 2       # filter_type == 'doubletransition'
    seq_len = 8
    batch = 2              # note: up to B=8 is free (rows pad to 8 sublanes)

    key = jax.random.PRNGKey(0)
    key, k_adj, k_in, k_tf, k_par = jax.random.split(key, 5)

    # dense random "double transition" supports D^-1 A and D^-1 A^T
    adj = jax.random.uniform(k_adj, (node_num, node_num), jnp.float32, 0.1, 1.0)
    p_fwd = adj / jnp.sum(adj, axis=1, keepdims=True)
    p_bwd = adj.T / jnp.sum(adj.T, axis=1, keepdims=True)
    supports = jnp.stack([p_fwd, p_bwd], axis=0)          # (S, N, N)

    inputs = jax.random.normal(k_in, (seq_len, batch, node_num * input_dim),
                               jnp.float32)
    initial_hidden_state = jnp.zeros(
        (num_rnn_layers, batch, node_num * hid_dim), jnp.float32)
    tf_flags = (jax.random.uniform(k_tf, (seq_len,)) < 0.5).astype(jnp.int32)

    params = init_params(k_par, node_num, input_dim, hid_dim, output_dim,
                         max_diffusion_step, supports_len, num_rnn_layers)

    out = dcgru_decoder_forward(inputs, supports, initial_hidden_state, params,
                                tf_flags, node_num=node_num, input_dim=input_dim,
                                hid_dim=hid_dim, output_dim=output_dim,
                                max_diffusion_step=max_diffusion_step)
    out = jax.block_until_ready(out)

    ref = dcgru_decoder_ref(inputs, supports, initial_hidden_state, params,
                            tf_flags, node_num=node_num, hid_dim=hid_dim,
                            output_dim=output_dim,
                            max_diffusion_step=max_diffusion_step)
    # tolerance accounts for bf16 matmul operands (accumulation is f32, state is f32)
    np.testing.assert_allclose(np.asarray(out), np.asarray(ref),
                               rtol=5e-2, atol=5e-2)
    print("KERNEL_OK")
</pallas_src>

<mosaic_0001>
module attributes {stable_mosaic.version = 11 : i64} {
  func.func @_decoder_kernel(%arg0: memref<8xi32, #tpu.memory_space<smem>>, %arg1: memref<8x2x32xf32, #tpu.memory_space<vmem>>, %arg2: memref<2x2x128xf32, #tpu.memory_space<vmem>>, %arg3: memref<160x256xbf16, #tpu.memory_space<vmem>>, %arg4: memref<160x128xbf16, #tpu.memory_space<vmem>>, %arg5: memref<1x256xf32, #tpu.memory_space<vmem>>, %arg6: memref<1x128xf32, #tpu.memory_space<vmem>>, %arg7: memref<256x256xbf16, #tpu.memory_space<vmem>>, %arg8: memref<256x128xbf16, #tpu.memory_space<vmem>>, %arg9: memref<1x256xf32, #tpu.memory_space<vmem>>, %arg10: memref<1x128xf32, #tpu.memory_space<vmem>>, %arg11: memref<128x32xbf16, #tpu.memory_space<vmem>>, %arg12: memref<1x32xf32, #tpu.memory_space<vmem>>, %arg13: memref<8x2x32xf32, #tpu.memory_space<vmem>>) attributes {dimension_semantics = [], scalar_prefetch = 0 : i64, scratch_operands = 0 : i64, tpu.core_type = #tpu.core_type<tc>} {
    %cst = arith.constant 0.000000e+00 : f32
    %0 = vector.broadcast %cst : f32 to vector<2x32xf32>
    %c0 = arith.constant 0 : index
    %c0_0 = arith.constant 0 : index
    %c0_1 = arith.constant 0 : index
    %1 = vector.load %arg13[%c0, %c0_0, %c0_1] : memref<8x2x32xf32, #tpu.memory_space<vmem>>, vector<1x2x32xf32>
    %2 = vector.shape_cast %1 : vector<1x2x32xf32> to vector<2x32xf32>
    %3 = vector.shape_cast %0 : vector<2x32xf32> to vector<1x2x32xf32>
    tpu.vector_store %arg13[%c0, %c0_0, %c0_1], %3 {strides = array<i32>} : memref<8x2x32xf32, #tpu.memory_space<vmem>>, vector<1x2x32xf32>,
    %c0_2 = arith.constant 0 : index
    %c0_3 = arith.constant 0 : index
    %c0_4 = arith.constant 0 : index
    %4 = vector.load %arg2[%c0_2, %c0_3, %c0_4] : memref<2x2x128xf32, #tpu.memory_space<vmem>>, vector<1x2x128xf32>
    %5 = vector.shape_cast %4 : vector<1x2x128xf32> to vector<2x128xf32>
    %c1 = arith.constant 1 : index
    %c0_5 = arith.constant 0 : index
    %c0_6 = arith.constant 0 : index
    %6 = vector.load %arg2[%c1, %c0_5, %c0_6] : memref<2x2x128xf32, #tpu.memory_space<vmem>>, vector<1x2x128xf32>
    %7 = vector.shape_cast %6 : vector<1x2x128xf32> to vector<2x128xf32>
    %c0_7 = arith.constant 0 : index
    %c0_8 = arith.constant 0 : index
    %c0_9 = arith.constant 0 : index
    %8 = vector.load %arg1[%c0_7, %c0_8, %c0_9] : memref<8x2x32xf32, #tpu.memory_space<vmem>>, vector<1x2x32xf32>
    %9 = vector.shape_cast %8 : vector<1x2x32xf32> to vector<2x32xf32>
    %10 = tpu.concatenate %9, %5 in 1 : vector<2x32xf32>, vector<2x128xf32> -> vector<2x160xf32>
    %11 = arith.truncf %10 : vector<2x160xf32> to vector<2x160xbf16>
    %c0_10 = arith.constant 0 : index
    %c0_11 = arith.constant 0 : index
    %12 = vector.load %arg3[%c0_10, %c0_11] : memref<160x256xbf16, #tpu.memory_space<vmem>>, vector<160x256xbf16>
    %cst_12 = arith.constant dense<0.000000e+00> : vector<2x256xf32>
    %13 = tpu.matmul %11, %12, %cst_12 {dimension_numbers = #tpu.dot_dimension_numbers<[1], [0], [0], [1], [0, 0, 1, 1], [], []>} : vector<2x160xbf16>, vector<160x256xbf16>, vector<2x256xf32> -> vector<2x256xf32>
    %c0_13 = arith.constant 0 : index
    %c0_14 = arith.constant 0 : index
    %14 = vector.load %arg5[%c0_13, %c0_14] : memref<1x256xf32, #tpu.memory_space<vmem>>, vector<1x256xf32>
    %15 = vector.broadcast %14 : vector<1x256xf32> to vector<2x256xf32>
    %16 = arith.addf %13, %15 : vector<2x256xf32>
    %17 = arith.negf %16 : vector<2x256xf32>
    %18 = math.exp %17 : vector<2x256xf32>
    %cst_15 = arith.constant 1.000000e+00 : f32
    %19 = vector.broadcast %cst_15 : f32 to vector<2x256xf32>
    %20 = arith.addf %19, %18 : vector<2x256xf32>
    %21 = arith.divf %19, %20 : vector<2x256xf32>
    %22 = vector.extract_strided_slice %21 {offsets = [0, 0], sizes = [2, 128], strides = [1, 1]} : vector<2x256xf32> to vector<2x128xf32>
    %23 = vector.extract_strided_slice %21 {offsets = [0, 128], sizes = [2, 128], strides = [1, 1]} : vector<2x256xf32> to vector<2x128xf32>
    %24 = arith.mulf %22, %5 : vector<2x128xf32>
    %25 = tpu.concatenate %9, %24 in 1 : vector<2x32xf32>, vector<2x128xf32> -> vector<2x160xf32>
    %26 = arith.truncf %25 : vector<2x160xf32> to vector<2x160xbf16>
    %c0_16 = arith.constant 0 : index
    %c0_17 = arith.constant 0 : index
    %27 = vector.load %arg4[%c0_16, %c0_17] : memref<160x128xbf16, #tpu.memory_space<vmem>>, vector<160x128xbf16>
    %cst_18 = arith.constant dense<0.000000e+00> : vector<2x128xf32>
    %28 = tpu.matmul %26, %27, %cst_18 {dimension_numbers = #tpu.dot_dimension_numbers<[1], [0], [0], [1], [0, 0, 1, 1], [], []>} : vector<2x160xbf16>, vector<160x128xbf16>, vector<2x128xf32> -> vector<2x128xf32>
    %c0_19 = arith.constant 0 : index
    %c0_20 = arith.constant 0 : index
    %29 = vector.load %arg6[%c0_19, %c0_20] : memref<1x128xf32, #tpu.memory_space<vmem>>, vector<1x128xf32>
    %30 = vector.broadcast %29 : vector<1x128xf32> to vector<2x128xf32>
    %31 = arith.addf %28, %30 : vector<2x128xf32>
    %32 = math.tanh %31 : vector<2x128xf32>
    %33 = arith.mulf %23, %5 : vector<2x128xf32>
    %cst_21 = arith.constant 1.000000e+00 : f32
    %34 = vector.broadcast %cst_21 : f32 to vector<2x128xf32>
    %35 = arith.subf %34, %23 : vector<2x128xf32>
    %36 = arith.mulf %35, %32 : vector<2x128xf32>
    %37 = arith.addf %33, %36 : vector<2x128xf32>
    %38 = tpu.concatenate %37, %7 in 1 : vector<2x128xf32>, vector<2x128xf32> -> vector<2x256xf32>
    %39 = arith.truncf %38 : vector<2x256xf32> to vector<2x256xbf16>
    %c0_22 = arith.constant 0 : index
    %c0_23 = arith.constant 0 : index
    %40 = vector.load %arg7[%c0_22, %c0_23] : memref<256x256xbf16, #tpu.memory_space<vmem>>, vector<256x256xbf16>
    %cst_24 = arith.constant dense<0.000000e+00> : vector<2x256xf32>
    %41 = tpu.matmul %39, %40, %cst_24 {dimension_numbers = #tpu.dot_dimension_numbers<[1], [0], [0], [1], [0, 0, 1, 1], [], []>} : vector<2x256xbf16>, vector<256x256xbf16>, vector<2x256xf32> -> vector<2x256xf32>
    %c0_25 = arith.constant 0 : index
    %c0_26 = arith.constant 0 : index
    %42 = vector.load %arg9[%c0_25, %c0_26] : memref<1x256xf32, #tpu.memory_space<vmem>>, vector<1x256xf32>
    %43 = vector.broadcast %42 : vector<1x256xf32> to vector<2x256xf32>
    %44 = arith.addf %41, %43 : vector<2x256xf32>
    %45 = arith.negf %44 : vector<2x256xf32>
    %46 = math.exp %45 : vector<2x256xf32>
    %cst_27 = arith.constant 1.000000e+00 : f32
    %47 = vector.broadcast %cst_27 : f32 to vector<2x256xf32>
    %48 = arith.addf %47, %46 : vector<2x256xf32>
    %49 = arith.divf %47, %48 : vector<2x256xf32>
    %50 = vector.extract_strided_slice %49 {offsets = [0, 0], sizes = [2, 128], strides = [1, 1]} : vector<2x256xf32> to vector<2x128xf32>
    %51 = vector.extract_strided_slice %49 {offsets = [0, 128], sizes = [2, 128], strides = [1, 1]} : vector<2x256xf32> to vector<2x128xf32>
    %52 = arith.mulf %50, %7 : vector<2x128xf32>
    %53 = tpu.concatenate %37, %52 in 1 : vector<2x128xf32>, vector<2x128xf32> -> vector<2x256xf32>
    %54 = arith.truncf %53 : vector<2x256xf32> to vector<2x256xbf16>
    %c0_28 = arith.constant 0 : index
    %c0_29 = arith.constant 0 : index
    %55 = vector.load %arg8[%c0_28, %c0_29] : memref<256x128xbf16, #tpu.memory_space<vmem>>, vector<256x128xbf16>
    %cst_30 = arith.constant dense<0.000000e+00> : vector<2x128xf32>
    %56 = tpu.matmul %54, %55, %cst_30 {dimension_numbers = #tpu.dot_dimension_numbers<[1], [0], [0], [1], [0, 0, 1, 1], [], []>} : vector<2x256xbf16>, vector<256x128xbf16>, vector<2x128xf32> -> vector<2x128xf32>
    %c0_31 = arith.constant 0 : index
    %c0_32 = arith.constant 0 : index
    %57 = vector.load %arg10[%c0_31, %c0_32] : memref<1x128xf32, #tpu.memory_space<vmem>>, vector<1x128xf32>
    %58 = vector.broadcast %57 : vector<1x128xf32> to vector<2x128xf32>
    %59 = arith.addf %56, %58 : vector<2x128xf32>
    %60 = math.tanh %59 : vector<2x128xf32>
    %61 = arith.mulf %51, %7 : vector<2x128xf32>
    %cst_33 = arith.constant 1.000000e+00 : f32
    %62 = vector.broadcast %cst_33 : f32 to vector<2x128xf32>
    %63 = arith.subf %62, %51 : vector<2x128xf32>
    %64 = arith.mulf %63, %60 : vector<2x128xf32>
    %65 = arith.addf %61, %64 : vector<2x128xf32>
    %66 = arith.truncf %65 : vector<2x128xf32> to vector<2x128xbf16>
    %c0_34 = arith.constant 0 : index
    %c0_35 = arith.constant 0 : index
    %67 = vector.load %arg11[%c0_34, %c0_35] : memref<128x32xbf16, #tpu.memory_space<vmem>>, vector<128x32xbf16>
    %cst_36 = arith.constant dense<0.000000e+00> : vector<2x32xf32>
    %68 = tpu.matmul %66, %67, %cst_36 {dimension_numbers = #tpu.dot_dimension_numbers<[1], [0], [0], [1], [0, 0, 1, 1], [], []>} : vector<2x128xbf16>, vector<128x32xbf16>, vector<2x32xf32> -> vector<2x32xf32>
    %c0_37 = arith.constant 0 : index
    %c0_38 = arith.constant 0 : index
    %69 = vector.load %arg12[%c0_37, %c0_38] : memref<1x32xf32, #tpu.memory_space<vmem>>, vector<1x32xf32>
    %70 = vector.broadcast %69 : vector<1x32xf32> to vector<2x32xf32>
    %71 = arith.addf %68, %70 : vector<2x32xf32>
    %c1_39 = arith.constant 1 : index
    %c0_40 = arith.constant 0 : index
    %c0_41 = arith.constant 0 : index
    %72 = vector.load %arg13[%c1_39, %c0_40, %c0_41] : memref<8x2x32xf32, #tpu.memory_space<vmem>>, vector<1x2x32xf32>
    %73 = vector.shape_cast %72 : vector<1x2x32xf32> to vector<2x32xf32>
    %74 = vector.shape_cast %71 : vector<2x32xf32> to vector<1x2x32xf32>
    tpu.vector_store %arg13[%c1_39, %c0_40, %c0_41], %74 {strides = array<i32>} : memref<8x2x32xf32, #tpu.memory_space<vmem>>, vector<1x2x32xf32>,
    %c1_42 = arith.constant 1 : index
    %75 = memref.load %arg0[%c1_42] : memref<8xi32, #tpu.memory_space<smem>>
    %76 = vector.broadcast %75 : i32 to vector<2x32xi32>
    %c0_i32 = arith.constant 0 : i32
    %77 = vector.broadcast %c0_i32 : i32 to vector<2x32xi32>
    %78 = arith.cmpi sgt, %76, %77 : vector<2x32xi32>
    %c1_43 = arith.constant 1 : index
    %c0_44 = arith.constant 0 : index
    %c0_45 = arith.constant 0 : index
    %79 = vector.load %arg1[%c1_43, %c0_44, %c0_45] : memref<8x2x32xf32, #tpu.memory_space<vmem>>, vector<1x2x32xf32>
    %80 = vector.shape_cast %79 : vector<1x2x32xf32> to vector<2x32xf32>
    %81 = arith.select %78, %80, %71 : vector<2x32xi1>, vector<2x32xf32>
    %82 = tpu.concatenate %81, %37 in 1 : vector<2x32xf32>, vector<2x128xf32> -> vector<2x160xf32>
    %83 = arith.truncf %82 : vector<2x160xf32> to vector<2x160xbf16>
    %c0_46 = arith.constant 0 : index
    %c0_47 = arith.constant 0 : index
    %84 = vector.load %arg3[%c0_46, %c0_47] : memref<160x256xbf16, #tpu.memory_space<vmem>>, vector<160x256xbf16>
    %cst_48 = arith.constant dense<0.000000e+00> : vector<2x256xf32>
    %85 = tpu.matmul %83, %84, %cst_48 {dimension_numbers = #tpu.dot_dimension_numbers<[1], [0], [0], [1], [0, 0, 1, 1], [], []>} : vector<2x160xbf16>, vector<160x256xbf16>, vector<2x256xf32> -> vector<2x256xf32>
    %c0_49 = arith.constant 0 : index
    %c0_50 = arith.constant 0 : index
    %86 = vector.load %arg5[%c0_49, %c0_50] : memref<1x256xf32, #tpu.memory_space<vmem>>, vector<1x256xf32>
    %87 = vector.broadcast %86 : vector<1x256xf32> to vector<2x256xf32>
    %88 = arith.addf %85, %87 : vector<2x256xf32>
    %89 = arith.negf %88 : vector<2x256xf32>
    %90 = math.exp %89 : vector<2x256xf32>
    %cst_51 = arith.constant 1.000000e+00 : f32
    %91 = vector.broadcast %cst_51 : f32 to vector<2x256xf32>
    %92 = arith.addf %91, %90 : vector<2x256xf32>
    %93 = arith.divf %91, %92 : vector<2x256xf32>
    %94 = vector.extract_strided_slice %93 {offsets = [0, 0], sizes = [2, 128], strides = [1, 1]} : vector<2x256xf32> to vector<2x128xf32>
    %95 = vector.extract_strided_slice %93 {offsets = [0, 128], sizes = [2, 128], strides = [1, 1]} : vector<2x256xf32> to vector<2x128xf32>
    %96 = arith.mulf %94, %37 : vector<2x128xf32>
    %97 = tpu.concatenate %81, %96 in 1 : vector<2x32xf32>, vector<2x128xf32> -> vector<2x160xf32>
    %98 = arith.truncf %97 : vector<2x160xf32> to vector<2x160xbf16>
    %c0_52 = arith.constant 0 : index
    %c0_53 = arith.constant 0 : index
    %99 = vector.load %arg4[%c0_52, %c0_53] : memref<160x128xbf16, #tpu.memory_space<vmem>>, vector<160x128xbf16>
    %cst_54 = arith.constant dense<0.000000e+00> : vector<2x128xf32>
    %100 = tpu.matmul %98, %99, %cst_54 {dimension_numbers = #tpu.dot_dimension_numbers<[1], [0], [0], [1], [0, 0, 1, 1], [], []>} : vector<2x160xbf16>, vector<160x128xbf16>, vector<2x128xf32> -> vector<2x128xf32>
    %c0_55 = arith.constant 0 : index
    %c0_56 = arith.constant 0 : index
    %101 = vector.load %arg6[%c0_55, %c0_56] : memref<1x128xf32, #tpu.memory_space<vmem>>, vector<1x128xf32>
    %102 = vector.broadcast %101 : vector<1x128xf32> to vector<2x128xf32>
    %103 = arith.addf %100, %102 : vector<2x128xf32>
    %104 = math.tanh %103 : vector<2x128xf32>
    %105 = arith.mulf %95, %37 : vector<2x128xf32>
    %cst_57 = arith.constant 1.000000e+00 : f32
    %106 = vector.broadcast %cst_57 : f32 to vector<2x128xf32>
    %107 = arith.subf %106, %95 : vector<2x128xf32>
    %108 = arith.mulf %107, %104 : vector<2x128xf32>
    %109 = arith.addf %105, %108 : vector<2x128xf32>
    %110 = tpu.concatenate %109, %65 in 1 : vector<2x128xf32>, vector<2x128xf32> -> vector<2x256xf32>
    %111 = arith.truncf %110 : vector<2x256xf32> to vector<2x256xbf16>
    %c0_58 = arith.constant 0 : index
    %c0_59 = arith.constant 0 : index
    %112 = vector.load %arg7[%c0_58, %c0_59] : memref<256x256xbf16, #tpu.memory_space<vmem>>, vector<256x256xbf16>
    %cst_60 = arith.constant dense<0.000000e+00> : vector<2x256xf32>
    %113 = tpu.matmul %111, %112, %cst_60 {dimension_numbers = #tpu.dot_dimension_numbers<[1], [0], [0], [1], [0, 0, 1, 1], [], []>} : vector<2x256xbf16>, vector<256x256xbf16>, vector<2x256xf32> -> vector<2x256xf32>
    %c0_61 = arith.constant 0 : index
    %c0_62 = arith.constant 0 : index
    %114 = vector.load %arg9[%c0_61, %c0_62] : memref<1x256xf32, #tpu.memory_space<vmem>>, vector<1x256xf32>
    %115 = vector.broadcast %114 : vector<1x256xf32> to vector<2x256xf32>
    %116 = arith.addf %113, %115 : vector<2x256xf32>
    %117 = arith.negf %116 : vector<2x256xf32>
    %118 = math.exp %117 : vector<2x256xf32>
    %cst_63 = arith.constant 1.000000e+00 : f32
    %119 = vector.broadcast %cst_63 : f32 to vector<2x256xf32>
    %120 = arith.addf %119, %118 : vector<2x256xf32>
    %121 = arith.divf %119, %120 : vector<2x256xf32>
    %122 = vector.extract_strided_slice %121 {offsets = [0, 0], sizes = [2, 128], strides = [1, 1]} : vector<2x256xf32> to vector<2x128xf32>
    %123 = vector.extract_strided_slice %121 {offsets = [0, 128], sizes = [2, 128], strides = [1, 1]} : vector<2x256xf32> to vector<2x128xf32>
    %124 = arith.mulf %122, %65 : vector<2x128xf32>
    %125 = tpu.concatenate %109, %124 in 1 : vector<2x128xf32>, vector<2x128xf32> -> vector<2x256xf32>
    %126 = arith.truncf %125 : vector<2x256xf32> to vector<2x256xbf16>
    %c0_64 = arith.constant 0 : index
    %c0_65 = arith.constant 0 : index
    %127 = vector.load %arg8[%c0_64, %c0_65] : memref<256x128xbf16, #tpu.memory_space<vmem>>, vector<256x128xbf16>
    %cst_66 = arith.constant dense<0.000000e+00> : vector<2x128xf32>
    %128 = tpu.matmul %126, %127, %cst_66 {dimension_numbers = #tpu.dot_dimension_numbers<[1], [0], [0], [1], [0, 0, 1, 1], [], []>} : vector<2x256xbf16>, vector<256x128xbf16>, vector<2x128xf32> -> vector<2x128xf32>
    %c0_67 = arith.constant 0 : index
    %c0_68 = arith.constant 0 : index
    %129 = vector.load %arg10[%c0_67, %c0_68] : memref<1x128xf32, #tpu.memory_space<vmem>>, vector<1x128xf32>
    %130 = vector.broadcast %129 : vector<1x128xf32> to vector<2x128xf32>
    %131 = arith.addf %128, %130 : vector<2x128xf32>
    %132 = math.tanh %131 : vector<2x128xf32>
    %133 = arith.mulf %123, %65 : vector<2x128xf32>
    %cst_69 = arith.constant 1.000000e+00 : f32
    %134 = vector.broadcast %cst_69 : f32 to vector<2x128xf32>
    %135 = arith.subf %134, %123 : vector<2x128xf32>
    %136 = arith.mulf %135, %132 : vector<2x128xf32>
    %137 = arith.addf %133, %136 : vector<2x128xf32>
    %138 = arith.truncf %137 : vector<2x128xf32> to vector<2x128xbf16>
    %c0_70 = arith.constant 0 : index
    %c0_71 = arith.constant 0 : index
    %139 = vector.load %arg11[%c0_70, %c0_71] : memref<128x32xbf16, #tpu.memory_space<vmem>>, vector<128x32xbf16>
    %cst_72 = arith.constant dense<0.000000e+00> : vector<2x32xf32>
    %140 = tpu.matmul %138, %139, %cst_72 {dimension_numbers = #tpu.dot_dimension_numbers<[1], [0], [0], [1], [0, 0, 1, 1], [], []>} : vector<2x128xbf16>, vector<128x32xbf16>, vector<2x32xf32> -> vector<2x32xf32>
    %c0_73 = arith.constant 0 : index
    %c0_74 = arith.constant 0 : index
    %141 = vector.load %arg12[%c0_73, %c0_74] : memref<1x32xf32, #tpu.memory_space<vmem>>, vector<1x32xf32>
    %142 = vector.broadcast %141 : vector<1x32xf32> to vector<2x32xf32>
    %143 = arith.addf %140, %142 : vector<2x32xf32>
    %c2 = arith.constant 2 : index
    %c0_75 = arith.constant 0 : index
    %c0_76 = arith.constant 0 : index
    %144 = vector.load %arg13[%c2, %c0_75, %c0_76] : memref<8x2x32xf32, #tpu.memory_space<vmem>>, vector<1x2x32xf32>
    %145 = vector.shape_cast %144 : vector<1x2x32xf32> to vector<2x32xf32>
    %146 = vector.shape_cast %143 : vector<2x32xf32> to vector<1x2x32xf32>
    tpu.vector_store %arg13[%c2, %c0_75, %c0_76], %146 {strides = array<i32>} : memref<8x2x32xf32, #tpu.memory_space<vmem>>, vector<1x2x32xf32>,
    %c2_77 = arith.constant 2 : index
    %147 = memref.load %arg0[%c2_77] : memref<8xi32, #tpu.memory_space<smem>>
    %148 = vector.broadcast %147 : i32 to vector<2x32xi32>
    %c0_i32_78 = arith.constant 0 : i32
    %149 = vector.broadcast %c0_i32_78 : i32 to vector<2x32xi32>
    %150 = arith.cmpi sgt, %148, %149 : vector<2x32xi32>
    %c2_79 = arith.constant 2 : index
    %c0_80 = arith.constant 0 : index
    %c0_81 = arith.constant 0 : index
    %151 = vector.load %arg1[%c2_79, %c0_80, %c0_81] : memref<8x2x32xf32, #tpu.memory_space<vmem>>, vector<1x2x32xf32>
    %152 = vector.shape_cast %151 : vector<1x2x32xf32> to vector<2x32xf32>
    %153 = arith.select %150, %152, %143 : vector<2x32xi1>, vector<2x32xf32>
    %154 = tpu.concatenate %153, %109 in 1 : vector<2x32xf32>, vector<2x128xf32> -> vector<2x160xf32>
    %155 = arith.truncf %154 : vector<2x160xf32> to vector<2x160xbf16>
    %c0_82 = arith.constant 0 : index
    %c0_83 = arith.constant 0 : index
    %156 = vector.load %arg3[%c0_82, %c0_83] : memref<160x256xbf16, #tpu.memory_space<vmem>>, vector<160x256xbf16>
    %cst_84 = arith.constant dense<0.000000e+00> : vector<2x256xf32>
    %157 = tpu.matmul %155, %156, %cst_84 {dimension_numbers = #tpu.dot_dimension_numbers<[1], [0], [0], [1], [0, 0, 1, 1], [], []>} : vector<2x160xbf16>, vector<160x256xbf16>, vector<2x256xf32> -> vector<2x256xf32>
    %c0_85 = arith.constant 0 : index
    %c0_86 = arith.constant 0 : index
    %158 = vector.load %arg5[%c0_85, %c0_86] : memref<1x256xf32, #tpu.memory_space<vmem>>, vector<1x256xf32>
    %159 = vector.broadcast %158 : vector<1x256xf32> to vector<2x256xf32>
    %160 = arith.addf %157, %159 : vector<2x256xf32>
    %161 = arith.negf %160 : vector<2x256xf32>
    %162 = math.exp %161 : vector<2x256xf32>
    %cst_87 = arith.constant 1.000000e+00 : f32
    %163 = vector.broadcast %cst_87 : f32 to vector<2x256xf32>
    %164 = arith.addf %163, %162 : vector<2x256xf32>
    %165 = arith.divf %163, %164 : vector<2x256xf32>
    %166 = vector.extract_strided_slice %165 {offsets = [0, 0], sizes = [2, 128], strides = [1, 1]} : vector<2x256xf32> to vector<2x128xf32>
    %167 = vector.extract_strided_slice %165 {offsets = [0, 128], sizes = [2, 128], strides = [1, 1]} : vector<2x256xf32> to vector<2x128xf32>
    %168 = arith.mulf %166, %109 : vector<2x128xf32>
    %169 = tpu.concatenate %153, %168 in 1 : vector<2x32xf32>, vector<2x128xf32> -> vector<2x160xf32>
    %170 = arith.truncf %169 : vector<2x160xf32> to vector<2x160xbf16>
    %c0_88 = arith.constant 0 : index
    %c0_89 = arith.constant 0 : index
    %171 = vector.load %arg4[%c0_88, %c0_89] : memref<160x128xbf16, #tpu.memory_space<vmem>>, vector<160x128xbf16>
    %cst_90 = arith.constant dense<0.000000e+00> : vector<2x128xf32>
    %172 = tpu.matmul %170, %171, %cst_90 {dimension_numbers = #tpu.dot_dimension_numbers<[1], [0], [0], [1], [0, 0, 1, 1], [], []>} : vector<2x160xbf16>, vector<160x128xbf16>, vector<2x128xf32> -> vector<2x128xf32>
    %c0_91 = arith.constant 0 : index
    %c0_92 = arith.constant 0 : index
    %173 = vector.load %arg6[%c0_91, %c0_92] : memref<1x128xf32, #tpu.memory_space<vmem>>, vector<1x128xf32>
    %174 = vector.broadcast %173 : vector<1x128xf32> to vector<2x128xf32>
    %175 = arith.addf %172, %174 : vector<2x128xf32>
    %176 = math.tanh %175 : vector<2x128xf32>
    %177 = arith.mulf %167, %109 : vector<2x128xf32>
    %cst_93 = arith.constant 1.000000e+00 : f32
    %178 = vector.broadcast %cst_93 : f32 to vector<2x128xf32>
    %179 = arith.subf %178, %167 : vector<2x128xf32>
    %180 = arith.mulf %179, %176 : vector<2x128xf32>
    %181 = arith.addf %177, %180 : vector<2x128xf32>
    %182 = tpu.concatenate %181, %137 in 1 : vector<2x128xf32>, vector<2x128xf32> -> vector<2x256xf32>
    %183 = arith.truncf %182 : vector<2x256xf32> to vector<2x256xbf16>
    %c0_94 = arith.constant 0 : index
    %c0_95 = arith.constant 0 : index
    %184 = vector.load %arg7[%c0_94, %c0_95] : memref<256x256xbf16, #tpu.memory_space<vmem>>, vector<256x256xbf16>
    %cst_96 = arith.constant dense<0.000000e+00> : vector<2x256xf32>
    %185 = tpu.matmul %183, %184, %cst_96 {dimension_numbers = #tpu.dot_dimension_numbers<[1], [0], [0], [1], [0, 0, 1, 1], [], []>} : vector<2x256xbf16>, vector<256x256xbf16>, vector<2x256xf32> -> vector<2x256xf32>
    %c0_97 = arith.constant 0 : index
    %c0_98 = arith.constant 0 : index
    %186 = vector.load %arg9[%c0_97, %c0_98] : memref<1x256xf32, #tpu.memory_space<vmem>>, vector<1x256xf32>
    %187 = vector.broadcast %186 : vector<1x256xf32> to vector<2x256xf32>
    %188 = arith.addf %185, %187 : vector<2x256xf32>
    %189 = arith.negf %188 : vector<2x256xf32>
    %190 = math.exp %189 : vector<2x256xf32>
    %cst_99 = arith.constant 1.000000e+00 : f32
    %191 = vector.broadcast %cst_99 : f32 to vector<2x256xf32>
    %192 = arith.addf %191, %190 : vector<2x256xf32>
    %193 = arith.divf %191, %192 : vector<2x256xf32>
    %194 = vector.extract_strided_slice %193 {offsets = [0, 0], sizes = [2, 128], strides = [1, 1]} : vector<2x256xf32> to vector<2x128xf32>
    %195 = vector.extract_strided_slice %193 {offsets = [0, 128], sizes = [2, 128], strides = [1, 1]} : vector<2x256xf32> to vector<2x128xf32>
    %196 = arith.mulf %194, %137 : vector<2x128xf32>
    %197 = tpu.concatenate %181, %196 in 1 : vector<2x128xf32>, vector<2x128xf32> -> vector<2x256xf32>
    %198 = arith.truncf %197 : vector<2x256xf32> to vector<2x256xbf16>
    %c0_100 = arith.constant 0 : index
    %c0_101 = arith.constant 0 : index
    %199 = vector.load %arg8[%c0_100, %c0_101] : memref<256x128xbf16, #tpu.memory_space<vmem>>, vector<256x128xbf16>
    %cst_102 = arith.constant dense<0.000000e+00> : vector<2x128xf32>
    %200 = tpu.matmul %198, %199, %cst_102 {dimension_numbers = #tpu.dot_dimension_numbers<[1], [0], [0], [1], [0, 0, 1, 1], [], []>} : vector<2x256xbf16>, vector<256x128xbf16>, vector<2x128xf32> -> vector<2x128xf32>
    %c0_103 = arith.constant 0 : index
    %c0_104 = arith.constant 0 : index
    %201 = vector.load %arg10[%c0_103, %c0_104] : memref<1x128xf32, #tpu.memory_space<vmem>>, vector<1x128xf32>
    %202 = vector.broadcast %201 : vector<1x128xf32> to vector<2x128xf32>
    %203 = arith.addf %200, %202 : vector<2x128xf32>
    %204 = math.tanh %203 : vector<2x128xf32>
    %205 = arith.mulf %195, %137 : vector<2x128xf32>
    %cst_105 = arith.constant 1.000000e+00 : f32
    %206 = vector.broadcast %cst_105 : f32 to vector<2x128xf32>
    %207 = arith.subf %206, %195 : vector<2x128xf32>
    %208 = arith.mulf %207, %204 : vector<2x128xf32>
    %209 = arith.addf %205, %208 : vector<2x128xf32>
    %210 = arith.truncf %209 : vector<2x128xf32> to vector<2x128xbf16>
    %c0_106 = arith.constant 0 : index
    %c0_107 = arith.constant 0 : index
    %211 = vector.load %arg11[%c0_106, %c0_107] : memref<128x32xbf16, #tpu.memory_space<vmem>>, vector<128x32xbf16>
    %cst_108 = arith.constant dense<0.000000e+00> : vector<2x32xf32>
    %212 = tpu.matmul %210, %211, %cst_108 {dimension_numbers = #tpu.dot_dimension_numbers<[1], [0], [0], [1], [0, 0, 1, 1], [], []>} : vector<2x128xbf16>, vector<128x32xbf16>, vector<2x32xf32> -> vector<2x32xf32>
    %c0_109 = arith.constant 0 : index
    %c0_110 = arith.constant 0 : index
    %213 = vector.load %arg12[%c0_109, %c0_110] : memref<1x32xf32, #tpu.memory_space<vmem>>, vector<1x32xf32>
    %214 = vector.broadcast %213 : vector<1x32xf32> to vector<2x32xf32>
    %215 = arith.addf %212, %214 : vector<2x32xf32>
    %c3 = arith.constant 3 : index
    %c0_111 = arith.constant 0 : index
    %c0_112 = arith.constant 0 : index
    %216 = vector.load %arg13[%c3, %c0_111, %c0_112] : memref<8x2x32xf32, #tpu.memory_space<vmem>>, vector<1x2x32xf32>
    %217 = vector.shape_cast %216 : vector<1x2x32xf32> to vector<2x32xf32>
    %218 = vector.shape_cast %215 : vector<2x32xf32> to vector<1x2x32xf32>
    tpu.vector_store %arg13[%c3, %c0_111, %c0_112], %218 {strides = array<i32>} : memref<8x2x32xf32, #tpu.memory_space<vmem>>, vector<1x2x32xf32>,
    %c3_113 = arith.constant 3 : index
    %219 = memref.load %arg0[%c3_113] : memref<8xi32, #tpu.memory_space<smem>>
    %220 = vector.broadcast %219 : i32 to vector<2x32xi32>
    %c0_i32_114 = arith.constant 0 : i32
    %221 = vector.broadcast %c0_i32_114 : i32 to vector<2x32xi32>
    %222 = arith.cmpi sgt, %220, %221 : vector<2x32xi32>
    %c3_115 = arith.constant 3 : index
    %c0_116 = arith.constant 0 : index
    %c0_117 = arith.constant 0 : index
    %223 = vector.load %arg1[%c3_115, %c0_116, %c0_117] : memref<8x2x32xf32, #tpu.memory_space<vmem>>, vector<1x2x32xf32>
    %224 = vector.shape_cast %223 : vector<1x2x32xf32> to vector<2x32xf32>
    %225 = arith.select %222, %224, %215 : vector<2x32xi1>, vector<2x32xf32>
    %226 = tpu.concatenate %225, %181 in 1 : vector<2x32xf32>, vector<2x128xf32> -> vector<2x160xf32>
    %227 = arith.truncf %226 : vector<2x160xf32> to vector<2x160xbf16>
    %c0_118 = arith.constant 0 : index
    %c0_119 = arith.constant 0 : index
    %228 = vector.load %arg3[%c0_118, %c0_119] : memref<160x256xbf16, #tpu.memory_space<vmem>>, vector<160x256xbf16>
    %cst_120 = arith.constant dense<0.000000e+00> : vector<2x256xf32>
    %229 = tpu.matmul %227, %228, %cst_120 {dimension_numbers = #tpu.dot_dimension_numbers<[1], [0], [0], [1], [0, 0, 1, 1], [], []>} : vector<2x160xbf16>, vector<160x256xbf16>, vector<2x256xf32> -> vector<2x256xf32>
    %c0_121 = arith.constant 0 : index
    %c0_122 = arith.constant 0 : index
    %230 = vector.load %arg5[%c0_121, %c0_122] : memref<1x256xf32, #tpu.memory_space<vmem>>, vector<1x256xf32>
    %231 = vector.broadcast %230 : vector<1x256xf32> to vector<2x256xf32>
    %232 = arith.addf %229, %231 : vector<2x256xf32>
    %233 = arith.negf %232 : vector<2x256xf32>
    %234 = math.exp %233 : vector<2x256xf32>
    %cst_123 = arith.constant 1.000000e+00 : f32
    %235 = vector.broadcast %cst_123 : f32 to vector<2x256xf32>
    %236 = arith.addf %235, %234 : vector<2x256xf32>
    %237 = arith.divf %235, %236 : vector<2x256xf32>
    %238 = vector.extract_strided_slice %237 {offsets = [0, 0], sizes = [2, 128], strides = [1, 1]} : vector<2x256xf32> to vector<2x128xf32>
    %239 = vector.extract_strided_slice %237 {offsets = [0, 128], sizes = [2, 128], strides = [1, 1]} : vector<2x256xf32> to vector<2x128xf32>
    %240 = arith.mulf %238, %181 : vector<2x128xf32>
    %241 = tpu.concatenate %225, %240 in 1 : vector<2x32xf32>, vector<2x128xf32> -> vector<2x160xf32>
    %242 = arith.truncf %241 : vector<2x160xf32> to vector<2x160xbf16>
    %c0_124 = arith.constant 0 : index
    %c0_125 = arith.constant 0 : index
    %243 = vector.load %arg4[%c0_124, %c0_125] : memref<160x128xbf16, #tpu.memory_space<vmem>>, vector<160x128xbf16>
    %cst_126 = arith.constant dense<0.000000e+00> : vector<2x128xf32>
    %244 = tpu.matmul %242, %243, %cst_126 {dimension_numbers = #tpu.dot_dimension_numbers<[1], [0], [0], [1], [0, 0, 1, 1], [], []>} : vector<2x160xbf16>, vector<160x128xbf16>, vector<2x128xf32> -> vector<2x128xf32>
    %c0_127 = arith.constant 0 : index
    %c0_128 = arith.constant 0 : index
    %245 = vector.load %arg6[%c0_127, %c0_128] : memref<1x128xf32, #tpu.memory_space<vmem>>, vector<1x128xf32>
    %246 = vector.broadcast %245 : vector<1x128xf32> to vector<2x128xf32>
    %247 = arith.addf %244, %246 : vector<2x128xf32>
    %248 = math.tanh %247 : vector<2x128xf32>
    %249 = arith.mulf %239, %181 : vector<2x128xf32>
    %cst_129 = arith.constant 1.000000e+00 : f32
    %250 = vector.broadcast %cst_129 : f32 to vector<2x128xf32>
    %251 = arith.subf %250, %239 : vector<2x128xf32>
    %252 = arith.mulf %251, %248 : vector<2x128xf32>
    %253 = arith.addf %249, %252 : vector<2x128xf32>
    %254 = tpu.concatenate %253, %209 in 1 : vector<2x128xf32>, vector<2x128xf32> -> vector<2x256xf32>
    %255 = arith.truncf %254 : vector<2x256xf32> to vector<2x256xbf16>
    %c0_130 = arith.constant 0 : index
    %c0_131 = arith.constant 0 : index
    %256 = vector.load %arg7[%c0_130, %c0_131] : memref<256x256xbf16, #tpu.memory_space<vmem>>, vector<256x256xbf16>
    %cst_132 = arith.constant dense<0.000000e+00> : vector<2x256xf32>
    %257 = tpu.matmul %255, %256, %cst_132 {dimension_numbers = #tpu.dot_dimension_numbers<[1], [0], [0], [1], [0, 0, 1, 1], [], []>} : vector<2x256xbf16>, vector<256x256xbf16>, vector<2x256xf32> -> vector<2x256xf32>
    %c0_133 = arith.constant 0 : index
    %c0_134 = arith.constant 0 : index
    %258 = vector.load %arg9[%c0_133, %c0_134] : memref<1x256xf32, #tpu.memory_space<vmem>>, vector<1x256xf32>
    %259 = vector.broadcast %258 : vector<1x256xf32> to vector<2x256xf32>
    %260 = arith.addf %257, %259 : vector<2x256xf32>
    %261 = arith.negf %260 : vector<2x256xf32>
    %262 = math.exp %261 : vector<2x256xf32>
    %cst_135 = arith.constant 1.000000e+00 : f32
    %263 = vector.broadcast %cst_135 : f32 to vector<2x256xf32>
    %264 = arith.addf %263, %262 : vector<2x256xf32>
    %265 = arith.divf %263, %264 : vector<2x256xf32>
    %266 = vector.extract_strided_slice %265 {offsets = [0, 0], sizes = [2, 128], strides = [1, 1]} : vector<2x256xf32> to vector<2x128xf32>
    %267 = vector.extract_strided_slice %265 {offsets = [0, 128], sizes = [2, 128], strides = [1, 1]} : vector<2x256xf32> to vector<2x128xf32>
    %268 = arith.mulf %266, %209 : vector<2x128xf32>
    %269 = tpu.concatenate %253, %268 in 1 : vector<2x128xf32>, vector<2x128xf32> -> vector<2x256xf32>
    %270 = arith.truncf %269 : vector<2x256xf32> to vector<2x256xbf16>
    %c0_136 = arith.constant 0 : index
    %c0_137 = arith.constant 0 : index
    %271 = vector.load %arg8[%c0_136, %c0_137] : memref<256x128xbf16, #tpu.memory_space<vmem>>, vector<256x128xbf16>
    %cst_138 = arith.constant dense<0.000000e+00> : vector<2x128xf32>
    %272 = tpu.matmul %270, %271, %cst_138 {dimension_numbers = #tpu.dot_dimension_numbers<[1], [0], [0], [1], [0, 0, 1, 1], [], []>} : vector<2x256xbf16>, vector<256x128xbf16>, vector<2x128xf32> -> vector<2x128xf32>
    %c0_139 = arith.constant 0 : index
    %c0_140 = arith.constant 0 : index
    %273 = vector.load %arg10[%c0_139, %c0_140] : memref<1x128xf32, #tpu.memory_space<vmem>>, vector<1x128xf32>
    %274 = vector.broadcast %273 : vector<1x128xf32> to vector<2x128xf32>
    %275 = arith.addf %272, %274 : vector<2x128xf32>
    %276 = math.tanh %275 : vector<2x128xf32>
    %277 = arith.mulf %267, %209 : vector<2x128xf32>
    %cst_141 = arith.constant 1.000000e+00 : f32
    %278 = vector.broadcast %cst_141 : f32 to vector<2x128xf32>
    %279 = arith.subf %278, %267 : vector<2x128xf32>
    %280 = arith.mulf %279, %276 : vector<2x128xf32>
    %281 = arith.addf %277, %280 : vector<2x128xf32>
    %282 = arith.truncf %281 : vector<2x128xf32> to vector<2x128xbf16>
    %c0_142 = arith.constant 0 : index
    %c0_143 = arith.constant 0 : index
    %283 = vector.load %arg11[%c0_142, %c0_143] : memref<128x32xbf16, #tpu.memory_space<vmem>>, vector<128x32xbf16>
    %cst_144 = arith.constant dense<0.000000e+00> : vector<2x32xf32>
    %284 = tpu.matmul %282, %283, %cst_144 {dimension_numbers = #tpu.dot_dimension_numbers<[1], [0], [0], [1], [0, 0, 1, 1], [], []>} : vector<2x128xbf16>, vector<128x32xbf16>, vector<2x32xf32> -> vector<2x32xf32>
    %c0_145 = arith.constant 0 : index
    %c0_146 = arith.constant 0 : index
    %285 = vector.load %arg12[%c0_145, %c0_146] : memref<1x32xf32, #tpu.memory_space<vmem>>, vector<1x32xf32>
    %286 = vector.broadcast %285 : vector<1x32xf32> to vector<2x32xf32>
    %287 = arith.addf %284, %286 : vector<2x32xf32>
    %c4 = arith.constant 4 : index
    %c0_147 = arith.constant 0 : index
    %c0_148 = arith.constant 0 : index
    %288 = vector.load %arg13[%c4, %c0_147, %c0_148] : memref<8x2x32xf32, #tpu.memory_space<vmem>>, vector<1x2x32xf32>
    %289 = vector.shape_cast %288 : vector<1x2x32xf32> to vector<2x32xf32>
    %290 = vector.shape_cast %287 : vector<2x32xf32> to vector<1x2x32xf32>
    tpu.vector_store %arg13[%c4, %c0_147, %c0_148], %290 {strides = array<i32>} : memref<8x2x32xf32, #tpu.memory_space<vmem>>, vector<1x2x32xf32>,
    %c4_149 = arith.constant 4 : index
    %291 = memref.load %arg0[%c4_149] : memref<8xi32, #tpu.memory_space<smem>>
    %292 = vector.broadcast %291 : i32 to vector<2x32xi32>
    %c0_i32_150 = arith.constant 0 : i32
    %293 = vector.broadcast %c0_i32_150 : i32 to vector<2x32xi32>
    %294 = arith.cmpi sgt, %292, %293 : vector<2x32xi32>
    %c4_151 = arith.constant 4 : index
    %c0_152 = arith.constant 0 : index
    %c0_153 = arith.constant 0 : index
    %295 = vector.load %arg1[%c4_151, %c0_152, %c0_153] : memref<8x2x32xf32, #tpu.memory_space<vmem>>, vector<1x2x32xf32>
    %296 = vector.shape_cast %295 : vector<1x2x32xf32> to vector<2x32xf32>
    %297 = arith.select %294, %296, %287 : vector<2x32xi1>, vector<2x32xf32>
    %298 = tpu.concatenate %297, %253 in 1 : vector<2x32xf32>, vector<2x128xf32> -> vector<2x160xf32>
    %299 = arith.truncf %298 : vector<2x160xf32> to vector<2x160xbf16>
    %c0_154 = arith.constant 0 : index
    %c0_155 = arith.constant 0 : index
    %300 = vector.load %arg3[%c0_154, %c0_155] : memref<160x256xbf16, #tpu.memory_space<vmem>>, vector<160x256xbf16>
    %cst_156 = arith.constant dense<0.000000e+00> : vector<2x256xf32>
    %301 = tpu.matmul %299, %300, %cst_156 {dimension_numbers = #tpu.dot_dimension_numbers<[1], [0], [0], [1], [0, 0, 1, 1], [], []>} : vector<2x160xbf16>, vector<160x256xbf16>, vector<2x256xf32> -> vector<2x256xf32>
    %c0_157 = arith.constant 0 : index
    %c0_158 = arith.constant 0 : index
    %302 = vector.load %arg5[%c0_157, %c0_158] : memref<1x256xf32, #tpu.memory_space<vmem>>, vector<1x256xf32>
    %303 = vector.broadcast %302 : vector<1x256xf32> to vector<2x256xf32>
    %304 = arith.addf %301, %303 : vector<2x256xf32>
    %305 = arith.negf %304 : vector<2x256xf32>
    %306 = math.exp %305 : vector<2x256xf32>
    %cst_159 = arith.constant 1.000000e+00 : f32
    %307 = vector.broadcast %cst_159 : f32 to vector<2x256xf32>
    %308 = arith.addf %307, %306 : vector<2x256xf32>
    %309 = arith.divf %307, %308 : vector<2x256xf32>
    %310 = vector.extract_strided_slice %309 {offsets = [0, 0], sizes = [2, 128], strides = [1, 1]} : vector<2x256xf32> to vector<2x128xf32>
    %311 = vector.extract_strided_slice %309 {offsets = [0, 128], sizes = [2, 128], strides = [1, 1]} : vector<2x256xf32> to vector<2x128xf32>
    %312 = arith.mulf %310, %253 : vector<2x128xf32>
    %313 = tpu.concatenate %297, %312 in 1 : vector<2x32xf32>, vector<2x128xf32> -> vector<2x160xf32>
    %314 = arith.truncf %313 : vector<2x160xf32> to vector<2x160xbf16>
    %c0_160 = arith.constant 0 : index
    %c0_161 = arith.constant 0 : index
    %315 = vector.load %arg4[%c0_160, %c0_161] : memref<160x128xbf16, #tpu.memory_space<vmem>>, vector<160x128xbf16>
    %cst_162 = arith.constant dense<0.000000e+00> : vector<2x128xf32>
    %316 = tpu.matmul %314, %315, %cst_162 {dimension_numbers = #tpu.dot_dimension_numbers<[1], [0], [0], [1], [0, 0, 1, 1], [], []>} : vector<2x160xbf16>, vector<160x128xbf16>, vector<2x128xf32> -> vector<2x128xf32>
    %c0_163 = arith.constant 0 : index
    %c0_164 = arith.constant 0 : index
    %317 = vector.load %arg6[%c0_163, %c0_164] : memref<1x128xf32, #tpu.memory_space<vmem>>, vector<1x128xf32>
    %318 = vector.broadcast %317 : vector<1x128xf32> to vector<2x128xf32>
    %319 = arith.addf %316, %318 : vector<2x128xf32>
    %320 = math.tanh %319 : vector<2x128xf32>
    %321 = arith.mulf %311, %253 : vector<2x128xf32>
    %cst_165 = arith.constant 1.000000e+00 : f32
    %322 = vector.broadcast %cst_165 : f32 to vector<2x128xf32>
    %323 = arith.subf %322, %311 : vector<2x128xf32>
    %324 = arith.mulf %323, %320 : vector<2x128xf32>
    %325 = arith.addf %321, %324 : vector<2x128xf32>
    %326 = tpu.concatenate %325, %281 in 1 : vector<2x128xf32>, vector<2x128xf32> -> vector<2x256xf32>
    %327 = arith.truncf %326 : vector<2x256xf32> to vector<2x256xbf16>
    %c0_166 = arith.constant 0 : index
    %c0_167 = arith.constant 0 : index
    %328 = vector.load %arg7[%c0_166, %c0_167] : memref<256x256xbf16, #tpu.memory_space<vmem>>, vector<256x256xbf16>
    %cst_168 = arith.constant dense<0.000000e+00> : vector<2x256xf32>
    %329 = tpu.matmul %327, %328, %cst_168 {dimension_numbers = #tpu.dot_dimension_numbers<[1], [0], [0], [1], [0, 0, 1, 1], [], []>} : vector<2x256xbf16>, vector<256x256xbf16>, vector<2x256xf32> -> vector<2x256xf32>
    %c0_169 = arith.constant 0 : index
    %c0_170 = arith.constant 0 : index
    %330 = vector.load %arg9[%c0_169, %c0_170] : memref<1x256xf32, #tpu.memory_space<vmem>>, vector<1x256xf32>
    %331 = vector.broadcast %330 : vector<1x256xf32> to vector<2x256xf32>
    %332 = arith.addf %329, %331 : vector<2x256xf32>
    %333 = arith.negf %332 : vector<2x256xf32>
    %334 = math.exp %333 : vector<2x256xf32>
    %cst_171 = arith.constant 1.000000e+00 : f32
    %335 = vector.broadcast %cst_171 : f32 to vector<2x256xf32>
    %336 = arith.addf %335, %334 : vector<2x256xf32>
    %337 = arith.divf %335, %336 : vector<2x256xf32>
    %338 = vector.extract_strided_slice %337 {offsets = [0, 0], sizes = [2, 128], strides = [1, 1]} : vector<2x256xf32> to vector<2x128xf32>
    %339 = vector.extract_strided_slice %337 {offsets = [0, 128], sizes = [2, 128], strides = [1, 1]} : vector<2x256xf32> to vector<2x128xf32>
    %340 = arith.mulf %338, %281 : vector<2x128xf32>
    %341 = tpu.concatenate %325, %340 in 1 : vector<2x128xf32>, vector<2x128xf32> -> vector<2x256xf32>
    %342 = arith.truncf %341 : vector<2x256xf32> to vector<2x256xbf16>
    %c0_172 = arith.constant 0 : index
    %c0_173 = arith.constant 0 : index
    %343 = vector.load %arg8[%c0_172, %c0_173] : memref<256x128xbf16, #tpu.memory_space<vmem>>, vector<256x128xbf16>
    %cst_174 = arith.constant dense<0.000000e+00> : vector<2x128xf32>
    %344 = tpu.matmul %342, %343, %cst_174 {dimension_numbers = #tpu.dot_dimension_numbers<[1], [0], [0], [1], [0, 0, 1, 1], [], []>} : vector<2x256xbf16>, vector<256x128xbf16>, vector<2x128xf32> -> vector<2x128xf32>
    %c0_175 = arith.constant 0 : index
    %c0_176 = arith.constant 0 : index
    %345 = vector.load %arg10[%c0_175, %c0_176] : memref<1x128xf32, #tpu.memory_space<vmem>>, vector<1x128xf32>
    %346 = vector.broadcast %345 : vector<1x128xf32> to vector<2x128xf32>
    %347 = arith.addf %344, %346 : vector<2x128xf32>
    %348 = math.tanh %347 : vector<2x128xf32>
    %349 = arith.mulf %339, %281 : vector<2x128xf32>
    %cst_177 = arith.constant 1.000000e+00 : f32
    %350 = vector.broadcast %cst_177 : f32 to vector<2x128xf32>
    %351 = arith.subf %350, %339 : vector<2x128xf32>
    %352 = arith.mulf %351, %348 : vector<2x128xf32>
    %353 = arith.addf %349, %352 : vector<2x128xf32>
    %354 = arith.truncf %353 : vector<2x128xf32> to vector<2x128xbf16>
    %c0_178 = arith.constant 0 : index
    %c0_179 = arith.constant 0 : index
    %355 = vector.load %arg11[%c0_178, %c0_179] : memref<128x32xbf16, #tpu.memory_space<vmem>>, vector<128x32xbf16>
    %cst_180 = arith.constant dense<0.000000e+00> : vector<2x32xf32>
    %356 = tpu.matmul %354, %355, %cst_180 {dimension_numbers = #tpu.dot_dimension_numbers<[1], [0], [0], [1], [0, 0, 1, 1], [], []>} : vector<2x128xbf16>, vector<128x32xbf16>, vector<2x32xf32> -> vector<2x32xf32>
    %c0_181 = arith.constant 0 : index
    %c0_182 = arith.constant 0 : index
    %357 = vector.load %arg12[%c0_181, %c0_182] : memref<1x32xf32, #tpu.memory_space<vmem>>, vector<1x32xf32>
    %358 = vector.broadcast %357 : vector<1x32xf32> to vector<2x32xf32>
    %359 = arith.addf %356, %358 : vector<2x32xf32>
    %c5 = arith.constant 5 : index
    %c0_183 = arith.constant 0 : index
    %c0_184 = arith.constant 0 : index
    %360 = vector.load %arg13[%c5, %c0_183, %c0_184] : memref<8x2x32xf32, #tpu.memory_space<vmem>>, vector<1x2x32xf32>
    %361 = vector.shape_cast %360 : vector<1x2x32xf32> to vector<2x32xf32>
    %362 = vector.shape_cast %359 : vector<2x32xf32> to vector<1x2x32xf32>
    tpu.vector_store %arg13[%c5, %c0_183, %c0_184], %362 {strides = array<i32>} : memref<8x2x32xf32, #tpu.memory_space<vmem>>, vector<1x2x32xf32>,
    %c5_185 = arith.constant 5 : index
    %363 = memref.load %arg0[%c5_185] : memref<8xi32, #tpu.memory_space<smem>>
    %364 = vector.broadcast %363 : i32 to vector<2x32xi32>
    %c0_i32_186 = arith.constant 0 : i32
    %365 = vector.broadcast %c0_i32_186 : i32 to vector<2x32xi32>
    %366 = arith.cmpi sgt, %364, %365 : vector<2x32xi32>
    %c5_187 = arith.constant 5 : index
    %c0_188 = arith.constant 0 : index
    %c0_189 = arith.constant 0 : index
    %367 = vector.load %arg1[%c5_187, %c0_188, %c0_189] : memref<8x2x32xf32, #tpu.memory_space<vmem>>, vector<1x2x32xf32>
    %368 = vector.shape_cast %367 : vector<1x2x32xf32> to vector<2x32xf32>
    %369 = arith.select %366, %368, %359 : vector<2x32xi1>, vector<2x32xf32>
    %370 = tpu.concatenate %369, %325 in 1 : vector<2x32xf32>, vector<2x128xf32> -> vector<2x160xf32>
    %371 = arith.truncf %370 : vector<2x160xf32> to vector<2x160xbf16>
    %c0_190 = arith.constant 0 : index
    %c0_191 = arith.constant 0 : index
    %372 = vector.load %arg3[%c0_190, %c0_191] : memref<160x256xbf16, #tpu.memory_space<vmem>>, vector<160x256xbf16>
    %cst_192 = arith.constant dense<0.000000e+00> : vector<2x256xf32>
    %373 = tpu.matmul %371, %372, %cst_192 {dimension_numbers = #tpu.dot_dimension_numbers<[1], [0], [0], [1], [0, 0, 1, 1], [], []>} : vector<2x160xbf16>, vector<160x256xbf16>, vector<2x256xf32> -> vector<2x256xf32>
    %c0_193 = arith.constant 0 : index
    %c0_194 = arith.constant 0 : index
    %374 = vector.load %arg5[%c0_193, %c0_194] : memref<1x256xf32, #tpu.memory_space<vmem>>, vector<1x256xf32>
    %375 = vector.broadcast %374 : vector<1x256xf32> to vector<2x256xf32>
    %376 = arith.addf %373, %375 : vector<2x256xf32>
    %377 = arith.negf %376 : vector<2x256xf32>
    %378 = math.exp %377 : vector<2x256xf32>
    %cst_195 = arith.constant 1.000000e+00 : f32
    %379 = vector.broadcast %cst_195 : f32 to vector<2x256xf32>
    %380 = arith.addf %379, %378 : vector<2x256xf32>
    %381 = arith.divf %379, %380 : vector<2x256xf32>
    %382 = vector.extract_strided_slice %381 {offsets = [0, 0], sizes = [2, 128], strides = [1, 1]} : vector<2x256xf32> to vector<2x128xf32>
    %383 = vector.extract_strided_slice %381 {offsets = [0, 128], sizes = [2, 128], strides = [1, 1]} : vector<2x256xf32> to vector<2x128xf32>
    %384 = arith.mulf %382, %325 : vector<2x128xf32>
    %385 = tpu.concatenate %369, %384 in 1 : vector<2x32xf32>, vector<2x128xf32> -> vector<2x160xf32>
    %386 = arith.truncf %385 : vector<2x160xf32> to vector<2x160xbf16>
    %c0_196 = arith.constant 0 : index
    %c0_197 = arith.constant 0 : index
    %387 = vector.load %arg4[%c0_196, %c0_197] : memref<160x128xbf16, #tpu.memory_space<vmem>>, vector<160x128xbf16>
    %cst_198 = arith.constant dense<0.000000e+00> : vector<2x128xf32>
    %388 = tpu.matmul %386, %387, %cst_198 {dimension_numbers = #tpu.dot_dimension_numbers<[1], [0], [0], [1], [0, 0, 1, 1], [], []>} : vector<2x160xbf16>, vector<160x128xbf16>, vector<2x128xf32> -> vector<2x128xf32>
    %c0_199 = arith.constant 0 : index
    %c0_200 = arith.constant 0 : index
    %389 = vector.load %arg6[%c0_199, %c0_200] : memref<1x128xf32, #tpu.memory_space<vmem>>, vector<1x128xf32>
    %390 = vector.broadcast %389 : vector<1x128xf32> to vector<2x128xf32>
    %391 = arith.addf %388, %390 : vector<2x128xf32>
    %392 = math.tanh %391 : vector<2x128xf32>
    %393 = arith.mulf %383, %325 : vector<2x128xf32>
    %cst_201 = arith.constant 1.000000e+00 : f32
    %394 = vector.broadcast %cst_201 : f32 to vector<2x128xf32>
    %395 = arith.subf %394, %383 : vector<2x128xf32>
    %396 = arith.mulf %395, %392 : vector<2x128xf32>
    %397 = arith.addf %393, %396 : vector<2x128xf32>
    %398 = tpu.concatenate %397, %353 in 1 : vector<2x128xf32>, vector<2x128xf32> -> vector<2x256xf32>
    %399 = arith.truncf %398 : vector<2x256xf32> to vector<2x256xbf16>
    %c0_202 = arith.constant 0 : index
    %c0_203 = arith.constant 0 : index
    %400 = vector.load %arg7[%c0_202, %c0_203] : memref<256x256xbf16, #tpu.memory_space<vmem>>, vector<256x256xbf16>
    %cst_204 = arith.constant dense<0.000000e+00> : vector<2x256xf32>
    %401 = tpu.matmul %399, %400, %cst_204 {dimension_numbers = #tpu.dot_dimension_numbers<[1], [0], [0], [1], [0, 0, 1, 1], [], []>} : vector<2x256xbf16>, vector<256x256xbf16>, vector<2x256xf32> -> vector<2x256xf32>
    %c0_205 = arith.constant 0 : index
    %c0_206 = arith.constant 0 : index
    %402 = vector.load %arg9[%c0_205, %c0_206] : memref<1x256xf32, #tpu.memory_space<vmem>>, vector<1x256xf32>
    %403 = vector.broadcast %402 : vector<1x256xf32> to vector<2x256xf32>
    %404 = arith.addf %401, %403 : vector<2x256xf32>
    %405 = arith.negf %404 : vector<2x256xf32>
    %406 = math.exp %405 : vector<2x256xf32>
    %cst_207 = arith.constant 1.000000e+00 : f32
    %407 = vector.broadcast %cst_207 : f32 to vector<2x256xf32>
    %408 = arith.addf %407, %406 : vector<2x256xf32>
    %409 = arith.divf %407, %408 : vector<2x256xf32>
    %410 = vector.extract_strided_slice %409 {offsets = [0, 0], sizes = [2, 128], strides = [1, 1]} : vector<2x256xf32> to vector<2x128xf32>
    %411 = vector.extract_strided_slice %409 {offsets = [0, 128], sizes = [2, 128], strides = [1, 1]} : vector<2x256xf32> to vector<2x128xf32>
    %412 = arith.mulf %410, %353 : vector<2x128xf32>
    %413 = tpu.concatenate %397, %412 in 1 : vector<2x128xf32>, vector<2x128xf32> -> vector<2x256xf32>
    %414 = arith.truncf %413 : vector<2x256xf32> to vector<2x256xbf16>
    %c0_208 = arith.constant 0 : index
    %c0_209 = arith.constant 0 : index
    %415 = vector.load %arg8[%c0_208, %c0_209] : memref<256x128xbf16, #tpu.memory_space<vmem>>, vector<256x128xbf16>
    %cst_210 = arith.constant dense<0.000000e+00> : vector<2x128xf32>
    %416 = tpu.matmul %414, %415, %cst_210 {dimension_numbers = #tpu.dot_dimension_numbers<[1], [0], [0], [1], [0, 0, 1, 1], [], []>} : vector<2x256xbf16>, vector<256x128xbf16>, vector<2x128xf32> -> vector<2x128xf32>
    %c0_211 = arith.constant 0 : index
    %c0_212 = arith.constant 0 : index
    %417 = vector.load %arg10[%c0_211, %c0_212] : memref<1x128xf32, #tpu.memory_space<vmem>>, vector<1x128xf32>
    %418 = vector.broadcast %417 : vector<1x128xf32> to vector<2x128xf32>
    %419 = arith.addf %416, %418 : vector<2x128xf32>
    %420 = math.tanh %419 : vector<2x128xf32>
    %421 = arith.mulf %411, %353 : vector<2x128xf32>
    %cst_213 = arith.constant 1.000000e+00 : f32
    %422 = vector.broadcast %cst_213 : f32 to vector<2x128xf32>
    %423 = arith.subf %422, %411 : vector<2x128xf32>
    %424 = arith.mulf %423, %420 : vector<2x128xf32>
    %425 = arith.addf %421, %424 : vector<2x128xf32>
    %426 = arith.truncf %425 : vector<2x128xf32> to vector<2x128xbf16>
    %c0_214 = arith.constant 0 : index
    %c0_215 = arith.constant 0 : index
    %427 = vector.load %arg11[%c0_214, %c0_215] : memref<128x32xbf16, #tpu.memory_space<vmem>>, vector<128x32xbf16>
    %cst_216 = arith.constant dense<0.000000e+00> : vector<2x32xf32>
    %428 = tpu.matmul %426, %427, %cst_216 {dimension_numbers = #tpu.dot_dimension_numbers<[1], [0], [0], [1], [0, 0, 1, 1], [], []>} : vector<2x128xbf16>, vector<128x32xbf16>, vector<2x32xf32> -> vector<2x32xf32>
    %c0_217 = arith.constant 0 : index
    %c0_218 = arith.constant 0 : index
    %429 = vector.load %arg12[%c0_217, %c0_218] : memref<1x32xf32, #tpu.memory_space<vmem>>, vector<1x32xf32>
    %430 = vector.broadcast %429 : vector<1x32xf32> to vector<2x32xf32>
    %431 = arith.addf %428, %430 : vector<2x32xf32>
    %c6 = arith.constant 6 : index
    %c0_219 = arith.constant 0 : index
    %c0_220 = arith.constant 0 : index
    %432 = vector.load %arg13[%c6, %c0_219, %c0_220] : memref<8x2x32xf32, #tpu.memory_space<vmem>>, vector<1x2x32xf32>
    %433 = vector.shape_cast %432 : vector<1x2x32xf32> to vector<2x32xf32>
    %434 = vector.shape_cast %431 : vector<2x32xf32> to vector<1x2x32xf32>
    tpu.vector_store %arg13[%c6, %c0_219, %c0_220], %434 {strides = array<i32>} : memref<8x2x32xf32, #tpu.memory_space<vmem>>, vector<1x2x32xf32>,
    %c6_221 = arith.constant 6 : index
    %435 = memref.load %arg0[%c6_221] : memref<8xi32, #tpu.memory_space<smem>>
    %436 = vector.broadcast %435 : i32 to vector<2x32xi32>
    %c0_i32_222 = arith.constant 0 : i32
    %437 = vector.broadcast %c0_i32_222 : i32 to vector<2x32xi32>
    %438 = arith.cmpi sgt, %436, %437 : vector<2x32xi32>
    %c6_223 = arith.constant 6 : index
    %c0_224 = arith.constant 0 : index
    %c0_225 = arith.constant 0 : index
    %439 = vector.load %arg1[%c6_223, %c0_224, %c0_225] : memref<8x2x32xf32, #tpu.memory_space<vmem>>, vector<1x2x32xf32>
    %440 = vector.shape_cast %439 : vector<1x2x32xf32> to vector<2x32xf32>
    %441 = arith.select %438, %440, %431 : vector<2x32xi1>, vector<2x32xf32>
    %442 = tpu.concatenate %441, %397 in 1 : vector<2x32xf32>, vector<2x128xf32> -> vector<2x160xf32>
    %443 = arith.truncf %442 : vector<2x160xf32> to vector<2x160xbf16>
    %c0_226 = arith.constant 0 : index
    %c0_227 = arith.constant 0 : index
    %444 = vector.load %arg3[%c0_226, %c0_227] : memref<160x256xbf16, #tpu.memory_space<vmem>>, vector<160x256xbf16>
    %cst_228 = arith.constant dense<0.000000e+00> : vector<2x256xf32>
    %445 = tpu.matmul %443, %444, %cst_228 {dimension_numbers = #tpu.dot_dimension_numbers<[1], [0], [0], [1], [0, 0, 1, 1], [], []>} : vector<2x160xbf16>, vector<160x256xbf16>, vector<2x256xf32> -> vector<2x256xf32>
    %c0_229 = arith.constant 0 : index
    %c0_230 = arith.constant 0 : index
    %446 = vector.load %arg5[%c0_229, %c0_230] : memref<1x256xf32, #tpu.memory_space<vmem>>, vector<1x256xf32>
    %447 = vector.broadcast %446 : vector<1x256xf32> to vector<2x256xf32>
    %448 = arith.addf %445, %447 : vector<2x256xf32>
    %449 = arith.negf %448 : vector<2x256xf32>
    %450 = math.exp %449 : vector<2x256xf32>
    %cst_231 = arith.constant 1.000000e+00 : f32
    %451 = vector.broadcast %cst_231 : f32 to vector<2x256xf32>
    %452 = arith.addf %451, %450 : vector<2x256xf32>
    %453 = arith.divf %451, %452 : vector<2x256xf32>
    %454 = vector.extract_strided_slice %453 {offsets = [0, 0], sizes = [2, 128], strides = [1, 1]} : vector<2x256xf32> to vector<2x128xf32>
    %455 = vector.extract_strided_slice %453 {offsets = [0, 128], sizes = [2, 128], strides = [1, 1]} : vector<2x256xf32> to vector<2x128xf32>
    %456 = arith.mulf %454, %397 : vector<2x128xf32>
    %457 = tpu.concatenate %441, %456 in 1 : vector<2x32xf32>, vector<2x128xf32> -> vector<2x160xf32>
    %458 = arith.truncf %457 : vector<2x160xf32> to vector<2x160xbf16>
    %c0_232 = arith.constant 0 : index
    %c0_233 = arith.constant 0 : index
    %459 = vector.load %arg4[%c0_232, %c0_233] : memref<160x128xbf16, #tpu.memory_space<vmem>>, vector<160x128xbf16>
    %cst_234 = arith.constant dense<0.000000e+00> : vector<2x128xf32>
    %460 = tpu.matmul %458, %459, %cst_234 {dimension_numbers = #tpu.dot_dimension_numbers<[1], [0], [0], [1], [0, 0, 1, 1], [], []>} : vector<2x160xbf16>, vector<160x128xbf16>, vector<2x128xf32> -> vector<2x128xf32>
    %c0_235 = arith.constant 0 : index
    %c0_236 = arith.constant 0 : index
    %461 = vector.load %arg6[%c0_235, %c0_236] : memref<1x128xf32, #tpu.memory_space<vmem>>, vector<1x128xf32>
    %462 = vector.broadcast %461 : vector<1x128xf32> to vector<2x128xf32>
    %463 = arith.addf %460, %462 : vector<2x128xf32>
    %464 = math.tanh %463 : vector<2x128xf32>
    %465 = arith.mulf %455, %397 : vector<2x128xf32>
    %cst_237 = arith.constant 1.000000e+00 : f32
    %466 = vector.broadcast %cst_237 : f32 to vector<2x128xf32>
    %467 = arith.subf %466, %455 : vector<2x128xf32>
    %468 = arith.mulf %467, %464 : vector<2x128xf32>
    %469 = arith.addf %465, %468 : vector<2x128xf32>
    %470 = tpu.concatenate %469, %425 in 1 : vector<2x128xf32>, vector<2x128xf32> -> vector<2x256xf32>
    %471 = arith.truncf %470 : vector<2x256xf32> to vector<2x256xbf16>
    %c0_238 = arith.constant 0 : index
    %c0_239 = arith.constant 0 : index
    %472 = vector.load %arg7[%c0_238, %c0_239] : memref<256x256xbf16, #tpu.memory_space<vmem>>, vector<256x256xbf16>
    %cst_240 = arith.constant dense<0.000000e+00> : vector<2x256xf32>
    %473 = tpu.matmul %471, %472, %cst_240 {dimension_numbers = #tpu.dot_dimension_numbers<[1], [0], [0], [1], [0, 0, 1, 1], [], []>} : vector<2x256xbf16>, vector<256x256xbf16>, vector<2x256xf32> -> vector<2x256xf32>
    %c0_241 = arith.constant 0 : index
    %c0_242 = arith.constant 0 : index
    %474 = vector.load %arg9[%c0_241, %c0_242] : memref<1x256xf32, #tpu.memory_space<vmem>>, vector<1x256xf32>
    %475 = vector.broadcast %474 : vector<1x256xf32> to vector<2x256xf32>
    %476 = arith.addf %473, %475 : vector<2x256xf32>
    %477 = arith.negf %476 : vector<2x256xf32>
    %478 = math.exp %477 : vector<2x256xf32>
    %cst_243 = arith.constant 1.000000e+00 : f32
    %479 = vector.broadcast %cst_243 : f32 to vector<2x256xf32>
    %480 = arith.addf %479, %478 : vector<2x256xf32>
    %481 = arith.divf %479, %480 : vector<2x256xf32>
    %482 = vector.extract_strided_slice %481 {offsets = [0, 0], sizes = [2, 128], strides = [1, 1]} : vector<2x256xf32> to vector<2x128xf32>
    %483 = vector.extract_strided_slice %481 {offsets = [0, 128], sizes = [2, 128], strides = [1, 1]} : vector<2x256xf32> to vector<2x128xf32>
    %484 = arith.mulf %482, %425 : vector<2x128xf32>
    %485 = tpu.concatenate %469, %484 in 1 : vector<2x128xf32>, vector<2x128xf32> -> vector<2x256xf32>
    %486 = arith.truncf %485 : vector<2x256xf32> to vector<2x256xbf16>
    %c0_244 = arith.constant 0 : index
    %c0_245 = arith.constant 0 : index
    %487 = vector.load %arg8[%c0_244, %c0_245] : memref<256x128xbf16, #tpu.memory_space<vmem>>, vector<256x128xbf16>
    %cst_246 = arith.constant dense<0.000000e+00> : vector<2x128xf32>
    %488 = tpu.matmul %486, %487, %cst_246 {dimension_numbers = #tpu.dot_dimension_numbers<[1], [0], [0], [1], [0, 0, 1, 1], [], []>} : vector<2x256xbf16>, vector<256x128xbf16>, vector<2x128xf32> -> vector<2x128xf32>
    %c0_247 = arith.constant 0 : index
    %c0_248 = arith.constant 0 : index
    %489 = vector.load %arg10[%c0_247, %c0_248] : memref<1x128xf32, #tpu.memory_space<vmem>>, vector<1x128xf32>
    %490 = vector.broadcast %489 : vector<1x128xf32> to vector<2x128xf32>
    %491 = arith.addf %488, %490 : vector<2x128xf32>
    %492 = math.tanh %491 : vector<2x128xf32>
    %493 = arith.mulf %483, %425 : vector<2x128xf32>
    %cst_249 = arith.constant 1.000000e+00 : f32
    %494 = vector.broadcast %cst_249 : f32 to vector<2x128xf32>
    %495 = arith.subf %494, %483 : vector<2x128xf32>
    %496 = arith.mulf %495, %492 : vector<2x128xf32>
    %497 = arith.addf %493, %496 : vector<2x128xf32>
    %498 = arith.truncf %497 : vector<2x128xf32> to vector<2x128xbf16>
    %c0_250 = arith.constant 0 : index
    %c0_251 = arith.constant 0 : index
    %499 = vector.load %arg11[%c0_250, %c0_251] : memref<128x32xbf16, #tpu.memory_space<vmem>>, vector<128x32xbf16>
    %cst_252 = arith.constant dense<0.000000e+00> : vector<2x32xf32>
    %500 = tpu.matmul %498, %499, %cst_252 {dimension_numbers = #tpu.dot_dimension_numbers<[1], [0], [0], [1], [0, 0, 1, 1], [], []>} : vector<2x128xbf16>, vector<128x32xbf16>, vector<2x32xf32> -> vector<2x32xf32>
    %c0_253 = arith.constant 0 : index
    %c0_254 = arith.constant 0 : index
    %501 = vector.load %arg12[%c0_253, %c0_254] : memref<1x32xf32, #tpu.memory_space<vmem>>, vector<1x32xf32>
    %502 = vector.broadcast %501 : vector<1x32xf32> to vector<2x32xf32>
    %503 = arith.addf %500, %502 : vector<2x32xf32>
    %c7 = arith.constant 7 : index
    %c0_255 = arith.constant 0 : index
    %c0_256 = arith.constant 0 : index
    %504 = vector.load %arg13[%c7, %c0_255, %c0_256] : memref<8x2x32xf32, #tpu.memory_space<vmem>>, vector<1x2x32xf32>
    %505 = vector.shape_cast %504 : vector<1x2x32xf32> to vector<2x32xf32>
    %506 = vector.shape_cast %503 : vector<2x32xf32> to vector<1x2x32xf32>
    tpu.vector_store %arg13[%c7, %c0_255, %c0_256], %506 {strides = array<i32>} : memref<8x2x32xf32, #tpu.memory_space<vmem>>, vector<1x2x32xf32>,
    return
  }
}

</mosaic_0001>

<llo_original>
// kernel: tpu_custom_call.1
$region0: #{tpu_custom_call.1}
  #allocation0 [shape = 'u32[]', space=smem, size = 0x4, offset = 0x4, fixed_abs, tag = 'smem constant byte address 0x4 - core index']
  #allocation1 [shape = 'u32[144,128]{1,0:T(1,128)}', space=vmem, size = 0x12000, scoped, tag = 'internal scratch']
  %s0 = inlined_call_operand.hbm [shape: s32[8], index: 0, kind: input, shape index: {}]
  %s1 = inlined_call_operand.hbm [shape: f32[8,2,32], index: 1, kind: input, shape index: {}]
  %s2 = inlined_call_operand.vmem [shape: f32[2,2,128], index: 2, kind: input, shape index: {}]
  %s3 = inlined_call_operand.hbm [shape: bf16[160,256], index: 3, kind: input, shape index: {}]
  %s4 = inlined_call_operand.vmem [shape: bf16[160,128], index: 4, kind: input, shape index: {}]
  %s5 = inlined_call_operand.hbm [shape: f32[1,256], index: 5, kind: input, shape index: {}]
  %s6 = inlined_call_operand.hbm [shape: f32[1,128], index: 6, kind: input, shape index: {}]
  %s7 = inlined_call_operand.hbm [shape: bf16[256,256], index: 7, kind: input, shape index: {}]
  %s8 = inlined_call_operand.hbm [shape: bf16[256,128], index: 8, kind: input, shape index: {}]
  %s9 = inlined_call_operand.hbm [shape: f32[1,256], index: 9, kind: input, shape index: {}]
  %s10 = inlined_call_operand.hbm [shape: f32[1,128], index: 10, kind: input, shape index: {}]
  %s11 = inlined_call_operand.vmem [shape: bf16[128,32], index: 11, kind: input, shape index: {}]
  %s12 = inlined_call_operand.vmem [shape: f32[1,32], index: 12, kind: input, shape index: {}]
  %s13 = inlined_call_operand.hbm [shape: f32[8,2,32], index: 13, kind: output, shape index: {}]
  %s14 = sld [smem:[#allocation0]]
  $region98: #{tpu_custom_call.1} parent=0
    _
  %s16 = ssub.s32 1, %s14
  %s17 = scalar_select 0, %s16, %s14
  $region1: #{tpu_custom_call.1} parent=0
    #allocation2 [shape = 'u8[512]{0}', space=smem, size = 0x200, scoped, tag = 'input window, operand 0, single buffered']
    #allocation3 [shape = 's32[1]{0}', space=sflag, size = 0x4, scoped, tag = 'scoped memory for tpu_custom_call.1']
    #allocation4 [shape = 's32[1]{0}', space=sflag, size = 0x4, scoped, tag = 'scoped memory for tpu_custom_call.1']
    #allocation5 [shape = 's32[1]{0}', space=sflag, size = 0x4, scoped, tag = 'scoped memory for tpu_custom_call.1']
    #allocation6 [shape = 'u8[8192]{0}', space=vmem, size = 0x2000, scoped, tag = 'input window, operand 1, single buffered']
    #allocation7 [shape = 'u8[81920]{0}', space=vmem, size = 0x14000, scoped, tag = 'input window, operand 3, single buffered']
    #allocation8 [shape = 's32[1]{0}', space=sflag, size = 0x4, scoped, tag = 'scoped memory for tpu_custom_call.1']
    #allocation9 [shape = 'u8[1024]{0}', space=vmem, size = 0x400, scoped, tag = 'input window, operand 5, single buffered']
    #allocation10 [shape = 'u8[512]{0}', space=vmem, size = 0x400, scoped, tag = 'input window, operand 6, single buffered']
    #allocation11 [shape = 's32[1]{0}', space=sflag, size = 0x4, scoped, tag = 'scoped memory for tpu_custom_call.1']
    #allocation12 [shape = 'u8[131072]{0}', space=vmem, size = 0x20000, scoped, tag = 'input window, operand 7, single buffered']
    #allocation13 [shape = 'u8[65536]{0}', space=vmem, size = 0x10000, scoped, tag = 'input window, operand 8, single buffered']
    #allocation14 [shape = 's32[1]{0}', space=sflag, size = 0x4, scoped, tag = 'scoped memory for tpu_custom_call.1']
    #allocation15 [shape = 'u8[1024]{0}', space=vmem, size = 0x400, scoped, tag = 'input window, operand 9, single buffered']
    #allocation16 [shape = 'u8[512]{0}', space=vmem, size = 0x400, scoped, tag = 'input window, operand 10, single buffered']
    #allocation17 [shape = 's32[1]{0}', space=sflag, size = 0x4, scoped, tag = 'scoped memory for tpu_custom_call.1']
    #allocation18 [shape = 'u8[8192]{0}', space=vmem, size = 0x2000, scoped, tag = 'output window, operand 0, single buffered']
    %18 = vsyncpa [#allocation5], 0
    %19 = vsyncpa [#allocation3], 0
    %20 = vsyncpa [#allocation8], 0
    %21 = vsyncpa [#allocation11], 0
    %22 = vsyncpa [#allocation14], 0
    %23 = vsyncpa [#allocation17], 0
    %24 = vsyncpa [#allocation4], 0
    // Predicated region
    $region2: #{tpu_custom_call.1} parent=1 // pred_check
      _
    $region3: #{tpu_custom_call.1} parent=1 // pred_check_branch
      %26 = sbr.rel (0) target = $region5
    $region4: #{tpu_custom_call.1} parent=1 // pred_region
      %s28 = ssub.s32 16, 16
      %29 = vsyncadd [#allocation5], %s28
      %32 = dma.hbm_to_smem %s0, 16, [#allocation2], [#allocation5]
    $region5: #{tpu_custom_call.1} parent=1 // pred_fallthru
      _
    // Predicated region
    $region6: #{tpu_custom_call.1} parent=1 // pred_check
      _
    $region7: #{tpu_custom_call.1} parent=1 // pred_check_branch
      %34 = sbr.rel (0) target = $region9
    $region8: #{tpu_custom_call.1} parent=1 // pred_region
      %s36 = ssub.s32 256, 256
      %37 = vsyncadd [#allocation3], %s36
      %s38 = sshll.u32 [#allocation6], 4
      %s39 = int_to_ptr.vmem [resolvable:$true] %s38
      %44 = dma.hbm_to_vmem [thread:$0]  %s1, 256, %s39, [#allocation3], 32, 32, 2
    $region9: #{tpu_custom_call.1} parent=1 // pred_fallthru
      _
    // Predicated region
    $region10: #{tpu_custom_call.1} parent=1 // pred_check
      _
    $region11: #{tpu_custom_call.1} parent=1 // pred_check_branch
      %46 = sbr.rel (0) target = $region13
    $region12: #{tpu_custom_call.1} parent=1 // pred_region
      _
    $region13: #{tpu_custom_call.1} parent=1 // pred_fallthru
      _
    // Predicated region
    $region14: #{tpu_custom_call.1} parent=1 // pred_check
      _
    $region15: #{tpu_custom_call.1} parent=1 // pred_check_branch
      %48 = sbr.rel (0) target = $region17
    $region16: #{tpu_custom_call.1} parent=1 // pred_region
      %s50 = ssub.s32 2560, 2560
      %51 = vsyncadd [#allocation8], %s50
      %s52 = sshll.u32 [#allocation7], 4
      %s53 = int_to_ptr.vmem [resolvable:$true] %s52
      %58 = dma.hbm_to_vmem [thread:$0]  %s3, 2560, %s53, [#allocation8], 128, 128, 8
    $region17: #{tpu_custom_call.1} parent=1 // pred_fallthru
      _
    // Predicated region
    $region18: #{tpu_custom_call.1} parent=1 // pred_check
      _
    $region19: #{tpu_custom_call.1} parent=1 // pred_check_branch
      %60 = sbr.rel (0) target = $region21
    $region20: #{tpu_custom_call.1} parent=1 // pred_region
      _
    $region21: #{tpu_custom_call.1} parent=1 // pred_fallthru
      _
    // Predicated region
    $region22: #{tpu_custom_call.1} parent=1 // pred_check
      _
    $region23: #{tpu_custom_call.1} parent=1 // pred_check_branch
      %62 = sbr.rel (0) target = $region25
    $region24: #{tpu_custom_call.1} parent=1 // pred_region
      %s64 = ssub.s32 32, 32
      %65 = vsyncadd [#allocation8], %s64
      %s67 = sshll.u32 [#allocation9], 4
      %s68 = int_to_ptr.vmem [resolvable:$true] %s67
      %70 = dma.hbm_to_vmem [thread:$0]  %s5, 32, %s68, [#allocation8]
    $region25: #{tpu_custom_call.1} parent=1 // pred_fallthru
      _
    // Predicated region
    $region26: #{tpu_custom_call.1} parent=1 // pred_check
      _
    $region27: #{tpu_custom_call.1} parent=1 // pred_check_branch
      %72 = sbr.rel (0) target = $region29
    $region28: #{tpu_custom_call.1} parent=1 // pred_region
      %s74 = ssub.s32 16, 16
      %75 = vsyncadd [#allocation11], %s74
      %s77 = sshll.u32 [#allocation10], 4
      %s78 = int_to_ptr.vmem [resolvable:$true] %s77
      %80 = dma.hbm_to_vmem [thread:$0]  %s6, 16, %s78, [#allocation11]
    $region29: #{tpu_custom_call.1} parent=1 // pred_fallthru
      _
    // Predicated region
    $region30: #{tpu_custom_call.1} parent=1 // pred_check
      _
    $region31: #{tpu_custom_call.1} parent=1 // pred_check_branch
      %82 = sbr.rel (0) target = $region33
    $region32: #{tpu_custom_call.1} parent=1 // pred_region
      %s84 = ssub.s32 4096, 4096
      %85 = vsyncadd [#allocation11], %s84
      %s86 = sshll.u32 [#allocation12], 4
      %s87 = int_to_ptr.vmem [resolvable:$true] %s86
      %92 = dma.hbm_to_vmem [thread:$0]  %s7, 4096, %s87, [#allocation11], 128, 128, 8
    $region33: #{tpu_custom_call.1} parent=1 // pred_fallthru
      _
    // Predicated region
    $region34: #{tpu_custom_call.1} parent=1 // pred_check
      _
    $region35: #{tpu_custom_call.1} parent=1 // pred_check_branch
      %94 = sbr.rel (0) target = $region37
    $region36: #{tpu_custom_call.1} parent=1 // pred_region
      %s96 = ssub.s32 2048, 2048
      %97 = vsyncadd [#allocation14], %s96
      %s98 = sshll.u32 [#allocation13], 4
      %s99 = int_to_ptr.vmem [resolvable:$true] %s98
      %104 = dma.hbm_to_vmem [thread:$0]  %s8, 2048, %s99, [#allocation14], 64, 64, 4
    $region37: #{tpu_custom_call.1} parent=1 // pred_fallthru
      _
    // Predicated region
    $region38: #{tpu_custom_call.1} parent=1 // pred_check
      _
    $region39: #{tpu_custom_call.1} parent=1 // pred_check_branch
      %106 = sbr.rel (0) target = $region41
    $region40: #{tpu_custom_call.1} parent=1 // pred_region
      %s108 = ssub.s32 32, 32
      %109 = vsyncadd [#allocation14], %s108
      %s111 = sshll.u32 [#allocation15], 4
      %s112 = int_to_ptr.vmem [resolvable:$true] %s111
      %114 = dma.hbm_to_vmem [thread:$0]  %s9, 32, %s112, [#allocation14]
    $region41: #{tpu_custom_call.1} parent=1 // pred_fallthru
      _
    // Predicated region
    $region42: #{tpu_custom_call.1} parent=1 // pred_check
      _
    $region43: #{tpu_custom_call.1} parent=1 // pred_check_branch
      %116 = sbr.rel (0) target = $region45
    $region44: #{tpu_custom_call.1} parent=1 // pred_region
      %s118 = ssub.s32 16, 16
      %119 = vsyncadd [#allocation17], %s118
      %s121 = sshll.u32 [#allocation16], 4
      %s122 = int_to_ptr.vmem [resolvable:$true] %s121
      %124 = dma.hbm_to_vmem [thread:$0]  %s10, 16, %s122, [#allocation17]
    $region45: #{tpu_custom_call.1} parent=1 // pred_fallthru
      _
    // Predicated region
    $region46: #{tpu_custom_call.1} parent=1 // pred_check
      _
    $region47: #{tpu_custom_call.1} parent=1 // pred_check_branch
      %126 = sbr.rel (0) target = $region49
    $region48: #{tpu_custom_call.1} parent=1 // pred_region
      _
    $region49: #{tpu_custom_call.1} parent=1 // pred_fallthru
      _
    // Predicated region
    $region50: #{tpu_custom_call.1} parent=1 // pred_check
      _
    $region51: #{tpu_custom_call.1} parent=1 // pred_check_branch
      %128 = sbr.rel (0) target = $region53
    $region52: #{tpu_custom_call.1} parent=1 // pred_region
      _
    $region53: #{tpu_custom_call.1} parent=1 // pred_fallthru
      _
    // Predicated region
    $region54: #{tpu_custom_call.1} parent=1 // pred_check
      _
    $region55: #{tpu_custom_call.1} parent=1 // pred_check_branch
      %130 = sbr.rel (0) target = $region57
    $region56: #{tpu_custom_call.1} parent=1 // pred_region
      %131 = dma.done [#allocation5], 16
    $region57: #{tpu_custom_call.1} parent=1 // pred_fallthru
      _
    // Predicated region
    $region58: #{tpu_custom_call.1} parent=1 // pred_check
      _
    $region59: #{tpu_custom_call.1} parent=1 // pred_check_branch
      %133 = sbr.rel (0) target = $region61
    $region60: #{tpu_custom_call.1} parent=1 // pred_region
      %134 = dma.done [#allocation3], 256
    $region61: #{tpu_custom_call.1} parent=1 // pred_fallthru
      _
    // Predicated region
    $region62: #{tpu_custom_call.1} parent=1 // pred_check
      _
    $region63: #{tpu_custom_call.1} parent=1 // pred_check_branch
      %136 = sbr.rel (0) target = $region65
    $region64: #{tpu_custom_call.1} parent=1 // pred_region
      %137 = dma.done [#allocation8], 2560
    $region65: #{tpu_custom_call.1} parent=1 // pred_fallthru
      _
    // Predicated region
    $region66: #{tpu_custom_call.1} parent=1 // pred_check
      _
    $region67: #{tpu_custom_call.1} parent=1 // pred_check_branch
      %139 = sbr.rel (0) target = $region69
    $region68: #{tpu_custom_call.1} parent=1 // pred_region
      %140 = dma.done [#allocation8], 32
    $region69: #{tpu_custom_call.1} parent=1 // pred_fallthru
      _
    // Predicated region
    $region70: #{tpu_custom_call.1} parent=1 // pred_check
      _
    $region71: #{tpu_custom_call.1} parent=1 // pred_check_branch
      %142 = sbr.rel (0) target = $region73
    $region72: #{tpu_custom_call.1} parent=1 // pred_region
      %143 = dma.done [#allocation11], 16
    $region73: #{tpu_custom_call.1} parent=1 // pred_fallthru
      _
    // Predicated region
    $region74: #{tpu_custom_call.1} parent=1 // pred_check
      _
    $region75: #{tpu_custom_call.1} parent=1 // pred_check_branch
      %145 = sbr.rel (0) target = $region77
    $region76: #{tpu_custom_call.1} parent=1 // pred_region
      %146 = dma.done [#allocation11], 4096
    $region77: #{tpu_custom_call.1} parent=1 // pred_fallthru
      _
    // Predicated region
    $region78: #{tpu_custom_call.1} parent=1 // pred_check
      _
    $region79: #{tpu_custom_call.1} parent=1 // pred_check_branch
      %148 = sbr.rel (0) target = $region81
    $region80: #{tpu_custom_call.1} parent=1 // pred_region
      %149 = dma.done [#allocation14], 2048
    $region81: #{tpu_custom_call.1} parent=1 // pred_fallthru
      _
    // Predicated region
    $region82: #{tpu_custom_call.1} parent=1 // pred_check
      _
    $region83: #{tpu_custom_call.1} parent=1 // pred_check_branch
      %151 = sbr.rel (0) target = $region85
    $region84: #{tpu_custom_call.1} parent=1 // pred_region
      %152 = dma.done [#allocation14], 32
    $region85: #{tpu_custom_call.1} parent=1 // pred_fallthru
      _
    // Predicated region
    $region86: #{tpu_custom_call.1} parent=1 // pred_check
      _
    $region87: #{tpu_custom_call.1} parent=1 // pred_check_branch
      %154 = sbr.rel (0) target = $region89
    $region88: #{tpu_custom_call.1} parent=1 // pred_region
      %155 = dma.done [#allocation17], 16
    $region89: #{tpu_custom_call.1} parent=1 // pred_fallthru
      _
    %156 = sfence
    %vm158 = vcmask 254976
    %159 = vst.msk [vmem:[#allocation18] sm:$0x3] %vm158, 0.0
    %v160 = vld [vmem:[%s2] sm:$0x3]
    %s161 = scalar_lea.vmem %s2, 2
    %v162 = vld [vmem:[%s161] sm:$0x3]
    %v163 = vld [vmem:[#allocation6] sm:$0x3]
    %165 = vrot.lane.b32.xlu0 %v160, 32
    %v166 = vpop.permute.xlu0 %165
    %vm168 = vcmask 261120
    %v169 = vsel %vm168, %v163, %v166
    %v170 = vpack.c.bf16 %v169, %v169
    %v171 = vpack.c.bf16 %v166, %v166
    %v172 = vld [vmem:[#allocation7] sm:$0xff]
    %v173 = vld [vmem:[#allocation7 + $0x8] sm:$0xff]
    %v174 = vld [vmem:[#allocation7 + $0x10] sm:$0xff]
    %v175 = vld [vmem:[#allocation7 + $0x18] sm:$0xff]
    %v176 = vld [vmem:[#allocation7 + $0x20] sm:$0xff]
    %v177 = vld [vmem:[#allocation7 + $0x28] sm:$0xff]
    %v178 = vld [vmem:[#allocation7 + $0x30] sm:$0xff]
    %v179 = vld [vmem:[#allocation7 + $0x38] sm:$0xff]
    %v180 = vld [vmem:[#allocation7 + $0x40] sm:$0xff]
    %v181 = vld [vmem:[#allocation7 + $0x48] sm:$0xff]
    %v182 = vld [vmem:[#allocation7 + $0x50] sm:$0xff]
    %v183 = vld [vmem:[#allocation7 + $0x58] sm:$0xff]
    %v184 = vld [vmem:[#allocation7 + $0x60] sm:$0xff]
    %v185 = vld [vmem:[#allocation7 + $0x68] sm:$0xff]
    %v186 = vld [vmem:[#allocation7 + $0x70] sm:$0xff]
    %v187 = vld [vmem:[#allocation7 + $0x78] sm:$0xff]
    %v188 = vld [vmem:[#allocation7 + $0x80] sm:$0xff]
    %v189 = vld [vmem:[#allocation7 + $0x88] sm:$0xff]
    %v190 = vld [vmem:[#allocation7 + $0x90] sm:$0xff]
    %v191 = vld [vmem:[#allocation7 + $0x98] sm:$0xff]
    %v192 = vld [vmem:[#allocation9] sm:$0x3]
    %v194 = vlaneseq
    %v195 = vshrl.u32 %v194, 7
    %v196 = vsub.s32 0, %v195
    %v197 = vrot.slane %v192, %v196
    %v198 = vlaneseq
    %v199 = vshrl.u32 %v198, 7
    %v200 = vsub.s32 1, %v199
    %v201 = vrot.slane %v192, %v200
    %v224 = vunpack.c.l.b16 %v172
    %v225 = vunpack.c.h.b16 %v172
    %v226 = vunpack.c.l.b16 %v173
    %v227 = vunpack.c.h.b16 %v173
    %v228 = vunpack.c.l.b16 %v174
    %v229 = vunpack.c.h.b16 %v174
    %v230 = vunpack.c.l.b16 %v175
    %v231 = vunpack.c.h.b16 %v175
    %v232 = vunpack.c.l.b16 %v176
    %v233 = vunpack.c.h.b16 %v176
    %v234 = vunpack.c.l.b16 %v177
    %v235 = vunpack.c.h.b16 %v177
    %v236 = vunpack.c.l.b16 %v178
    %v237 = vunpack.c.h.b16 %v178
    %v238 = vunpack.c.l.b16 %v179
    %v239 = vunpack.c.h.b16 %v179
    %v240 = vunpack.c.l.b16 %v180
    %v241 = vunpack.c.h.b16 %v180
    %v242 = vunpack.c.l.b16 %v181
    %v243 = vunpack.c.h.b16 %v181
    %v244 = vunpack.c.l.b16 %v182
    %v245 = vunpack.c.h.b16 %v182
    %v246 = vunpack.c.l.b16 %v183
    %v247 = vunpack.c.h.b16 %v183
    %v248 = vunpack.c.l.b16 %v184
    %v249 = vunpack.c.h.b16 %v184
    %v250 = vunpack.c.l.b16 %v185
    %v251 = vunpack.c.h.b16 %v185
    %v252 = vunpack.c.l.b16 %v186
    %v253 = vunpack.c.h.b16 %v186
    %v254 = vunpack.c.l.b16 %v187
    %v255 = vunpack.c.h.b16 %v187
    %v256 = vunpack.c.l.b16 %v188
    %v257 = vunpack.c.h.b16 %v188
    %v258 = vunpack.c.l.b16 %v189
    %v259 = vunpack.c.h.b16 %v189
    %v260 = vunpack.c.l.b16 %v190
    %v261 = vunpack.c.h.b16 %v190
    %v262 = vunpack.c.l.b16 %v191
    %v263 = vunpack.c.h.b16 %v191
    %v264 = vpack.c.b16 %v226, %v224
    %v265 = vpack.c.b16 %v227, %v225
    %v266 = vpack.c.b16 %v230, %v228
    %v267 = vpack.c.b16 %v231, %v229
    %v268 = vpack.c.b16 %v234, %v232
    %v269 = vpack.c.b16 %v235, %v233
    %v270 = vpack.c.b16 %v238, %v236
    %v271 = vpack.c.b16 %v239, %v237
    %v272 = vpack.c.b16 %v242, %v240
    %v273 = vpack.c.b16 %v243, %v241
    %v274 = vpack.c.b16 %v246, %v244
    %v275 = vpack.c.b16 %v247, %v245
    %v276 = vpack.c.b16 %v250, %v248
    %v277 = vpack.c.b16 %v251, %v249
    %v278 = vpack.c.b16 %v254, %v252
    %v279 = vpack.c.b16 %v255, %v253
    %v280 = vpack.c.b16 %v258, %v256
    %v281 = vpack.c.b16 %v259, %v257
    %v282 = vpack.c.b16 %v262, %v260
    %v283 = vpack.c.b16 %v263, %v261
    %v305 = vsel %vm168, %v171, 0
    %307 = vmatprep.subr.bf16.mxu0 %v279
    %308 = vmatpush1.bf16.msra.mxu0 %v278
    %309 = vmatprep.subr.bf16.mxu0 %v277
    %310 = vmatpush1.bf16.msra.mxu0 %v276
    %311 = vmatprep.subr.bf16.mxu0 %v275
    %312 = vmatpush1.bf16.msra.mxu0 %v274
    %313 = vmatprep.subr.bf16.mxu0 %v273
    %314 = vmatpush1.bf16.msra.mxu0 %v272
    %315 = vmatprep.subr.bf16.mxu0 %v271
    %316 = vmatpush1.bf16.msra.mxu0 %v270
    %317 = vmatprep.subr.bf16.mxu0 %v269
    %318 = vmatpush1.bf16.msra.mxu0 %v268
    %319 = vmatprep.subr.bf16.mxu0 %v267
    %320 = vmatpush1.bf16.msra.mxu0 %v266
    %321 = vmatprep.subr.bf16.mxu0 %v265
    %322 = vmatpush1.bf16.msra.mxu0 %v264
    %323 = vmatprep.subr.bf16.mxu0 0
    %324 = vmatpush2.bf16.msra.mxu0 0
    %325 = vmatprep.subr.bf16.mxu0 0
    %326 = vmatpush2.bf16.msra.mxu0 0
    %327 = vmatprep.subr.bf16.mxu0 0
    %328 = vmatpush2.bf16.msra.mxu0 0
    %329 = vmatprep.subr.bf16.mxu0 0
    %330 = vmatpush2.bf16.msra.mxu0 0
    %331 = vmatprep.subr.bf16.mxu0 0
    %332 = vmatpush2.bf16.msra.mxu0 0
    %333 = vmatprep.subr.bf16.mxu0 0
    %334 = vmatpush2.bf16.msra.mxu0 0
    %335 = vmatprep.subr.bf16.mxu0 %v283
    %336 = vmatpush2.bf16.msra.mxu0 %v282
    %337 = vmatprep.subr.bf16.mxu0 %v281
    %338 = vmatpush2.bf16.msra.mxu0 %v280
    %339 = vmatprep.mubr.bf16.mxu0 %v305
    %340 = vmatmul.mubr.bf16.gmra.mxu0 %v170
    %v341 = vpop.f32.mrf.mxu0
    %v342 = vadd.f32 %v197, %v341
    %v343 = vpop.f32.mrf.mxu0
    %v344 = vadd.f32 %v201, %v343
    %v345 = vpop.f32.mrf.mxu0
    %v346 = vpop.f32.mrf.mxu0
    %347 = vdwg.mxu0
    %v348 = vxor.u32 %v342, 2147483648
    %v349 = vxor.u32 %v344, 2147483648
    %v350 = vmul.f32 %v348, 1.442695
    %v351 = vpow.pop %v350
    %v352 = vmul.f32 %v349, 1.442695
    %v353 = vpow.pop %v352
    %v354 = vadd.f32 %v351, 1.0
    %v355 = vadd.f32 %v353, 1.0
    %v356 = vrcp.pop %v354
    %v357 = vmul.f32 1.0, %v356
    %v358 = vrcp.pop %v355
    %v359 = vmul.f32 1.0, %v358
    %v360 = vmul.f32 %v357, %v160
    %362 = vrot.lane.b32.xlu0 %v360, 32
    %v363 = vpop.permute.xlu0 %362
    %v365 = vsel %vm168, %v163, %v363
    %v366 = vpack.c.bf16 %v365, %v365
    %v367 = vpack.c.bf16 %v363, %v363
    %v368 = vld [vmem:[%s4] sm:$0xf]
    %v369 = vld [vmem:[%s4 + $0x4] sm:$0xf]
    %v370 = vld [vmem:[%s4 + $0x8] sm:$0xf]
    %v371 = vld [vmem:[%s4 + $0xc] sm:$0xf]
    %v372 = vld [vmem:[%s4 + $0x10] sm:$0xf]
    %v373 = vld [vmem:[%s4 + $0x14] sm:$0xf]
    %v374 = vld [vmem:[%s4 + $0x18] sm:$0xf]
    %v375 = vld [vmem:[%s4 + $0x1c] sm:$0xf]
    %v376 = vld [vmem:[%s4 + $0x20] sm:$0xf]
    %v377 = vld [vmem:[%s4 + $0x24] sm:$0xf]
    %v378 = vld [vmem:[%s4 + $0x28] sm:$0xf]
    %v379 = vld [vmem:[%s4 + $0x2c] sm:$0xf]
    %v380 = vld [vmem:[%s4 + $0x30] sm:$0xf]
    %v381 = vld [vmem:[%s4 + $0x34] sm:$0xf]
    %v382 = vld [vmem:[%s4 + $0x38] sm:$0xf]
    %v383 = vld [vmem:[%s4 + $0x3c] sm:$0xf]
    %v384 = vld [vmem:[%s4 + $0x40] sm:$0xf]
    %v385 = vld [vmem:[%s4 + $0x44] sm:$0xf]
    %v386 = vld [vmem:[%s4 + $0x48] sm:$0xf]
    %v387 = vld [vmem:[%s4 + $0x4c] sm:$0xf]
    %v388 = vld [vmem:[#allocation10] sm:$0x1]
    %v390 = vlaneseq
    %v391 = vshrl.u32 %v390, 7
    %v392 = vsub.s32 0, %v391
    %v393 = vrot.slane %v388, %v392
    %v415 = vunpack.c.l.b16 %v368
    %v416 = vunpack.c.l.b16 %v369
    %v417 = vunpack.c.l.b16 %v370
    %v418 = vunpack.c.l.b16 %v371
    %v419 = vunpack.c.l.b16 %v372
    %v420 = vunpack.c.l.b16 %v373
    %v421 = vunpack.c.l.b16 %v374
    %v422 = vunpack.c.l.b16 %v375
    %v423 = vunpack.c.l.b16 %v376
    %v424 = vunpack.c.l.b16 %v377
    %v425 = vunpack.c.l.b16 %v378
    %v426 = vunpack.c.l.b16 %v379
    %v427 = vunpack.c.l.b16 %v380
    %v428 = vunpack.c.l.b16 %v381
    %v429 = vunpack.c.l.b16 %v382
    %v430 = vunpack.c.l.b16 %v383
    %v431 = vunpack.c.l.b16 %v384
    %v432 = vunpack.c.l.b16 %v385
    %v433 = vunpack.c.l.b16 %v386
    %v434 = vunpack.c.l.b16 %v387
    %v435 = vpack.c.b16 %v416, %v415
    %v436 = vpack.c.b16 %v418, %v417
    %v437 = vpack.c.b16 %v420, %v419
    %v438 = vpack.c.b16 %v422, %v421
    %v439 = vpack.c.b16 %v424, %v423
    %v440 = vpack.c.b16 %v426, %v425
    %v441 = vpack.c.b16 %v428, %v427
    %v442 = vpack.c.b16 %v430, %v429
    %v443 = vpack.c.b16 %v432, %v431
    %v444 = vpack.c.b16 %v434, %v433
    %v456 = vsel %vm168, %v367, 0
    %458 = vmatprep.subr.bf16.mxu0 0
    %459 = vmatpush1.bf16.msra.mxu0 %v442
    %460 = vmatprep.subr.bf16.mxu0 0
    %461 = vmatpush1.bf16.msra.mxu0 %v441
    %462 = vmatprep.subr.bf16.mxu0 0
    %463 = vmatpush1.bf16.msra.mxu0 %v440
    %464 = vmatprep.subr.bf16.mxu0 0
    %465 = vmatpush1.bf16.msra.mxu0 %v439
    %466 = vmatprep.subr.bf16.mxu0 0
    %467 = vmatpush1.bf16.msra.mxu0 %v438
    %468 = vmatprep.subr.bf16.mxu0 0
    %469 = vmatpush1.bf16.msra.mxu0 %v437
    %470 = vmatprep.subr.bf16.mxu0 0
    %471 = vmatpush1.bf16.msra.mxu0 %v436
    %472 = vmatprep.subr.bf16.mxu0 0
    %473 = vmatpush1.bf16.msra.mxu0 %v435
    %474 = vmatprep.subr.bf16.mxu0 0
    %475 = vmatpush2.bf16.msra.mxu0 0
    %476 = vmatprep.subr.bf16.mxu0 0
    %477 = vmatpush2.bf16.msra.mxu0 0
    %478 = vmatprep.subr.bf16.mxu0 0
    %479 = vmatpush2.bf16.msra.mxu0 0
    %480 = vmatprep.subr.bf16.mxu0 0
    %481 = vmatpush2.bf16.msra.mxu0 0
    %482 = vmatprep.subr.bf16.mxu0 0
    %483 = vmatpush2.bf16.msra.mxu0 0
    %484 = vmatprep.subr.bf16.mxu0 0
    %485 = vmatpush2.bf16.msra.mxu0 0
    %486 = vmatprep.subr.bf16.mxu0 0
    %487 = vmatpush2.bf16.msra.mxu0 %v444
    %488 = vmatprep.subr.bf16.mxu0 0
    %489 = vmatpush2.bf16.msra.mxu0 %v443
    %490 = vmatprep.mubr.bf16.mxu0 %v456
    %491 = vmatmul.mubr.bf16.gmra.mxu0 %v366
    %v492 = vpop.f32.mrf.mxu0
    %v493 = vadd.f32 %v393, %v492
    %v494 = vpop.f32.mrf.mxu0
    %v495 = vpop.f32.mrf.mxu0
    %v496 = vpop.f32.mrf.mxu0
    %497 = vdwg.mxu0
    %v498 = vtanh.pop %v493
    %v499 = vmul.f32 %v359, %v160
    %v500 = vsub.f32 1.0, %v359
    %v501 = vmul.f32 %v500, %v498
    %v502 = vadd.f32 %v499, %v501
    %v503 = vpack.c.bf16 %v502, %v502
    %v504 = vpack.c.bf16 %v162, %v162
    %v505 = vld [vmem:[#allocation12] sm:$0xff]
    %v506 = vld [vmem:[#allocation12 + $0x8] sm:$0xff]
    %v507 = vld [vmem:[#allocation12 + $0x10] sm:$0xff]
    %v508 = vld [vmem:[#allocation12 + $0x18] sm:$0xff]
    %v509 = vld [vmem:[#allocation12 + $0x20] sm:$0xff]
    %v510 = vld [vmem:[#allocation12 + $0x28] sm:$0xff]
    %v511 = vld [vmem:[#allocation12 + $0x30] sm:$0xff]
    %v512 = vld [vmem:[#allocation12 + $0x38] sm:$0xff]
    %v513 = vld [vmem:[#allocation12 + $0x40] sm:$0xff]
    %v514 = vld [vmem:[#allocation12 + $0x48] sm:$0xff]
    %v515 = vld [vmem:[#allocation12 + $0x50] sm:$0xff]
    %v516 = vld [vmem:[#allocation12 + $0x58] sm:$0xff]
    %v517 = vld [vmem:[#allocation12 + $0x60] sm:$0xff]
    %v518 = vld [vmem:[#allocation12 + $0x68] sm:$0xff]
    %v519 = vld [vmem:[#allocation12 + $0x70] sm:$0xff]
    %v520 = vld [vmem:[#allocation12 + $0x78] sm:$0xff]
    %v521 = vld [vmem:[#allocation12 + $0x80] sm:$0xff]
    %v522 = vld [vmem:[#allocation12 + $0x88] sm:$0xff]
    %v523 = vld [vmem:[#allocation12 + $0x90] sm:$0xff]
    %v524 = vld [vmem:[#allocation12 + $0x98] sm:$0xff]
    %v525 = vld [vmem:[#allocation12 + $0xa0] sm:$0xff]
    %v526 = vld [vmem:[#allocation12 + $0xa8] sm:$0xff]
    %v527 = vld [vmem:[#allocation12 + $0xb0] sm:$0xff]
    %v528 = vld [vmem:[#allocation12 + $0xb8] sm:$0xff]
    %v529 = vld [vmem:[#allocation12 + $0xc0] sm:$0xff]
    %v530 = vld [vmem:[#allocation12 + $0xc8] sm:$0xff]
    %v531 = vld [vmem:[#allocation12 + $0xd0] sm:$0xff]
    %v532 = vld [vmem:[#allocation12 + $0xd8] sm:$0xff]
    %v533 = vld [vmem:[#allocation12 + $0xe0] sm:$0xff]
    %v534 = vld [vmem:[#allocation12 + $0xe8] sm:$0xff]
    %v535 = vld [vmem:[#allocation12 + $0xf0] sm:$0xff]
    %v536 = vld [vmem:[#allocation12 + $0xf8] sm:$0xff]
    %v537 = vld [vmem:[#allocation15] sm:$0x3]
    %v539 = vlaneseq
    %v540 = vshrl.u32 %v539, 7
    %v541 = vsub.s32 0, %v540
    %v542 = vrot.slane %v537, %v541
    %v543 = vlaneseq
    %v544 = vshrl.u32 %v543, 7
    %v545 = vsub.s32 1, %v544
    %v546 = vrot.slane %v537, %v545
    %v581 = vunpack.c.l.b16 %v505
    %v582 = vunpack.c.h.b16 %v505
    %v583 = vunpack.c.l.b16 %v506
    %v584 = vunpack.c.h.b16 %v506
    %v585 = vunpack.c.l.b16 %v507
    %v586 = vunpack.c.h.b16 %v507
    %v587 = vunpack.c.l.b16 %v508
    %v588 = vunpack.c.h.b16 %v508
    %v589 = vunpack.c.l.b16 %v509
    %v590 = vunpack.c.h.b16 %v509
    %v591 = vunpack.c.l.b16 %v510
    %v592 = vunpack.c.h.b16 %v510
    %v593 = vunpack.c.l.b16 %v511
    %v594 = vunpack.c.h.b16 %v511
    %v595 = vunpack.c.l.b16 %v512
    %v596 = vunpack.c.h.b16 %v512
    %v597 = vunpack.c.l.b16 %v513
    %v598 = vunpack.c.h.b16 %v513
    %v599 = vunpack.c.l.b16 %v514
    %v600 = vunpack.c.h.b16 %v514
    %v601 = vunpack.c.l.b16 %v515
    %v602 = vunpack.c.h.b16 %v515
    %v603 = vunpack.c.l.b16 %v516
    %v604 = vunpack.c.h.b16 %v516
    %v605 = vunpack.c.l.b16 %v517
    %v606 = vunpack.c.h.b16 %v517
    %v607 = vunpack.c.l.b16 %v518
    %v608 = vunpack.c.h.b16 %v518
    %v609 = vunpack.c.l.b16 %v519
    %v610 = vunpack.c.h.b16 %v519
    %v611 = vunpack.c.l.b16 %v520
    %v612 = vunpack.c.h.b16 %v520
    %v613 = vunpack.c.l.b16 %v521
    %v614 = vunpack.c.h.b16 %v521
    %v615 = vunpack.c.l.b16 %v522
    %v616 = vunpack.c.h.b16 %v522
    %v617 = vunpack.c.l.b16 %v523
    %v618 = vunpack.c.h.b16 %v523
    %v619 = vunpack.c.l.b16 %v524
    %v620 = vunpack.c.h.b16 %v524
    %v621 = vunpack.c.l.b16 %v525
    %v622 = vunpack.c.h.b16 %v525
    %v623 = vunpack.c.l.b16 %v526
    %v624 = vunpack.c.h.b16 %v526
    %v625 = vunpack.c.l.b16 %v527
    %v626 = vunpack.c.h.b16 %v527
    %v627 = vunpack.c.l.b16 %v528
    %v628 = vunpack.c.h.b16 %v528
    %v629 = vunpack.c.l.b16 %v529
    %v630 = vunpack.c.h.b16 %v529
    %v631 = vunpack.c.l.b16 %v530
    %v632 = vunpack.c.h.b16 %v530
    %v633 = vunpack.c.l.b16 %v531
    %v634 = vunpack.c.h.b16 %v531
    %v635 = vunpack.c.l.b16 %v532
    %v636 = vunpack.c.h.b16 %v532
    %v637 = vunpack.c.l.b16 %v533
    %v638 = vunpack.c.h.b16 %v533
    %v639 = vunpack.c.l.b16 %v534
    %v640 = vunpack.c.h.b16 %v534
    %v641 = vunpack.c.l.b16 %v535
    %v642 = vunpack.c.h.b16 %v535
    %v643 = vunpack.c.l.b16 %v536
    %v644 = vunpack.c.h.b16 %v536
    %v645 = vpack.c.b16 %v583, %v581
    %v646 = vpack.c.b16 %v584, %v582
    %v647 = vpack.c.b16 %v587, %v585
    %v648 = vpack.c.b16 %v588, %v586
    %v649 = vpack.c.b16 %v591, %v589
    %v650 = vpack.c.b16 %v592, %v590
    %v651 = vpack.c.b16 %v595, %v593
    %v652 = vpack.c.b16 %v596, %v594
    %v653 = vpack.c.b16 %v599, %v597
    %v654 = vpack.c.b16 %v600, %v598
    %v655 = vpack.c.b16 %v603, %v601
    %v656 = vpack.c.b16 %v604, %v602
    %v657 = vpack.c.b16 %v607, %v605
    %v658 = vpack.c.b16 %v608, %v606
    %v659 = vpack.c.b16 %v611, %v609
    %v660 = vpack.c.b16 %v612, %v610
    %v661 = vpack.c.b16 %v615, %v613
    %v662 = vpack.c.b16 %v616, %v614
    %v663 = vpack.c.b16 %v619, %v617
    %v664 = vpack.c.b16 %v620, %v618
    %v665 = vpack.c.b16 %v623, %v621
    %v666 = vpack.c.b16 %v624, %v622
    %v667 = vpack.c.b16 %v627, %v625
    %v668 = vpack.c.b16 %v628, %v626
    %v669 = vpack.c.b16 %v631, %v629
    %v670 = vpack.c.b16 %v632, %v630
    %v671 = vpack.c.b16 %v635, %v633
    %v672 = vpack.c.b16 %v636, %v634
    %v673 = vpack.c.b16 %v639, %v637
    %v674 = vpack.c.b16 %v640, %v638
    %v675 = vpack.c.b16 %v643, %v641
    %v676 = vpack.c.b16 %v644, %v642
    %709 = vmatprep.subr.bf16.mxu0 %v660
    %710 = vmatpush1.bf16.msra.mxu0 %v659
    %711 = vmatprep.subr.bf16.mxu0 %v658
    %712 = vmatpush1.bf16.msra.mxu0 %v657
    %713 = vmatprep.subr.bf16.mxu0 %v656
    %714 = vmatpush1.bf16.msra.mxu0 %v655
    %715 = vmatprep.subr.bf16.mxu0 %v654
    %716 = vmatpush1.bf16.msra.mxu0 %v653
    %717 = vmatprep.subr.bf16.mxu0 %v652
    %718 = vmatpush1.bf16.msra.mxu0 %v651
    %719 = vmatprep.subr.bf16.mxu0 %v650
    %720 = vmatpush1.bf16.msra.mxu0 %v649
    %721 = vmatprep.subr.bf16.mxu0 %v648
    %722 = vmatpush1.bf16.msra.mxu0 %v647
    %723 = vmatprep.subr.bf16.mxu0 %v646
    %724 = vmatpush1.bf16.msra.mxu0 %v645
    %725 = vmatprep.subr.bf16.mxu0 %v676
    %726 = vmatpush2.bf16.msra.mxu0 %v675
    %727 = vmatprep.subr.bf16.mxu0 %v674
    %728 = vmatpush2.bf16.msra.mxu0 %v673
    %729 = vmatprep.subr.bf16.mxu0 %v672
    %730 = vmatpush2.bf16.msra.mxu0 %v671
    %731 = vmatprep.subr.bf16.mxu0 %v670
    %732 = vmatpush2.bf16.msra.mxu0 %v669
    %733 = vmatprep.subr.bf16.mxu0 %v668
    %734 = vmatpush2.bf16.msra.mxu0 %v667
    %735 = vmatprep.subr.bf16.mxu0 %v666
    %736 = vmatpush2.bf16.msra.mxu0 %v665
    %737 = vmatprep.subr.bf16.mxu0 %v664
    %738 = vmatpush2.bf16.msra.mxu0 %v663
    %739 = vmatprep.subr.bf16.mxu0 %v662
    %740 = vmatpush2.bf16.msra.mxu0 %v661
    %741 = vmatprep.mubr.bf16.mxu0 %v504
    %742 = vmatmul.mubr.bf16.gmra.mxu0 %v503
    %v743 = vpop.f32.mrf.mxu0
    %v744 = vadd.f32 %v542, %v743
    %v745 = vpop.f32.mrf.mxu0
    %v746 = vadd.f32 %v546, %v745
    %v747 = vpop.f32.mrf.mxu0
    %v748 = vpop.f32.mrf.mxu0
    %749 = vdwg.mxu0
    %v750 = vxor.u32 %v744, 2147483648
    %v751 = vxor.u32 %v746, 2147483648
    %v752 = vmul.f32 %v750, 1.442695
    %v753 = vpow.pop %v752
    %v754 = vmul.f32 %v751, 1.442695
    %v755 = vpow.pop %v754
    %v756 = vadd.f32 %v753, 1.0
    %v757 = vadd.f32 %v755, 1.0
    %v758 = vrcp.pop %v756
    %v759 = vmul.f32 1.0, %v758
    %v760 = vrcp.pop %v757
    %v761 = vmul.f32 1.0, %v760
    %v762 = vmul.f32 %v759, %v162
    %v763 = vpack.c.bf16 %v762, %v762
    %v764 = vld [vmem:[#allocation13] sm:$0xf]
    %v765 = vld [vmem:[#allocation13 + $0x4] sm:$0xf]
    %v766 = vld [vmem:[#allocation13 + $0x8] sm:$0xf]
    %v767 = vld [vmem:[#allocation13 + $0xc] sm:$0xf]
    %v768 = vld [vmem:[#allocation13 + $0x10] sm:$0xf]
    %v769 = vld [vmem:[#allocation13 + $0x14] sm:$0xf]
    %v770 = vld [vmem:[#allocation13 + $0x18] sm:$0xf]
    %v771 = vld [vmem:[#allocation13 + $0x1c] sm:$0xf]
    %v772 = vld [vmem:[#allocation13 + $0x20] sm:$0xf]
    %v773 = vld [vmem:[#allocation13 + $0x24] sm:$0xf]
    %v774 = vld [vmem:[#allocation13 + $0x28] sm:$0xf]
    %v775 = vld [vmem:[#allocation13 + $0x2c] sm:$0xf]
    %v776 = vld [vmem:[#allocation13 + $0x30] sm:$0xf]
    %v777 = vld [vmem:[#allocation13 + $0x34] sm:$0xf]
    %v778 = vld [vmem:[#allocation13 + $0x38] sm:$0xf]
    %v779 = vld [vmem:[#allocation13 + $0x3c] sm:$0xf]
    %v780 = vld [vmem:[#allocation13 + $0x40] sm:$0xf]
    %v781 = vld [vmem:[#allocation13 + $0x44] sm:$0xf]
    %v782 = vld [vmem:[#allocation13 + $0x48] sm:$0xf]
    %v783 = vld [vmem:[#allocation13 + $0x4c] sm:$0xf]
    %v784 = vld [vmem:[#allocation13 + $0x50] sm:$0xf]
    %v785 = vld [vmem:[#allocation13 + $0x54] sm:$0xf]
    %v786 = vld [vmem:[#allocation13 + $0x58] sm:$0xf]
    %v787 = vld [vmem:[#allocation13 + $0x5c] sm:$0xf]
    %v788 = vld [vmem:[#allocation13 + $0x60] sm:$0xf]
    %v789 = vld [vmem:[#allocation13 + $0x64] sm:$0xf]
    %v790 = vld [vmem:[#allocation13 + $0x68] sm:$0xf]
    %v791 = vld [vmem:[#allocation13 + $0x6c] sm:$0xf]
    %v792 = vld [vmem:[#allocation13 + $0x70] sm:$0xf]
    %v793 = vld [vmem:[#allocation13 + $0x74] sm:$0xf]
    %v794 = vld [vmem:[#allocation13 + $0x78] sm:$0xf]
    %v795 = vld [vmem:[#allocation13 + $0x7c] sm:$0xf]
    %v796 = vld [vmem:[#allocation16] sm:$0x1]
    %v798 = vlaneseq
    %v799 = vshrl.u32 %v798, 7
    %v800 = vsub.s32 0, %v799
    %v801 = vrot.slane %v796, %v800
    %v835 = vunpack.c.l.b16 %v764
    %v836 = vunpack.c.l.b16 %v765
    %v837 = vunpack.c.l.b16 %v766
    %v838 = vunpack.c.l.b16 %v767
    %v839 = vunpack.c.l.b16 %v768
    %v840 = vunpack.c.l.b16 %v769
    %v841 = vunpack.c.l.b16 %v770
    %v842 = vunpack.c.l.b16 %v771
    %v843 = vunpack.c.l.b16 %v772
    %v844 = vunpack.c.l.b16 %v773
    %v845 = vunpack.c.l.b16 %v774
    %v846 = vunpack.c.l.b16 %v775
    %v847 = vunpack.c.l.b16 %v776
    %v848 = vunpack.c.l.b16 %v777
    %v849 = vunpack.c.l.b16 %v778
    %v850 = vunpack.c.l.b16 %v779
    %v851 = vunpack.c.l.b16 %v780
    %v852 = vunpack.c.l.b16 %v781
    %v853 = vunpack.c.l.b16 %v782
    %v854 = vunpack.c.l.b16 %v783
    %v855 = vunpack.c.l.b16 %v784
    %v856 = vunpack.c.l.b16 %v785
    %v857 = vunpack.c.l.b16 %v786
    %v858 = vunpack.c.l.b16 %v787
    %v859 = vunpack.c.l.b16 %v788
    %v860 = vunpack.c.l.b16 %v789
    %v861 = vunpack.c.l.b16 %v790
    %v862 = vunpack.c.l.b16 %v791
    %v863 = vunpack.c.l.b16 %v792
    %v864 = vunpack.c.l.b16 %v793
    %v865 = vunpack.c.l.b16 %v794
    %v866 = vunpack.c.l.b16 %v795
    %v867 = vpack.c.b16 %v836, %v835
    %v868 = vpack.c.b16 %v838, %v837
    %v869 = vpack.c.b16 %v840, %v839
    %v870 = vpack.c.b16 %v842, %v841
    %v871 = vpack.c.b16 %v844, %v843
    %v872 = vpack.c.b16 %v846, %v845
    %v873 = vpack.c.b16 %v848, %v847
    %v874 = vpack.c.b16 %v850, %v849
    %v875 = vpack.c.b16 %v852, %v851
    %v876 = vpack.c.b16 %v854, %v853
    %v877 = vpack.c.b16 %v856, %v855
    %v878 = vpack.c.b16 %v858, %v857
    %v879 = vpack.c.b16 %v860, %v859
    %v880 = vpack.c.b16 %v862, %v861
    %v881 = vpack.c.b16 %v864, %v863
    %v882 = vpack.c.b16 %v866, %v865
    %899 = vmatprep.subr.bf16.mxu0 0
    %900 = vmatpush1.bf16.msra.mxu0 %v874
    %901 = vmatprep.subr.bf16.mxu0 0
    %902 = vmatpush1.bf16.msra.mxu0 %v873
    %903 = vmatprep.subr.bf16.mxu0 0
    %904 = vmatpush1.bf16.msra.mxu0 %v872
    %905 = vmatprep.subr.bf16.mxu0 0
    %906 = vmatpush1.bf16.msra.mxu0 %v871
    %907 = vmatprep.subr.bf16.mxu0 0
    %908 = vmatpush1.bf16.msra.mxu0 %v870
    %909 = vmatprep.subr.bf16.mxu0 0
    %910 = vmatpush1.bf16.msra.mxu0 %v869
    %911 = vmatprep.subr.bf16.mxu0 0
    %912 = vmatpush1.bf16.msra.mxu0 %v868
    %913 = vmatprep.subr.bf16.mxu0 0
    %914 = vmatpush1.bf16.msra.mxu0 %v867
    %915 = vmatprep.subr.bf16.mxu0 0
    %916 = vmatpush2.bf16.msra.mxu0 %v882
    %917 = vmatprep.subr.bf16.mxu0 0
    %918 = vmatpush2.bf16.msra.mxu0 %v881
    %919 = vmatprep.subr.bf16.mxu0 0
    %920 = vmatpush2.bf16.msra.mxu0 %v880
    %921 = vmatprep.subr.bf16.mxu0 0
    %922 = vmatpush2.bf16.msra.mxu0 %v879
    %923 = vmatprep.subr.bf16.mxu0 0
    %924 = vmatpush2.bf16.msra.mxu0 %v878
    %925 = vmatprep.subr.bf16.mxu0 0
    %926 = vmatpush2.bf16.msra.mxu0 %v877
    %927 = vmatprep.subr.bf16.mxu0 0
    %928 = vmatpush2.bf16.msra.mxu0 %v876
    %929 = vmatprep.subr.bf16.mxu0 0
    %930 = vmatpush2.bf16.msra.mxu0 %v875
    %931 = vmatprep.mubr.bf16.mxu0 %v763
    %932 = vmatmul.mubr.bf16.gmra.mxu0 %v503
    %v933 = vpop.f32.mrf.mxu0
    %v934 = vadd.f32 %v801, %v933
    %v935 = vpop.f32.mrf.mxu0
    %v936 = vpop.f32.mrf.mxu0
    %v937 = vpop.f32.mrf.mxu0
    %938 = vdwg.mxu0
    %v939 = vtanh.pop %v934
    %v940 = vmul.f32 %v761, %v162
    %v941 = vsub.f32 1.0, %v761
    %v942 = vmul.f32 %v941, %v939
    %v943 = vadd.f32 %v940, %v942
    %v944 = vpack.c.bf16 %v943, %v943
    %v945 = vld [vmem:[%s11] sm:$0xf]
    %v946 = vld [vmem:[%s11 + $0x4] sm:$0xf]
    %v947 = vld [vmem:[%s11 + $0x8] sm:$0xf]
    %v948 = vld [vmem:[%s11 + $0xc] sm:$0xf]
    %v949 = vld [vmem:[%s11 + $0x10] sm:$0xf]
    %v950 = vld [vmem:[%s11 + $0x14] sm:$0xf]
    %v951 = vld [vmem:[%s11 + $0x18] sm:$0xf]
    %v952 = vld [vmem:[%s11 + $0x1c] sm:$0xf]
    %v953 = vld [vmem:[%s11 + $0x20] sm:$0xf]
    %v954 = vld [vmem:[%s11 + $0x24] sm:$0xf]
    %v955 = vld [vmem:[%s11 + $0x28] sm:$0xf]
    %v956 = vld [vmem:[%s11 + $0x2c] sm:$0xf]
    %v957 = vld [vmem:[%s11 + $0x30] sm:$0xf]
    %v958 = vld [vmem:[%s11 + $0x34] sm:$0xf]
    %v959 = vld [vmem:[%s11 + $0x38] sm:$0xf]
    %v960 = vld [vmem:[%s11 + $0x3c] sm:$0xf]
    %v961 = vld [vmem:[%s12] sm:$0x1]
    %v963 = vlaneseq
    %v964 = vshrl.u32 %v963, 7
    %v965 = vsub.s32 0, %v964
    %v966 = vrot.slane %v961, %v965
    %v984 = vunpack.c.l.b16 %v945
    %v985 = vunpack.c.l.b16 %v946
    %v986 = vunpack.c.l.b16 %v947
    %v987 = vunpack.c.l.b16 %v948
    %v988 = vunpack.c.l.b16 %v949
    %v989 = vunpack.c.l.b16 %v950
    %v990 = vunpack.c.l.b16 %v951
    %v991 = vunpack.c.l.b16 %v952
    %v992 = vunpack.c.l.b16 %v953
    %v993 = vunpack.c.l.b16 %v954
    %v994 = vunpack.c.l.b16 %v955
    %v995 = vunpack.c.l.b16 %v956
    %v996 = vunpack.c.l.b16 %v957
    %v997 = vunpack.c.l.b16 %v958
    %v998 = vunpack.c.l.b16 %v959
    %v999 = vunpack.c.l.b16 %v960
    %v1000 = vpack.c.b16 %v985, %v984
    %v1001 = vpack.c.b16 %v987, %v986
    %v1002 = vpack.c.b16 %v989, %v988
    %v1003 = vpack.c.b16 %v991, %v990
    %v1004 = vpack.c.b16 %v993, %v992
    %v1005 = vpack.c.b16 %v995, %v994
    %v1006 = vpack.c.b16 %v997, %v996
    %v1007 = vpack.c.b16 %v999, %v998
    %1016 = vmatprep.subr.bf16.mxu0 0
    %1017 = vmatpush1.bf16.msra.mxu0 %v1007
    %1018 = vmatprep.subr.bf16.mxu0 0
    %1019 = vmatpush1.bf16.msra.mxu0 %v1006
    %1020 = vmatprep.subr.bf16.mxu0 0
    %1021 = vmatpush1.bf16.msra.mxu0 %v1005
    %1022 = vmatprep.subr.bf16.mxu0 0
    %1023 = vmatpush1.bf16.msra.mxu0 %v1004
    %1024 = vmatprep.subr.bf16.mxu0 0
    %1025 = vmatpush1.bf16.msra.mxu0 %v1003
    %1026 = vmatprep.subr.bf16.mxu0 0
    %1027 = vmatpush1.bf16.msra.mxu0 %v1002
    %1028 = vmatprep.subr.bf16.mxu0 0
    %1029 = vmatpush1.bf16.msra.mxu0 %v1001
    %1030 = vmatprep.subr.bf16.mxu0 0
    %1031 = vmatpush1.bf16.msra.mxu0 %v1000
    %1032 = vmatprep.subr.bf16.mxu0 0
    %1033 = vmatpush2.bf16.msra.mxu0 0
    %1034 = vmatprep.subr.bf16.mxu0 0
    %1035 = vmatpush2.bf16.msra.mxu0 0
    %1036 = vmatprep.subr.bf16.mxu0 0
    %1037 = vmatpush2.bf16.msra.mxu0 0
    %1038 = vmatprep.subr.bf16.mxu0 0
    %1039 = vmatpush2.bf16.msra.mxu0 0
    %1040 = vmatprep.subr.bf16.mxu0 0
    %1041 = vmatpush2.bf16.msra.mxu0 0
    %1042 = vmatprep.subr.bf16.mxu0 0
    %1043 = vmatpush2.bf16.msra.mxu0 0
    %1044 = vmatprep.subr.bf16.mxu0 0
    %1045 = vmatpush2.bf16.msra.mxu0 0
    %1046 = vmatprep.subr.bf16.mxu0 0
    %1047 = vmatpush2.bf16.msra.mxu0 0
    %1048 = vmatprep.mubr.bf16.mxu0 0
    %1049 = vmatmul.mubr.bf16.gmra.mxu0 %v944
    %v1050 = vpop.f32.mrf.mxu0
    %v1051 = vadd.f32 %v966, %v1050
    %v1052 = vpop.f32.mrf.mxu0
    %v1053 = vpop.f32.mrf.mxu0
    %v1054 = vpop.f32.mrf.mxu0
    %1055 = vdwg.mxu0
    %s1056 = scalar_lea.vmem [#allocation18], 2
    %1057 = vst.msk [vmem:[%s1056] sm:$0x3] %vm158, %v1051
    %s1058 = sld [smem:[#allocation2 + $0x1]]
    %v1059 = vstv %s1058
    %vm1060 = vcmp.gt.s32.totalorder %v1059, 0
    %s1061 = scalar_lea.vmem [#allocation6], 2
    %v1062 = vld [vmem:[%s1061] sm:$0x3]
    %v1063 = vsel %vm1060, %v1062, %v1051
    %1065 = vrot.lane.b32.xlu0 %v502, 32
    %v1066 = vpop.permute.xlu0 %1065
    %v1068 = vsel %vm168, %v1063, %v1066
    %v1069 = vpack.c.bf16 %v1068, %v1068
    %v1070 = vpack.c.bf16 %v1066, %v1066
    %v1071 = vld [vmem:[#allocation7] sm:$0xff]
    %v1072 = vld [vmem:[#allocation7 + $0x8] sm:$0xff]
    %v1073 = vld [vmem:[#allocation7 + $0x10] sm:$0xff]
    %v1074 = vld [vmem:[#allocation7 + $0x18] sm:$0xff]
    %v1075 = vld [vmem:[#allocation7 + $0x20] sm:$0xff]
    %v1076 = vld [vmem:[#allocation7 + $0x28] sm:$0xff]
    %v1077 = vld [vmem:[#allocation7 + $0x30] sm:$0xff]
    %v1078 = vld [vmem:[#allocation7 + $0x38] sm:$0xff]
    %v1079 = vld [vmem:[#allocation7 + $0x40] sm:$0xff]
    %v1080 = vld [vmem:[#allocation7 + $0x48] sm:$0xff]
    %v1081 = vld [vmem:[#allocation7 + $0x50] sm:$0xff]
    %v1082 = vld [vmem:[#allocation7 + $0x58] sm:$0xff]
    %v1083 = vld [vmem:[#allocation7 + $0x60] sm:$0xff]
    %v1084 = vld [vmem:[#allocation7 + $0x68] sm:$0xff]
    %v1085 = vld [vmem:[#allocation7 + $0x70] sm:$0xff]
    %v1086 = vld [vmem:[#allocation7 + $0x78] sm:$0xff]
    %v1087 = vld [vmem:[#allocation7 + $0x80] sm:$0xff]
    %v1088 = vld [vmem:[#allocation7 + $0x88] sm:$0xff]
    %v1089 = vld [vmem:[#allocation7 + $0x90] sm:$0xff]
    %v1090 = vld [vmem:[#allocation7 + $0x98] sm:$0xff]
    %v1091 = vld [vmem:[#allocation9] sm:$0x3]
    %v1093 = vlaneseq
    %v1094 = vshrl.u32 %v1093, 7
    %v1095 = vsub.s32 0, %v1094
    %v1096 = vrot.slane %v1091, %v1095
    %v1097 = vlaneseq
    %v1098 = vshrl.u32 %v1097, 7
    %v1099 = vsub.s32 1, %v1098
    %v1100 = vrot.slane %v1091, %v1099
    %v1123 = vunpack.c.l.b16 %v1071
    %v1124 = vunpack.c.h.b16 %v1071
    %v1125 = vunpack.c.l.b16 %v1072
    %v1126 = vunpack.c.h.b16 %v1072
    %v1127 = vunpack.c.l.b16 %v1073
    %v1128 = vunpack.c.h.b16 %v1073
    %v1129 = vunpack.c.l.b16 %v1074
    %v1130 = vunpack.c.h.b16 %v1074
    %v1131 = vunpack.c.l.b16 %v1075
    %v1132 = vunpack.c.h.b16 %v1075
    %v1133 = vunpack.c.l.b16 %v1076
    %v1134 = vunpack.c.h.b16 %v1076
    %v1135 = vunpack.c.l.b16 %v1077
    %v1136 = vunpack.c.h.b16 %v1077
    %v1137 = vunpack.c.l.b16 %v1078
    %v1138 = vunpack.c.h.b16 %v1078
    %v1139 = vunpack.c.l.b16 %v1079
    %v1140 = vunpack.c.h.b16 %v1079
    %v1141 = vunpack.c.l.b16 %v1080
    %v1142 = vunpack.c.h.b16 %v1080
    %v1143 = vunpack.c.l.b16 %v1081
    %v1144 = vunpack.c.h.b16 %v1081
    %v1145 = vunpack.c.l.b16 %v1082
    %v1146 = vunpack.c.h.b16 %v1082
    %v1147 = vunpack.c.l.b16 %v1083
    %v1148 = vunpack.c.h.b16 %v1083
    %v1149 = vunpack.c.l.b16 %v1084
    %v1150 = vunpack.c.h.b16 %v1084
    %v1151 = vunpack.c.l.b16 %v1085
    %v1152 = vunpack.c.h.b16 %v1085
    %v1153 = vunpack.c.l.b16 %v1086
    %v1154 = vunpack.c.h.b16 %v1086
    %v1155 = vunpack.c.l.b16 %v1087
    %v1156 = vunpack.c.h.b16 %v1087
    %v1157 = vunpack.c.l.b16 %v1088
    %v1158 = vunpack.c.h.b16 %v1088
    %v1159 = vunpack.c.l.b16 %v1089
    %v1160 = vunpack.c.h.b16 %v1089
    %v1161 = vunpack.c.l.b16 %v1090
    %v1162 = vunpack.c.h.b16 %v1090
    %v1163 = vpack.c.b16 %v1125, %v1123
    %v1164 = vpack.c.b16 %v1126, %v1124
    %v1165 = vpack.c.b16 %v1129, %v1127
    %v1166 = vpack.c.b16 %v1130, %v1128
    %v1167 = vpack.c.b16 %v1133, %v1131
    %v1168 = vpack.c.b16 %v1134, %v1132
    %v1169 = vpack.c.b16 %v1137, %v1135
    %v1170 = vpack.c.b16 %v1138, %v1136
    %v1171 = vpack.c.b16 %v1141, %v1139
    %v1172 = vpack.c.b16 %v1142, %v1140
    %v1173 = vpack.c.b16 %v1145, %v1143
    %v1174 = vpack.c.b16 %v1146, %v1144
    %v1175 = vpack.c.b16 %v1149, %v1147
    %v1176 = vpack.c.b16 %v1150, %v1148
    %v1177 = vpack.c.b16 %v1153, %v1151
    %v1178 = vpack.c.b16 %v1154, %v1152
    %v1179 = vpack.c.b16 %v1157, %v1155
    %v1180 = vpack.c.b16 %v1158, %v1156
    %v1181 = vpack.c.b16 %v1161, %v1159
    %v1182 = vpack.c.b16 %v1162, %v1160
    %v1204 = vsel %vm168, %v1070, 0
    %1206 = vmatprep.subr.bf16.mxu0 %v1178
    %1207 = vmatpush1.bf16.msra.mxu0 %v1177
    %1208 = vmatprep.subr.bf16.mxu0 %v1176
    %1209 = vmatpush1.bf16.msra.mxu0 %v1175
    %1210 = vmatprep.subr.bf16.mxu0 %v1174
    %1211 = vmatpush1.bf16.msra.mxu0 %v1173
    %1212 = vmatprep.subr.bf16.mxu0 %v1172
    %1213 = vmatpush1.bf16.msra.mxu0 %v1171
    %1214 = vmatprep.subr.bf16.mxu0 %v1170
    %1215 = vmatpush1.bf16.msra.mxu0 %v1169
    %1216 = vmatprep.subr.bf16.mxu0 %v1168
    %1217 = vmatpush1.bf16.msra.mxu0 %v1167
    %1218 = vmatprep.subr.bf16.mxu0 %v1166
    %1219 = vmatpush1.bf16.msra.mxu0 %v1165
    %1220 = vmatprep.subr.bf16.mxu0 %v1164
    %1221 = vmatpush1.bf16.msra.mxu0 %v1163
    %1222 = vmatprep.subr.bf16.mxu0 0
    %1223 = vmatpush2.bf16.msra.mxu0 0
    %1224 = vmatprep.subr.bf16.mxu0 0
    %1225 = vmatpush2.bf16.msra.mxu0 0
    %1226 = vmatprep.subr.bf16.mxu0 0
    %1227 = vmatpush2.bf16.msra.mxu0 0
    %1228 = vmatprep.subr.bf16.mxu0 0
    %1229 = vmatpush2.bf16.msra.mxu0 0
    %1230 = vmatprep.subr.bf16.mxu0 0
    %1231 = vmatpush2.bf16.msra.mxu0 0
    %1232 = vmatprep.subr.bf16.mxu0 0
    %1233 = vmatpush2.bf16.msra.mxu0 0
    %1234 = vmatprep.subr.bf16.mxu0 %v1182
    %1235 = vmatpush2.bf16.msra.mxu0 %v1181
    %1236 = vmatprep.subr.bf16.mxu0 %v1180
    %1237 = vmatpush2.bf16.msra.mxu0 %v1179
    %1238 = vmatprep.mubr.bf16.mxu0 %v1204
    %1239 = vmatmul.mubr.bf16.gmra.mxu0 %v1069
    %v1240 = vpop.f32.mrf.mxu0
    %v1241 = vadd.f32 %v1096, %v1240
    %v1242 = vpop.f32.mrf.mxu0
    %v1243 = vadd.f32 %v1100, %v1242
    %v1244 = vpop.f32.mrf.mxu0
    %v1245 = vpop.f32.mrf.mxu0
    %1246 = vdwg.mxu0
    %v1247 = vxor.u32 %v1241, 2147483648
    %v1248 = vxor.u32 %v1243, 2147483648
    %v1249 = vmul.f32 %v1247, 1.442695
    %v1250 = vpow.pop %v1249
    %v1251 = vmul.f32 %v1248, 1.442695
    %v1252 = vpow.pop %v1251
    %v1253 = vadd.f32 %v1250, 1.0
    %v1254 = vadd.f32 %v1252, 1.0
    %v1255 = vrcp.pop %v1253
    %v1256 = vmul.f32 1.0, %v1255
    %v1257 = vrcp.pop %v1254
    %v1258 = vmul.f32 1.0, %v1257
    %v1259 = vmul.f32 %v1256, %v502
    %1261 = vrot.lane.b32.xlu0 %v1259, 32
    %v1262 = vpop.permute.xlu0 %1261
    %v1264 = vsel %vm168, %v1063, %v1262
    %v1265 = vpack.c.bf16 %v1264, %v1264
    %v1266 = vpack.c.bf16 %v1262, %v1262
    %v1267 = vld [vmem:[%s4] sm:$0xf]
    %v1268 = vld [vmem:[%s4 + $0x4] sm:$0xf]
    %v1269 = vld [vmem:[%s4 + $0x8] sm:$0xf]
    %v1270 = vld [vmem:[%s4 + $0xc] sm:$0xf]
    %v1271 = vld [vmem:[%s4 + $0x10] sm:$0xf]
    %v1272 = vld [vmem:[%s4 + $0x14] sm:$0xf]
    %v1273 = vld [vmem:[%s4 + $0x18] sm:$0xf]
    %v1274 = vld [vmem:[%s4 + $0x1c] sm:$0xf]
    %v1275 = vld [vmem:[%s4 + $0x20] sm:$0xf]
    %v1276 = vld [vmem:[%s4 + $0x24] sm:$0xf]
    %v1277 = vld [vmem:[%s4 + $0x28] sm:$0xf]
    %v1278 = vld [vmem:[%s4 + $0x2c] sm:$0xf]
    %v1279 = vld [vmem:[%s4 + $0x30] sm:$0xf]
    %v1280 = vld [vmem:[%s4 + $0x34] sm:$0xf]
    %v1281 = vld [vmem:[%s4 + $0x38] sm:$0xf]
    %v1282 = vld [vmem:[%s4 + $0x3c] sm:$0xf]
    %v1283 = vld [vmem:[%s4 + $0x40] sm:$0xf]
    %v1284 = vld [vmem:[%s4 + $0x44] sm:$0xf]
    %v1285 = vld [vmem:[%s4 + $0x48] sm:$0xf]
    %v1286 = vld [vmem:[%s4 + $0x4c] sm:$0xf]
    %v1287 = vld [vmem:[#allocation10] sm:$0x1]
    %v1289 = vlaneseq
    %v1290 = vshrl.u32 %v1289, 7
    %v1291 = vsub.s32 0, %v1290
    %v1292 = vrot.slane %v1287, %v1291
    %v1314 = vunpack.c.l.b16 %v1267
    %v1315 = vunpack.c.l.b16 %v1268
    %v1316 = vunpack.c.l.b16 %v1269
    %v1317 = vunpack.c.l.b16 %v1270
    %v1318 = vunpack.c.l.b16 %v1271
    %v1319 = vunpack.c.l.b16 %v1272
    %v1320 = vunpack.c.l.b16 %v1273
    %v1321 = vunpack.c.l.b16 %v1274
    %v1322 = vunpack.c.l.b16 %v1275
    %v1323 = vunpack.c.l.b16 %v1276
    %v1324 = vunpack.c.l.b16 %v1277
    %v1325 = vunpack.c.l.b16 %v1278
    %v1326 = vunpack.c.l.b16 %v1279
    %v1327 = vunpack.c.l.b16 %v1280
    %v1328 = vunpack.c.l.b16 %v1281
    %v1329 = vunpack.c.l.b16 %v1282
    %v1330 = vunpack.c.l.b16 %v1283
    %v1331 = vunpack.c.l.b16 %v1284
    %v1332 = vunpack.c.l.b16 %v1285
    %v1333 = vunpack.c.l.b16 %v1286
    %v1334 = vpack.c.b16 %v1315, %v1314
    %v1335 = vpack.c.b16 %v1317, %v1316
    %v1336 = vpack.c.b16 %v1319, %v1318
    %v1337 = vpack.c.b16 %v1321, %v1320
    %v1338 = vpack.c.b16 %v1323, %v1322
    %v1339 = vpack.c.b16 %v1325, %v1324
    %v1340 = vpack.c.b16 %v1327, %v1326
    %v1341 = vpack.c.b16 %v1329, %v1328
    %v1342 = vpack.c.b16 %v1331, %v1330
    %v1343 = vpack.c.b16 %v1333, %v1332
    %v1355 = vsel %vm168, %v1266, 0
    %1357 = vmatprep.subr.bf16.mxu0 0
    %1358 = vmatpush1.bf16.msra.mxu0 %v1341
    %1359 = vmatprep.subr.bf16.mxu0 0
    %1360 = vmatpush1.bf16.msra.mxu0 %v1340
    %1361 = vmatprep.subr.bf16.mxu0 0
    %1362 = vmatpush1.bf16.msra.mxu0 %v1339
    %1363 = vmatprep.subr.bf16.mxu0 0
    %1364 = vmatpush1.bf16.msra.mxu0 %v1338
    %1365 = vmatprep.subr.bf16.mxu0 0
    %1366 = vmatpush1.bf16.msra.mxu0 %v1337
    %1367 = vmatprep.subr.bf16.mxu0 0
    %1368 = vmatpush1.bf16.msra.mxu0 %v1336
    %1369 = vmatprep.subr.bf16.mxu0 0
    %1370 = vmatpush1.bf16.msra.mxu0 %v1335
    %1371 = vmatprep.subr.bf16.mxu0 0
    %1372 = vmatpush1.bf16.msra.mxu0 %v1334
    %1373 = vmatprep.subr.bf16.mxu0 0
    %1374 = vmatpush2.bf16.msra.mxu0 0
    %1375 = vmatprep.subr.bf16.mxu0 0
    %1376 = vmatpush2.bf16.msra.mxu0 0
    %1377 = vmatprep.subr.bf16.mxu0 0
    %1378 = vmatpush2.bf16.msra.mxu0 0
    %1379 = vmatprep.subr.bf16.mxu0 0
    %1380 = vmatpush2.bf16.msra.mxu0 0
    %1381 = vmatprep.subr.bf16.mxu0 0
    %1382 = vmatpush2.bf16.msra.mxu0 0
    %1383 = vmatprep.subr.bf16.mxu0 0
    %1384 = vmatpush2.bf16.msra.mxu0 0
    %1385 = vmatprep.subr.bf16.mxu0 0
    %1386 = vmatpush2.bf16.msra.mxu0 %v1343
    %1387 = vmatprep.subr.bf16.mxu0 0
    %1388 = vmatpush2.bf16.msra.mxu0 %v1342
    %1389 = vmatprep.mubr.bf16.mxu0 %v1355
    %1390 = vmatmul.mubr.bf16.gmra.mxu0 %v1265
    %v1391 = vpop.f32.mrf.mxu0
    %v1392 = vadd.f32 %v1292, %v1391
    %v1393 = vpop.f32.mrf.mxu0
    %v1394 = vpop.f32.mrf.mxu0
    %v1395 = vpop.f32.mrf.mxu0
    %1396 = vdwg.mxu0
    %v1397 = vtanh.pop %v1392
    %v1398 = vmul.f32 %v1258, %v502
    %v1399 = vsub.f32 1.0, %v1258
    %v1400 = vmul.f32 %v1399, %v1397
    %v1401 = vadd.f32 %v1398, %v1400
    %v1402 = vpack.c.bf16 %v1401, %v1401
    %v1403 = vld [vmem:[#allocation12] sm:$0xff]
    %v1404 = vld [vmem:[#allocation12 + $0x8] sm:$0xff]
    %v1405 = vld [vmem:[#allocation12 + $0x10] sm:$0xff]
    %v1406 = vld [vmem:[#allocation12 + $0x18] sm:$0xff]
    %v1407 = vld [vmem:[#allocation12 + $0x20] sm:$0xff]
    %v1408 = vld [vmem:[#allocation12 + $0x28] sm:$0xff]
    %v1409 = vld [vmem:[#allocation12 + $0x30] sm:$0xff]
    %v1410 = vld [vmem:[#allocation12 + $0x38] sm:$0xff]
    %v1411 = vld [vmem:[#allocation12 + $0x40] sm:$0xff]
    %v1412 = vld [vmem:[#allocation12 + $0x48] sm:$0xff]
    %v1413 = vld [vmem:[#allocation12 + $0x50] sm:$0xff]
    %v1414 = vld [vmem:[#allocation12 + $0x58] sm:$0xff]
    %v1415 = vld [vmem:[#allocation12 + $0x60] sm:$0xff]
    %v1416 = vld [vmem:[#allocation12 + $0x68] sm:$0xff]
    %v1417 = vld [vmem:[#allocation12 + $0x70] sm:$0xff]
    %v1418 = vld [vmem:[#allocation12 + $0x78] sm:$0xff]
    %v1419 = vld [vmem:[#allocation12 + $0x80] sm:$0xff]
    %v1420 = vld [vmem:[#allocation12 + $0x88] sm:$0xff]
    %v1421 = vld [vmem:[#allocation12 + $0x90] sm:$0xff]
    %v1422 = vld [vmem:[#allocation12 + $0x98] sm:$0xff]
    %v1423 = vld [vmem:[#allocation12 + $0xa0] sm:$0xff]
    %v1424 = vld [vmem:[#allocation12 + $0xa8] sm:$0xff]
    %v1425 = vld [vmem:[#allocation12 + $0xb0] sm:$0xff]
    %v1426 = vld [vmem:[#allocation12 + $0xb8] sm:$0xff]
    %v1427 = vld [vmem:[#allocation12 + $0xc0] sm:$0xff]
    %v1428 = vld [vmem:[#allocation12 + $0xc8] sm:$0xff]
    %v1429 = vld [vmem:[#allocation12 + $0xd0] sm:$0xff]
    %v1430 = vld [vmem:[#allocation12 + $0xd8] sm:$0xff]
    %v1431 = vld [vmem:[#allocation12 + $0xe0] sm:$0xff]
    %v1432 = vld [vmem:[#allocation12 + $0xe8] sm:$0xff]
    %v1433 = vld [vmem:[#allocation12 + $0xf0] sm:$0xff]
    %v1434 = vld [vmem:[#allocation12 + $0xf8] sm:$0xff]
    %v1435 = vld [vmem:[#allocation15] sm:$0x3]
    %v1437 = vlaneseq
    %v1438 = vshrl.u32 %v1437, 7
    %v1439 = vsub.s32 0, %v1438
    %v1440 = vrot.slane %v1435, %v1439
    %v1441 = vlaneseq
    %v1442 = vshrl.u32 %v1441, 7
    %v1443 = vsub.s32 1, %v1442
    %v1444 = vrot.slane %v1435, %v1443
    %v1479 = vunpack.c.l.b16 %v1403
    %v1480 = vunpack.c.h.b16 %v1403
    %v1481 = vunpack.c.l.b16 %v1404
    %v1482 = vunpack.c.h.b16 %v1404
    %v1483 = vunpack.c.l.b16 %v1405
    %v1484 = vunpack.c.h.b16 %v1405
    %v1485 = vunpack.c.l.b16 %v1406
    %v1486 = vunpack.c.h.b16 %v1406
    %v1487 = vunpack.c.l.b16 %v1407
    %v1488 = vunpack.c.h.b16 %v1407
    %v1489 = vunpack.c.l.b16 %v1408
    %v1490 = vunpack.c.h.b16 %v1408
    %v1491 = vunpack.c.l.b16 %v1409
    %v1492 = vunpack.c.h.b16 %v1409
    %v1493 = vunpack.c.l.b16 %v1410
    %v1494 = vunpack.c.h.b16 %v1410
    %v1495 = vunpack.c.l.b16 %v1411
    %v1496 = vunpack.c.h.b16 %v1411
    %v1497 = vunpack.c.l.b16 %v1412
    %v1498 = vunpack.c.h.b16 %v1412
    %v1499 = vunpack.c.l.b16 %v1413
    %v1500 = vunpack.c.h.b16 %v1413
    %v1501 = vunpack.c.l.b16 %v1414
    %v1502 = vunpack.c.h.b16 %v1414
    %v1503 = vunpack.c.l.b16 %v1415
    %v1504 = vunpack.c.h.b16 %v1415
    %v1505 = vunpack.c.l.b16 %v1416
    %v1506 = vunpack.c.h.b16 %v1416
    %v1507 = vunpack.c.l.b16 %v1417
    %v1508 = vunpack.c.h.b16 %v1417
    %v1509 = vunpack.c.l.b16 %v1418
    %v1510 = vunpack.c.h.b16 %v1418
    %v1511 = vunpack.c.l.b16 %v1419
    %v1512 = vunpack.c.h.b16 %v1419
    %v1513 = vunpack.c.l.b16 %v1420
    %v1514 = vunpack.c.h.b16 %v1420
    %v1515 = vunpack.c.l.b16 %v1421
    %v1516 = vunpack.c.h.b16 %v1421
    %v1517 = vunpack.c.l.b16 %v1422
    %v1518 = vunpack.c.h.b16 %v1422
    %v1519 = vunpack.c.l.b16 %v1423
    %v1520 = vunpack.c.h.b16 %v1423
    %v1521 = vunpack.c.l.b16 %v1424
    %v1522 = vunpack.c.h.b16 %v1424
    %v1523 = vunpack.c.l.b16 %v1425
    %v1524 = vunpack.c.h.b16 %v1425
    %v1525 = vunpack.c.l.b16 %v1426
    %v1526 = vunpack.c.h.b16 %v1426
    %v1527 = vunpack.c.l.b16 %v1427
    %v1528 = vunpack.c.h.b16 %v1427
    %v1529 = vunpack.c.l.b16 %v1428
    %v1530 = vunpack.c.h.b16 %v1428
    %v1531 = vunpack.c.l.b16 %v1429
    %v1532 = vunpack.c.h.b16 %v1429
    %v1533 = vunpack.c.l.b16 %v1430
    %v1534 = vunpack.c.h.b16 %v1430
    %v1535 = vunpack.c.l.b16 %v1431
    %v1536 = vunpack.c.h.b16 %v1431
    %v1537 = vunpack.c.l.b16 %v1432
    %v1538 = vunpack.c.h.b16 %v1432
    %v1539 = vunpack.c.l.b16 %v1433
    %v1540 = vunpack.c.h.b16 %v1433
    %v1541 = vunpack.c.l.b16 %v1434
    %v1542 = vunpack.c.h.b16 %v1434
    %v1543 = vpack.c.b16 %v1481, %v1479
    %v1544 = vpack.c.b16 %v1482, %v1480
    %v1545 = vpack.c.b16 %v1485, %v1483
    %v1546 = vpack.c.b16 %v1486, %v1484
    %v1547 = vpack.c.b16 %v1489, %v1487
    %v1548 = vpack.c.b16 %v1490, %v1488
    %v1549 = vpack.c.b16 %v1493, %v1491
    %v1550 = vpack.c.b16 %v1494, %v1492
    %v1551 = vpack.c.b16 %v1497, %v1495
    %v1552 = vpack.c.b16 %v1498, %v1496
    %v1553 = vpack.c.b16 %v1501, %v1499
    %v1554 = vpack.c.b16 %v1502, %v1500
    %v1555 = vpack.c.b16 %v1505, %v1503
    %v1556 = vpack.c.b16 %v1506, %v1504
    %v1557 = vpack.c.b16 %v1509, %v1507
    %v1558 = vpack.c.b16 %v1510, %v1508
    %v1559 = vpack.c.b16 %v1513, %v1511
    %v1560 = vpack.c.b16 %v1514, %v1512
    %v1561 = vpack.c.b16 %v1517, %v1515
    %v1562 = vpack.c.b16 %v1518, %v1516
    %v1563 = vpack.c.b16 %v1521, %v1519
    %v1564 = vpack.c.b16 %v1522, %v1520
    %v1565 = vpack.c.b16 %v1525, %v1523
    %v1566 = vpack.c.b16 %v1526, %v1524
    %v1567 = vpack.c.b16 %v1529, %v1527
    %v1568 = vpack.c.b16 %v1530, %v1528
    %v1569 = vpack.c.b16 %v1533, %v1531
    %v1570 = vpack.c.b16 %v1534, %v1532
    %v1571 = vpack.c.b16 %v1537, %v1535
    %v1572 = vpack.c.b16 %v1538, %v1536
    %v1573 = vpack.c.b16 %v1541, %v1539
    %v1574 = vpack.c.b16 %v1542, %v1540
    %1607 = vmatprep.subr.bf16.mxu0 %v1558
    %1608 = vmatpush1.bf16.msra.mxu0 %v1557
    %1609 = vmatprep.subr.bf16.mxu0 %v1556
    %1610 = vmatpush1.bf16.msra.mxu0 %v1555
    %1611 = vmatprep.subr.bf16.mxu0 %v1554
    %1612 = vmatpush1.bf16.msra.mxu0 %v1553
    %1613 = vmatprep.subr.bf16.mxu0 %v1552
    %1614 = vmatpush1.bf16.msra.mxu0 %v1551
    %1615 = vmatprep.subr.bf16.mxu0 %v1550
    %1616 = vmatpush1.bf16.msra.mxu0 %v1549
    %1617 = vmatprep.subr.bf16.mxu0 %v1548
    %1618 = vmatpush1.bf16.msra.mxu0 %v1547
    %1619 = vmatprep.subr.bf16.mxu0 %v1546
    %1620 = vmatpush1.bf16.msra.mxu0 %v1545
    %1621 = vmatprep.subr.bf16.mxu0 %v1544
    %1622 = vmatpush1.bf16.msra.mxu0 %v1543
    %1623 = vmatprep.subr.bf16.mxu0 %v1574
    %1624 = vmatpush2.bf16.msra.mxu0 %v1573
    %1625 = vmatprep.subr.bf16.mxu0 %v1572
    %1626 = vmatpush2.bf16.msra.mxu0 %v1571
    %1627 = vmatprep.subr.bf16.mxu0 %v1570
    %1628 = vmatpush2.bf16.msra.mxu0 %v1569
    %1629 = vmatprep.subr.bf16.mxu0 %v1568
    %1630 = vmatpush2.bf16.msra.mxu0 %v1567
    %1631 = vmatprep.subr.bf16.mxu0 %v1566
    %1632 = vmatpush2.bf16.msra.mxu0 %v1565
    %1633 = vmatprep.subr.bf16.mxu0 %v1564
    %1634 = vmatpush2.bf16.msra.mxu0 %v1563
    %1635 = vmatprep.subr.bf16.mxu0 %v1562
    %1636 = vmatpush2.bf16.msra.mxu0 %v1561
    %1637 = vmatprep.subr.bf16.mxu0 %v1560
    %1638 = vmatpush2.bf16.msra.mxu0 %v1559
    %1639 = vmatprep.mubr.bf16.mxu0 %v944
    %1640 = vmatmul.mubr.bf16.gmra.mxu0 %v1402
    %v1641 = vpop.f32.mrf.mxu0
    %v1642 = vadd.f32 %v1440, %v1641
    %v1643 = vpop.f32.mrf.mxu0
    %v1644 = vadd.f32 %v1444, %v1643
    %v1645 = vpop.f32.mrf.mxu0
    %v1646 = vpop.f32.mrf.mxu0
    %1647 = vdwg.mxu0
    %v1648 = vxor.u32 %v1642, 2147483648
    %v1649 = vxor.u32 %v1644, 2147483648
    %v1650 = vmul.f32 %v1648, 1.442695
    %v1651 = vpow.pop %v1650
    %v1652 = vmul.f32 %v1649, 1.442695
    %v1653 = vpow.pop %v1652
    %v1654 = vadd.f32 %v1651, 1.0
    %v1655 = vadd.f32 %v1653, 1.0
    %v1656 = vrcp.pop %v1654
    %v1657 = vmul.f32 1.0, %v1656
    %v1658 = vrcp.pop %v1655
    %v1659 = vmul.f32 1.0, %v1658
    %v1660 = vmul.f32 %v1657, %v943
    %v1661 = vpack.c.bf16 %v1660, %v1660
    %v1662 = vld [vmem:[#allocation13] sm:$0xf]
    %v1663 = vld [vmem:[#allocation13 + $0x4] sm:$0xf]
    %v1664 = vld [vmem:[#allocation13 + $0x8] sm:$0xf]
    %v1665 = vld [vmem:[#allocation13 + $0xc] sm:$0xf]
    %v1666 = vld [vmem:[#allocation13 + $0x10] sm:$0xf]
    %v1667 = vld [vmem:[#allocation13 + $0x14] sm:$0xf]
    %v1668 = vld [vmem:[#allocation13 + $0x18] sm:$0xf]
    %v1669 = vld [vmem:[#allocation13 + $0x1c] sm:$0xf]
    %v1670 = vld [vmem:[#allocation13 + $0x20] sm:$0xf]
    %v1671 = vld [vmem:[#allocation13 + $0x24] sm:$0xf]
    %v1672 = vld [vmem:[#allocation13 + $0x28] sm:$0xf]
    %v1673 = vld [vmem:[#allocation13 + $0x2c] sm:$0xf]
    %v1674 = vld [vmem:[#allocation13 + $0x30] sm:$0xf]
    %v1675 = vld [vmem:[#allocation13 + $0x34] sm:$0xf]
    %v1676 = vld [vmem:[#allocation13 + $0x38] sm:$0xf]
    %v1677 = vld [vmem:[#allocation13 + $0x3c] sm:$0xf]
    %v1678 = vld [vmem:[#allocation13 + $0x40] sm:$0xf]
    %v1679 = vld [vmem:[#allocation13 + $0x44] sm:$0xf]
    %v1680 = vld [vmem:[#allocation13 + $0x48] sm:$0xf]
    %v1681 = vld [vmem:[#allocation13 + $0x4c] sm:$0xf]
    %v1682 = vld [vmem:[#allocation13 + $0x50] sm:$0xf]
    %v1683 = vld [vmem:[#allocation13 + $0x54] sm:$0xf]
    %v1684 = vld [vmem:[#allocation13 + $0x58] sm:$0xf]
    %v1685 = vld [vmem:[#allocation13 + $0x5c] sm:$0xf]
    %v1686 = vld [vmem:[#allocation13 + $0x60] sm:$0xf]
    %v1687 = vld [vmem:[#allocation13 + $0x64] sm:$0xf]
    %v1688 = vld [vmem:[#allocation13 + $0x68] sm:$0xf]
    %v1689 = vld [vmem:[#allocation13 + $0x6c] sm:$0xf]
    %v1690 = vld [vmem:[#allocation13 + $0x70] sm:$0xf]
    %v1691 = vld [vmem:[#allocation13 + $0x74] sm:$0xf]
    %v1692 = vld [vmem:[#allocation13 + $0x78] sm:$0xf]
    %v1693 = vld [vmem:[#allocation13 + $0x7c] sm:$0xf]
    %v1694 = vld [vmem:[#allocation16] sm:$0x1]
    %v1696 = vlaneseq
    %v1697 = vshrl.u32 %v1696, 7
    %v1698 = vsub.s32 0, %v1697
    %v1699 = vrot.slane %v1694, %v1698
    %v1733 = vunpack.c.l.b16 %v1662
    %v1734 = vunpack.c.l.b16 %v1663
    %v1735 = vunpack.c.l.b16 %v1664
    %v1736 = vunpack.c.l.b16 %v1665
    %v1737 = vunpack.c.l.b16 %v1666
    %v1738 = vunpack.c.l.b16 %v1667
    %v1739 = vunpack.c.l.b16 %v1668
    %v1740 = vunpack.c.l.b16 %v1669
    %v1741 = vunpack.c.l.b16 %v1670
    %v1742 = vunpack.c.l.b16 %v1671
    %v1743 = vunpack.c.l.b16 %v1672
    %v1744 = vunpack.c.l.b16 %v1673
    %v1745 = vunpack.c.l.b16 %v1674
    %v1746 = vunpack.c.l.b16 %v1675
    %v1747 = vunpack.c.l.b16 %v1676
    %v1748 = vunpack.c.l.b16 %v1677
    %v1749 = vunpack.c.l.b16 %v1678
    %v1750 = vunpack.c.l.b16 %v1679
    %v1751 = vunpack.c.l.b16 %v1680
    %v1752 = vunpack.c.l.b16 %v1681
    %v1753 = vunpack.c.l.b16 %v1682
    %v1754 = vunpack.c.l.b16 %v1683
    %v1755 = vunpack.c.l.b16 %v1684
    %v1756 = vunpack.c.l.b16 %v1685
    %v1757 = vunpack.c.l.b16 %v1686
    %v1758 = vunpack.c.l.b16 %v1687
    %v1759 = vunpack.c.l.b16 %v1688
    %v1760 = vunpack.c.l.b16 %v1689
    %v1761 = vunpack.c.l.b16 %v1690
    %v1762 = vunpack.c.l.b16 %v1691
    %v1763 = vunpack.c.l.b16 %v1692
    %v1764 = vunpack.c.l.b16 %v1693
    %v1765 = vpack.c.b16 %v1734, %v1733
    %v1766 = vpack.c.b16 %v1736, %v1735
    %v1767 = vpack.c.b16 %v1738, %v1737
    %v1768 = vpack.c.b16 %v1740, %v1739
    %v1769 = vpack.c.b16 %v1742, %v1741
    %v1770 = vpack.c.b16 %v1744, %v1743
    %v1771 = vpack.c.b16 %v1746, %v1745
    %v1772 = vpack.c.b16 %v1748, %v1747
    %v1773 = vpack.c.b16 %v1750, %v1749
    %v1774 = vpack.c.b16 %v1752, %v1751
    %v1775 = vpack.c.b16 %v1754, %v1753
    %v1776 = vpack.c.b16 %v1756, %v1755
    %v1777 = vpack.c.b16 %v1758, %v1757
    %v1778 = vpack.c.b16 %v1760, %v1759
    %v1779 = vpack.c.b16 %v1762, %v1761
    %v1780 = vpack.c.b16 %v1764, %v1763
    %1797 = vmatprep.subr.bf16.mxu0 0
    %1798 = vmatpush1.bf16.msra.mxu0 %v1772
    %1799 = vmatprep.subr.bf16.mxu0 0
    %1800 = vmatpush1.bf16.msra.mxu0 %v1771
    %1801 = vmatprep.subr.bf16.mxu0 0
    %1802 = vmatpush1.bf16.msra.mxu0 %v1770
    %1803 = vmatprep.subr.bf16.mxu0 0
    %1804 = vmatpush1.bf16.msra.mxu0 %v1769
    %1805 = vmatprep.subr.bf16.mxu0 0
    %1806 = vmatpush1.bf16.msra.mxu0 %v1768
    %1807 = vmatprep.subr.bf16.mxu0 0
    %1808 = vmatpush1.bf16.msra.mxu0 %v1767
    %1809 = vmatprep.subr.bf16.mxu0 0
    %1810 = vmatpush1.bf16.msra.mxu0 %v1766
    %1811 = vmatprep.subr.bf16.mxu0 0
    %1812 = vmatpush1.bf16.msra.mxu0 %v1765
    %1813 = vmatprep.subr.bf16.mxu0 0
    %1814 = vmatpush2.bf16.msra.mxu0 %v1780
    %1815 = vmatprep.subr.bf16.mxu0 0
    %1816 = vmatpush2.bf16.msra.mxu0 %v1779
    %1817 = vmatprep.subr.bf16.mxu0 0
    %1818 = vmatpush2.bf16.msra.mxu0 %v1778
    %1819 = vmatprep.subr.bf16.mxu0 0
    %1820 = vmatpush2.bf16.msra.mxu0 %v1777
    %1821 = vmatprep.subr.bf16.mxu0 0
    %1822 = vmatpush2.bf16.msra.mxu0 %v1776
    %1823 = vmatprep.subr.bf16.mxu0 0
    %1824 = vmatpush2.bf16.msra.mxu0 %v1775
    %1825 = vmatprep.subr.bf16.mxu0 0
    %1826 = vmatpush2.bf16.msra.mxu0 %v1774
    %1827 = vmatprep.subr.bf16.mxu0 0
    %1828 = vmatpush2.bf16.msra.mxu0 %v1773
    %1829 = vmatprep.mubr.bf16.mxu0 %v1661
    %1830 = vmatmul.mubr.bf16.gmra.mxu0 %v1402
    %v1831 = vpop.f32.mrf.mxu0
    %v1832 = vadd.f32 %v1699, %v1831
    %v1833 = vpop.f32.mrf.mxu0
    %v1834 = vpop.f32.mrf.mxu0
    %v1835 = vpop.f32.mrf.mxu0
    %1836 = vdwg.mxu0
    %v1837 = vtanh.pop %v1832
    %v1838 = vmul.f32 %v1659, %v943
    %v1839 = vsub.f32 1.0, %v1659
    %v1840 = vmul.f32 %v1839, %v1837
    %v1841 = vadd.f32 %v1838, %v1840
    %v1842 = vpack.c.bf16 %v1841, %v1841
    %v1843 = vld [vmem:[%s11] sm:$0xf]
    %v1844 = vld [vmem:[%s11 + $0x4] sm:$0xf]
    %v1845 = vld [vmem:[%s11 + $0x8] sm:$0xf]
    %v1846 = vld [vmem:[%s11 + $0xc] sm:$0xf]
    %v1847 = vld [vmem:[%s11 + $0x10] sm:$0xf]
    %v1848 = vld [vmem:[%s11 + $0x14] sm:$0xf]
    %v1849 = vld [vmem:[%s11 + $0x18] sm:$0xf]
    %v1850 = vld [vmem:[%s11 + $0x1c] sm:$0xf]
    %v1851 = vld [vmem:[%s11 + $0x20] sm:$0xf]
    %v1852 = vld [vmem:[%s11 + $0x24] sm:$0xf]
    %v1853 = vld [vmem:[%s11 + $0x28] sm:$0xf]
    %v1854 = vld [vmem:[%s11 + $0x2c] sm:$0xf]
    %v1855 = vld [vmem:[%s11 + $0x30] sm:$0xf]
    %v1856 = vld [vmem:[%s11 + $0x34] sm:$0xf]
    %v1857 = vld [vmem:[%s11 + $0x38] sm:$0xf]
    %v1858 = vld [vmem:[%s11 + $0x3c] sm:$0xf]
    %v1859 = vld [vmem:[%s12] sm:$0x1]
    %v1861 = vlaneseq
    %v1862 = vshrl.u32 %v1861, 7
    %v1863 = vsub.s32 0, %v1862
    %v1864 = vrot.slane %v1859, %v1863
    %v1882 = vunpack.c.l.b16 %v1843
    %v1883 = vunpack.c.l.b16 %v1844
    %v1884 = vunpack.c.l.b16 %v1845
    %v1885 = vunpack.c.l.b16 %v1846
    %v1886 = vunpack.c.l.b16 %v1847
    %v1887 = vunpack.c.l.b16 %v1848
    %v1888 = vunpack.c.l.b16 %v1849
    %v1889 = vunpack.c.l.b16 %v1850
    %v1890 = vunpack.c.l.b16 %v1851
    %v1891 = vunpack.c.l.b16 %v1852
    %v1892 = vunpack.c.l.b16 %v1853
    %v1893 = vunpack.c.l.b16 %v1854
    %v1894 = vunpack.c.l.b16 %v1855
    %v1895 = vunpack.c.l.b16 %v1856
    %v1896 = vunpack.c.l.b16 %v1857
    %v1897 = vunpack.c.l.b16 %v1858
    %v1898 = vpack.c.b16 %v1883, %v1882
    %v1899 = vpack.c.b16 %v1885, %v1884
    %v1900 = vpack.c.b16 %v1887, %v1886
    %v1901 = vpack.c.b16 %v1889, %v1888
    %v1902 = vpack.c.b16 %v1891, %v1890
    %v1903 = vpack.c.b16 %v1893, %v1892
    %v1904 = vpack.c.b16 %v1895, %v1894
    %v1905 = vpack.c.b16 %v1897, %v1896
    %1914 = vmatprep.subr.bf16.mxu0 0
    %1915 = vmatpush1.bf16.msra.mxu0 %v1905
    %1916 = vmatprep.subr.bf16.mxu0 0
    %1917 = vmatpush1.bf16.msra.mxu0 %v1904
    %1918 = vmatprep.subr.bf16.mxu0 0
    %1919 = vmatpush1.bf16.msra.mxu0 %v1903
    %1920 = vmatprep.subr.bf16.mxu0 0
    %1921 = vmatpush1.bf16.msra.mxu0 %v1902
    %1922 = vmatprep.subr.bf16.mxu0 0
    %1923 = vmatpush1.bf16.msra.mxu0 %v1901
    %1924 = vmatprep.subr.bf16.mxu0 0
    %1925 = vmatpush1.bf16.msra.mxu0 %v1900
    %1926 = vmatprep.subr.bf16.mxu0 0
    %1927 = vmatpush1.bf16.msra.mxu0 %v1899
    %1928 = vmatprep.subr.bf16.mxu0 0
    %1929 = vmatpush1.bf16.msra.mxu0 %v1898
    %1930 = vmatprep.subr.bf16.mxu0 0
    %1931 = vmatpush2.bf16.msra.mxu0 0
    %1932 = vmatprep.subr.bf16.mxu0 0
    %1933 = vmatpush2.bf16.msra.mxu0 0
    %1934 = vmatprep.subr.bf16.mxu0 0
    %1935 = vmatpush2.bf16.msra.mxu0 0
    %1936 = vmatprep.subr.bf16.mxu0 0
    %1937 = vmatpush2.bf16.msra.mxu0 0
    %1938 = vmatprep.subr.bf16.mxu0 0
    %1939 = vmatpush2.bf16.msra.mxu0 0
    %1940 = vmatprep.subr.bf16.mxu0 0
    %1941 = vmatpush2.bf16.msra.mxu0 0
    %1942 = vmatprep.subr.bf16.mxu0 0
    %1943 = vmatpush2.bf16.msra.mxu0 0
    %1944 = vmatprep.subr.bf16.mxu0 0
    %1945 = vmatpush2.bf16.msra.mxu0 0
    %1946 = vmatprep.mubr.bf16.mxu0 0
    %1947 = vmatmul.mubr.bf16.gmra.mxu0 %v1842
    %v1948 = vpop.f32.mrf.mxu0
    %v1949 = vadd.f32 %v1864, %v1948
    %v1950 = vpop.f32.mrf.mxu0
    %v1951 = vpop.f32.mrf.mxu0
    %v1952 = vpop.f32.mrf.mxu0
    %1953 = vdwg.mxu0
    %s1954 = scalar_lea.vmem [#allocation18], 4
    %1955 = vst.msk [vmem:[%s1954] sm:$0x3] %vm158, %v1949
    %s1956 = sld [smem:[#allocation2 + $0x2]]
    %v1957 = vstv %s1956
    %vm1958 = vcmp.gt.s32.totalorder %v1957, 0
    %s1959 = scalar_lea.vmem [#allocation6], 4
    %v1960 = vld [vmem:[%s1959] sm:$0x3]
    %v1961 = vsel %vm1958, %v1960, %v1949
    %1963 = vrot.lane.b32.xlu0 %v1401, 32
    %v1964 = vpop.permute.xlu0 %1963
    %v1966 = vsel %vm168, %v1961, %v1964
    %v1967 = vpack.c.bf16 %v1966, %v1966
    %v1968 = vpack.c.bf16 %v1964, %v1964
    %v1969 = vld [vmem:[#allocation7] sm:$0xff]
    %v1970 = vld [vmem:[#allocation7 + $0x8] sm:$0xff]
    %v1971 = vld [vmem:[#allocation7 + $0x10] sm:$0xff]
    %v1972 = vld [vmem:[#allocation7 + $0x18] sm:$0xff]
    %v1973 = vld [vmem:[#allocation7 + $0x20] sm:$0xff]
    %v1974 = vld [vmem:[#allocation7 + $0x28] sm:$0xff]
    %v1975 = vld [vmem:[#allocation7 + $0x30] sm:$0xff]
    %v1976 = vld [vmem:[#allocation7 + $0x38] sm:$0xff]
    %v1977 = vld [vmem:[#allocation7 + $0x40] sm:$0xff]
    %v1978 = vld [vmem:[#allocation7 + $0x48] sm:$0xff]
    %v1979 = vld [vmem:[#allocation7 + $0x50] sm:$0xff]
    %v1980 = vld [vmem:[#allocation7 + $0x58] sm:$0xff]
    %v1981 = vld [vmem:[#allocation7 + $0x60] sm:$0xff]
    %v1982 = vld [vmem:[#allocation7 + $0x68] sm:$0xff]
    %v1983 = vld [vmem:[#allocation7 + $0x70] sm:$0xff]
    %v1984 = vld [vmem:[#allocation7 + $0x78] sm:$0xff]
    %v1985 = vld [vmem:[#allocation7 + $0x80] sm:$0xff]
    %v1986 = vld [vmem:[#allocation7 + $0x88] sm:$0xff]
    %v1987 = vld [vmem:[#allocation7 + $0x90] sm:$0xff]
    %v1988 = vld [vmem:[#allocation7 + $0x98] sm:$0xff]
    %v1989 = vld [vmem:[#allocation9] sm:$0x3]
    %v1991 = vlaneseq
    %v1992 = vshrl.u32 %v1991, 7
    %v1993 = vsub.s32 0, %v1992
    %v1994 = vrot.slane %v1989, %v1993
    %v1995 = vlaneseq
    %v1996 = vshrl.u32 %v1995, 7
    %v1997 = vsub.s32 1, %v1996
    %v1998 = vrot.slane %v1989, %v1997
    %v2021 = vunpack.c.l.b16 %v1969
    %v2022 = vunpack.c.h.b16 %v1969
    %v2023 = vunpack.c.l.b16 %v1970
    %v2024 = vunpack.c.h.b16 %v1970
    %v2025 = vunpack.c.l.b16 %v1971
    %v2026 = vunpack.c.h.b16 %v1971
    %v2027 = vunpack.c.l.b16 %v1972
    %v2028 = vunpack.c.h.b16 %v1972
    %v2029 = vunpack.c.l.b16 %v1973
    %v2030 = vunpack.c.h.b16 %v1973
    %v2031 = vunpack.c.l.b16 %v1974
    %v2032 = vunpack.c.h.b16 %v1974
    %v2033 = vunpack.c.l.b16 %v1975
    %v2034 = vunpack.c.h.b16 %v1975
    %v2035 = vunpack.c.l.b16 %v1976
    %v2036 = vunpack.c.h.b16 %v1976
    %v2037 = vunpack.c.l.b16 %v1977
    %v2038 = vunpack.c.h.b16 %v1977
    %v2039 = vunpack.c.l.b16 %v1978
    %v2040 = vunpack.c.h.b16 %v1978
    %v2041 = vunpack.c.l.b16 %v1979
    %v2042 = vunpack.c.h.b16 %v1979
    %v2043 = vunpack.c.l.b16 %v1980
    %v2044 = vunpack.c.h.b16 %v1980
    %v2045 = vunpack.c.l.b16 %v1981
    %v2046 = vunpack.c.h.b16 %v1981
    %v2047 = vunpack.c.l.b16 %v1982
    %v2048 = vunpack.c.h.b16 %v1982
    %v2049 = vunpack.c.l.b16 %v1983
    %v2050 = vunpack.c.h.b16 %v1983
    %v2051 = vunpack.c.l.b16 %v1984
    %v2052 = vunpack.c.h.b16 %v1984
    %v2053 = vunpack.c.l.b16 %v1985
    %v2054 = vunpack.c.h.b16 %v1985
    %v2055 = vunpack.c.l.b16 %v1986
    %v2056 = vunpack.c.h.b16 %v1986
    %v2057 = vunpack.c.l.b16 %v1987
    %v2058 = vunpack.c.h.b16 %v1987
    %v2059 = vunpack.c.l.b16 %v1988
    %v2060 = vunpack.c.h.b16 %v1988
    %v2061 = vpack.c.b16 %v2023, %v2021
    %v2062 = vpack.c.b16 %v2024, %v2022
    %v2063 = vpack.c.b16 %v2027, %v2025
    %v2064 = vpack.c.b16 %v2028, %v2026
    %v2065 = vpack.c.b16 %v2031, %v2029
    %v2066 = vpack.c.b16 %v2032, %v2030
    %v2067 = vpack.c.b16 %v2035, %v2033
    %v2068 = vpack.c.b16 %v2036, %v2034
    %v2069 = vpack.c.b16 %v2039, %v2037
    %v2070 = vpack.c.b16 %v2040, %v2038
    %v2071 = vpack.c.b16 %v2043, %v2041
    %v2072 = vpack.c.b16 %v2044, %v2042
    %v2073 = vpack.c.b16 %v2047, %v2045
    %v2074 = vpack.c.b16 %v2048, %v2046
    %v2075 = vpack.c.b16 %v2051, %v2049
    %v2076 = vpack.c.b16 %v2052, %v2050
    %v2077 = vpack.c.b16 %v2055, %v2053
    %v2078 = vpack.c.b16 %v2056, %v2054
    %v2079 = vpack.c.b16 %v2059, %v2057
    %v2080 = vpack.c.b16 %v2060, %v2058
    %v2102 = vsel %vm168, %v1968, 0
    %2104 = vmatprep.subr.bf16.mxu0 %v2076
    %2105 = vmatpush1.bf16.msra.mxu0 %v2075
    %2106 = vmatprep.subr.bf16.mxu0 %v2074
    %2107 = vmatpush1.bf16.msra.mxu0 %v2073
    %2108 = vmatprep.subr.bf16.mxu0 %v2072
    %2109 = vmatpush1.bf16.msra.mxu0 %v2071
    %2110 = vmatprep.subr.bf16.mxu0 %v2070
    %2111 = vmatpush1.bf16.msra.mxu0 %v2069
    %2112 = vmatprep.subr.bf16.mxu0 %v2068
    %2113 = vmatpush1.bf16.msra.mxu0 %v2067
    %2114 = vmatprep.subr.bf16.mxu0 %v2066
    %2115 = vmatpush1.bf16.msra.mxu0 %v2065
    %2116 = vmatprep.subr.bf16.mxu0 %v2064
    %2117 = vmatpush1.bf16.msra.mxu0 %v2063
    %2118 = vmatprep.subr.bf16.mxu0 %v2062
    %2119 = vmatpush1.bf16.msra.mxu0 %v2061
    %2120 = vmatprep.subr.bf16.mxu0 0
    %2121 = vmatpush2.bf16.msra.mxu0 0
    %2122 = vmatprep.subr.bf16.mxu0 0
    %2123 = vmatpush2.bf16.msra.mxu0 0
    %2124 = vmatprep.subr.bf16.mxu0 0
    %2125 = vmatpush2.bf16.msra.mxu0 0
    %2126 = vmatprep.subr.bf16.mxu0 0
    %2127 = vmatpush2.bf16.msra.mxu0 0
    %2128 = vmatprep.subr.bf16.mxu0 0
    %2129 = vmatpush2.bf16.msra.mxu0 0
    %2130 = vmatprep.subr.bf16.mxu0 0
    %2131 = vmatpush2.bf16.msra.mxu0 0
    %2132 = vmatprep.subr.bf16.mxu0 %v2080
    %2133 = vmatpush2.bf16.msra.mxu0 %v2079
    %2134 = vmatprep.subr.bf16.mxu0 %v2078
    %2135 = vmatpush2.bf16.msra.mxu0 %v2077
    %2136 = vmatprep.mubr.bf16.mxu0 %v2102
    %2137 = vmatmul.mubr.bf16.gmra.mxu0 %v1967
    %v2138 = vpop.f32.mrf.mxu0
    %v2139 = vadd.f32 %v1994, %v2138
    %v2140 = vpop.f32.mrf.mxu0
    %v2141 = vadd.f32 %v1998, %v2140
    %v2142 = vpop.f32.mrf.mxu0
    %v2143 = vpop.f32.mrf.mxu0
    %2144 = vdwg.mxu0
    %v2145 = vxor.u32 %v2139, 2147483648
    %v2146 = vxor.u32 %v2141, 2147483648
    %v2147 = vmul.f32 %v2145, 1.442695
    %v2148 = vpow.pop %v2147
    %v2149 = vmul.f32 %v2146, 1.442695
    %v2150 = vpow.pop %v2149
    %v2151 = vadd.f32 %v2148, 1.0
    %v2152 = vadd.f32 %v2150, 1.0
    %v2153 = vrcp.pop %v2151
    %v2154 = vmul.f32 1.0, %v2153
    %v2155 = vrcp.pop %v2152
    %v2156 = vmul.f32 1.0, %v2155
    %v2157 = vmul.f32 %v2154, %v1401
    %2159 = vrot.lane.b32.xlu0 %v2157, 32
    %v2160 = vpop.permute.xlu0 %2159
    %v2162 = vsel %vm168, %v1961, %v2160
    %v2163 = vpack.c.bf16 %v2162, %v2162
    %v2164 = vpack.c.bf16 %v2160, %v2160
    %v2165 = vld [vmem:[%s4] sm:$0xf]
    %v2166 = vld [vmem:[%s4 + $0x4] sm:$0xf]
    %v2167 = vld [vmem:[%s4 + $0x8] sm:$0xf]
    %v2168 = vld [vmem:[%s4 + $0xc] sm:$0xf]
    %v2169 = vld [vmem:[%s4 + $0x10] sm:$0xf]
    %v2170 = vld [vmem:[%s4 + $0x14] sm:$0xf]
    %v2171 = vld [vmem:[%s4 + $0x18] sm:$0xf]
    %v2172 = vld [vmem:[%s4 + $0x1c] sm:$0xf]
    %v2173 = vld [vmem:[%s4 + $0x20] sm:$0xf]
    %v2174 = vld [vmem:[%s4 + $0x24] sm:$0xf]
    %v2175 = vld [vmem:[%s4 + $0x28] sm:$0xf]
    %v2176 = vld [vmem:[%s4 + $0x2c] sm:$0xf]
    %v2177 = vld [vmem:[%s4 + $0x30] sm:$0xf]
    %v2178 = vld [vmem:[%s4 + $0x34] sm:$0xf]
    %v2179 = vld [vmem:[%s4 + $0x38] sm:$0xf]
    %v2180 = vld [vmem:[%s4 + $0x3c] sm:$0xf]
    %v2181 = vld [vmem:[%s4 + $0x40] sm:$0xf]
    %v2182 = vld [vmem:[%s4 + $0x44] sm:$0xf]
    %v2183 = vld [vmem:[%s4 + $0x48] sm:$0xf]
    %v2184 = vld [vmem:[%s4 + $0x4c] sm:$0xf]
    %v2185 = vld [vmem:[#allocation10] sm:$0x1]
    %v2187 = vlaneseq
    %v2188 = vshrl.u32 %v2187, 7
    %v2189 = vsub.s32 0, %v2188
    %v2190 = vrot.slane %v2185, %v2189
    %v2212 = vunpack.c.l.b16 %v2165
    %v2213 = vunpack.c.l.b16 %v2166
    %v2214 = vunpack.c.l.b16 %v2167
    %v2215 = vunpack.c.l.b16 %v2168
    %v2216 = vunpack.c.l.b16 %v2169
    %v2217 = vunpack.c.l.b16 %v2170
    %v2218 = vunpack.c.l.b16 %v2171
    %v2219 = vunpack.c.l.b16 %v2172
    %v2220 = vunpack.c.l.b16 %v2173
    %v2221 = vunpack.c.l.b16 %v2174
    %v2222 = vunpack.c.l.b16 %v2175
    %v2223 = vunpack.c.l.b16 %v2176
    %v2224 = vunpack.c.l.b16 %v2177
    %v2225 = vunpack.c.l.b16 %v2178
    %v2226 = vunpack.c.l.b16 %v2179
    %v2227 = vunpack.c.l.b16 %v2180
    %v2228 = vunpack.c.l.b16 %v2181
    %v2229 = vunpack.c.l.b16 %v2182
    %v2230 = vunpack.c.l.b16 %v2183
    %v2231 = vunpack.c.l.b16 %v2184
    %v2232 = vpack.c.b16 %v2213, %v2212
    %v2233 = vpack.c.b16 %v2215, %v2214
    %v2234 = vpack.c.b16 %v2217, %v2216
    %v2235 = vpack.c.b16 %v2219, %v2218
    %v2236 = vpack.c.b16 %v2221, %v2220
    %v2237 = vpack.c.b16 %v2223, %v2222
    %v2238 = vpack.c.b16 %v2225, %v2224
    %v2239 = vpack.c.b16 %v2227, %v2226
    %v2240 = vpack.c.b16 %v2229, %v2228
    %v2241 = vpack.c.b16 %v2231, %v2230
    %v2253 = vsel %vm168, %v2164, 0
    %2255 = vmatprep.subr.bf16.mxu0 0
    %2256 = vmatpush1.bf16.msra.mxu0 %v2239
    %2257 = vmatprep.subr.bf16.mxu0 0
    %2258 = vmatpush1.bf16.msra.mxu0 %v2238
    %2259 = vmatprep.subr.bf16.mxu0 0
    %2260 = vmatpush1.bf16.msra.mxu0 %v2237
    %2261 = vmatprep.subr.bf16.mxu0 0
    %2262 = vmatpush1.bf16.msra.mxu0 %v2236
    %2263 = vmatprep.subr.bf16.mxu0 0
    %2264 = vmatpush1.bf16.msra.mxu0 %v2235
    %2265 = vmatprep.subr.bf16.mxu0 0
    %2266 = vmatpush1.bf16.msra.mxu0 %v2234
    %2267 = vmatprep.subr.bf16.mxu0 0
    %2268 = vmatpush1.bf16.msra.mxu0 %v2233
    %2269 = vmatprep.subr.bf16.mxu0 0
    %2270 = vmatpush1.bf16.msra.mxu0 %v2232
    %2271 = vmatprep.subr.bf16.mxu0 0
    %2272 = vmatpush2.bf16.msra.mxu0 0
    %2273 = vmatprep.subr.bf16.mxu0 0
    %2274 = vmatpush2.bf16.msra.mxu0 0
    %2275 = vmatprep.subr.bf16.mxu0 0
    %2276 = vmatpush2.bf16.msra.mxu0 0
    %2277 = vmatprep.subr.bf16.mxu0 0
    %2278 = vmatpush2.bf16.msra.mxu0 0
    %2279 = vmatprep.subr.bf16.mxu0 0
    %2280 = vmatpush2.bf16.msra.mxu0 0
    %2281 = vmatprep.subr.bf16.mxu0 0
    %2282 = vmatpush2.bf16.msra.mxu0 0
    %2283 = vmatprep.subr.bf16.mxu0 0
    %2284 = vmatpush2.bf16.msra.mxu0 %v2241
    %2285 = vmatprep.subr.bf16.mxu0 0
    %2286 = vmatpush2.bf16.msra.mxu0 %v2240
    %2287 = vmatprep.mubr.bf16.mxu0 %v2253
    %2288 = vmatmul.mubr.bf16.gmra.mxu0 %v2163
    %v2289 = vpop.f32.mrf.mxu0
    %v2290 = vadd.f32 %v2190, %v2289
    %v2291 = vpop.f32.mrf.mxu0
    %v2292 = vpop.f32.mrf.mxu0
    %v2293 = vpop.f32.mrf.mxu0
    %2294 = vdwg.mxu0
    %v2295 = vtanh.pop %v2290
    %v2296 = vmul.f32 %v2156, %v1401
    %v2297 = vsub.f32 1.0, %v2156
    %v2298 = vmul.f32 %v2297, %v2295
    %v2299 = vadd.f32 %v2296, %v2298
    %v2300 = vpack.c.bf16 %v2299, %v2299
    %v2301 = vld [vmem:[#allocation12] sm:$0xff]
    %v2302 = vld [vmem:[#allocation12 + $0x8] sm:$0xff]
    %v2303 = vld [vmem:[#allocation12 + $0x10] sm:$0xff]
    %v2304 = vld [vmem:[#allocation12 + $0x18] sm:$0xff]
    %v2305 = vld [vmem:[#allocation12 + $0x20] sm:$0xff]
    %v2306 = vld [vmem:[#allocation12 + $0x28] sm:$0xff]
    %v2307 = vld [vmem:[#allocation12 + $0x30] sm:$0xff]
    %v2308 = vld [vmem:[#allocation12 + $0x38] sm:$0xff]
    %v2309 = vld [vmem:[#allocation12 + $0x40] sm:$0xff]
    %v2310 = vld [vmem:[#allocation12 + $0x48] sm:$0xff]
    %v2311 = vld [vmem:[#allocation12 + $0x50] sm:$0xff]
    %v2312 = vld [vmem:[#allocation12 + $0x58] sm:$0xff]
    %v2313 = vld [vmem:[#allocation12 + $0x60] sm:$0xff]
    %v2314 = vld [vmem:[#allocation12 + $0x68] sm:$0xff]
    %v2315 = vld [vmem:[#allocation12 + $0x70] sm:$0xff]
    %v2316 = vld [vmem:[#allocation12 + $0x78] sm:$0xff]
    %v2317 = vld [vmem:[#allocation12 + $0x80] sm:$0xff]
    %v2318 = vld [vmem:[#allocation12 + $0x88] sm:$0xff]
    %v2319 = vld [vmem:[#allocation12 + $0x90] sm:$0xff]
    %v2320 = vld [vmem:[#allocation12 + $0x98] sm:$0xff]
    %v2321 = vld [vmem:[#allocation12 + $0xa0] sm:$0xff]
    %v2322 = vld [vmem:[#allocation12 + $0xa8] sm:$0xff]
    %v2323 = vld [vmem:[#allocation12 + $0xb0] sm:$0xff]
    %v2324 = vld [vmem:[#allocation12 + $0xb8] sm:$0xff]
    %v2325 = vld [vmem:[#allocation12 + $0xc0] sm:$0xff]
    %v2326 = vld [vmem:[#allocation12 + $0xc8] sm:$0xff]
    %v2327 = vld [vmem:[#allocation12 + $0xd0] sm:$0xff]
    %v2328 = vld [vmem:[#allocation12 + $0xd8] sm:$0xff]
    %v2329 = vld [vmem:[#allocation12 + $0xe0] sm:$0xff]
    %v2330 = vld [vmem:[#allocation12 + $0xe8] sm:$0xff]
    %v2331 = vld [vmem:[#allocation12 + $0xf0] sm:$0xff]
    %v2332 = vld [vmem:[#allocation12 + $0xf8] sm:$0xff]
    %v2333 = vld [vmem:[#allocation15] sm:$0x3]
    %v2335 = vlaneseq
    %v2336 = vshrl.u32 %v2335, 7
    %v2337 = vsub.s32 0, %v2336
    %v2338 = vrot.slane %v2333, %v2337
    %v2339 = vlaneseq
    %v2340 = vshrl.u32 %v2339, 7
    %v2341 = vsub.s32 1, %v2340
    %v2342 = vrot.slane %v2333, %v2341
    %v2377 = vunpack.c.l.b16 %v2301
    %v2378 = vunpack.c.h.b16 %v2301
    %v2379 = vunpack.c.l.b16 %v2302
    %v2380 = vunpack.c.h.b16 %v2302
    %v2381 = vunpack.c.l.b16 %v2303
    %v2382 = vunpack.c.h.b16 %v2303
    %v2383 = vunpack.c.l.b16 %v2304
    %v2384 = vunpack.c.h.b16 %v2304
    %v2385 = vunpack.c.l.b16 %v2305
    %v2386 = vunpack.c.h.b16 %v2305
    %v2387 = vunpack.c.l.b16 %v2306
    %v2388 = vunpack.c.h.b16 %v2306
    %v2389 = vunpack.c.l.b16 %v2307
    %v2390 = vunpack.c.h.b16 %v2307
    %v2391 = vunpack.c.l.b16 %v2308
    %v2392 = vunpack.c.h.b16 %v2308
    %v2393 = vunpack.c.l.b16 %v2309
    %v2394 = vunpack.c.h.b16 %v2309
    %v2395 = vunpack.c.l.b16 %v2310
    %v2396 = vunpack.c.h.b16 %v2310
    %v2397 = vunpack.c.l.b16 %v2311
    %v2398 = vunpack.c.h.b16 %v2311
    %v2399 = vunpack.c.l.b16 %v2312
    %v2400 = vunpack.c.h.b16 %v2312
    %v2401 = vunpack.c.l.b16 %v2313
    %v2402 = vunpack.c.h.b16 %v2313
    %v2403 = vunpack.c.l.b16 %v2314
    %v2404 = vunpack.c.h.b16 %v2314
    %v2405 = vunpack.c.l.b16 %v2315
    %v2406 = vunpack.c.h.b16 %v2315
    %v2407 = vunpack.c.l.b16 %v2316
    %v2408 = vunpack.c.h.b16 %v2316
    %v2409 = vunpack.c.l.b16 %v2317
    %v2410 = vunpack.c.h.b16 %v2317
    %v2411 = vunpack.c.l.b16 %v2318
    %v2412 = vunpack.c.h.b16 %v2318
    %v2413 = vunpack.c.l.b16 %v2319
    %v2414 = vunpack.c.h.b16 %v2319
    %v2415 = vunpack.c.l.b16 %v2320
    %v2416 = vunpack.c.h.b16 %v2320
    %v2417 = vunpack.c.l.b16 %v2321
    %v2418 = vunpack.c.h.b16 %v2321
    %v2419 = vunpack.c.l.b16 %v2322
    %v2420 = vunpack.c.h.b16 %v2322
    %v2421 = vunpack.c.l.b16 %v2323
    %v2422 = vunpack.c.h.b16 %v2323
    %v2423 = vunpack.c.l.b16 %v2324
    %v2424 = vunpack.c.h.b16 %v2324
    %v2425 = vunpack.c.l.b16 %v2325
    %v2426 = vunpack.c.h.b16 %v2325
    %v2427 = vunpack.c.l.b16 %v2326
    %v2428 = vunpack.c.h.b16 %v2326
    %v2429 = vunpack.c.l.b16 %v2327
    %v2430 = vunpack.c.h.b16 %v2327
    %v2431 = vunpack.c.l.b16 %v2328
    %v2432 = vunpack.c.h.b16 %v2328
    %v2433 = vunpack.c.l.b16 %v2329
    %v2434 = vunpack.c.h.b16 %v2329
    %v2435 = vunpack.c.l.b16 %v2330
    %v2436 = vunpack.c.h.b16 %v2330
    %v2437 = vunpack.c.l.b16 %v2331
    %v2438 = vunpack.c.h.b16 %v2331
    %v2439 = vunpack.c.l.b16 %v2332
    %v2440 = vunpack.c.h.b16 %v2332
    %v2441 = vpack.c.b16 %v2379, %v2377
    %v2442 = vpack.c.b16 %v2380, %v2378
    %v2443 = vpack.c.b16 %v2383, %v2381
    %v2444 = vpack.c.b16 %v2384, %v2382
    %v2445 = vpack.c.b16 %v2387, %v2385
    %v2446 = vpack.c.b16 %v2388, %v2386
    %v2447 = vpack.c.b16 %v2391, %v2389
    %v2448 = vpack.c.b16 %v2392, %v2390
    %v2449 = vpack.c.b16 %v2395, %v2393
    %v2450 = vpack.c.b16 %v2396, %v2394
    %v2451 = vpack.c.b16 %v2399, %v2397
    %v2452 = vpack.c.b16 %v2400, %v2398
    %v2453 = vpack.c.b16 %v2403, %v2401
    %v2454 = vpack.c.b16 %v2404, %v2402
    %v2455 = vpack.c.b16 %v2407, %v2405
    %v2456 = vpack.c.b16 %v2408, %v2406
    %v2457 = vpack.c.b16 %v2411, %v2409
    %v2458 = vpack.c.b16 %v2412, %v2410
    %v2459 = vpack.c.b16 %v2415, %v2413
    %v2460 = vpack.c.b16 %v2416, %v2414
    %v2461 = vpack.c.b16 %v2419, %v2417
    %v2462 = vpack.c.b16 %v2420, %v2418
    %v2463 = vpack.c.b16 %v2423, %v2421
    %v2464 = vpack.c.b16 %v2424, %v2422
    %v2465 = vpack.c.b16 %v2427, %v2425
    %v2466 = vpack.c.b16 %v2428, %v2426
    %v2467 = vpack.c.b16 %v2431, %v2429
    %v2468 = vpack.c.b16 %v2432, %v2430
    %v2469 = vpack.c.b16 %v2435, %v2433
    %v2470 = vpack.c.b16 %v2436, %v2434
    %v2471 = vpack.c.b16 %v2439, %v2437
    %v2472 = vpack.c.b16 %v2440, %v2438
    %2505 = vmatprep.subr.bf16.mxu0 %v2456
    %2506 = vmatpush1.bf16.msra.mxu0 %v2455
    %2507 = vmatprep.subr.bf16.mxu0 %v2454
    %2508 = vmatpush1.bf16.msra.mxu0 %v2453
    %2509 = vmatprep.subr.bf16.mxu0 %v2452
    %2510 = vmatpush1.bf16.msra.mxu0 %v2451
    %2511 = vmatprep.subr.bf16.mxu0 %v2450
    %2512 = vmatpush1.bf16.msra.mxu0 %v2449
    %2513 = vmatprep.subr.bf16.mxu0 %v2448
    %2514 = vmatpush1.bf16.msra.mxu0 %v2447
    %2515 = vmatprep.subr.bf16.mxu0 %v2446
    %2516 = vmatpush1.bf16.msra.mxu0 %v2445
    %2517 = vmatprep.subr.bf16.mxu0 %v2444
    %2518 = vmatpush1.bf16.msra.mxu0 %v2443
    %2519 = vmatprep.subr.bf16.mxu0 %v2442
    %2520 = vmatpush1.bf16.msra.mxu0 %v2441
    %2521 = vmatprep.subr.bf16.mxu0 %v2472
    %2522 = vmatpush2.bf16.msra.mxu0 %v2471
    %2523 = vmatprep.subr.bf16.mxu0 %v2470
    %2524 = vmatpush2.bf16.msra.mxu0 %v2469
    %2525 = vmatprep.subr.bf16.mxu0 %v2468
    %2526 = vmatpush2.bf16.msra.mxu0 %v2467
    %2527 = vmatprep.subr.bf16.mxu0 %v2466
    %2528 = vmatpush2.bf16.msra.mxu0 %v2465
    %2529 = vmatprep.subr.bf16.mxu0 %v2464
    %2530 = vmatpush2.bf16.msra.mxu0 %v2463
    %2531 = vmatprep.subr.bf16.mxu0 %v2462
    %2532 = vmatpush2.bf16.msra.mxu0 %v2461
    %2533 = vmatprep.subr.bf16.mxu0 %v2460
    %2534 = vmatpush2.bf16.msra.mxu0 %v2459
    %2535 = vmatprep.subr.bf16.mxu0 %v2458
    %2536 = vmatpush2.bf16.msra.mxu0 %v2457
    %2537 = vmatprep.mubr.bf16.mxu0 %v1842
    %2538 = vmatmul.mubr.bf16.gmra.mxu0 %v2300
    %v2539 = vpop.f32.mrf.mxu0
    %v2540 = vadd.f32 %v2338, %v2539
    %v2541 = vpop.f32.mrf.mxu0
    %v2542 = vadd.f32 %v2342, %v2541
    %v2543 = vpop.f32.mrf.mxu0
    %v2544 = vpop.f32.mrf.mxu0
    %2545 = vdwg.mxu0
    %v2546 = vxor.u32 %v2540, 2147483648
    %v2547 = vxor.u32 %v2542, 2147483648
    %v2548 = vmul.f32 %v2546, 1.442695
    %v2549 = vpow.pop %v2548
    %v2550 = vmul.f32 %v2547, 1.442695
    %v2551 = vpow.pop %v2550
    %v2552 = vadd.f32 %v2549, 1.0
    %v2553 = vadd.f32 %v2551, 1.0
    %v2554 = vrcp.pop %v2552
    %v2555 = vmul.f32 1.0, %v2554
    %v2556 = vrcp.pop %v2553
    %v2557 = vmul.f32 1.0, %v2556
    %v2558 = vmul.f32 %v2555, %v1841
    %v2559 = vpack.c.bf16 %v2558, %v2558
    %v2560 = vld [vmem:[#allocation13] sm:$0xf]
    %v2561 = vld [vmem:[#allocation13 + $0x4] sm:$0xf]
    %v2562 = vld [vmem:[#allocation13 + $0x8] sm:$0xf]
    %v2563 = vld [vmem:[#allocation13 + $0xc] sm:$0xf]
    %v2564 = vld [vmem:[#allocation13 + $0x10] sm:$0xf]
    %v2565 = vld [vmem:[#allocation13 + $0x14] sm:$0xf]
    %v2566 = vld [vmem:[#allocation13 + $0x18] sm:$0xf]
    %v2567 = vld [vmem:[#allocation13 + $0x1c] sm:$0xf]
    %v2568 = vld [vmem:[#allocation13 + $0x20] sm:$0xf]
    %v2569 = vld [vmem:[#allocation13 + $0x24] sm:$0xf]
    %v2570 = vld [vmem:[#allocation13 + $0x28] sm:$0xf]
    %v2571 = vld [vmem:[#allocation13 + $0x2c] sm:$0xf]
    %v2572 = vld [vmem:[#allocation13 + $0x30] sm:$0xf]
    %v2573 = vld [vmem:[#allocation13 + $0x34] sm:$0xf]
    %v2574 = vld [vmem:[#allocation13 + $0x38] sm:$0xf]
    %v2575 = vld [vmem:[#allocation13 + $0x3c] sm:$0xf]
    %v2576 = vld [vmem:[#allocation13 + $0x40] sm:$0xf]
    %v2577 = vld [vmem:[#allocation13 + $0x44] sm:$0xf]
    %v2578 = vld [vmem:[#allocation13 + $0x48] sm:$0xf]
    %v2579 = vld [vmem:[#allocation13 + $0x4c] sm:$0xf]
    %v2580 = vld [vmem:[#allocation13 + $0x50] sm:$0xf]
    %v2581 = vld [vmem:[#allocation13 + $0x54] sm:$0xf]
    %v2582 = vld [vmem:[#allocation13 + $0x58] sm:$0xf]
    %v2583 = vld [vmem:[#allocation13 + $0x5c] sm:$0xf]
    %v2584 = vld [vmem:[#allocation13 + $0x60] sm:$0xf]
    %v2585 = vld [vmem:[#allocation13 + $0x64] sm:$0xf]
    %v2586 = vld [vmem:[#allocation13 + $0x68] sm:$0xf]
    %v2587 = vld [vmem:[#allocation13 + $0x6c] sm:$0xf]
    %v2588 = vld [vmem:[#allocation13 + $0x70] sm:$0xf]
    %v2589 = vld [vmem:[#allocation13 + $0x74] sm:$0xf]
    %v2590 = vld [vmem:[#allocation13 + $0x78] sm:$0xf]
    %v2591 = vld [vmem:[#allocation13 + $0x7c] sm:$0xf]
    %v2592 = vld [vmem:[#allocation16] sm:$0x1]
    %v2594 = vlaneseq
    %v2595 = vshrl.u32 %v2594, 7
    %v2596 = vsub.s32 0, %v2595
    %v2597 = vrot.slane %v2592, %v2596
    %v2631 = vunpack.c.l.b16 %v2560
    %v2632 = vunpack.c.l.b16 %v2561
    %v2633 = vunpack.c.l.b16 %v2562
    %v2634 = vunpack.c.l.b16 %v2563
    %v2635 = vunpack.c.l.b16 %v2564
    %v2636 = vunpack.c.l.b16 %v2565
    %v2637 = vunpack.c.l.b16 %v2566
    %v2638 = vunpack.c.l.b16 %v2567
    %v2639 = vunpack.c.l.b16 %v2568
    %v2640 = vunpack.c.l.b16 %v2569
    %v2641 = vunpack.c.l.b16 %v2570
    %v2642 = vunpack.c.l.b16 %v2571
    %v2643 = vunpack.c.l.b16 %v2572
    %v2644 = vunpack.c.l.b16 %v2573
    %v2645 = vunpack.c.l.b16 %v2574
    %v2646 = vunpack.c.l.b16 %v2575
    %v2647 = vunpack.c.l.b16 %v2576
    %v2648 = vunpack.c.l.b16 %v2577
    %v2649 = vunpack.c.l.b16 %v2578
    %v2650 = vunpack.c.l.b16 %v2579
    %v2651 = vunpack.c.l.b16 %v2580
    %v2652 = vunpack.c.l.b16 %v2581
    %v2653 = vunpack.c.l.b16 %v2582
    %v2654 = vunpack.c.l.b16 %v2583
    %v2655 = vunpack.c.l.b16 %v2584
    %v2656 = vunpack.c.l.b16 %v2585
    %v2657 = vunpack.c.l.b16 %v2586
    %v2658 = vunpack.c.l.b16 %v2587
    %v2659 = vunpack.c.l.b16 %v2588
    %v2660 = vunpack.c.l.b16 %v2589
    %v2661 = vunpack.c.l.b16 %v2590
    %v2662 = vunpack.c.l.b16 %v2591
    %v2663 = vpack.c.b16 %v2632, %v2631
    %v2664 = vpack.c.b16 %v2634, %v2633
    %v2665 = vpack.c.b16 %v2636, %v2635
    %v2666 = vpack.c.b16 %v2638, %v2637
    %v2667 = vpack.c.b16 %v2640, %v2639
    %v2668 = vpack.c.b16 %v2642, %v2641
    %v2669 = vpack.c.b16 %v2644, %v2643
    %v2670 = vpack.c.b16 %v2646, %v2645
    %v2671 = vpack.c.b16 %v2648, %v2647
    %v2672 = vpack.c.b16 %v2650, %v2649
    %v2673 = vpack.c.b16 %v2652, %v2651
    %v2674 = vpack.c.b16 %v2654, %v2653
    %v2675 = vpack.c.b16 %v2656, %v2655
    %v2676 = vpack.c.b16 %v2658, %v2657
    %v2677 = vpack.c.b16 %v2660, %v2659
    %v2678 = vpack.c.b16 %v2662, %v2661
    %2695 = vmatprep.subr.bf16.mxu0 0
    %2696 = vmatpush1.bf16.msra.mxu0 %v2670
    %2697 = vmatprep.subr.bf16.mxu0 0
    %2698 = vmatpush1.bf16.msra.mxu0 %v2669
    %2699 = vmatprep.subr.bf16.mxu0 0
    %2700 = vmatpush1.bf16.msra.mxu0 %v2668
    %2701 = vmatprep.subr.bf16.mxu0 0
    %2702 = vmatpush1.bf16.msra.mxu0 %v2667
    %2703 = vmatprep.subr.bf16.mxu0 0
    %2704 = vmatpush1.bf16.msra.mxu0 %v2666
    %2705 = vmatprep.subr.bf16.mxu0 0
    %2706 = vmatpush1.bf16.msra.mxu0 %v2665
    %2707 = vmatprep.subr.bf16.mxu0 0
    %2708 = vmatpush1.bf16.msra.mxu0 %v2664
    %2709 = vmatprep.subr.bf16.mxu0 0
    %2710 = vmatpush1.bf16.msra.mxu0 %v2663
    %2711 = vmatprep.subr.bf16.mxu0 0
    %2712 = vmatpush2.bf16.msra.mxu0 %v2678
    %2713 = vmatprep.subr.bf16.mxu0 0
    %2714 = vmatpush2.bf16.msra.mxu0 %v2677
    %2715 = vmatprep.subr.bf16.mxu0 0
    %2716 = vmatpush2.bf16.msra.mxu0 %v2676
    %2717 = vmatprep.subr.bf16.mxu0 0
    %2718 = vmatpush2.bf16.msra.mxu0 %v2675
    %2719 = vmatprep.subr.bf16.mxu0 0
    %2720 = vmatpush2.bf16.msra.mxu0 %v2674
    %2721 = vmatprep.subr.bf16.mxu0 0
    %2722 = vmatpush2.bf16.msra.mxu0 %v2673
    %2723 = vmatprep.subr.bf16.mxu0 0
    %2724 = vmatpush2.bf16.msra.mxu0 %v2672
    %2725 = vmatprep.subr.bf16.mxu0 0
    %2726 = vmatpush2.bf16.msra.mxu0 %v2671
    %2727 = vmatprep.mubr.bf16.mxu0 %v2559
    %2728 = vmatmul.mubr.bf16.gmra.mxu0 %v2300
    %v2729 = vpop.f32.mrf.mxu0
    %v2730 = vadd.f32 %v2597, %v2729
    %v2731 = vpop.f32.mrf.mxu0
    %v2732 = vpop.f32.mrf.mxu0
    %v2733 = vpop.f32.mrf.mxu0
    %2734 = vdwg.mxu0
    %v2735 = vtanh.pop %v2730
    %v2736 = vmul.f32 %v2557, %v1841
    %v2737 = vsub.f32 1.0, %v2557
    %v2738 = vmul.f32 %v2737, %v2735
    %v2739 = vadd.f32 %v2736, %v2738
    %v2740 = vpack.c.bf16 %v2739, %v2739
    %v2741 = vld [vmem:[%s11] sm:$0xf]
    %v2742 = vld [vmem:[%s11 + $0x4] sm:$0xf]
    %v2743 = vld [vmem:[%s11 + $0x8] sm:$0xf]
    %v2744 = vld [vmem:[%s11 + $0xc] sm:$0xf]
    %v2745 = vld [vmem:[%s11 + $0x10] sm:$0xf]
    %v2746 = vld [vmem:[%s11 + $0x14] sm:$0xf]
    %v2747 = vld [vmem:[%s11 + $0x18] sm:$0xf]
    %v2748 = vld [vmem:[%s11 + $0x1c] sm:$0xf]
    %v2749 = vld [vmem:[%s11 + $0x20] sm:$0xf]
    %v2750 = vld [vmem:[%s11 + $0x24] sm:$0xf]
    %v2751 = vld [vmem:[%s11 + $0x28] sm:$0xf]
    %v2752 = vld [vmem:[%s11 + $0x2c] sm:$0xf]
    %v2753 = vld [vmem:[%s11 + $0x30] sm:$0xf]
    %v2754 = vld [vmem:[%s11 + $0x34] sm:$0xf]
    %v2755 = vld [vmem:[%s11 + $0x38] sm:$0xf]
    %v2756 = vld [vmem:[%s11 + $0x3c] sm:$0xf]
    %v2757 = vld [vmem:[%s12] sm:$0x1]
    %v2759 = vlaneseq
    %v2760 = vshrl.u32 %v2759, 7
    %v2761 = vsub.s32 0, %v2760
    %v2762 = vrot.slane %v2757, %v2761
    %v2780 = vunpack.c.l.b16 %v2741
    %v2781 = vunpack.c.l.b16 %v2742
    %v2782 = vunpack.c.l.b16 %v2743
    %v2783 = vunpack.c.l.b16 %v2744
    %v2784 = vunpack.c.l.b16 %v2745
    %v2785 = vunpack.c.l.b16 %v2746
    %v2786 = vunpack.c.l.b16 %v2747
    %v2787 = vunpack.c.l.b16 %v2748
    %v2788 = vunpack.c.l.b16 %v2749
    %v2789 = vunpack.c.l.b16 %v2750
    %v2790 = vunpack.c.l.b16 %v2751
    %v2791 = vunpack.c.l.b16 %v2752
    %v2792 = vunpack.c.l.b16 %v2753
    %v2793 = vunpack.c.l.b16 %v2754
    %v2794 = vunpack.c.l.b16 %v2755
    %v2795 = vunpack.c.l.b16 %v2756
    %v2796 = vpack.c.b16 %v2781, %v2780
    %v2797 = vpack.c.b16 %v2783, %v2782
    %v2798 = vpack.c.b16 %v2785, %v2784
    %v2799 = vpack.c.b16 %v2787, %v2786
    %v2800 = vpack.c.b16 %v2789, %v2788
    %v2801 = vpack.c.b16 %v2791, %v2790
    %v2802 = vpack.c.b16 %v2793, %v2792
    %v2803 = vpack.c.b16 %v2795, %v2794
    %2812 = vmatprep.subr.bf16.mxu0 0
    %2813 = vmatpush1.bf16.msra.mxu0 %v2803
    %2814 = vmatprep.subr.bf16.mxu0 0
    %2815 = vmatpush1.bf16.msra.mxu0 %v2802
    %2816 = vmatprep.subr.bf16.mxu0 0
    %2817 = vmatpush1.bf16.msra.mxu0 %v2801
    %2818 = vmatprep.subr.bf16.mxu0 0
    %2819 = vmatpush1.bf16.msra.mxu0 %v2800
    %2820 = vmatprep.subr.bf16.mxu0 0
    %2821 = vmatpush1.bf16.msra.mxu0 %v2799
    %2822 = vmatprep.subr.bf16.mxu0 0
    %2823 = vmatpush1.bf16.msra.mxu0 %v2798
    %2824 = vmatprep.subr.bf16.mxu0 0
    %2825 = vmatpush1.bf16.msra.mxu0 %v2797
    %2826 = vmatprep.subr.bf16.mxu0 0
    %2827 = vmatpush1.bf16.msra.mxu0 %v2796
    %2828 = vmatprep.subr.bf16.mxu0 0
    %2829 = vmatpush2.bf16.msra.mxu0 0
    %2830 = vmatprep.subr.bf16.mxu0 0
    %2831 = vmatpush2.bf16.msra.mxu0 0
    %2832 = vmatprep.subr.bf16.mxu0 0
    %2833 = vmatpush2.bf16.msra.mxu0 0
    %2834 = vmatprep.subr.bf16.mxu0 0
    %2835 = vmatpush2.bf16.msra.mxu0 0
    %2836 = vmatprep.subr.bf16.mxu0 0
    %2837 = vmatpush2.bf16.msra.mxu0 0
    %2838 = vmatprep.subr.bf16.mxu0 0
    %2839 = vmatpush2.bf16.msra.mxu0 0
    %2840 = vmatprep.subr.bf16.mxu0 0
    %2841 = vmatpush2.bf16.msra.mxu0 0
    %2842 = vmatprep.subr.bf16.mxu0 0
    %2843 = vmatpush2.bf16.msra.mxu0 0
    %2844 = vmatprep.mubr.bf16.mxu0 0
    %2845 = vmatmul.mubr.bf16.gmra.mxu0 %v2740
    %v2846 = vpop.f32.mrf.mxu0
    %v2847 = vadd.f32 %v2762, %v2846
    %v2848 = vpop.f32.mrf.mxu0
    %v2849 = vpop.f32.mrf.mxu0
    %v2850 = vpop.f32.mrf.mxu0
    %2851 = vdwg.mxu0
    %s2852 = scalar_lea.vmem [#allocation18], 6
    %2853 = vst.msk [vmem:[%s2852] sm:$0x3] %vm158, %v2847
    %s2854 = sld [smem:[#allocation2 + $0x3]]
    %v2855 = vstv %s2854
    %vm2856 = vcmp.gt.s32.totalorder %v2855, 0
    %s2857 = scalar_lea.vmem [#allocation6], 6
    %v2858 = vld [vmem:[%s2857] sm:$0x3]
    %v2859 = vsel %vm2856, %v2858, %v2847
    %2861 = vrot.lane.b32.xlu0 %v2299, 32
    %v2862 = vpop.permute.xlu0 %2861
    %v2864 = vsel %vm168, %v2859, %v2862
    %v2865 = vpack.c.bf16 %v2864, %v2864
    %v2866 = vpack.c.bf16 %v2862, %v2862
    %v2867 = vld [vmem:[#allocation7] sm:$0xff]
    %v2868 = vld [vmem:[#allocation7 + $0x8] sm:$0xff]
    %v2869 = vld [vmem:[#allocation7 + $0x10] sm:$0xff]
    %v2870 = vld [vmem:[#allocation7 + $0x18] sm:$0xff]
    %v2871 = vld [vmem:[#allocation7 + $0x20] sm:$0xff]
    %v2872 = vld [vmem:[#allocation7 + $0x28] sm:$0xff]
    %v2873 = vld [vmem:[#allocation7 + $0x30] sm:$0xff]
    %v2874 = vld [vmem:[#allocation7 + $0x38] sm:$0xff]
    %v2875 = vld [vmem:[#allocation7 + $0x40] sm:$0xff]
    %v2876 = vld [vmem:[#allocation7 + $0x48] sm:$0xff]
    %v2877 = vld [vmem:[#allocation7 + $0x50] sm:$0xff]
    %v2878 = vld [vmem:[#allocation7 + $0x58] sm:$0xff]
    %v2879 = vld [vmem:[#allocation7 + $0x60] sm:$0xff]
    %v2880 = vld [vmem:[#allocation7 + $0x68] sm:$0xff]
    %v2881 = vld [vmem:[#allocation7 + $0x70] sm:$0xff]
    %v2882 = vld [vmem:[#allocation7 + $0x78] sm:$0xff]
    %v2883 = vld [vmem:[#allocation7 + $0x80] sm:$0xff]
    %v2884 = vld [vmem:[#allocation7 + $0x88] sm:$0xff]
    %v2885 = vld [vmem:[#allocation7 + $0x90] sm:$0xff]
    %v2886 = vld [vmem:[#allocation7 + $0x98] sm:$0xff]
    %v2887 = vld [vmem:[#allocation9] sm:$0x3]
    %v2889 = vlaneseq
    %v2890 = vshrl.u32 %v2889, 7
    %v2891 = vsub.s32 0, %v2890
    %v2892 = vrot.slane %v2887, %v2891
    %v2893 = vlaneseq
    %v2894 = vshrl.u32 %v2893, 7
    %v2895 = vsub.s32 1, %v2894
    %v2896 = vrot.slane %v2887, %v2895
    %v2919 = vunpack.c.l.b16 %v2867
    %v2920 = vunpack.c.h.b16 %v2867
    %v2921 = vunpack.c.l.b16 %v2868
    %v2922 = vunpack.c.h.b16 %v2868
    %v2923 = vunpack.c.l.b16 %v2869
    %v2924 = vunpack.c.h.b16 %v2869
    %v2925 = vunpack.c.l.b16 %v2870
    %v2926 = vunpack.c.h.b16 %v2870
    %v2927 = vunpack.c.l.b16 %v2871
    %v2928 = vunpack.c.h.b16 %v2871
    %v2929 = vunpack.c.l.b16 %v2872
    %v2930 = vunpack.c.h.b16 %v2872
    %v2931 = vunpack.c.l.b16 %v2873
    %v2932 = vunpack.c.h.b16 %v2873
    %v2933 = vunpack.c.l.b16 %v2874
    %v2934 = vunpack.c.h.b16 %v2874
    %v2935 = vunpack.c.l.b16 %v2875
    %v2936 = vunpack.c.h.b16 %v2875
    %v2937 = vunpack.c.l.b16 %v2876
    %v2938 = vunpack.c.h.b16 %v2876
    %v2939 = vunpack.c.l.b16 %v2877
    %v2940 = vunpack.c.h.b16 %v2877
    %v2941 = vunpack.c.l.b16 %v2878
    %v2942 = vunpack.c.h.b16 %v2878
    %v2943 = vunpack.c.l.b16 %v2879
    %v2944 = vunpack.c.h.b16 %v2879
    %v2945 = vunpack.c.l.b16 %v2880
    %v2946 = vunpack.c.h.b16 %v2880
    %v2947 = vunpack.c.l.b16 %v2881
    %v2948 = vunpack.c.h.b16 %v2881
    %v2949 = vunpack.c.l.b16 %v2882
    %v2950 = vunpack.c.h.b16 %v2882
    %v2951 = vunpack.c.l.b16 %v2883
    %v2952 = vunpack.c.h.b16 %v2883
    %v2953 = vunpack.c.l.b16 %v2884
    %v2954 = vunpack.c.h.b16 %v2884
    %v2955 = vunpack.c.l.b16 %v2885
    %v2956 = vunpack.c.h.b16 %v2885
    %v2957 = vunpack.c.l.b16 %v2886
    %v2958 = vunpack.c.h.b16 %v2886
    %v2959 = vpack.c.b16 %v2921, %v2919
    %v2960 = vpack.c.b16 %v2922, %v2920
    %v2961 = vpack.c.b16 %v2925, %v2923
    %v2962 = vpack.c.b16 %v2926, %v2924
    %v2963 = vpack.c.b16 %v2929, %v2927
    %v2964 = vpack.c.b16 %v2930, %v2928
    %v2965 = vpack.c.b16 %v2933, %v2931
    %v2966 = vpack.c.b16 %v2934, %v2932
    %v2967 = vpack.c.b16 %v2937, %v2935
    %v2968 = vpack.c.b16 %v2938, %v2936
    %v2969 = vpack.c.b16 %v2941, %v2939
    %v2970 = vpack.c.b16 %v2942, %v2940
    %v2971 = vpack.c.b16 %v2945, %v2943
    %v2972 = vpack.c.b16 %v2946, %v2944
    %v2973 = vpack.c.b16 %v2949, %v2947
    %v2974 = vpack.c.b16 %v2950, %v2948
    %v2975 = vpack.c.b16 %v2953, %v2951
    %v2976 = vpack.c.b16 %v2954, %v2952
    %v2977 = vpack.c.b16 %v2957, %v2955
    %v2978 = vpack.c.b16 %v2958, %v2956
    %v3000 = vsel %vm168, %v2866, 0
    %3002 = vmatprep.subr.bf16.mxu0 %v2974
    %3003 = vmatpush1.bf16.msra.mxu0 %v2973
    %3004 = vmatprep.subr.bf16.mxu0 %v2972
    %3005 = vmatpush1.bf16.msra.mxu0 %v2971
    %3006 = vmatprep.subr.bf16.mxu0 %v2970
    %3007 = vmatpush1.bf16.msra.mxu0 %v2969
    %3008 = vmatprep.subr.bf16.mxu0 %v2968
    %3009 = vmatpush1.bf16.msra.mxu0 %v2967
    %3010 = vmatprep.subr.bf16.mxu0 %v2966
    %3011 = vmatpush1.bf16.msra.mxu0 %v2965
    %3012 = vmatprep.subr.bf16.mxu0 %v2964
    %3013 = vmatpush1.bf16.msra.mxu0 %v2963
    %3014 = vmatprep.subr.bf16.mxu0 %v2962
    %3015 = vmatpush1.bf16.msra.mxu0 %v2961
    %3016 = vmatprep.subr.bf16.mxu0 %v2960
    %3017 = vmatpush1.bf16.msra.mxu0 %v2959
    %3018 = vmatprep.subr.bf16.mxu0 0
    %3019 = vmatpush2.bf16.msra.mxu0 0
    %3020 = vmatprep.subr.bf16.mxu0 0
    %3021 = vmatpush2.bf16.msra.mxu0 0
    %3022 = vmatprep.subr.bf16.mxu0 0
    %3023 = vmatpush2.bf16.msra.mxu0 0
    %3024 = vmatprep.subr.bf16.mxu0 0
    %3025 = vmatpush2.bf16.msra.mxu0 0
    %3026 = vmatprep.subr.bf16.mxu0 0
    %3027 = vmatpush2.bf16.msra.mxu0 0
    %3028 = vmatprep.subr.bf16.mxu0 0
    %3029 = vmatpush2.bf16.msra.mxu0 0
    %3030 = vmatprep.subr.bf16.mxu0 %v2978
    %3031 = vmatpush2.bf16.msra.mxu0 %v2977
    %3032 = vmatprep.subr.bf16.mxu0 %v2976
    %3033 = vmatpush2.bf16.msra.mxu0 %v2975
    %3034 = vmatprep.mubr.bf16.mxu0 %v3000
    %3035 = vmatmul.mubr.bf16.gmra.mxu0 %v2865
    %v3036 = vpop.f32.mrf.mxu0
    %v3037 = vadd.f32 %v2892, %v3036
    %v3038 = vpop.f32.mrf.mxu0
    %v3039 = vadd.f32 %v2896, %v3038
    %v3040 = vpop.f32.mrf.mxu0
    %v3041 = vpop.f32.mrf.mxu0
    %3042 = vdwg.mxu0
    %v3043 = vxor.u32 %v3037, 2147483648
    %v3044 = vxor.u32 %v3039, 2147483648
    %v3045 = vmul.f32 %v3043, 1.442695
    %v3046 = vpow.pop %v3045
    %v3047 = vmul.f32 %v3044, 1.442695
    %v3048 = vpow.pop %v3047
    %v3049 = vadd.f32 %v3046, 1.0
    %v3050 = vadd.f32 %v3048, 1.0
    %v3051 = vrcp.pop %v3049
    %v3052 = vmul.f32 1.0, %v3051
    %v3053 = vrcp.pop %v3050
    %v3054 = vmul.f32 1.0, %v3053
    %v3055 = vmul.f32 %v3052, %v2299
    %3057 = vrot.lane.b32.xlu0 %v3055, 32
    %v3058 = vpop.permute.xlu0 %3057
    %v3060 = vsel %vm168, %v2859, %v3058
    %v3061 = vpack.c.bf16 %v3060, %v3060
    %v3062 = vpack.c.bf16 %v3058, %v3058
    %v3063 = vld [vmem:[%s4] sm:$0xf]
    %v3064 = vld [vmem:[%s4 + $0x4] sm:$0xf]
    %v3065 = vld [vmem:[%s4 + $0x8] sm:$0xf]
    %v3066 = vld [vmem:[%s4 + $0xc] sm:$0xf]
    %v3067 = vld [vmem:[%s4 + $0x10] sm:$0xf]
    %v3068 = vld [vmem:[%s4 + $0x14] sm:$0xf]
    %v3069 = vld [vmem:[%s4 + $0x18] sm:$0xf]
    %v3070 = vld [vmem:[%s4 + $0x1c] sm:$0xf]
    %v3071 = vld [vmem:[%s4 + $0x20] sm:$0xf]
    %v3072 = vld [vmem:[%s4 + $0x24] sm:$0xf]
    %v3073 = vld [vmem:[%s4 + $0x28] sm:$0xf]
    %v3074 = vld [vmem:[%s4 + $0x2c] sm:$0xf]
    %v3075 = vld [vmem:[%s4 + $0x30] sm:$0xf]
    %v3076 = vld [vmem:[%s4 + $0x34] sm:$0xf]
    %v3077 = vld [vmem:[%s4 + $0x38] sm:$0xf]
    %v3078 = vld [vmem:[%s4 + $0x3c] sm:$0xf]
    %v3079 = vld [vmem:[%s4 + $0x40] sm:$0xf]
    %v3080 = vld [vmem:[%s4 + $0x44] sm:$0xf]
    %v3081 = vld [vmem:[%s4 + $0x48] sm:$0xf]
    %v3082 = vld [vmem:[%s4 + $0x4c] sm:$0xf]
    %v3083 = vld [vmem:[#allocation10] sm:$0x1]
    %v3085 = vlaneseq
    %v3086 = vshrl.u32 %v3085, 7
    %v3087 = vsub.s32 0, %v3086
    %v3088 = vrot.slane %v3083, %v3087
    %v3110 = vunpack.c.l.b16 %v3063
    %v3111 = vunpack.c.l.b16 %v3064
    %v3112 = vunpack.c.l.b16 %v3065
    %v3113 = vunpack.c.l.b16 %v3066
    %v3114 = vunpack.c.l.b16 %v3067
    %v3115 = vunpack.c.l.b16 %v3068
    %v3116 = vunpack.c.l.b16 %v3069
    %v3117 = vunpack.c.l.b16 %v3070
    %v3118 = vunpack.c.l.b16 %v3071
    %v3119 = vunpack.c.l.b16 %v3072
    %v3120 = vunpack.c.l.b16 %v3073
    %v3121 = vunpack.c.l.b16 %v3074
    %v3122 = vunpack.c.l.b16 %v3075
    %v3123 = vunpack.c.l.b16 %v3076
    %v3124 = vunpack.c.l.b16 %v3077
    %v3125 = vunpack.c.l.b16 %v3078
    %v3126 = vunpack.c.l.b16 %v3079
    %v3127 = vunpack.c.l.b16 %v3080
    %v3128 = vunpack.c.l.b16 %v3081
    %v3129 = vunpack.c.l.b16 %v3082
    %v3130 = vpack.c.b16 %v3111, %v3110
    %v3131 = vpack.c.b16 %v3113, %v3112
    %v3132 = vpack.c.b16 %v3115, %v3114
    %v3133 = vpack.c.b16 %v3117, %v3116
    %v3134 = vpack.c.b16 %v3119, %v3118
    %v3135 = vpack.c.b16 %v3121, %v3120
    %v3136 = vpack.c.b16 %v3123, %v3122
    %v3137 = vpack.c.b16 %v3125, %v3124
    %v3138 = vpack.c.b16 %v3127, %v3126
    %v3139 = vpack.c.b16 %v3129, %v3128
    %v3151 = vsel %vm168, %v3062, 0
    %3153 = vmatprep.subr.bf16.mxu0 0
    %3154 = vmatpush1.bf16.msra.mxu0 %v3137
    %3155 = vmatprep.subr.bf16.mxu0 0
    %3156 = vmatpush1.bf16.msra.mxu0 %v3136
    %3157 = vmatprep.subr.bf16.mxu0 0
    %3158 = vmatpush1.bf16.msra.mxu0 %v3135
    %3159 = vmatprep.subr.bf16.mxu0 0
    %3160 = vmatpush1.bf16.msra.mxu0 %v3134
    %3161 = vmatprep.subr.bf16.mxu0 0
    %3162 = vmatpush1.bf16.msra.mxu0 %v3133
    %3163 = vmatprep.subr.bf16.mxu0 0
    %3164 = vmatpush1.bf16.msra.mxu0 %v3132
    %3165 = vmatprep.subr.bf16.mxu0 0
    %3166 = vmatpush1.bf16.msra.mxu0 %v3131
    %3167 = vmatprep.subr.bf16.mxu0 0
    %3168 = vmatpush1.bf16.msra.mxu0 %v3130
    %3169 = vmatprep.subr.bf16.mxu0 0
    %3170 = vmatpush2.bf16.msra.mxu0 0
    %3171 = vmatprep.subr.bf16.mxu0 0
    %3172 = vmatpush2.bf16.msra.mxu0 0
    %3173 = vmatprep.subr.bf16.mxu0 0
    %3174 = vmatpush2.bf16.msra.mxu0 0
    %3175 = vmatprep.subr.bf16.mxu0 0
    %3176 = vmatpush2.bf16.msra.mxu0 0
    %3177 = vmatprep.subr.bf16.mxu0 0
    %3178 = vmatpush2.bf16.msra.mxu0 0
    %3179 = vmatprep.subr.bf16.mxu0 0
    %3180 = vmatpush2.bf16.msra.mxu0 0
    %3181 = vmatprep.subr.bf16.mxu0 0
    %3182 = vmatpush2.bf16.msra.mxu0 %v3139
    %3183 = vmatprep.subr.bf16.mxu0 0
    %3184 = vmatpush2.bf16.msra.mxu0 %v3138
    %3185 = vmatprep.mubr.bf16.mxu0 %v3151
    %3186 = vmatmul.mubr.bf16.gmra.mxu0 %v3061
    %v3187 = vpop.f32.mrf.mxu0
    %v3188 = vadd.f32 %v3088, %v3187
    %v3189 = vpop.f32.mrf.mxu0
    %v3190 = vpop.f32.mrf.mxu0
    %v3191 = vpop.f32.mrf.mxu0
    %3192 = vdwg.mxu0
    %v3193 = vtanh.pop %v3188
    %v3194 = vmul.f32 %v3054, %v2299
    %v3195 = vsub.f32 1.0, %v3054
    %v3196 = vmul.f32 %v3195, %v3193
    %v3197 = vadd.f32 %v3194, %v3196
    %v3198 = vpack.c.bf16 %v3197, %v3197
    %v3199 = vld [vmem:[#allocation12] sm:$0xff]
    %v3200 = vld [vmem:[#allocation12 + $0x8] sm:$0xff]
    %v3201 = vld [vmem:[#allocation12 + $0x10] sm:$0xff]
    %v3202 = vld [vmem:[#allocation12 + $0x18] sm:$0xff]
    %v3203 = vld [vmem:[#allocation12 + $0x20] sm:$0xff]
    %v3204 = vld [vmem:[#allocation12 + $0x28] sm:$0xff]
    %v3205 = vld [vmem:[#allocation12 + $0x30] sm:$0xff]
    %v3206 = vld [vmem:[#allocation12 + $0x38] sm:$0xff]
    %v3207 = vld [vmem:[#allocation12 + $0x40] sm:$0xff]
    %v3208 = vld [vmem:[#allocation12 + $0x48] sm:$0xff]
    %v3209 = vld [vmem:[#allocation12 + $0x50] sm:$0xff]
    %v3210 = vld [vmem:[#allocation12 + $0x58] sm:$0xff]
    %v3211 = vld [vmem:[#allocation12 + $0x60] sm:$0xff]
    %v3212 = vld [vmem:[#allocation12 + $0x68] sm:$0xff]
    %v3213 = vld [vmem:[#allocation12 + $0x70] sm:$0xff]
    %v3214 = vld [vmem:[#allocation12 + $0x78] sm:$0xff]
    %v3215 = vld [vmem:[#allocation12 + $0x80] sm:$0xff]
    %v3216 = vld [vmem:[#allocation12 + $0x88] sm:$0xff]
    %v3217 = vld [vmem:[#allocation12 + $0x90] sm:$0xff]
    %v3218 = vld [vmem:[#allocation12 + $0x98] sm:$0xff]
    %v3219 = vld [vmem:[#allocation12 + $0xa0] sm:$0xff]
    %v3220 = vld [vmem:[#allocation12 + $0xa8] sm:$0xff]
    %v3221 = vld [vmem:[#allocation12 + $0xb0] sm:$0xff]
    %v3222 = vld [vmem:[#allocation12 + $0xb8] sm:$0xff]
    %v3223 = vld [vmem:[#allocation12 + $0xc0] sm:$0xff]
    %v3224 = vld [vmem:[#allocation12 + $0xc8] sm:$0xff]
    %v3225 = vld [vmem:[#allocation12 + $0xd0] sm:$0xff]
    %v3226 = vld [vmem:[#allocation12 + $0xd8] sm:$0xff]
    %v3227 = vld [vmem:[#allocation12 + $0xe0] sm:$0xff]
    %v3228 = vld [vmem:[#allocation12 + $0xe8] sm:$0xff]
    %v3229 = vld [vmem:[#allocation12 + $0xf0] sm:$0xff]
    %v3230 = vld [vmem:[#allocation12 + $0xf8] sm:$0xff]
    %v3231 = vld [vmem:[#allocation15] sm:$0x3]
    %v3233 = vlaneseq
    %v3234 = vshrl.u32 %v3233, 7
    %v3235 = vsub.s32 0, %v3234
    %v3236 = vrot.slane %v3231, %v3235
    %v3237 = vlaneseq
    %v3238 = vshrl.u32 %v3237, 7
    %v3239 = vsub.s32 1, %v3238
    %v3240 = vrot.slane %v3231, %v3239
    %v3275 = vunpack.c.l.b16 %v3199
    %v3276 = vunpack.c.h.b16 %v3199
    %v3277 = vunpack.c.l.b16 %v3200
    %v3278 = vunpack.c.h.b16 %v3200
    %v3279 = vunpack.c.l.b16 %v3201
    %v3280 = vunpack.c.h.b16 %v3201
    %v3281 = vunpack.c.l.b16 %v3202
    %v3282 = vunpack.c.h.b16 %v3202
    %v3283 = vunpack.c.l.b16 %v3203
    %v3284 = vunpack.c.h.b16 %v3203
    %v3285 = vunpack.c.l.b16 %v3204
    %v3286 = vunpack.c.h.b16 %v3204
    %v3287 = vunpack.c.l.b16 %v3205
    %v3288 = vunpack.c.h.b16 %v3205
    %v3289 = vunpack.c.l.b16 %v3206
    %v3290 = vunpack.c.h.b16 %v3206
    %v3291 = vunpack.c.l.b16 %v3207
    %v3292 = vunpack.c.h.b16 %v3207
    %v3293 = vunpack.c.l.b16 %v3208
    %v3294 = vunpack.c.h.b16 %v3208
    %v3295 = vunpack.c.l.b16 %v3209
    %v3296 = vunpack.c.h.b16 %v3209
    %v3297 = vunpack.c.l.b16 %v3210
    %v3298 = vunpack.c.h.b16 %v3210
    %v3299 = vunpack.c.l.b16 %v3211
    %v3300 = vunpack.c.h.b16 %v3211
    %v3301 = vunpack.c.l.b16 %v3212
    %v3302 = vunpack.c.h.b16 %v3212
    %v3303 = vunpack.c.l.b16 %v3213
    %v3304 = vunpack.c.h.b16 %v3213
    %v3305 = vunpack.c.l.b16 %v3214
    %v3306 = vunpack.c.h.b16 %v3214
    %v3307 = vunpack.c.l.b16 %v3215
    %v3308 = vunpack.c.h.b16 %v3215
    %v3309 = vunpack.c.l.b16 %v3216
    %v3310 = vunpack.c.h.b16 %v3216
    %v3311 = vunpack.c.l.b16 %v3217
    %v3312 = vunpack.c.h.b16 %v3217
    %v3313 = vunpack.c.l.b16 %v3218
    %v3314 = vunpack.c.h.b16 %v3218
    %v3315 = vunpack.c.l.b16 %v3219
    %v3316 = vunpack.c.h.b16 %v3219
    %v3317 = vunpack.c.l.b16 %v3220
    %v3318 = vunpack.c.h.b16 %v3220
    %v3319 = vunpack.c.l.b16 %v3221
    %v3320 = vunpack.c.h.b16 %v3221
    %v3321 = vunpack.c.l.b16 %v3222
    %v3322 = vunpack.c.h.b16 %v3222
    %v3323 = vunpack.c.l.b16 %v3223
    %v3324 = vunpack.c.h.b16 %v3223
    %v3325 = vunpack.c.l.b16 %v3224
    %v3326 = vunpack.c.h.b16 %v3224
    %v3327 = vunpack.c.l.b16 %v3225
    %v3328 = vunpack.c.h.b16 %v3225
    %v3329 = vunpack.c.l.b16 %v3226
    %v3330 = vunpack.c.h.b16 %v3226
    %v3331 = vunpack.c.l.b16 %v3227
    %v3332 = vunpack.c.h.b16 %v3227
    %v3333 = vunpack.c.l.b16 %v3228
    %v3334 = vunpack.c.h.b16 %v3228
    %v3335 = vunpack.c.l.b16 %v3229
    %v3336 = vunpack.c.h.b16 %v3229
    %v3337 = vunpack.c.l.b16 %v3230
    %v3338 = vunpack.c.h.b16 %v3230
    %v3339 = vpack.c.b16 %v3277, %v3275
    %v3340 = vpack.c.b16 %v3278, %v3276
    %v3341 = vpack.c.b16 %v3281, %v3279
    %v3342 = vpack.c.b16 %v3282, %v3280
    %v3343 = vpack.c.b16 %v3285, %v3283
    %v3344 = vpack.c.b16 %v3286, %v3284
    %v3345 = vpack.c.b16 %v3289, %v3287
    %v3346 = vpack.c.b16 %v3290, %v3288
    %v3347 = vpack.c.b16 %v3293, %v3291
    %v3348 = vpack.c.b16 %v3294, %v3292
    %v3349 = vpack.c.b16 %v3297, %v3295
    %v3350 = vpack.c.b16 %v3298, %v3296
    %v3351 = vpack.c.b16 %v3301, %v3299
    %v3352 = vpack.c.b16 %v3302, %v3300
    %v3353 = vpack.c.b16 %v3305, %v3303
    %v3354 = vpack.c.b16 %v3306, %v3304
    %v3355 = vpack.c.b16 %v3309, %v3307
    %v3356 = vpack.c.b16 %v3310, %v3308
    %v3357 = vpack.c.b16 %v3313, %v3311
    %v3358 = vpack.c.b16 %v3314, %v3312
    %v3359 = vpack.c.b16 %v3317, %v3315
    %v3360 = vpack.c.b16 %v3318, %v3316
    %v3361 = vpack.c.b16 %v3321, %v3319
    %v3362 = vpack.c.b16 %v3322, %v3320
    %v3363 = vpack.c.b16 %v3325, %v3323
    %v3364 = vpack.c.b16 %v3326, %v3324
    %v3365 = vpack.c.b16 %v3329, %v3327
    %v3366 = vpack.c.b16 %v3330, %v3328
    %v3367 = vpack.c.b16 %v3333, %v3331
    %v3368 = vpack.c.b16 %v3334, %v3332
    %v3369 = vpack.c.b16 %v3337, %v3335
    %v3370 = vpack.c.b16 %v3338, %v3336
    %3403 = vmatprep.subr.bf16.mxu0 %v3354
    %3404 = vmatpush1.bf16.msra.mxu0 %v3353
    %3405 = vmatprep.subr.bf16.mxu0 %v3352
    %3406 = vmatpush1.bf16.msra.mxu0 %v3351
    %3407 = vmatprep.subr.bf16.mxu0 %v3350
    %3408 = vmatpush1.bf16.msra.mxu0 %v3349
    %3409 = vmatprep.subr.bf16.mxu0 %v3348
    %3410 = vmatpush1.bf16.msra.mxu0 %v3347
    %3411 = vmatprep.subr.bf16.mxu0 %v3346
    %3412 = vmatpush1.bf16.msra.mxu0 %v3345
    %3413 = vmatprep.subr.bf16.mxu0 %v3344
    %3414 = vmatpush1.bf16.msra.mxu0 %v3343
    %3415 = vmatprep.subr.bf16.mxu0 %v3342
    %3416 = vmatpush1.bf16.msra.mxu0 %v3341
    %3417 = vmatprep.subr.bf16.mxu0 %v3340
    %3418 = vmatpush1.bf16.msra.mxu0 %v3339
    %3419 = vmatprep.subr.bf16.mxu0 %v3370
    %3420 = vmatpush2.bf16.msra.mxu0 %v3369
    %3421 = vmatprep.subr.bf16.mxu0 %v3368
    %3422 = vmatpush2.bf16.msra.mxu0 %v3367
    %3423 = vmatprep.subr.bf16.mxu0 %v3366
    %3424 = vmatpush2.bf16.msra.mxu0 %v3365
    %3425 = vmatprep.subr.bf16.mxu0 %v3364
    %3426 = vmatpush2.bf16.msra.mxu0 %v3363
    %3427 = vmatprep.subr.bf16.mxu0 %v3362
    %3428 = vmatpush2.bf16.msra.mxu0 %v3361
    %3429 = vmatprep.subr.bf16.mxu0 %v3360
    %3430 = vmatpush2.bf16.msra.mxu0 %v3359
    %3431 = vmatprep.subr.bf16.mxu0 %v3358
    %3432 = vmatpush2.bf16.msra.mxu0 %v3357
    %3433 = vmatprep.subr.bf16.mxu0 %v3356
    %3434 = vmatpush2.bf16.msra.mxu0 %v3355
    %3435 = vmatprep.mubr.bf16.mxu0 %v2740
    %3436 = vmatmul.mubr.bf16.gmra.mxu0 %v3198
    %v3437 = vpop.f32.mrf.mxu0
    %v3438 = vadd.f32 %v3236, %v3437
    %v3439 = vpop.f32.mrf.mxu0
    %v3440 = vadd.f32 %v3240, %v3439
    %v3441 = vpop.f32.mrf.mxu0
    %v3442 = vpop.f32.mrf.mxu0
    %3443 = vdwg.mxu0
    %v3444 = vxor.u32 %v3438, 2147483648
    %v3445 = vxor.u32 %v3440, 2147483648
    %v3446 = vmul.f32 %v3444, 1.442695
    %v3447 = vpow.pop %v3446
    %v3448 = vmul.f32 %v3445, 1.442695
    %v3449 = vpow.pop %v3448
    %v3450 = vadd.f32 %v3447, 1.0
    %v3451 = vadd.f32 %v3449, 1.0
    %v3452 = vrcp.pop %v3450
    %v3453 = vmul.f32 1.0, %v3452
    %v3454 = vrcp.pop %v3451
    %v3455 = vmul.f32 1.0, %v3454
    %v3456 = vmul.f32 %v3453, %v2739
    %v3457 = vpack.c.bf16 %v3456, %v3456
    %v3458 = vld [vmem:[#allocation13] sm:$0xf]
    %v3459 = vld [vmem:[#allocation13 + $0x4] sm:$0xf]
    %v3460 = vld [vmem:[#allocation13 + $0x8] sm:$0xf]
    %v3461 = vld [vmem:[#allocation13 + $0xc] sm:$0xf]
    %v3462 = vld [vmem:[#allocation13 + $0x10] sm:$0xf]
    %v3463 = vld [vmem:[#allocation13 + $0x14] sm:$0xf]
    %v3464 = vld [vmem:[#allocation13 + $0x18] sm:$0xf]
    %v3465 = vld [vmem:[#allocation13 + $0x1c] sm:$0xf]
    %v3466 = vld [vmem:[#allocation13 + $0x20] sm:$0xf]
    %v3467 = vld [vmem:[#allocation13 + $0x24] sm:$0xf]
    %v3468 = vld [vmem:[#allocation13 + $0x28] sm:$0xf]
    %v3469 = vld [vmem:[#allocation13 + $0x2c] sm:$0xf]
    %v3470 = vld [vmem:[#allocation13 + $0x30] sm:$0xf]
    %v3471 = vld [vmem:[#allocation13 + $0x34] sm:$0xf]
    %v3472 = vld [vmem:[#allocation13 + $0x38] sm:$0xf]
    %v3473 = vld [vmem:[#allocation13 + $0x3c] sm:$0xf]
    %v3474 = vld [vmem:[#allocation13 + $0x40] sm:$0xf]
    %v3475 = vld [vmem:[#allocation13 + $0x44] sm:$0xf]
    %v3476 = vld [vmem:[#allocation13 + $0x48] sm:$0xf]
    %v3477 = vld [vmem:[#allocation13 + $0x4c] sm:$0xf]
    %v3478 = vld [vmem:[#allocation13 + $0x50] sm:$0xf]
    %v3479 = vld [vmem:[#allocation13 + $0x54] sm:$0xf]
    %v3480 = vld [vmem:[#allocation13 + $0x58] sm:$0xf]
    %v3481 = vld [vmem:[#allocation13 + $0x5c] sm:$0xf]
    %v3482 = vld [vmem:[#allocation13 + $0x60] sm:$0xf]
    %v3483 = vld [vmem:[#allocation13 + $0x64] sm:$0xf]
    %v3484 = vld [vmem:[#allocation13 + $0x68] sm:$0xf]
    %v3485 = vld [vmem:[#allocation13 + $0x6c] sm:$0xf]
    %v3486 = vld [vmem:[#allocation13 + $0x70] sm:$0xf]
    %v3487 = vld [vmem:[#allocation13 + $0x74] sm:$0xf]
    %v3488 = vld [vmem:[#allocation13 + $0x78] sm:$0xf]
    %v3489 = vld [vmem:[#allocation13 + $0x7c] sm:$0xf]
    %v3490 = vld [vmem:[#allocation16] sm:$0x1]
    %v3492 = vlaneseq
    %v3493 = vshrl.u32 %v3492, 7
    %v3494 = vsub.s32 0, %v3493
    %v3495 = vrot.slane %v3490, %v3494
    %v3529 = vunpack.c.l.b16 %v3458
    %v3530 = vunpack.c.l.b16 %v3459
    %v3531 = vunpack.c.l.b16 %v3460
    %v3532 = vunpack.c.l.b16 %v3461
    %v3533 = vunpack.c.l.b16 %v3462
    %v3534 = vunpack.c.l.b16 %v3463
    %v3535 = vunpack.c.l.b16 %v3464
    %v3536 = vunpack.c.l.b16 %v3465
    %v3537 = vunpack.c.l.b16 %v3466
    %v3538 = vunpack.c.l.b16 %v3467
    %v3539 = vunpack.c.l.b16 %v3468
    %v3540 = vunpack.c.l.b16 %v3469
    %v3541 = vunpack.c.l.b16 %v3470
    %v3542 = vunpack.c.l.b16 %v3471
    %v3543 = vunpack.c.l.b16 %v3472
    %v3544 = vunpack.c.l.b16 %v3473
    %v3545 = vunpack.c.l.b16 %v3474
    %v3546 = vunpack.c.l.b16 %v3475
    %v3547 = vunpack.c.l.b16 %v3476
    %v3548 = vunpack.c.l.b16 %v3477
    %v3549 = vunpack.c.l.b16 %v3478
    %v3550 = vunpack.c.l.b16 %v3479
    %v3551 = vunpack.c.l.b16 %v3480
    %v3552 = vunpack.c.l.b16 %v3481
    %v3553 = vunpack.c.l.b16 %v3482
    %v3554 = vunpack.c.l.b16 %v3483
    %v3555 = vunpack.c.l.b16 %v3484
    %v3556 = vunpack.c.l.b16 %v3485
    %v3557 = vunpack.c.l.b16 %v3486
    %v3558 = vunpack.c.l.b16 %v3487
    %v3559 = vunpack.c.l.b16 %v3488
    %v3560 = vunpack.c.l.b16 %v3489
    %v3561 = vpack.c.b16 %v3530, %v3529
    %v3562 = vpack.c.b16 %v3532, %v3531
    %v3563 = vpack.c.b16 %v3534, %v3533
    %v3564 = vpack.c.b16 %v3536, %v3535
    %v3565 = vpack.c.b16 %v3538, %v3537
    %v3566 = vpack.c.b16 %v3540, %v3539
    %v3567 = vpack.c.b16 %v3542, %v3541
    %v3568 = vpack.c.b16 %v3544, %v3543
    %v3569 = vpack.c.b16 %v3546, %v3545
    %v3570 = vpack.c.b16 %v3548, %v3547
    %v3571 = vpack.c.b16 %v3550, %v3549
    %v3572 = vpack.c.b16 %v3552, %v3551
    %v3573 = vpack.c.b16 %v3554, %v3553
    %v3574 = vpack.c.b16 %v3556, %v3555
    %v3575 = vpack.c.b16 %v3558, %v3557
    %v3576 = vpack.c.b16 %v3560, %v3559
    %3593 = vmatprep.subr.bf16.mxu0 0
    %3594 = vmatpush1.bf16.msra.mxu0 %v3568
    %3595 = vmatprep.subr.bf16.mxu0 0
    %3596 = vmatpush1.bf16.msra.mxu0 %v3567
    %3597 = vmatprep.subr.bf16.mxu0 0
    %3598 = vmatpush1.bf16.msra.mxu0 %v3566
    %3599 = vmatprep.subr.bf16.mxu0 0
    %3600 = vmatpush1.bf16.msra.mxu0 %v3565
    %3601 = vmatprep.subr.bf16.mxu0 0
    %3602 = vmatpush1.bf16.msra.mxu0 %v3564
    %3603 = vmatprep.subr.bf16.mxu0 0
    %3604 = vmatpush1.bf16.msra.mxu0 %v3563
    %3605 = vmatprep.subr.bf16.mxu0 0
    %3606 = vmatpush1.bf16.msra.mxu0 %v3562
    %3607 = vmatprep.subr.bf16.mxu0 0
    %3608 = vmatpush1.bf16.msra.mxu0 %v3561
    %3609 = vmatprep.subr.bf16.mxu0 0
    %3610 = vmatpush2.bf16.msra.mxu0 %v3576
    %3611 = vmatprep.subr.bf16.mxu0 0
    %3612 = vmatpush2.bf16.msra.mxu0 %v3575
    %3613 = vmatprep.subr.bf16.mxu0 0
    %3614 = vmatpush2.bf16.msra.mxu0 %v3574
    %3615 = vmatprep.subr.bf16.mxu0 0
    %3616 = vmatpush2.bf16.msra.mxu0 %v3573
    %3617 = vmatprep.subr.bf16.mxu0 0
    %3618 = vmatpush2.bf16.msra.mxu0 %v3572
    %3619 = vmatprep.subr.bf16.mxu0 0
    %3620 = vmatpush2.bf16.msra.mxu0 %v3571
    %3621 = vmatprep.subr.bf16.mxu0 0
    %3622 = vmatpush2.bf16.msra.mxu0 %v3570
    %3623 = vmatprep.subr.bf16.mxu0 0
    %3624 = vmatpush2.bf16.msra.mxu0 %v3569
    %3625 = vmatprep.mubr.bf16.mxu0 %v3457
    %3626 = vmatmul.mubr.bf16.gmra.mxu0 %v3198
    %v3627 = vpop.f32.mrf.mxu0
    %v3628 = vadd.f32 %v3495, %v3627
    %v3629 = vpop.f32.mrf.mxu0
    %v3630 = vpop.f32.mrf.mxu0
    %v3631 = vpop.f32.mrf.mxu0
    %3632 = vdwg.mxu0
    %v3633 = vtanh.pop %v3628
    %v3634 = vmul.f32 %v3455, %v2739
    %v3635 = vsub.f32 1.0, %v3455
    %v3636 = vmul.f32 %v3635, %v3633
    %v3637 = vadd.f32 %v3634, %v3636
    %v3638 = vpack.c.bf16 %v3637, %v3637
    %v3639 = vld [vmem:[%s11] sm:$0xf]
    %v3640 = vld [vmem:[%s11 + $0x4] sm:$0xf]
    %v3641 = vld [vmem:[%s11 + $0x8] sm:$0xf]
    %v3642 = vld [vmem:[%s11 + $0xc] sm:$0xf]
    %v3643 = vld [vmem:[%s11 + $0x10] sm:$0xf]
    %v3644 = vld [vmem:[%s11 + $0x14] sm:$0xf]
    %v3645 = vld [vmem:[%s11 + $0x18] sm:$0xf]
    %v3646 = vld [vmem:[%s11 + $0x1c] sm:$0xf]
    %v3647 = vld [vmem:[%s11 + $0x20] sm:$0xf]
    %v3648 = vld [vmem:[%s11 + $0x24] sm:$0xf]
    %v3649 = vld [vmem:[%s11 + $0x28] sm:$0xf]
    %v3650 = vld [vmem:[%s11 + $0x2c] sm:$0xf]
    %v3651 = vld [vmem:[%s11 + $0x30] sm:$0xf]
    %v3652 = vld [vmem:[%s11 + $0x34] sm:$0xf]
    %v3653 = vld [vmem:[%s11 + $0x38] sm:$0xf]
    %v3654 = vld [vmem:[%s11 + $0x3c] sm:$0xf]
    %v3655 = vld [vmem:[%s12] sm:$0x1]
    %v3657 = vlaneseq
    %v3658 = vshrl.u32 %v3657, 7
    %v3659 = vsub.s32 0, %v3658
    %v3660 = vrot.slane %v3655, %v3659
    %v3678 = vunpack.c.l.b16 %v3639
    %v3679 = vunpack.c.l.b16 %v3640
    %v3680 = vunpack.c.l.b16 %v3641
    %v3681 = vunpack.c.l.b16 %v3642
    %v3682 = vunpack.c.l.b16 %v3643
    %v3683 = vunpack.c.l.b16 %v3644
    %v3684 = vunpack.c.l.b16 %v3645
    %v3685 = vunpack.c.l.b16 %v3646
    %v3686 = vunpack.c.l.b16 %v3647
    %v3687 = vunpack.c.l.b16 %v3648
    %v3688 = vunpack.c.l.b16 %v3649
    %v3689 = vunpack.c.l.b16 %v3650
    %v3690 = vunpack.c.l.b16 %v3651
    %v3691 = vunpack.c.l.b16 %v3652
    %v3692 = vunpack.c.l.b16 %v3653
    %v3693 = vunpack.c.l.b16 %v3654
    %v3694 = vpack.c.b16 %v3679, %v3678
    %v3695 = vpack.c.b16 %v3681, %v3680
    %v3696 = vpack.c.b16 %v3683, %v3682
    %v3697 = vpack.c.b16 %v3685, %v3684
    %v3698 = vpack.c.b16 %v3687, %v3686
    %v3699 = vpack.c.b16 %v3689, %v3688
    %v3700 = vpack.c.b16 %v3691, %v3690
    %v3701 = vpack.c.b16 %v3693, %v3692
    %3710 = vmatprep.subr.bf16.mxu0 0
    %3711 = vmatpush1.bf16.msra.mxu0 %v3701
    %3712 = vmatprep.subr.bf16.mxu0 0
    %3713 = vmatpush1.bf16.msra.mxu0 %v3700
    %3714 = vmatprep.subr.bf16.mxu0 0
    %3715 = vmatpush1.bf16.msra.mxu0 %v3699
    %3716 = vmatprep.subr.bf16.mxu0 0
    %3717 = vmatpush1.bf16.msra.mxu0 %v3698
    %3718 = vmatprep.subr.bf16.mxu0 0
    %3719 = vmatpush1.bf16.msra.mxu0 %v3697
    %3720 = vmatprep.subr.bf16.mxu0 0
    %3721 = vmatpush1.bf16.msra.mxu0 %v3696
    %3722 = vmatprep.subr.bf16.mxu0 0
    %3723 = vmatpush1.bf16.msra.mxu0 %v3695
    %3724 = vmatprep.subr.bf16.mxu0 0
    %3725 = vmatpush1.bf16.msra.mxu0 %v3694
    %3726 = vmatprep.subr.bf16.mxu0 0
    %3727 = vmatpush2.bf16.msra.mxu0 0
    %3728 = vmatprep.subr.bf16.mxu0 0
    %3729 = vmatpush2.bf16.msra.mxu0 0
    %3730 = vmatprep.subr.bf16.mxu0 0
    %3731 = vmatpush2.bf16.msra.mxu0 0
    %3732 = vmatprep.subr.bf16.mxu0 0
    %3733 = vmatpush2.bf16.msra.mxu0 0
    %3734 = vmatprep.subr.bf16.mxu0 0
    %3735 = vmatpush2.bf16.msra.mxu0 0
    %3736 = vmatprep.subr.bf16.mxu0 0
    %3737 = vmatpush2.bf16.msra.mxu0 0
    %3738 = vmatprep.subr.bf16.mxu0 0
    %3739 = vmatpush2.bf16.msra.mxu0 0
    %3740 = vmatprep.subr.bf16.mxu0 0
    %3741 = vmatpush2.bf16.msra.mxu0 0
    %3742 = vmatprep.mubr.bf16.mxu0 0
    %3743 = vmatmul.mubr.bf16.gmra.mxu0 %v3638
    %v3744 = vpop.f32.mrf.mxu0
    %v3745 = vadd.f32 %v3660, %v3744
    %v3746 = vpop.f32.mrf.mxu0
    %v3747 = vpop.f32.mrf.mxu0
    %v3748 = vpop.f32.mrf.mxu0
    %3749 = vdwg.mxu0
    %s3750 = scalar_lea.vmem [#allocation18], 8
    %3751 = vst.msk [vmem:[%s3750] sm:$0x3] %vm158, %v3745
    %s3752 = sld [smem:[#allocation2 + $0x4]]
    %v3753 = vstv %s3752
    %vm3754 = vcmp.gt.s32.totalorder %v3753, 0
    %s3755 = scalar_lea.vmem [#allocation6], 8
    %v3756 = vld [vmem:[%s3755] sm:$0x3]
    %v3757 = vsel %vm3754, %v3756, %v3745
    %3759 = vrot.lane.b32.xlu0 %v3197, 32
    %v3760 = vpop.permute.xlu0 %3759
    %v3762 = vsel %vm168, %v3757, %v3760
    %v3763 = vpack.c.bf16 %v3762, %v3762
    %v3764 = vpack.c.bf16 %v3760, %v3760
    %v3765 = vld [vmem:[#allocation7] sm:$0xff]
    %v3766 = vld [vmem:[#allocation7 + $0x8] sm:$0xff]
    %v3767 = vld [vmem:[#allocation7 + $0x10] sm:$0xff]
    %v3768 = vld [vmem:[#allocation7 + $0x18] sm:$0xff]
    %v3769 = vld [vmem:[#allocation7 + $0x20] sm:$0xff]
    %v3770 = vld [vmem:[#allocation7 + $0x28] sm:$0xff]
    %v3771 = vld [vmem:[#allocation7 + $0x30] sm:$0xff]
    %v3772 = vld [vmem:[#allocation7 + $0x38] sm:$0xff]
    %v3773 = vld [vmem:[#allocation7 + $0x40] sm:$0xff]
    %v3774 = vld [vmem:[#allocation7 + $0x48] sm:$0xff]
    %v3775 = vld [vmem:[#allocation7 + $0x50] sm:$0xff]
    %v3776 = vld [vmem:[#allocation7 + $0x58] sm:$0xff]
    %v3777 = vld [vmem:[#allocation7 + $0x60] sm:$0xff]
    %v3778 = vld [vmem:[#allocation7 + $0x68] sm:$0xff]
    %v3779 = vld [vmem:[#allocation7 + $0x70] sm:$0xff]
    %v3780 = vld [vmem:[#allocation7 + $0x78] sm:$0xff]
    %v3781 = vld [vmem:[#allocation7 + $0x80] sm:$0xff]
    %v3782 = vld [vmem:[#allocation7 + $0x88] sm:$0xff]
    %v3783 = vld [vmem:[#allocation7 + $0x90] sm:$0xff]
    %v3784 = vld [vmem:[#allocation7 + $0x98] sm:$0xff]
    %v3785 = vld [vmem:[#allocation9] sm:$0x3]
    %v3787 = vlaneseq
    %v3788 = vshrl.u32 %v3787, 7
    %v3789 = vsub.s32 0, %v3788
    %v3790 = vrot.slane %v3785, %v3789
    %v3791 = vlaneseq
    %v3792 = vshrl.u32 %v3791, 7
    %v3793 = vsub.s32 1, %v3792
    %v3794 = vrot.slane %v3785, %v3793
    %v3817 = vunpack.c.l.b16 %v3765
    %v3818 = vunpack.c.h.b16 %v3765
    %v3819 = vunpack.c.l.b16 %v3766
    %v3820 = vunpack.c.h.b16 %v3766
    %v3821 = vunpack.c.l.b16 %v3767
    %v3822 = vunpack.c.h.b16 %v3767
    %v3823 = vunpack.c.l.b16 %v3768
    %v3824 = vunpack.c.h.b16 %v3768
    %v3825 = vunpack.c.l.b16 %v3769
    %v3826 = vunpack.c.h.b16 %v3769
    %v3827 = vunpack.c.l.b16 %v3770
    %v3828 = vunpack.c.h.b16 %v3770
    %v3829 = vunpack.c.l.b16 %v3771
    %v3830 = vunpack.c.h.b16 %v3771
    %v3831 = vunpack.c.l.b16 %v3772
    %v3832 = vunpack.c.h.b16 %v3772
    %v3833 = vunpack.c.l.b16 %v3773
    %v3834 = vunpack.c.h.b16 %v3773
    %v3835 = vunpack.c.l.b16 %v3774
    %v3836 = vunpack.c.h.b16 %v3774
    %v3837 = vunpack.c.l.b16 %v3775
    %v3838 = vunpack.c.h.b16 %v3775
    %v3839 = vunpack.c.l.b16 %v3776
    %v3840 = vunpack.c.h.b16 %v3776
    %v3841 = vunpack.c.l.b16 %v3777
    %v3842 = vunpack.c.h.b16 %v3777
    %v3843 = vunpack.c.l.b16 %v3778
    %v3844 = vunpack.c.h.b16 %v3778
    %v3845 = vunpack.c.l.b16 %v3779
    %v3846 = vunpack.c.h.b16 %v3779
    %v3847 = vunpack.c.l.b16 %v3780
    %v3848 = vunpack.c.h.b16 %v3780
    %v3849 = vunpack.c.l.b16 %v3781
    %v3850 = vunpack.c.h.b16 %v3781
    %v3851 = vunpack.c.l.b16 %v3782
    %v3852 = vunpack.c.h.b16 %v3782
    %v3853 = vunpack.c.l.b16 %v3783
    %v3854 = vunpack.c.h.b16 %v3783
    %v3855 = vunpack.c.l.b16 %v3784
    %v3856 = vunpack.c.h.b16 %v3784
    %v3857 = vpack.c.b16 %v3819, %v3817
    %v3858 = vpack.c.b16 %v3820, %v3818
    %v3859 = vpack.c.b16 %v3823, %v3821
    %v3860 = vpack.c.b16 %v3824, %v3822
    %v3861 = vpack.c.b16 %v3827, %v3825
    %v3862 = vpack.c.b16 %v3828, %v3826
    %v3863 = vpack.c.b16 %v3831, %v3829
    %v3864 = vpack.c.b16 %v3832, %v3830
    %v3865 = vpack.c.b16 %v3835, %v3833
    %v3866 = vpack.c.b16 %v3836, %v3834
    %v3867 = vpack.c.b16 %v3839, %v3837
    %v3868 = vpack.c.b16 %v3840, %v3838
    %v3869 = vpack.c.b16 %v3843, %v3841
    %v3870 = vpack.c.b16 %v3844, %v3842
    %v3871 = vpack.c.b16 %v3847, %v3845
    %v3872 = vpack.c.b16 %v3848, %v3846
    %v3873 = vpack.c.b16 %v3851, %v3849
    %v3874 = vpack.c.b16 %v3852, %v3850
    %v3875 = vpack.c.b16 %v3855, %v3853
    %v3876 = vpack.c.b16 %v3856, %v3854
    %v3898 = vsel %vm168, %v3764, 0
    %3900 = vmatprep.subr.bf16.mxu0 %v3872
    %3901 = vmatpush1.bf16.msra.mxu0 %v3871
    %3902 = vmatprep.subr.bf16.mxu0 %v3870
    %3903 = vmatpush1.bf16.msra.mxu0 %v3869
    %3904 = vmatprep.subr.bf16.mxu0 %v3868
    %3905 = vmatpush1.bf16.msra.mxu0 %v3867
    %3906 = vmatprep.subr.bf16.mxu0 %v3866
    %3907 = vmatpush1.bf16.msra.mxu0 %v3865
    %3908 = vmatprep.subr.bf16.mxu0 %v3864
    %3909 = vmatpush1.bf16.msra.mxu0 %v3863
    %3910 = vmatprep.subr.bf16.mxu0 %v3862
    %3911 = vmatpush1.bf16.msra.mxu0 %v3861
    %3912 = vmatprep.subr.bf16.mxu0 %v3860
    %3913 = vmatpush1.bf16.msra.mxu0 %v3859
    %3914 = vmatprep.subr.bf16.mxu0 %v3858
    %3915 = vmatpush1.bf16.msra.mxu0 %v3857
    %3916 = vmatprep.subr.bf16.mxu0 0
    %3917 = vmatpush2.bf16.msra.mxu0 0
    %3918 = vmatprep.subr.bf16.mxu0 0
    %3919 = vmatpush2.bf16.msra.mxu0 0
    %3920 = vmatprep.subr.bf16.mxu0 0
    %3921 = vmatpush2.bf16.msra.mxu0 0
    %3922 = vmatprep.subr.bf16.mxu0 0
    %3923 = vmatpush2.bf16.msra.mxu0 0
    %3924 = vmatprep.subr.bf16.mxu0 0
    %3925 = vmatpush2.bf16.msra.mxu0 0
    %3926 = vmatprep.subr.bf16.mxu0 0
    %3927 = vmatpush2.bf16.msra.mxu0 0
    %3928 = vmatprep.subr.bf16.mxu0 %v3876
    %3929 = vmatpush2.bf16.msra.mxu0 %v3875
    %3930 = vmatprep.subr.bf16.mxu0 %v3874
    %3931 = vmatpush2.bf16.msra.mxu0 %v3873
    %3932 = vmatprep.mubr.bf16.mxu0 %v3898
    %3933 = vmatmul.mubr.bf16.gmra.mxu0 %v3763
    %v3934 = vpop.f32.mrf.mxu0
    %v3935 = vadd.f32 %v3790, %v3934
    %v3936 = vpop.f32.mrf.mxu0
    %v3937 = vadd.f32 %v3794, %v3936
    %v3938 = vpop.f32.mrf.mxu0
    %v3939 = vpop.f32.mrf.mxu0
    %3940 = vdwg.mxu0
    %v3941 = vxor.u32 %v3935, 2147483648
    %v3942 = vxor.u32 %v3937, 2147483648
    %v3943 = vmul.f32 %v3941, 1.442695
    %v3944 = vpow.pop %v3943
    %v3945 = vmul.f32 %v3942, 1.442695
    %v3946 = vpow.pop %v3945
    %v3947 = vadd.f32 %v3944, 1.0
    %v3948 = vadd.f32 %v3946, 1.0
    %v3949 = vrcp.pop %v3947
    %v3950 = vmul.f32 1.0, %v3949
    %v3951 = vrcp.pop %v3948
    %v3952 = vmul.f32 1.0, %v3951
    %v3953 = vmul.f32 %v3950, %v3197
    %3955 = vrot.lane.b32.xlu0 %v3953, 32
    %v3956 = vpop.permute.xlu0 %3955
    %v3958 = vsel %vm168, %v3757, %v3956
    %v3959 = vpack.c.bf16 %v3958, %v3958
    %v3960 = vpack.c.bf16 %v3956, %v3956
    %v3961 = vld [vmem:[%s4] sm:$0xf]
    %v3962 = vld [vmem:[%s4 + $0x4] sm:$0xf]
    %v3963 = vld [vmem:[%s4 + $0x8] sm:$0xf]
    %v3964 = vld [vmem:[%s4 + $0xc] sm:$0xf]
    %v3965 = vld [vmem:[%s4 + $0x10] sm:$0xf]
    %v3966 = vld [vmem:[%s4 + $0x14] sm:$0xf]
    %v3967 = vld [vmem:[%s4 + $0x18] sm:$0xf]
    %v3968 = vld [vmem:[%s4 + $0x1c] sm:$0xf]
    %v3969 = vld [vmem:[%s4 + $0x20] sm:$0xf]
    %v3970 = vld [vmem:[%s4 + $0x24] sm:$0xf]
    %v3971 = vld [vmem:[%s4 + $0x28] sm:$0xf]
    %v3972 = vld [vmem:[%s4 + $0x2c] sm:$0xf]
    %v3973 = vld [vmem:[%s4 + $0x30] sm:$0xf]
    %v3974 = vld [vmem:[%s4 + $0x34] sm:$0xf]
    %v3975 = vld [vmem:[%s4 + $0x38] sm:$0xf]
    %v3976 = vld [vmem:[%s4 + $0x3c] sm:$0xf]
    %v3977 = vld [vmem:[%s4 + $0x40] sm:$0xf]
    %v3978 = vld [vmem:[%s4 + $0x44] sm:$0xf]
    %v3979 = vld [vmem:[%s4 + $0x48] sm:$0xf]
    %v3980 = vld [vmem:[%s4 + $0x4c] sm:$0xf]
    %v3981 = vld [vmem:[#allocation10] sm:$0x1]
    %v3983 = vlaneseq
    %v3984 = vshrl.u32 %v3983, 7
    %v3985 = vsub.s32 0, %v3984
    %v3986 = vrot.slane %v3981, %v3985
    %v4008 = vunpack.c.l.b16 %v3961
    %v4009 = vunpack.c.l.b16 %v3962
    %v4010 = vunpack.c.l.b16 %v3963
    %v4011 = vunpack.c.l.b16 %v3964
    %v4012 = vunpack.c.l.b16 %v3965
    %v4013 = vunpack.c.l.b16 %v3966
    %v4014 = vunpack.c.l.b16 %v3967
    %v4015 = vunpack.c.l.b16 %v3968
    %v4016 = vunpack.c.l.b16 %v3969
    %v4017 = vunpack.c.l.b16 %v3970
    %v4018 = vunpack.c.l.b16 %v3971
    %v4019 = vunpack.c.l.b16 %v3972
    %v4020 = vunpack.c.l.b16 %v3973
    %v4021 = vunpack.c.l.b16 %v3974
    %v4022 = vunpack.c.l.b16 %v3975
    %v4023 = vunpack.c.l.b16 %v3976
    %v4024 = vunpack.c.l.b16 %v3977
    %v4025 = vunpack.c.l.b16 %v3978
    %v4026 = vunpack.c.l.b16 %v3979
    %v4027 = vunpack.c.l.b16 %v3980
    %v4028 = vpack.c.b16 %v4009, %v4008
    %v4029 = vpack.c.b16 %v4011, %v4010
    %v4030 = vpack.c.b16 %v4013, %v4012
    %v4031 = vpack.c.b16 %v4015, %v4014
    %v4032 = vpack.c.b16 %v4017, %v4016
    %v4033 = vpack.c.b16 %v4019, %v4018
    %v4034 = vpack.c.b16 %v4021, %v4020
    %v4035 = vpack.c.b16 %v4023, %v4022
    %v4036 = vpack.c.b16 %v4025, %v4024
    %v4037 = vpack.c.b16 %v4027, %v4026
    %v4049 = vsel %vm168, %v3960, 0
    %4051 = vmatprep.subr.bf16.mxu0 0
    %4052 = vmatpush1.bf16.msra.mxu0 %v4035
    %4053 = vmatprep.subr.bf16.mxu0 0
    %4054 = vmatpush1.bf16.msra.mxu0 %v4034
    %4055 = vmatprep.subr.bf16.mxu0 0
    %4056 = vmatpush1.bf16.msra.mxu0 %v4033
    %4057 = vmatprep.subr.bf16.mxu0 0
    %4058 = vmatpush1.bf16.msra.mxu0 %v4032
    %4059 = vmatprep.subr.bf16.mxu0 0
    %4060 = vmatpush1.bf16.msra.mxu0 %v4031
    %4061 = vmatprep.subr.bf16.mxu0 0
    %4062 = vmatpush1.bf16.msra.mxu0 %v4030
    %4063 = vmatprep.subr.bf16.mxu0 0
    %4064 = vmatpush1.bf16.msra.mxu0 %v4029
    %4065 = vmatprep.subr.bf16.mxu0 0
    %4066 = vmatpush1.bf16.msra.mxu0 %v4028
    %4067 = vmatprep.subr.bf16.mxu0 0
    %4068 = vmatpush2.bf16.msra.mxu0 0
    %4069 = vmatprep.subr.bf16.mxu0 0
    %4070 = vmatpush2.bf16.msra.mxu0 0
    %4071 = vmatprep.subr.bf16.mxu0 0
    %4072 = vmatpush2.bf16.msra.mxu0 0
    %4073 = vmatprep.subr.bf16.mxu0 0
    %4074 = vmatpush2.bf16.msra.mxu0 0
    %4075 = vmatprep.subr.bf16.mxu0 0
    %4076 = vmatpush2.bf16.msra.mxu0 0
    %4077 = vmatprep.subr.bf16.mxu0 0
    %4078 = vmatpush2.bf16.msra.mxu0 0
    %4079 = vmatprep.subr.bf16.mxu0 0
    %4080 = vmatpush2.bf16.msra.mxu0 %v4037
    %4081 = vmatprep.subr.bf16.mxu0 0
    %4082 = vmatpush2.bf16.msra.mxu0 %v4036
    %4083 = vmatprep.mubr.bf16.mxu0 %v4049
    %4084 = vmatmul.mubr.bf16.gmra.mxu0 %v3959
    %v4085 = vpop.f32.mrf.mxu0
    %v4086 = vadd.f32 %v3986, %v4085
    %v4087 = vpop.f32.mrf.mxu0
    %v4088 = vpop.f32.mrf.mxu0
    %v4089 = vpop.f32.mrf.mxu0
    %4090 = vdwg.mxu0
    %v4091 = vtanh.pop %v4086
    %v4092 = vmul.f32 %v3952, %v3197
    %v4093 = vsub.f32 1.0, %v3952
    %v4094 = vmul.f32 %v4093, %v4091
    %v4095 = vadd.f32 %v4092, %v4094
    %v4096 = vpack.c.bf16 %v4095, %v4095
    %v4097 = vld [vmem:[#allocation12] sm:$0xff]
    %v4098 = vld [vmem:[#allocation12 + $0x8] sm:$0xff]
    %v4099 = vld [vmem:[#allocation12 + $0x10] sm:$0xff]
    %v4100 = vld [vmem:[#allocation12 + $0x18] sm:$0xff]
    %v4101 = vld [vmem:[#allocation12 + $0x20] sm:$0xff]
    %v4102 = vld [vmem:[#allocation12 + $0x28] sm:$0xff]
    %v4103 = vld [vmem:[#allocation12 + $0x30] sm:$0xff]
    %v4104 = vld [vmem:[#allocation12 + $0x38] sm:$0xff]
    %v4105 = vld [vmem:[#allocation12 + $0x40] sm:$0xff]
    %v4106 = vld [vmem:[#allocation12 + $0x48] sm:$0xff]
    %v4107 = vld [vmem:[#allocation12 + $0x50] sm:$0xff]
    %v4108 = vld [vmem:[#allocation12 + $0x58] sm:$0xff]
    %v4109 = vld [vmem:[#allocation12 + $0x60] sm:$0xff]
    %v4110 = vld [vmem:[#allocation12 + $0x68] sm:$0xff]
    %v4111 = vld [vmem:[#allocation12 + $0x70] sm:$0xff]
    %v4112 = vld [vmem:[#allocation12 + $0x78] sm:$0xff]
    %v4113 = vld [vmem:[#allocation12 + $0x80] sm:$0xff]
    %v4114 = vld [vmem:[#allocation12 + $0x88] sm:$0xff]
    %v4115 = vld [vmem:[#allocation12 + $0x90] sm:$0xff]
    %v4116 = vld [vmem:[#allocation12 + $0x98] sm:$0xff]
    %v4117 = vld [vmem:[#allocation12 + $0xa0] sm:$0xff]
    %v4118 = vld [vmem:[#allocation12 + $0xa8] sm:$0xff]
    %v4119 = vld [vmem:[#allocation12 + $0xb0] sm:$0xff]
    %v4120 = vld [vmem:[#allocation12 + $0xb8] sm:$0xff]
    %v4121 = vld [vmem:[#allocation12 + $0xc0] sm:$0xff]
    %v4122 = vld [vmem:[#allocation12 + $0xc8] sm:$0xff]
    %v4123 = vld [vmem:[#allocation12 + $0xd0] sm:$0xff]
    %v4124 = vld [vmem:[#allocation12 + $0xd8] sm:$0xff]
    %v4125 = vld [vmem:[#allocation12 + $0xe0] sm:$0xff]
    %v4126 = vld [vmem:[#allocation12 + $0xe8] sm:$0xff]
    %v4127 = vld [vmem:[#allocation12 + $0xf0] sm:$0xff]
    %v4128 = vld [vmem:[#allocation12 + $0xf8] sm:$0xff]
    %v4129 = vld [vmem:[#allocation15] sm:$0x3]
    %v4131 = vlaneseq
    %v4132 = vshrl.u32 %v4131, 7
    %v4133 = vsub.s32 0, %v4132
    %v4134 = vrot.slane %v4129, %v4133
    %v4135 = vlaneseq
    %v4136 = vshrl.u32 %v4135, 7
    %v4137 = vsub.s32 1, %v4136
    %v4138 = vrot.slane %v4129, %v4137
    %v4173 = vunpack.c.l.b16 %v4097
    %v4174 = vunpack.c.h.b16 %v4097
    %v4175 = vunpack.c.l.b16 %v4098
    %v4176 = vunpack.c.h.b16 %v4098
    %v4177 = vunpack.c.l.b16 %v4099
    %v4178 = vunpack.c.h.b16 %v4099
    %v4179 = vunpack.c.l.b16 %v4100
    %v4180 = vunpack.c.h.b16 %v4100
    %v4181 = vunpack.c.l.b16 %v4101
    %v4182 = vunpack.c.h.b16 %v4101
    %v4183 = vunpack.c.l.b16 %v4102
    %v4184 = vunpack.c.h.b16 %v4102
    %v4185 = vunpack.c.l.b16 %v4103
    %v4186 = vunpack.c.h.b16 %v4103
    %v4187 = vunpack.c.l.b16 %v4104
    %v4188 = vunpack.c.h.b16 %v4104
    %v4189 = vunpack.c.l.b16 %v4105
    %v4190 = vunpack.c.h.b16 %v4105
    %v4191 = vunpack.c.l.b16 %v4106
    %v4192 = vunpack.c.h.b16 %v4106
    %v4193 = vunpack.c.l.b16 %v4107
    %v4194 = vunpack.c.h.b16 %v4107
    %v4195 = vunpack.c.l.b16 %v4108
    %v4196 = vunpack.c.h.b16 %v4108
    %v4197 = vunpack.c.l.b16 %v4109
    %v4198 = vunpack.c.h.b16 %v4109
    %v4199 = vunpack.c.l.b16 %v4110
    %v4200 = vunpack.c.h.b16 %v4110
    %v4201 = vunpack.c.l.b16 %v4111
    %v4202 = vunpack.c.h.b16 %v4111
    %v4203 = vunpack.c.l.b16 %v4112
    %v4204 = vunpack.c.h.b16 %v4112
    %v4205 = vunpack.c.l.b16 %v4113
    %v4206 = vunpack.c.h.b16 %v4113
    %v4207 = vunpack.c.l.b16 %v4114
    %v4208 = vunpack.c.h.b16 %v4114
    %v4209 = vunpack.c.l.b16 %v4115
    %v4210 = vunpack.c.h.b16 %v4115
    %v4211 = vunpack.c.l.b16 %v4116
    %v4212 = vunpack.c.h.b16 %v4116
    %v4213 = vunpack.c.l.b16 %v4117
    %v4214 = vunpack.c.h.b16 %v4117
    %v4215 = vunpack.c.l.b16 %v4118
    %v4216 = vunpack.c.h.b16 %v4118
    %v4217 = vunpack.c.l.b16 %v4119
    %v4218 = vunpack.c.h.b16 %v4119
    %v4219 = vunpack.c.l.b16 %v4120
    %v4220 = vunpack.c.h.b16 %v4120
    %v4221 = vunpack.c.l.b16 %v4121
    %v4222 = vunpack.c.h.b16 %v4121
    %v4223 = vunpack.c.l.b16 %v4122
    %v4224 = vunpack.c.h.b16 %v4122
    %v4225 = vunpack.c.l.b16 %v4123
    %v4226 = vunpack.c.h.b16 %v4123
    %v4227 = vunpack.c.l.b16 %v4124
    %v4228 = vunpack.c.h.b16 %v4124
    %v4229 = vunpack.c.l.b16 %v4125
    %v4230 = vunpack.c.h.b16 %v4125
    %v4231 = vunpack.c.l.b16 %v4126
    %v4232 = vunpack.c.h.b16 %v4126
    %v4233 = vunpack.c.l.b16 %v4127
    %v4234 = vunpack.c.h.b16 %v4127
    %v4235 = vunpack.c.l.b16 %v4128
    %v4236 = vunpack.c.h.b16 %v4128
    %v4237 = vpack.c.b16 %v4175, %v4173
    %v4238 = vpack.c.b16 %v4176, %v4174
    %v4239 = vpack.c.b16 %v4179, %v4177
    %v4240 = vpack.c.b16 %v4180, %v4178
    %v4241 = vpack.c.b16 %v4183, %v4181
    %v4242 = vpack.c.b16 %v4184, %v4182
    %v4243 = vpack.c.b16 %v4187, %v4185
    %v4244 = vpack.c.b16 %v4188, %v4186
    %v4245 = vpack.c.b16 %v4191, %v4189
    %v4246 = vpack.c.b16 %v4192, %v4190
    %v4247 = vpack.c.b16 %v4195, %v4193
    %v4248 = vpack.c.b16 %v4196, %v4194
    %v4249 = vpack.c.b16 %v4199, %v4197
    %v4250 = vpack.c.b16 %v4200, %v4198
    %v4251 = vpack.c.b16 %v4203, %v4201
    %v4252 = vpack.c.b16 %v4204, %v4202
    %v4253 = vpack.c.b16 %v4207, %v4205
    %v4254 = vpack.c.b16 %v4208, %v4206
    %v4255 = vpack.c.b16 %v4211, %v4209
    %v4256 = vpack.c.b16 %v4212, %v4210
    %v4257 = vpack.c.b16 %v4215, %v4213
    %v4258 = vpack.c.b16 %v4216, %v4214
    %v4259 = vpack.c.b16 %v4219, %v4217
    %v4260 = vpack.c.b16 %v4220, %v4218
    %v4261 = vpack.c.b16 %v4223, %v4221
    %v4262 = vpack.c.b16 %v4224, %v4222
    %v4263 = vpack.c.b16 %v4227, %v4225
    %v4264 = vpack.c.b16 %v4228, %v4226
    %v4265 = vpack.c.b16 %v4231, %v4229
    %v4266 = vpack.c.b16 %v4232, %v4230
    %v4267 = vpack.c.b16 %v4235, %v4233
    %v4268 = vpack.c.b16 %v4236, %v4234
    %4301 = vmatprep.subr.bf16.mxu0 %v4252
    %4302 = vmatpush1.bf16.msra.mxu0 %v4251
    %4303 = vmatprep.subr.bf16.mxu0 %v4250
    %4304 = vmatpush1.bf16.msra.mxu0 %v4249
    %4305 = vmatprep.subr.bf16.mxu0 %v4248
    %4306 = vmatpush1.bf16.msra.mxu0 %v4247
    %4307 = vmatprep.subr.bf16.mxu0 %v4246
    %4308 = vmatpush1.bf16.msra.mxu0 %v4245
    %4309 = vmatprep.subr.bf16.mxu0 %v4244
    %4310 = vmatpush1.bf16.msra.mxu0 %v4243
    %4311 = vmatprep.subr.bf16.mxu0 %v4242
    %4312 = vmatpush1.bf16.msra.mxu0 %v4241
    %4313 = vmatprep.subr.bf16.mxu0 %v4240
    %4314 = vmatpush1.bf16.msra.mxu0 %v4239
    %4315 = vmatprep.subr.bf16.mxu0 %v4238
    %4316 = vmatpush1.bf16.msra.mxu0 %v4237
    %4317 = vmatprep.subr.bf16.mxu0 %v4268
    %4318 = vmatpush2.bf16.msra.mxu0 %v4267
    %4319 = vmatprep.subr.bf16.mxu0 %v4266
    %4320 = vmatpush2.bf16.msra.mxu0 %v4265
    %4321 = vmatprep.subr.bf16.mxu0 %v4264
    %4322 = vmatpush2.bf16.msra.mxu0 %v4263
    %4323 = vmatprep.subr.bf16.mxu0 %v4262
    %4324 = vmatpush2.bf16.msra.mxu0 %v4261
    %4325 = vmatprep.subr.bf16.mxu0 %v4260
    %4326 = vmatpush2.bf16.msra.mxu0 %v4259
    %4327 = vmatprep.subr.bf16.mxu0 %v4258
    %4328 = vmatpush2.bf16.msra.mxu0 %v4257
    %4329 = vmatprep.subr.bf16.mxu0 %v4256
    %4330 = vmatpush2.bf16.msra.mxu0 %v4255
    %4331 = vmatprep.subr.bf16.mxu0 %v4254
    %4332 = vmatpush2.bf16.msra.mxu0 %v4253
    %4333 = vmatprep.mubr.bf16.mxu0 %v3638
    %4334 = vmatmul.mubr.bf16.gmra.mxu0 %v4096
    %v4335 = vpop.f32.mrf.mxu0
    %v4336 = vadd.f32 %v4134, %v4335
    %v4337 = vpop.f32.mrf.mxu0
    %v4338 = vadd.f32 %v4138, %v4337
    %v4339 = vpop.f32.mrf.mxu0
    %v4340 = vpop.f32.mrf.mxu0
    %4341 = vdwg.mxu0
    %v4342 = vxor.u32 %v4336, 2147483648
    %v4343 = vxor.u32 %v4338, 2147483648
    %v4344 = vmul.f32 %v4342, 1.442695
    %v4345 = vpow.pop %v4344
    %v4346 = vmul.f32 %v4343, 1.442695
    %v4347 = vpow.pop %v4346
    %v4348 = vadd.f32 %v4345, 1.0
    %v4349 = vadd.f32 %v4347, 1.0
    %v4350 = vrcp.pop %v4348
    %v4351 = vmul.f32 1.0, %v4350
    %v4352 = vrcp.pop %v4349
    %v4353 = vmul.f32 1.0, %v4352
    %v4354 = vmul.f32 %v4351, %v3637
    %v4355 = vpack.c.bf16 %v4354, %v4354
    %v4356 = vld [vmem:[#allocation13] sm:$0xf]
    %v4357 = vld [vmem:[#allocation13 + $0x4] sm:$0xf]
    %v4358 = vld [vmem:[#allocation13 + $0x8] sm:$0xf]
    %v4359 = vld [vmem:[#allocation13 + $0xc] sm:$0xf]
    %v4360 = vld [vmem:[#allocation13 + $0x10] sm:$0xf]
    %v4361 = vld [vmem:[#allocation13 + $0x14] sm:$0xf]
    %v4362 = vld [vmem:[#allocation13 + $0x18] sm:$0xf]
    %v4363 = vld [vmem:[#allocation13 + $0x1c] sm:$0xf]
    %v4364 = vld [vmem:[#allocation13 + $0x20] sm:$0xf]
    %v4365 = vld [vmem:[#allocation13 + $0x24] sm:$0xf]
    %v4366 = vld [vmem:[#allocation13 + $0x28] sm:$0xf]
    %v4367 = vld [vmem:[#allocation13 + $0x2c] sm:$0xf]
    %v4368 = vld [vmem:[#allocation13 + $0x30] sm:$0xf]
    %v4369 = vld [vmem:[#allocation13 + $0x34] sm:$0xf]
    %v4370 = vld [vmem:[#allocation13 + $0x38] sm:$0xf]
    %v4371 = vld [vmem:[#allocation13 + $0x3c] sm:$0xf]
    %v4372 = vld [vmem:[#allocation13 + $0x40] sm:$0xf]
    %v4373 = vld [vmem:[#allocation13 + $0x44] sm:$0xf]
    %v4374 = vld [vmem:[#allocation13 + $0x48] sm:$0xf]
    %v4375 = vld [vmem:[#allocation13 + $0x4c] sm:$0xf]
    %v4376 = vld [vmem:[#allocation13 + $0x50] sm:$0xf]
    %v4377 = vld [vmem:[#allocation13 + $0x54] sm:$0xf]
    %v4378 = vld [vmem:[#allocation13 + $0x58] sm:$0xf]
    %v4379 = vld [vmem:[#allocation13 + $0x5c] sm:$0xf]
    %v4380 = vld [vmem:[#allocation13 + $0x60] sm:$0xf]
    %v4381 = vld [vmem:[#allocation13 + $0x64] sm:$0xf]
    %v4382 = vld [vmem:[#allocation13 + $0x68] sm:$0xf]
    %v4383 = vld [vmem:[#allocation13 + $0x6c] sm:$0xf]
    %v4384 = vld [vmem:[#allocation13 + $0x70] sm:$0xf]
    %v4385 = vld [vmem:[#allocation13 + $0x74] sm:$0xf]
    %v4386 = vld [vmem:[#allocation13 + $0x78] sm:$0xf]
    %v4387 = vld [vmem:[#allocation13 + $0x7c] sm:$0xf]
    %v4388 = vld [vmem:[#allocation16] sm:$0x1]
    %v4390 = vlaneseq
    %v4391 = vshrl.u32 %v4390, 7
    %v4392 = vsub.s32 0, %v4391
    %v4393 = vrot.slane %v4388, %v4392
    %v4427 = vunpack.c.l.b16 %v4356
    %v4428 = vunpack.c.l.b16 %v4357
    %v4429 = vunpack.c.l.b16 %v4358
    %v4430 = vunpack.c.l.b16 %v4359
    %v4431 = vunpack.c.l.b16 %v4360
    %v4432 = vunpack.c.l.b16 %v4361
    %v4433 = vunpack.c.l.b16 %v4362
    %v4434 = vunpack.c.l.b16 %v4363
    %v4435 = vunpack.c.l.b16 %v4364
    %v4436 = vunpack.c.l.b16 %v4365
    %v4437 = vunpack.c.l.b16 %v4366
    %v4438 = vunpack.c.l.b16 %v4367
    %v4439 = vunpack.c.l.b16 %v4368
    %v4440 = vunpack.c.l.b16 %v4369
    %v4441 = vunpack.c.l.b16 %v4370
    %v4442 = vunpack.c.l.b16 %v4371
    %v4443 = vunpack.c.l.b16 %v4372
    %v4444 = vunpack.c.l.b16 %v4373
    %v4445 = vunpack.c.l.b16 %v4374
    %v4446 = vunpack.c.l.b16 %v4375
    %v4447 = vunpack.c.l.b16 %v4376
    %v4448 = vunpack.c.l.b16 %v4377
    %v4449 = vunpack.c.l.b16 %v4378
    %v4450 = vunpack.c.l.b16 %v4379
    %v4451 = vunpack.c.l.b16 %v4380
    %v4452 = vunpack.c.l.b16 %v4381
    %v4453 = vunpack.c.l.b16 %v4382
    %v4454 = vunpack.c.l.b16 %v4383
    %v4455 = vunpack.c.l.b16 %v4384
    %v4456 = vunpack.c.l.b16 %v4385
    %v4457 = vunpack.c.l.b16 %v4386
    %v4458 = vunpack.c.l.b16 %v4387
    %v4459 = vpack.c.b16 %v4428, %v4427
    %v4460 = vpack.c.b16 %v4430, %v4429
    %v4461 = vpack.c.b16 %v4432, %v4431
    %v4462 = vpack.c.b16 %v4434, %v4433
    %v4463 = vpack.c.b16 %v4436, %v4435
    %v4464 = vpack.c.b16 %v4438, %v4437
    %v4465 = vpack.c.b16 %v4440, %v4439
    %v4466 = vpack.c.b16 %v4442, %v4441
    %v4467 = vpack.c.b16 %v4444, %v4443
    %v4468 = vpack.c.b16 %v4446, %v4445
    %v4469 = vpack.c.b16 %v4448, %v4447
    %v4470 = vpack.c.b16 %v4450, %v4449
    %v4471 = vpack.c.b16 %v4452, %v4451
    %v4472 = vpack.c.b16 %v4454, %v4453
    %v4473 = vpack.c.b16 %v4456, %v4455
    %v4474 = vpack.c.b16 %v4458, %v4457
    %4491 = vmatprep.subr.bf16.mxu0 0
    %4492 = vmatpush1.bf16.msra.mxu0 %v4466
    %4493 = vmatprep.subr.bf16.mxu0 0
    %4494 = vmatpush1.bf16.msra.mxu0 %v4465
    %4495 = vmatprep.subr.bf16.mxu0 0
    %4496 = vmatpush1.bf16.msra.mxu0 %v4464
    %4497 = vmatprep.subr.bf16.mxu0 0
    %4498 = vmatpush1.bf16.msra.mxu0 %v4463
    %4499 = vmatprep.subr.bf16.mxu0 0
    %4500 = vmatpush1.bf16.msra.mxu0 %v4462
    %4501 = vmatprep.subr.bf16.mxu0 0
    %4502 = vmatpush1.bf16.msra.mxu0 %v4461
    %4503 = vmatprep.subr.bf16.mxu0 0
    %4504 = vmatpush1.bf16.msra.mxu0 %v4460
    %4505 = vmatprep.subr.bf16.mxu0 0
    %4506 = vmatpush1.bf16.msra.mxu0 %v4459
    %4507 = vmatprep.subr.bf16.mxu0 0
    %4508 = vmatpush2.bf16.msra.mxu0 %v4474
    %4509 = vmatprep.subr.bf16.mxu0 0
    %4510 = vmatpush2.bf16.msra.mxu0 %v4473
    %4511 = vmatprep.subr.bf16.mxu0 0
    %4512 = vmatpush2.bf16.msra.mxu0 %v4472
    %4513 = vmatprep.subr.bf16.mxu0 0
    %4514 = vmatpush2.bf16.msra.mxu0 %v4471
    %4515 = vmatprep.subr.bf16.mxu0 0
    %4516 = vmatpush2.bf16.msra.mxu0 %v4470
    %4517 = vmatprep.subr.bf16.mxu0 0
    %4518 = vmatpush2.bf16.msra.mxu0 %v4469
    %4519 = vmatprep.subr.bf16.mxu0 0
    %4520 = vmatpush2.bf16.msra.mxu0 %v4468
    %4521 = vmatprep.subr.bf16.mxu0 0
    %4522 = vmatpush2.bf16.msra.mxu0 %v4467
    %4523 = vmatprep.mubr.bf16.mxu0 %v4355
    %4524 = vmatmul.mubr.bf16.gmra.mxu0 %v4096
    %v4525 = vpop.f32.mrf.mxu0
    %v4526 = vadd.f32 %v4393, %v4525
    %v4527 = vpop.f32.mrf.mxu0
    %v4528 = vpop.f32.mrf.mxu0
    %v4529 = vpop.f32.mrf.mxu0
    %4530 = vdwg.mxu0
    %v4531 = vtanh.pop %v4526
    %v4532 = vmul.f32 %v4353, %v3637
    %v4533 = vsub.f32 1.0, %v4353
    %v4534 = vmul.f32 %v4533, %v4531
    %v4535 = vadd.f32 %v4532, %v4534
    %v4536 = vpack.c.bf16 %v4535, %v4535
    %v4537 = vld [vmem:[%s11] sm:$0xf]
    %v4538 = vld [vmem:[%s11 + $0x4] sm:$0xf]
    %v4539 = vld [vmem:[%s11 + $0x8] sm:$0xf]
    %v4540 = vld [vmem:[%s11 + $0xc] sm:$0xf]
    %v4541 = vld [vmem:[%s11 + $0x10] sm:$0xf]
    %v4542 = vld [vmem:[%s11 + $0x14] sm:$0xf]
    %v4543 = vld [vmem:[%s11 + $0x18] sm:$0xf]
    %v4544 = vld [vmem:[%s11 + $0x1c] sm:$0xf]
    %v4545 = vld [vmem:[%s11 + $0x20] sm:$0xf]
    %v4546 = vld [vmem:[%s11 + $0x24] sm:$0xf]
    %v4547 = vld [vmem:[%s11 + $0x28] sm:$0xf]
    %v4548 = vld [vmem:[%s11 + $0x2c] sm:$0xf]
    %v4549 = vld [vmem:[%s11 + $0x30] sm:$0xf]
    %v4550 = vld [vmem:[%s11 + $0x34] sm:$0xf]
    %v4551 = vld [vmem:[%s11 + $0x38] sm:$0xf]
    %v4552 = vld [vmem:[%s11 + $0x3c] sm:$0xf]
    %v4553 = vld [vmem:[%s12] sm:$0x1]
    %v4555 = vlaneseq
    %v4556 = vshrl.u32 %v4555, 7
    %v4557 = vsub.s32 0, %v4556
    %v4558 = vrot.slane %v4553, %v4557
    %v4576 = vunpack.c.l.b16 %v4537
    %v4577 = vunpack.c.l.b16 %v4538
    %v4578 = vunpack.c.l.b16 %v4539
    %v4579 = vunpack.c.l.b16 %v4540
    %v4580 = vunpack.c.l.b16 %v4541
    %v4581 = vunpack.c.l.b16 %v4542
    %v4582 = vunpack.c.l.b16 %v4543
    %v4583 = vunpack.c.l.b16 %v4544
    %v4584 = vunpack.c.l.b16 %v4545
    %v4585 = vunpack.c.l.b16 %v4546
    %v4586 = vunpack.c.l.b16 %v4547
    %v4587 = vunpack.c.l.b16 %v4548
    %v4588 = vunpack.c.l.b16 %v4549
    %v4589 = vunpack.c.l.b16 %v4550
    %v4590 = vunpack.c.l.b16 %v4551
    %v4591 = vunpack.c.l.b16 %v4552
    %v4592 = vpack.c.b16 %v4577, %v4576
    %v4593 = vpack.c.b16 %v4579, %v4578
    %v4594 = vpack.c.b16 %v4581, %v4580
    %v4595 = vpack.c.b16 %v4583, %v4582
    %v4596 = vpack.c.b16 %v4585, %v4584
    %v4597 = vpack.c.b16 %v4587, %v4586
    %v4598 = vpack.c.b16 %v4589, %v4588
    %v4599 = vpack.c.b16 %v4591, %v4590
    %4608 = vmatprep.subr.bf16.mxu0 0
    %4609 = vmatpush1.bf16.msra.mxu0 %v4599
    %4610 = vmatprep.subr.bf16.mxu0 0
    %4611 = vmatpush1.bf16.msra.mxu0 %v4598
    %4612 = vmatprep.subr.bf16.mxu0 0
    %4613 = vmatpush1.bf16.msra.mxu0 %v4597
    %4614 = vmatprep.subr.bf16.mxu0 0
    %4615 = vmatpush1.bf16.msra.mxu0 %v4596
    %4616 = vmatprep.subr.bf16.mxu0 0
    %4617 = vmatpush1.bf16.msra.mxu0 %v4595
    %4618 = vmatprep.subr.bf16.mxu0 0
    %4619 = vmatpush1.bf16.msra.mxu0 %v4594
    %4620 = vmatprep.subr.bf16.mxu0 0
    %4621 = vmatpush1.bf16.msra.mxu0 %v4593
    %4622 = vmatprep.subr.bf16.mxu0 0
    %4623 = vmatpush1.bf16.msra.mxu0 %v4592
    %4624 = vmatprep.subr.bf16.mxu0 0
    %4625 = vmatpush2.bf16.msra.mxu0 0
    %4626 = vmatprep.subr.bf16.mxu0 0
    %4627 = vmatpush2.bf16.msra.mxu0 0
    %4628 = vmatprep.subr.bf16.mxu0 0
    %4629 = vmatpush2.bf16.msra.mxu0 0
    %4630 = vmatprep.subr.bf16.mxu0 0
    %4631 = vmatpush2.bf16.msra.mxu0 0
    %4632 = vmatprep.subr.bf16.mxu0 0
    %4633 = vmatpush2.bf16.msra.mxu0 0
    %4634 = vmatprep.subr.bf16.mxu0 0
    %4635 = vmatpush2.bf16.msra.mxu0 0
    %4636 = vmatprep.subr.bf16.mxu0 0
    %4637 = vmatpush2.bf16.msra.mxu0 0
    %4638 = vmatprep.subr.bf16.mxu0 0
    %4639 = vmatpush2.bf16.msra.mxu0 0
    %4640 = vmatprep.mubr.bf16.mxu0 0
    %4641 = vmatmul.mubr.bf16.gmra.mxu0 %v4536
    %v4642 = vpop.f32.mrf.mxu0
    %v4643 = vadd.f32 %v4558, %v4642
    %v4644 = vpop.f32.mrf.mxu0
    %v4645 = vpop.f32.mrf.mxu0
    %v4646 = vpop.f32.mrf.mxu0
    %4647 = vdwg.mxu0
    %s4648 = scalar_lea.vmem [#allocation18], 10
    %4649 = vst.msk [vmem:[%s4648] sm:$0x3] %vm158, %v4643
    %s4650 = sld [smem:[#allocation2 + $0x5]]
    %v4651 = vstv %s4650
    %vm4652 = vcmp.gt.s32.totalorder %v4651, 0
    %s4653 = scalar_lea.vmem [#allocation6], 10
    %v4654 = vld [vmem:[%s4653] sm:$0x3]
    %v4655 = vsel %vm4652, %v4654, %v4643
    %4657 = vrot.lane.b32.xlu0 %v4095, 32
    %v4658 = vpop.permute.xlu0 %4657
    %v4660 = vsel %vm168, %v4655, %v4658
    %v4661 = vpack.c.bf16 %v4660, %v4660
    %v4662 = vpack.c.bf16 %v4658, %v4658
    %v4663 = vld [vmem:[#allocation7] sm:$0xff]
    %v4664 = vld [vmem:[#allocation7 + $0x8] sm:$0xff]
    %v4665 = vld [vmem:[#allocation7 + $0x10] sm:$0xff]
    %v4666 = vld [vmem:[#allocation7 + $0x18] sm:$0xff]
    %v4667 = vld [vmem:[#allocation7 + $0x20] sm:$0xff]
    %v4668 = vld [vmem:[#allocation7 + $0x28] sm:$0xff]
    %v4669 = vld [vmem:[#allocation7 + $0x30] sm:$0xff]
    %v4670 = vld [vmem:[#allocation7 + $0x38] sm:$0xff]
    %v4671 = vld [vmem:[#allocation7 + $0x40] sm:$0xff]
    %v4672 = vld [vmem:[#allocation7 + $0x48] sm:$0xff]
    %v4673 = vld [vmem:[#allocation7 + $0x50] sm:$0xff]
    %v4674 = vld [vmem:[#allocation7 + $0x58] sm:$0xff]
    %v4675 = vld [vmem:[#allocation7 + $0x60] sm:$0xff]
    %v4676 = vld [vmem:[#allocation7 + $0x68] sm:$0xff]
    %v4677 = vld [vmem:[#allocation7 + $0x70] sm:$0xff]
    %v4678 = vld [vmem:[#allocation7 + $0x78] sm:$0xff]
    %v4679 = vld [vmem:[#allocation7 + $0x80] sm:$0xff]
    %v4680 = vld [vmem:[#allocation7 + $0x88] sm:$0xff]
    %v4681 = vld [vmem:[#allocation7 + $0x90] sm:$0xff]
    %v4682 = vld [vmem:[#allocation7 + $0x98] sm:$0xff]
    %v4683 = vld [vmem:[#allocation9] sm:$0x3]
    %v4685 = vlaneseq
    %v4686 = vshrl.u32 %v4685, 7
    %v4687 = vsub.s32 0, %v4686
    %v4688 = vrot.slane %v4683, %v4687
    %v4689 = vlaneseq
    %v4690 = vshrl.u32 %v4689, 7
    %v4691 = vsub.s32 1, %v4690
    %v4692 = vrot.slane %v4683, %v4691
    %v4715 = vunpack.c.l.b16 %v4663
    %v4716 = vunpack.c.h.b16 %v4663
    %v4717 = vunpack.c.l.b16 %v4664
    %v4718 = vunpack.c.h.b16 %v4664
    %v4719 = vunpack.c.l.b16 %v4665
    %v4720 = vunpack.c.h.b16 %v4665
    %v4721 = vunpack.c.l.b16 %v4666
    %v4722 = vunpack.c.h.b16 %v4666
    %v4723 = vunpack.c.l.b16 %v4667
    %v4724 = vunpack.c.h.b16 %v4667
    %v4725 = vunpack.c.l.b16 %v4668
    %v4726 = vunpack.c.h.b16 %v4668
    %v4727 = vunpack.c.l.b16 %v4669
    %v4728 = vunpack.c.h.b16 %v4669
    %v4729 = vunpack.c.l.b16 %v4670
    %v4730 = vunpack.c.h.b16 %v4670
    %v4731 = vunpack.c.l.b16 %v4671
    %v4732 = vunpack.c.h.b16 %v4671
    %v4733 = vunpack.c.l.b16 %v4672
    %v4734 = vunpack.c.h.b16 %v4672
    %v4735 = vunpack.c.l.b16 %v4673
    %v4736 = vunpack.c.h.b16 %v4673
    %v4737 = vunpack.c.l.b16 %v4674
    %v4738 = vunpack.c.h.b16 %v4674
    %v4739 = vunpack.c.l.b16 %v4675
    %v4740 = vunpack.c.h.b16 %v4675
    %v4741 = vunpack.c.l.b16 %v4676
    %v4742 = vunpack.c.h.b16 %v4676
    %v4743 = vunpack.c.l.b16 %v4677
    %v4744 = vunpack.c.h.b16 %v4677
    %v4745 = vunpack.c.l.b16 %v4678
    %v4746 = vunpack.c.h.b16 %v4678
    %v4747 = vunpack.c.l.b16 %v4679
    %v4748 = vunpack.c.h.b16 %v4679
    %v4749 = vunpack.c.l.b16 %v4680
    %v4750 = vunpack.c.h.b16 %v4680
    %v4751 = vunpack.c.l.b16 %v4681
    %v4752 = vunpack.c.h.b16 %v4681
    %v4753 = vunpack.c.l.b16 %v4682
    %v4754 = vunpack.c.h.b16 %v4682
    %v4755 = vpack.c.b16 %v4717, %v4715
    %v4756 = vpack.c.b16 %v4718, %v4716
    %v4757 = vpack.c.b16 %v4721, %v4719
    %v4758 = vpack.c.b16 %v4722, %v4720
    %v4759 = vpack.c.b16 %v4725, %v4723
    %v4760 = vpack.c.b16 %v4726, %v4724
    %v4761 = vpack.c.b16 %v4729, %v4727
    %v4762 = vpack.c.b16 %v4730, %v4728
    %v4763 = vpack.c.b16 %v4733, %v4731
    %v4764 = vpack.c.b16 %v4734, %v4732
    %v4765 = vpack.c.b16 %v4737, %v4735
    %v4766 = vpack.c.b16 %v4738, %v4736
    %v4767 = vpack.c.b16 %v4741, %v4739
    %v4768 = vpack.c.b16 %v4742, %v4740
    %v4769 = vpack.c.b16 %v4745, %v4743
    %v4770 = vpack.c.b16 %v4746, %v4744
    %v4771 = vpack.c.b16 %v4749, %v4747
    %v4772 = vpack.c.b16 %v4750, %v4748
    %v4773 = vpack.c.b16 %v4753, %v4751
    %v4774 = vpack.c.b16 %v4754, %v4752
    %v4796 = vsel %vm168, %v4662, 0
    %4798 = vmatprep.subr.bf16.mxu0 %v4770
    %4799 = vmatpush1.bf16.msra.mxu0 %v4769
    %4800 = vmatprep.subr.bf16.mxu0 %v4768
    %4801 = vmatpush1.bf16.msra.mxu0 %v4767
    %4802 = vmatprep.subr.bf16.mxu0 %v4766
    %4803 = vmatpush1.bf16.msra.mxu0 %v4765
    %4804 = vmatprep.subr.bf16.mxu0 %v4764
    %4805 = vmatpush1.bf16.msra.mxu0 %v4763
    %4806 = vmatprep.subr.bf16.mxu0 %v4762
    %4807 = vmatpush1.bf16.msra.mxu0 %v4761
    %4808 = vmatprep.subr.bf16.mxu0 %v4760
    %4809 = vmatpush1.bf16.msra.mxu0 %v4759
    %4810 = vmatprep.subr.bf16.mxu0 %v4758
    %4811 = vmatpush1.bf16.msra.mxu0 %v4757
    %4812 = vmatprep.subr.bf16.mxu0 %v4756
    %4813 = vmatpush1.bf16.msra.mxu0 %v4755
    %4814 = vmatprep.subr.bf16.mxu0 0
    %4815 = vmatpush2.bf16.msra.mxu0 0
    %4816 = vmatprep.subr.bf16.mxu0 0
    %4817 = vmatpush2.bf16.msra.mxu0 0
    %4818 = vmatprep.subr.bf16.mxu0 0
    %4819 = vmatpush2.bf16.msra.mxu0 0
    %4820 = vmatprep.subr.bf16.mxu0 0
    %4821 = vmatpush2.bf16.msra.mxu0 0
    %4822 = vmatprep.subr.bf16.mxu0 0
    %4823 = vmatpush2.bf16.msra.mxu0 0
    %4824 = vmatprep.subr.bf16.mxu0 0
    %4825 = vmatpush2.bf16.msra.mxu0 0
    %4826 = vmatprep.subr.bf16.mxu0 %v4774
    %4827 = vmatpush2.bf16.msra.mxu0 %v4773
    %4828 = vmatprep.subr.bf16.mxu0 %v4772
    %4829 = vmatpush2.bf16.msra.mxu0 %v4771
    %4830 = vmatprep.mubr.bf16.mxu0 %v4796
    %4831 = vmatmul.mubr.bf16.gmra.mxu0 %v4661
    %v4832 = vpop.f32.mrf.mxu0
    %v4833 = vadd.f32 %v4688, %v4832
    %v4834 = vpop.f32.mrf.mxu0
    %v4835 = vadd.f32 %v4692, %v4834
    %v4836 = vpop.f32.mrf.mxu0
    %v4837 = vpop.f32.mrf.mxu0
    %4838 = vdwg.mxu0
    %v4839 = vxor.u32 %v4833, 2147483648
    %v4840 = vxor.u32 %v4835, 2147483648
    %v4841 = vmul.f32 %v4839, 1.442695
    %v4842 = vpow.pop %v4841
    %v4843 = vmul.f32 %v4840, 1.442695
    %v4844 = vpow.pop %v4843
    %v4845 = vadd.f32 %v4842, 1.0
    %v4846 = vadd.f32 %v4844, 1.0
    %v4847 = vrcp.pop %v4845
    %v4848 = vmul.f32 1.0, %v4847
    %v4849 = vrcp.pop %v4846
    %v4850 = vmul.f32 1.0, %v4849
    %v4851 = vmul.f32 %v4848, %v4095
    %4853 = vrot.lane.b32.xlu0 %v4851, 32
    %v4854 = vpop.permute.xlu0 %4853
    %v4856 = vsel %vm168, %v4655, %v4854
    %v4857 = vpack.c.bf16 %v4856, %v4856
    %v4858 = vpack.c.bf16 %v4854, %v4854
    %v4859 = vld [vmem:[%s4] sm:$0xf]
    %v4860 = vld [vmem:[%s4 + $0x4] sm:$0xf]
    %v4861 = vld [vmem:[%s4 + $0x8] sm:$0xf]
    %v4862 = vld [vmem:[%s4 + $0xc] sm:$0xf]
    %v4863 = vld [vmem:[%s4 + $0x10] sm:$0xf]
    %v4864 = vld [vmem:[%s4 + $0x14] sm:$0xf]
    %v4865 = vld [vmem:[%s4 + $0x18] sm:$0xf]
    %v4866 = vld [vmem:[%s4 + $0x1c] sm:$0xf]
    %v4867 = vld [vmem:[%s4 + $0x20] sm:$0xf]
    %v4868 = vld [vmem:[%s4 + $0x24] sm:$0xf]
    %v4869 = vld [vmem:[%s4 + $0x28] sm:$0xf]
    %v4870 = vld [vmem:[%s4 + $0x2c] sm:$0xf]
    %v4871 = vld [vmem:[%s4 + $0x30] sm:$0xf]
    %v4872 = vld [vmem:[%s4 + $0x34] sm:$0xf]
    %v4873 = vld [vmem:[%s4 + $0x38] sm:$0xf]
    %v4874 = vld [vmem:[%s4 + $0x3c] sm:$0xf]
    %v4875 = vld [vmem:[%s4 + $0x40] sm:$0xf]
    %v4876 = vld [vmem:[%s4 + $0x44] sm:$0xf]
    %v4877 = vld [vmem:[%s4 + $0x48] sm:$0xf]
    %v4878 = vld [vmem:[%s4 + $0x4c] sm:$0xf]
    %v4879 = vld [vmem:[#allocation10] sm:$0x1]
    %v4881 = vlaneseq
    %v4882 = vshrl.u32 %v4881, 7
    %v4883 = vsub.s32 0, %v4882
    %v4884 = vrot.slane %v4879, %v4883
    %v4906 = vunpack.c.l.b16 %v4859
    %v4907 = vunpack.c.l.b16 %v4860
    %v4908 = vunpack.c.l.b16 %v4861
    %v4909 = vunpack.c.l.b16 %v4862
    %v4910 = vunpack.c.l.b16 %v4863
    %v4911 = vunpack.c.l.b16 %v4864
    %v4912 = vunpack.c.l.b16 %v4865
    %v4913 = vunpack.c.l.b16 %v4866
    %v4914 = vunpack.c.l.b16 %v4867
    %v4915 = vunpack.c.l.b16 %v4868
    %v4916 = vunpack.c.l.b16 %v4869
    %v4917 = vunpack.c.l.b16 %v4870
    %v4918 = vunpack.c.l.b16 %v4871
    %v4919 = vunpack.c.l.b16 %v4872
    %v4920 = vunpack.c.l.b16 %v4873
    %v4921 = vunpack.c.l.b16 %v4874
    %v4922 = vunpack.c.l.b16 %v4875
    %v4923 = vunpack.c.l.b16 %v4876
    %v4924 = vunpack.c.l.b16 %v4877
    %v4925 = vunpack.c.l.b16 %v4878
    %v4926 = vpack.c.b16 %v4907, %v4906
    %v4927 = vpack.c.b16 %v4909, %v4908
    %v4928 = vpack.c.b16 %v4911, %v4910
    %v4929 = vpack.c.b16 %v4913, %v4912
    %v4930 = vpack.c.b16 %v4915, %v4914
    %v4931 = vpack.c.b16 %v4917, %v4916
    %v4932 = vpack.c.b16 %v4919, %v4918
    %v4933 = vpack.c.b16 %v4921, %v4920
    %v4934 = vpack.c.b16 %v4923, %v4922
    %v4935 = vpack.c.b16 %v4925, %v4924
    %v4947 = vsel %vm168, %v4858, 0
    %4949 = vmatprep.subr.bf16.mxu0 0
    %4950 = vmatpush1.bf16.msra.mxu0 %v4933
    %4951 = vmatprep.subr.bf16.mxu0 0
    %4952 = vmatpush1.bf16.msra.mxu0 %v4932
    %4953 = vmatprep.subr.bf16.mxu0 0
    %4954 = vmatpush1.bf16.msra.mxu0 %v4931
    %4955 = vmatprep.subr.bf16.mxu0 0
    %4956 = vmatpush1.bf16.msra.mxu0 %v4930
    %4957 = vmatprep.subr.bf16.mxu0 0
    %4958 = vmatpush1.bf16.msra.mxu0 %v4929
    %4959 = vmatprep.subr.bf16.mxu0 0
    %4960 = vmatpush1.bf16.msra.mxu0 %v4928
    %4961 = vmatprep.subr.bf16.mxu0 0
    %4962 = vmatpush1.bf16.msra.mxu0 %v4927
    %4963 = vmatprep.subr.bf16.mxu0 0
    %4964 = vmatpush1.bf16.msra.mxu0 %v4926
    %4965 = vmatprep.subr.bf16.mxu0 0
    %4966 = vmatpush2.bf16.msra.mxu0 0
    %4967 = vmatprep.subr.bf16.mxu0 0
    %4968 = vmatpush2.bf16.msra.mxu0 0
    %4969 = vmatprep.subr.bf16.mxu0 0
    %4970 = vmatpush2.bf16.msra.mxu0 0
    %4971 = vmatprep.subr.bf16.mxu0 0
    %4972 = vmatpush2.bf16.msra.mxu0 0
    %4973 = vmatprep.subr.bf16.mxu0 0
    %4974 = vmatpush2.bf16.msra.mxu0 0
    %4975 = vmatprep.subr.bf16.mxu0 0
    %4976 = vmatpush2.bf16.msra.mxu0 0
    %4977 = vmatprep.subr.bf16.mxu0 0
    %4978 = vmatpush2.bf16.msra.mxu0 %v4935
    %4979 = vmatprep.subr.bf16.mxu0 0
    %4980 = vmatpush2.bf16.msra.mxu0 %v4934
    %4981 = vmatprep.mubr.bf16.mxu0 %v4947
    %4982 = vmatmul.mubr.bf16.gmra.mxu0 %v4857
    %v4983 = vpop.f32.mrf.mxu0
    %v4984 = vadd.f32 %v4884, %v4983
    %v4985 = vpop.f32.mrf.mxu0
    %v4986 = vpop.f32.mrf.mxu0
    %v4987 = vpop.f32.mrf.mxu0
    %4988 = vdwg.mxu0
    %v4989 = vtanh.pop %v4984
    %v4990 = vmul.f32 %v4850, %v4095
    %v4991 = vsub.f32 1.0, %v4850
    %v4992 = vmul.f32 %v4991, %v4989
    %v4993 = vadd.f32 %v4990, %v4992
    %v4994 = vpack.c.bf16 %v4993, %v4993
    %v4995 = vld [vmem:[#allocation12] sm:$0xff]
    %v4996 = vld [vmem:[#allocation12 + $0x8] sm:$0xff]
    %v4997 = vld [vmem:[#allocation12 + $0x10] sm:$0xff]
    %v4998 = vld [vmem:[#allocation12 + $0x18] sm:$0xff]
    %v4999 = vld [vmem:[#allocation12 + $0x20] sm:$0xff]
    %v5000 = vld [vmem:[#allocation12 + $0x28] sm:$0xff]
    %v5001 = vld [vmem:[#allocation12 + $0x30] sm:$0xff]
    %v5002 = vld [vmem:[#allocation12 + $0x38] sm:$0xff]
    %v5003 = vld [vmem:[#allocation12 + $0x40] sm:$0xff]
    %v5004 = vld [vmem:[#allocation12 + $0x48] sm:$0xff]
    %v5005 = vld [vmem:[#allocation12 + $0x50] sm:$0xff]
    %v5006 = vld [vmem:[#allocation12 + $0x58] sm:$0xff]
    %v5007 = vld [vmem:[#allocation12 + $0x60] sm:$0xff]
    %v5008 = vld [vmem:[#allocation12 + $0x68] sm:$0xff]
    %v5009 = vld [vmem:[#allocation12 + $0x70] sm:$0xff]
    %v5010 = vld [vmem:[#allocation12 + $0x78] sm:$0xff]
    %v5011 = vld [vmem:[#allocation12 + $0x80] sm:$0xff]
    %v5012 = vld [vmem:[#allocation12 + $0x88] sm:$0xff]
    %v5013 = vld [vmem:[#allocation12 + $0x90] sm:$0xff]
    %v5014 = vld [vmem:[#allocation12 + $0x98] sm:$0xff]
    %v5015 = vld [vmem:[#allocation12 + $0xa0] sm:$0xff]
    %v5016 = vld [vmem:[#allocation12 + $0xa8] sm:$0xff]
    %v5017 = vld [vmem:[#allocation12 + $0xb0] sm:$0xff]
    %v5018 = vld [vmem:[#allocation12 + $0xb8] sm:$0xff]
    %v5019 = vld [vmem:[#allocation12 + $0xc0] sm:$0xff]
    %v5020 = vld [vmem:[#allocation12 + $0xc8] sm:$0xff]
    %v5021 = vld [vmem:[#allocation12 + $0xd0] sm:$0xff]
    %v5022 = vld [vmem:[#allocation12 + $0xd8] sm:$0xff]
    %v5023 = vld [vmem:[#allocation12 + $0xe0] sm:$0xff]
    %v5024 = vld [vmem:[#allocation12 + $0xe8] sm:$0xff]
    %v5025 = vld [vmem:[#allocation12 + $0xf0] sm:$0xff]
    %v5026 = vld [vmem:[#allocation12 + $0xf8] sm:$0xff]
    %v5027 = vld [vmem:[#allocation15] sm:$0x3]
    %v5029 = vlaneseq
    %v5030 = vshrl.u32 %v5029, 7
    %v5031 = vsub.s32 0, %v5030
    %v5032 = vrot.slane %v5027, %v5031
    %v5033 = vlaneseq
    %v5034 = vshrl.u32 %v5033, 7
    %v5035 = vsub.s32 1, %v5034
    %v5036 = vrot.slane %v5027, %v5035
    %v5071 = vunpack.c.l.b16 %v4995
    %v5072 = vunpack.c.h.b16 %v4995
    %v5073 = vunpack.c.l.b16 %v4996
    %v5074 = vunpack.c.h.b16 %v4996
    %v5075 = vunpack.c.l.b16 %v4997
    %v5076 = vunpack.c.h.b16 %v4997
    %v5077 = vunpack.c.l.b16 %v4998
    %v5078 = vunpack.c.h.b16 %v4998
    %v5079 = vunpack.c.l.b16 %v4999
    %v5080 = vunpack.c.h.b16 %v4999
    %v5081 = vunpack.c.l.b16 %v5000
    %v5082 = vunpack.c.h.b16 %v5000
    %v5083 = vunpack.c.l.b16 %v5001
    %v5084 = vunpack.c.h.b16 %v5001
    %v5085 = vunpack.c.l.b16 %v5002
    %v5086 = vunpack.c.h.b16 %v5002
    %v5087 = vunpack.c.l.b16 %v5003
    %v5088 = vunpack.c.h.b16 %v5003
    %v5089 = vunpack.c.l.b16 %v5004
    %v5090 = vunpack.c.h.b16 %v5004
    %v5091 = vunpack.c.l.b16 %v5005
    %v5092 = vunpack.c.h.b16 %v5005
    %v5093 = vunpack.c.l.b16 %v5006
    %v5094 = vunpack.c.h.b16 %v5006
    %v5095 = vunpack.c.l.b16 %v5007
    %v5096 = vunpack.c.h.b16 %v5007
    %v5097 = vunpack.c.l.b16 %v5008
    %v5098 = vunpack.c.h.b16 %v5008
    %v5099 = vunpack.c.l.b16 %v5009
    %v5100 = vunpack.c.h.b16 %v5009
    %v5101 = vunpack.c.l.b16 %v5010
    %v5102 = vunpack.c.h.b16 %v5010
    %v5103 = vunpack.c.l.b16 %v5011
    %v5104 = vunpack.c.h.b16 %v5011
    %v5105 = vunpack.c.l.b16 %v5012
    %v5106 = vunpack.c.h.b16 %v5012
    %v5107 = vunpack.c.l.b16 %v5013
    %v5108 = vunpack.c.h.b16 %v5013
    %v5109 = vunpack.c.l.b16 %v5014
    %v5110 = vunpack.c.h.b16 %v5014
    %v5111 = vunpack.c.l.b16 %v5015
    %v5112 = vunpack.c.h.b16 %v5015
    %v5113 = vunpack.c.l.b16 %v5016
    %v5114 = vunpack.c.h.b16 %v5016
    %v5115 = vunpack.c.l.b16 %v5017
    %v5116 = vunpack.c.h.b16 %v5017
    %v5117 = vunpack.c.l.b16 %v5018
    %v5118 = vunpack.c.h.b16 %v5018
    %v5119 = vunpack.c.l.b16 %v5019
    %v5120 = vunpack.c.h.b16 %v5019
    %v5121 = vunpack.c.l.b16 %v5020
    %v5122 = vunpack.c.h.b16 %v5020
    %v5123 = vunpack.c.l.b16 %v5021
    %v5124 = vunpack.c.h.b16 %v5021
    %v5125 = vunpack.c.l.b16 %v5022
    %v5126 = vunpack.c.h.b16 %v5022
    %v5127 = vunpack.c.l.b16 %v5023
    %v5128 = vunpack.c.h.b16 %v5023
    %v5129 = vunpack.c.l.b16 %v5024
    %v5130 = vunpack.c.h.b16 %v5024
    %v5131 = vunpack.c.l.b16 %v5025
    %v5132 = vunpack.c.h.b16 %v5025
    %v5133 = vunpack.c.l.b16 %v5026
    %v5134 = vunpack.c.h.b16 %v5026
    %v5135 = vpack.c.b16 %v5073, %v5071
    %v5136 = vpack.c.b16 %v5074, %v5072
    %v5137 = vpack.c.b16 %v5077, %v5075
    %v5138 = vpack.c.b16 %v5078, %v5076
    %v5139 = vpack.c.b16 %v5081, %v5079
    %v5140 = vpack.c.b16 %v5082, %v5080
    %v5141 = vpack.c.b16 %v5085, %v5083
    %v5142 = vpack.c.b16 %v5086, %v5084
    %v5143 = vpack.c.b16 %v5089, %v5087
    %v5144 = vpack.c.b16 %v5090, %v5088
    %v5145 = vpack.c.b16 %v5093, %v5091
    %v5146 = vpack.c.b16 %v5094, %v5092
    %v5147 = vpack.c.b16 %v5097, %v5095
    %v5148 = vpack.c.b16 %v5098, %v5096
    %v5149 = vpack.c.b16 %v5101, %v5099
    %v5150 = vpack.c.b16 %v5102, %v5100
    %v5151 = vpack.c.b16 %v5105, %v5103
    %v5152 = vpack.c.b16 %v5106, %v5104
    %v5153 = vpack.c.b16 %v5109, %v5107
    %v5154 = vpack.c.b16 %v5110, %v5108
    %v5155 = vpack.c.b16 %v5113, %v5111
    %v5156 = vpack.c.b16 %v5114, %v5112
    %v5157 = vpack.c.b16 %v5117, %v5115
    %v5158 = vpack.c.b16 %v5118, %v5116
    %v5159 = vpack.c.b16 %v5121, %v5119
    %v5160 = vpack.c.b16 %v5122, %v5120
    %v5161 = vpack.c.b16 %v5125, %v5123
    %v5162 = vpack.c.b16 %v5126, %v5124
    %v5163 = vpack.c.b16 %v5129, %v5127
    %v5164 = vpack.c.b16 %v5130, %v5128
    %v5165 = vpack.c.b16 %v5133, %v5131
    %v5166 = vpack.c.b16 %v5134, %v5132
    %5199 = vmatprep.subr.bf16.mxu0 %v5150
    %5200 = vmatpush1.bf16.msra.mxu0 %v5149
    %5201 = vmatprep.subr.bf16.mxu0 %v5148
    %5202 = vmatpush1.bf16.msra.mxu0 %v5147
    %5203 = vmatprep.subr.bf16.mxu0 %v5146
    %5204 = vmatpush1.bf16.msra.mxu0 %v5145
    %5205 = vmatprep.subr.bf16.mxu0 %v5144
    %5206 = vmatpush1.bf16.msra.mxu0 %v5143
    %5207 = vmatprep.subr.bf16.mxu0 %v5142
    %5208 = vmatpush1.bf16.msra.mxu0 %v5141
    %5209 = vmatprep.subr.bf16.mxu0 %v5140
    %5210 = vmatpush1.bf16.msra.mxu0 %v5139
    %5211 = vmatprep.subr.bf16.mxu0 %v5138
    %5212 = vmatpush1.bf16.msra.mxu0 %v5137
    %5213 = vmatprep.subr.bf16.mxu0 %v5136
    %5214 = vmatpush1.bf16.msra.mxu0 %v5135
    %5215 = vmatprep.subr.bf16.mxu0 %v5166
    %5216 = vmatpush2.bf16.msra.mxu0 %v5165
    %5217 = vmatprep.subr.bf16.mxu0 %v5164
    %5218 = vmatpush2.bf16.msra.mxu0 %v5163
    %5219 = vmatprep.subr.bf16.mxu0 %v5162
    %5220 = vmatpush2.bf16.msra.mxu0 %v5161
    %5221 = vmatprep.subr.bf16.mxu0 %v5160
    %5222 = vmatpush2.bf16.msra.mxu0 %v5159
    %5223 = vmatprep.subr.bf16.mxu0 %v5158
    %5224 = vmatpush2.bf16.msra.mxu0 %v5157
    %5225 = vmatprep.subr.bf16.mxu0 %v5156
    %5226 = vmatpush2.bf16.msra.mxu0 %v5155
    %5227 = vmatprep.subr.bf16.mxu0 %v5154
    %5228 = vmatpush2.bf16.msra.mxu0 %v5153
    %5229 = vmatprep.subr.bf16.mxu0 %v5152
    %5230 = vmatpush2.bf16.msra.mxu0 %v5151
    %5231 = vmatprep.mubr.bf16.mxu0 %v4536
    %5232 = vmatmul.mubr.bf16.gmra.mxu0 %v4994
    %v5233 = vpop.f32.mrf.mxu0
    %v5234 = vadd.f32 %v5032, %v5233
    %v5235 = vpop.f32.mrf.mxu0
    %v5236 = vadd.f32 %v5036, %v5235
    %v5237 = vpop.f32.mrf.mxu0
    %v5238 = vpop.f32.mrf.mxu0
    %5239 = vdwg.mxu0
    %v5240 = vxor.u32 %v5234, 2147483648
    %v5241 = vxor.u32 %v5236, 2147483648
    %v5242 = vmul.f32 %v5240, 1.442695
    %v5243 = vpow.pop %v5242
    %v5244 = vmul.f32 %v5241, 1.442695
    %v5245 = vpow.pop %v5244
    %v5246 = vadd.f32 %v5243, 1.0
    %v5247 = vadd.f32 %v5245, 1.0
    %v5248 = vrcp.pop %v5246
    %v5249 = vmul.f32 1.0, %v5248
    %v5250 = vrcp.pop %v5247
    %v5251 = vmul.f32 1.0, %v5250
    %v5252 = vmul.f32 %v5249, %v4535
    %v5253 = vpack.c.bf16 %v5252, %v5252
    %v5254 = vld [vmem:[#allocation13] sm:$0xf]
    %v5255 = vld [vmem:[#allocation13 + $0x4] sm:$0xf]
    %v5256 = vld [vmem:[#allocation13 + $0x8] sm:$0xf]
    %v5257 = vld [vmem:[#allocation13 + $0xc] sm:$0xf]
    %v5258 = vld [vmem:[#allocation13 + $0x10] sm:$0xf]
    %v5259 = vld [vmem:[#allocation13 + $0x14] sm:$0xf]
    %v5260 = vld [vmem:[#allocation13 + $0x18] sm:$0xf]
    %v5261 = vld [vmem:[#allocation13 + $0x1c] sm:$0xf]
    %v5262 = vld [vmem:[#allocation13 + $0x20] sm:$0xf]
    %v5263 = vld [vmem:[#allocation13 + $0x24] sm:$0xf]
    %v5264 = vld [vmem:[#allocation13 + $0x28] sm:$0xf]
    %v5265 = vld [vmem:[#allocation13 + $0x2c] sm:$0xf]
    %v5266 = vld [vmem:[#allocation13 + $0x30] sm:$0xf]
    %v5267 = vld [vmem:[#allocation13 + $0x34] sm:$0xf]
    %v5268 = vld [vmem:[#allocation13 + $0x38] sm:$0xf]
    %v5269 = vld [vmem:[#allocation13 + $0x3c] sm:$0xf]
    %v5270 = vld [vmem:[#allocation13 + $0x40] sm:$0xf]
    %v5271 = vld [vmem:[#allocation13 + $0x44] sm:$0xf]
    %v5272 = vld [vmem:[#allocation13 + $0x48] sm:$0xf]
    %v5273 = vld [vmem:[#allocation13 + $0x4c] sm:$0xf]
    %v5274 = vld [vmem:[#allocation13 + $0x50] sm:$0xf]
    %v5275 = vld [vmem:[#allocation13 + $0x54] sm:$0xf]
    %v5276 = vld [vmem:[#allocation13 + $0x58] sm:$0xf]
    %v5277 = vld [vmem:[#allocation13 + $0x5c] sm:$0xf]
    %v5278 = vld [vmem:[#allocation13 + $0x60] sm:$0xf]
    %v5279 = vld [vmem:[#allocation13 + $0x64] sm:$0xf]
    %v5280 = vld [vmem:[#allocation13 + $0x68] sm:$0xf]
    %v5281 = vld [vmem:[#allocation13 + $0x6c] sm:$0xf]
    %v5282 = vld [vmem:[#allocation13 + $0x70] sm:$0xf]
    %v5283 = vld [vmem:[#allocation13 + $0x74] sm:$0xf]
    %v5284 = vld [vmem:[#allocation13 + $0x78] sm:$0xf]
    %v5285 = vld [vmem:[#allocation13 + $0x7c] sm:$0xf]
    %v5286 = vld [vmem:[#allocation16] sm:$0x1]
    %v5288 = vlaneseq
    %v5289 = vshrl.u32 %v5288, 7
    %v5290 = vsub.s32 0, %v5289
    %v5291 = vrot.slane %v5286, %v5290
    %v5325 = vunpack.c.l.b16 %v5254
    %v5326 = vunpack.c.l.b16 %v5255
    %v5327 = vunpack.c.l.b16 %v5256
    %v5328 = vunpack.c.l.b16 %v5257
    %v5329 = vunpack.c.l.b16 %v5258
    %v5330 = vunpack.c.l.b16 %v5259
    %v5331 = vunpack.c.l.b16 %v5260
    %v5332 = vunpack.c.l.b16 %v5261
    %v5333 = vunpack.c.l.b16 %v5262
    %v5334 = vunpack.c.l.b16 %v5263
    %v5335 = vunpack.c.l.b16 %v5264
    %v5336 = vunpack.c.l.b16 %v5265
    %v5337 = vunpack.c.l.b16 %v5266
    %v5338 = vunpack.c.l.b16 %v5267
    %v5339 = vunpack.c.l.b16 %v5268
    %v5340 = vunpack.c.l.b16 %v5269
    %v5341 = vunpack.c.l.b16 %v5270
    %v5342 = vunpack.c.l.b16 %v5271
    %v5343 = vunpack.c.l.b16 %v5272
    %v5344 = vunpack.c.l.b16 %v5273
    %v5345 = vunpack.c.l.b16 %v5274
    %v5346 = vunpack.c.l.b16 %v5275
    %v5347 = vunpack.c.l.b16 %v5276
    %v5348 = vunpack.c.l.b16 %v5277
    %v5349 = vunpack.c.l.b16 %v5278
    %v5350 = vunpack.c.l.b16 %v5279
    %v5351 = vunpack.c.l.b16 %v5280
    %v5352 = vunpack.c.l.b16 %v5281
    %v5353 = vunpack.c.l.b16 %v5282
    %v5354 = vunpack.c.l.b16 %v5283
    %v5355 = vunpack.c.l.b16 %v5284
    %v5356 = vunpack.c.l.b16 %v5285
    %v5357 = vpack.c.b16 %v5326, %v5325
    %v5358 = vpack.c.b16 %v5328, %v5327
    %v5359 = vpack.c.b16 %v5330, %v5329
    %v5360 = vpack.c.b16 %v5332, %v5331
    %v5361 = vpack.c.b16 %v5334, %v5333
    %v5362 = vpack.c.b16 %v5336, %v5335
    %v5363 = vpack.c.b16 %v5338, %v5337
    %v5364 = vpack.c.b16 %v5340, %v5339
    %v5365 = vpack.c.b16 %v5342, %v5341
    %v5366 = vpack.c.b16 %v5344, %v5343
    %v5367 = vpack.c.b16 %v5346, %v5345
    %v5368 = vpack.c.b16 %v5348, %v5347
    %v5369 = vpack.c.b16 %v5350, %v5349
    %v5370 = vpack.c.b16 %v5352, %v5351
    %v5371 = vpack.c.b16 %v5354, %v5353
    %v5372 = vpack.c.b16 %v5356, %v5355
    %5389 = vmatprep.subr.bf16.mxu0 0
    %5390 = vmatpush1.bf16.msra.mxu0 %v5364
    %5391 = vmatprep.subr.bf16.mxu0 0
    %5392 = vmatpush1.bf16.msra.mxu0 %v5363
    %5393 = vmatprep.subr.bf16.mxu0 0
    %5394 = vmatpush1.bf16.msra.mxu0 %v5362
    %5395 = vmatprep.subr.bf16.mxu0 0
    %5396 = vmatpush1.bf16.msra.mxu0 %v5361
    %5397 = vmatprep.subr.bf16.mxu0 0
    %5398 = vmatpush1.bf16.msra.mxu0 %v5360
    %5399 = vmatprep.subr.bf16.mxu0 0
    %5400 = vmatpush1.bf16.msra.mxu0 %v5359
    %5401 = vmatprep.subr.bf16.mxu0 0
    %5402 = vmatpush1.bf16.msra.mxu0 %v5358
    %5403 = vmatprep.subr.bf16.mxu0 0
    %5404 = vmatpush1.bf16.msra.mxu0 %v5357
    %5405 = vmatprep.subr.bf16.mxu0 0
    %5406 = vmatpush2.bf16.msra.mxu0 %v5372
    %5407 = vmatprep.subr.bf16.mxu0 0
    %5408 = vmatpush2.bf16.msra.mxu0 %v5371
    %5409 = vmatprep.subr.bf16.mxu0 0
    %5410 = vmatpush2.bf16.msra.mxu0 %v5370
    %5411 = vmatprep.subr.bf16.mxu0 0
    %5412 = vmatpush2.bf16.msra.mxu0 %v5369
    %5413 = vmatprep.subr.bf16.mxu0 0
    %5414 = vmatpush2.bf16.msra.mxu0 %v5368
    %5415 = vmatprep.subr.bf16.mxu0 0
    %5416 = vmatpush2.bf16.msra.mxu0 %v5367
    %5417 = vmatprep.subr.bf16.mxu0 0
    %5418 = vmatpush2.bf16.msra.mxu0 %v5366
    %5419 = vmatprep.subr.bf16.mxu0 0
    %5420 = vmatpush2.bf16.msra.mxu0 %v5365
    %5421 = vmatprep.mubr.bf16.mxu0 %v5253
    %5422 = vmatmul.mubr.bf16.gmra.mxu0 %v4994
    %v5423 = vpop.f32.mrf.mxu0
    %v5424 = vadd.f32 %v5291, %v5423
    %v5425 = vpop.f32.mrf.mxu0
    %v5426 = vpop.f32.mrf.mxu0
    %v5427 = vpop.f32.mrf.mxu0
    %5428 = vdwg.mxu0
    %v5429 = vtanh.pop %v5424
    %v5430 = vmul.f32 %v5251, %v4535
    %v5431 = vsub.f32 1.0, %v5251
    %v5432 = vmul.f32 %v5431, %v5429
    %v5433 = vadd.f32 %v5430, %v5432
    %v5434 = vpack.c.bf16 %v5433, %v5433
    %v5435 = vld [vmem:[%s11] sm:$0xf]
    %v5436 = vld [vmem:[%s11 + $0x4] sm:$0xf]
    %v5437 = vld [vmem:[%s11 + $0x8] sm:$0xf]
    %v5438 = vld [vmem:[%s11 + $0xc] sm:$0xf]
    %v5439 = vld [vmem:[%s11 + $0x10] sm:$0xf]
    %v5440 = vld [vmem:[%s11 + $0x14] sm:$0xf]
    %v5441 = vld [vmem:[%s11 + $0x18] sm:$0xf]
    %v5442 = vld [vmem:[%s11 + $0x1c] sm:$0xf]
    %v5443 = vld [vmem:[%s11 + $0x20] sm:$0xf]
    %v5444 = vld [vmem:[%s11 + $0x24] sm:$0xf]
    %v5445 = vld [vmem:[%s11 + $0x28] sm:$0xf]
    %v5446 = vld [vmem:[%s11 + $0x2c] sm:$0xf]
    %v5447 = vld [vmem:[%s11 + $0x30] sm:$0xf]
    %v5448 = vld [vmem:[%s11 + $0x34] sm:$0xf]
    %v5449 = vld [vmem:[%s11 + $0x38] sm:$0xf]
    %v5450 = vld [vmem:[%s11 + $0x3c] sm:$0xf]
    %v5451 = vld [vmem:[%s12] sm:$0x1]
    %v5453 = vlaneseq
    %v5454 = vshrl.u32 %v5453, 7
    %v5455 = vsub.s32 0, %v5454
    %v5456 = vrot.slane %v5451, %v5455
    %v5474 = vunpack.c.l.b16 %v5435
    %v5475 = vunpack.c.l.b16 %v5436
    %v5476 = vunpack.c.l.b16 %v5437
    %v5477 = vunpack.c.l.b16 %v5438
    %v5478 = vunpack.c.l.b16 %v5439
    %v5479 = vunpack.c.l.b16 %v5440
    %v5480 = vunpack.c.l.b16 %v5441
    %v5481 = vunpack.c.l.b16 %v5442
    %v5482 = vunpack.c.l.b16 %v5443
    %v5483 = vunpack.c.l.b16 %v5444
    %v5484 = vunpack.c.l.b16 %v5445
    %v5485 = vunpack.c.l.b16 %v5446
    %v5486 = vunpack.c.l.b16 %v5447
    %v5487 = vunpack.c.l.b16 %v5448
    %v5488 = vunpack.c.l.b16 %v5449
    %v5489 = vunpack.c.l.b16 %v5450
    %v5490 = vpack.c.b16 %v5475, %v5474
    %v5491 = vpack.c.b16 %v5477, %v5476
    %v5492 = vpack.c.b16 %v5479, %v5478
    %v5493 = vpack.c.b16 %v5481, %v5480
    %v5494 = vpack.c.b16 %v5483, %v5482
    %v5495 = vpack.c.b16 %v5485, %v5484
    %v5496 = vpack.c.b16 %v5487, %v5486
    %v5497 = vpack.c.b16 %v5489, %v5488
    %5506 = vmatprep.subr.bf16.mxu0 0
    %5507 = vmatpush1.bf16.msra.mxu0 %v5497
    %5508 = vmatprep.subr.bf16.mxu0 0
    %5509 = vmatpush1.bf16.msra.mxu0 %v5496
    %5510 = vmatprep.subr.bf16.mxu0 0
    %5511 = vmatpush1.bf16.msra.mxu0 %v5495
    %5512 = vmatprep.subr.bf16.mxu0 0
    %5513 = vmatpush1.bf16.msra.mxu0 %v5494
    %5514 = vmatprep.subr.bf16.mxu0 0
    %5515 = vmatpush1.bf16.msra.mxu0 %v5493
    %5516 = vmatprep.subr.bf16.mxu0 0
    %5517 = vmatpush1.bf16.msra.mxu0 %v5492
    %5518 = vmatprep.subr.bf16.mxu0 0
    %5519 = vmatpush1.bf16.msra.mxu0 %v5491
    %5520 = vmatprep.subr.bf16.mxu0 0
    %5521 = vmatpush1.bf16.msra.mxu0 %v5490
    %5522 = vmatprep.subr.bf16.mxu0 0
    %5523 = vmatpush2.bf16.msra.mxu0 0
    %5524 = vmatprep.subr.bf16.mxu0 0
    %5525 = vmatpush2.bf16.msra.mxu0 0
    %5526 = vmatprep.subr.bf16.mxu0 0
    %5527 = vmatpush2.bf16.msra.mxu0 0
    %5528 = vmatprep.subr.bf16.mxu0 0
    %5529 = vmatpush2.bf16.msra.mxu0 0
    %5530 = vmatprep.subr.bf16.mxu0 0
    %5531 = vmatpush2.bf16.msra.mxu0 0
    %5532 = vmatprep.subr.bf16.mxu0 0
    %5533 = vmatpush2.bf16.msra.mxu0 0
    %5534 = vmatprep.subr.bf16.mxu0 0
    %5535 = vmatpush2.bf16.msra.mxu0 0
    %5536 = vmatprep.subr.bf16.mxu0 0
    %5537 = vmatpush2.bf16.msra.mxu0 0
    %5538 = vmatprep.mubr.bf16.mxu0 0
    %5539 = vmatmul.mubr.bf16.gmra.mxu0 %v5434
    %v5540 = vpop.f32.mrf.mxu0
    %v5541 = vadd.f32 %v5456, %v5540
    %v5542 = vpop.f32.mrf.mxu0
    %v5543 = vpop.f32.mrf.mxu0
    %v5544 = vpop.f32.mrf.mxu0
    %5545 = vdwg.mxu0
    %s5546 = scalar_lea.vmem [#allocation18], 12
    %5547 = vst.msk [vmem:[%s5546] sm:$0x3] %vm158, %v5541
    %s5548 = sld [smem:[#allocation2 + $0x6]]
    %v5549 = vstv %s5548
    %vm5550 = vcmp.gt.s32.totalorder %v5549, 0
    %s5551 = scalar_lea.vmem [#allocation6], 12
    %v5552 = vld [vmem:[%s5551] sm:$0x3]
    %v5553 = vsel %vm5550, %v5552, %v5541
    %5555 = vrot.lane.b32.xlu0 %v4993, 32
    %v5556 = vpop.permute.xlu0 %5555
    %v5558 = vsel %vm168, %v5553, %v5556
    %v5559 = vpack.c.bf16 %v5558, %v5558
    %v5560 = vpack.c.bf16 %v5556, %v5556
    %v5561 = vld [vmem:[#allocation7] sm:$0xff]
    %v5562 = vld [vmem:[#allocation7 + $0x8] sm:$0xff]
    %v5563 = vld [vmem:[#allocation7 + $0x10] sm:$0xff]
    %v5564 = vld [vmem:[#allocation7 + $0x18] sm:$0xff]
    %v5565 = vld [vmem:[#allocation7 + $0x20] sm:$0xff]
    %v5566 = vld [vmem:[#allocation7 + $0x28] sm:$0xff]
    %v5567 = vld [vmem:[#allocation7 + $0x30] sm:$0xff]
    %v5568 = vld [vmem:[#allocation7 + $0x38] sm:$0xff]
    %v5569 = vld [vmem:[#allocation7 + $0x40] sm:$0xff]
    %v5570 = vld [vmem:[#allocation7 + $0x48] sm:$0xff]
    %v5571 = vld [vmem:[#allocation7 + $0x50] sm:$0xff]
    %v5572 = vld [vmem:[#allocation7 + $0x58] sm:$0xff]
    %v5573 = vld [vmem:[#allocation7 + $0x60] sm:$0xff]
    %v5574 = vld [vmem:[#allocation7 + $0x68] sm:$0xff]
    %v5575 = vld [vmem:[#allocation7 + $0x70] sm:$0xff]
    %v5576 = vld [vmem:[#allocation7 + $0x78] sm:$0xff]
    %v5577 = vld [vmem:[#allocation7 + $0x80] sm:$0xff]
    %v5578 = vld [vmem:[#allocation7 + $0x88] sm:$0xff]
    %v5579 = vld [vmem:[#allocation7 + $0x90] sm:$0xff]
    %v5580 = vld [vmem:[#allocation7 + $0x98] sm:$0xff]
    %v5581 = vld [vmem:[#allocation9] sm:$0x3]
    %v5583 = vlaneseq
    %v5584 = vshrl.u32 %v5583, 7
    %v5585 = vsub.s32 0, %v5584
    %v5586 = vrot.slane %v5581, %v5585
    %v5587 = vlaneseq
    %v5588 = vshrl.u32 %v5587, 7
    %v5589 = vsub.s32 1, %v5588
    %v5590 = vrot.slane %v5581, %v5589
    %v5613 = vunpack.c.l.b16 %v5561
    %v5614 = vunpack.c.h.b16 %v5561
    %v5615 = vunpack.c.l.b16 %v5562
    %v5616 = vunpack.c.h.b16 %v5562
    %v5617 = vunpack.c.l.b16 %v5563
    %v5618 = vunpack.c.h.b16 %v5563
    %v5619 = vunpack.c.l.b16 %v5564
    %v5620 = vunpack.c.h.b16 %v5564
    %v5621 = vunpack.c.l.b16 %v5565
    %v5622 = vunpack.c.h.b16 %v5565
    %v5623 = vunpack.c.l.b16 %v5566
    %v5624 = vunpack.c.h.b16 %v5566
    %v5625 = vunpack.c.l.b16 %v5567
    %v5626 = vunpack.c.h.b16 %v5567
    %v5627 = vunpack.c.l.b16 %v5568
    %v5628 = vunpack.c.h.b16 %v5568
    %v5629 = vunpack.c.l.b16 %v5569
    %v5630 = vunpack.c.h.b16 %v5569
    %v5631 = vunpack.c.l.b16 %v5570
    %v5632 = vunpack.c.h.b16 %v5570
    %v5633 = vunpack.c.l.b16 %v5571
    %v5634 = vunpack.c.h.b16 %v5571
    %v5635 = vunpack.c.l.b16 %v5572
    %v5636 = vunpack.c.h.b16 %v5572
    %v5637 = vunpack.c.l.b16 %v5573
    %v5638 = vunpack.c.h.b16 %v5573
    %v5639 = vunpack.c.l.b16 %v5574
    %v5640 = vunpack.c.h.b16 %v5574
    %v5641 = vunpack.c.l.b16 %v5575
    %v5642 = vunpack.c.h.b16 %v5575
    %v5643 = vunpack.c.l.b16 %v5576
    %v5644 = vunpack.c.h.b16 %v5576
    %v5645 = vunpack.c.l.b16 %v5577
    %v5646 = vunpack.c.h.b16 %v5577
    %v5647 = vunpack.c.l.b16 %v5578
    %v5648 = vunpack.c.h.b16 %v5578
    %v5649 = vunpack.c.l.b16 %v5579
    %v5650 = vunpack.c.h.b16 %v5579
    %v5651 = vunpack.c.l.b16 %v5580
    %v5652 = vunpack.c.h.b16 %v5580
    %v5653 = vpack.c.b16 %v5615, %v5613
    %v5654 = vpack.c.b16 %v5616, %v5614
    %v5655 = vpack.c.b16 %v5619, %v5617
    %v5656 = vpack.c.b16 %v5620, %v5618
    %v5657 = vpack.c.b16 %v5623, %v5621
    %v5658 = vpack.c.b16 %v5624, %v5622
    %v5659 = vpack.c.b16 %v5627, %v5625
    %v5660 = vpack.c.b16 %v5628, %v5626
    %v5661 = vpack.c.b16 %v5631, %v5629
    %v5662 = vpack.c.b16 %v5632, %v5630
    %v5663 = vpack.c.b16 %v5635, %v5633
    %v5664 = vpack.c.b16 %v5636, %v5634
    %v5665 = vpack.c.b16 %v5639, %v5637
    %v5666 = vpack.c.b16 %v5640, %v5638
    %v5667 = vpack.c.b16 %v5643, %v5641
    %v5668 = vpack.c.b16 %v5644, %v5642
    %v5669 = vpack.c.b16 %v5647, %v5645
    %v5670 = vpack.c.b16 %v5648, %v5646
    %v5671 = vpack.c.b16 %v5651, %v5649
    %v5672 = vpack.c.b16 %v5652, %v5650
    %v5694 = vsel %vm168, %v5560, 0
    %5696 = vmatprep.subr.bf16.mxu0 %v5668
    %5697 = vmatpush1.bf16.msra.mxu0 %v5667
    %5698 = vmatprep.subr.bf16.mxu0 %v5666
    %5699 = vmatpush1.bf16.msra.mxu0 %v5665
    %5700 = vmatprep.subr.bf16.mxu0 %v5664
    %5701 = vmatpush1.bf16.msra.mxu0 %v5663
    %5702 = vmatprep.subr.bf16.mxu0 %v5662
    %5703 = vmatpush1.bf16.msra.mxu0 %v5661
    %5704 = vmatprep.subr.bf16.mxu0 %v5660
    %5705 = vmatpush1.bf16.msra.mxu0 %v5659
    %5706 = vmatprep.subr.bf16.mxu0 %v5658
    %5707 = vmatpush1.bf16.msra.mxu0 %v5657
    %5708 = vmatprep.subr.bf16.mxu0 %v5656
    %5709 = vmatpush1.bf16.msra.mxu0 %v5655
    %5710 = vmatprep.subr.bf16.mxu0 %v5654
    %5711 = vmatpush1.bf16.msra.mxu0 %v5653
    %5712 = vmatprep.subr.bf16.mxu0 0
    %5713 = vmatpush2.bf16.msra.mxu0 0
    %5714 = vmatprep.subr.bf16.mxu0 0
    %5715 = vmatpush2.bf16.msra.mxu0 0
    %5716 = vmatprep.subr.bf16.mxu0 0
    %5717 = vmatpush2.bf16.msra.mxu0 0
    %5718 = vmatprep.subr.bf16.mxu0 0
    %5719 = vmatpush2.bf16.msra.mxu0 0
    %5720 = vmatprep.subr.bf16.mxu0 0
    %5721 = vmatpush2.bf16.msra.mxu0 0
    %5722 = vmatprep.subr.bf16.mxu0 0
    %5723 = vmatpush2.bf16.msra.mxu0 0
    %5724 = vmatprep.subr.bf16.mxu0 %v5672
    %5725 = vmatpush2.bf16.msra.mxu0 %v5671
    %5726 = vmatprep.subr.bf16.mxu0 %v5670
    %5727 = vmatpush2.bf16.msra.mxu0 %v5669
    %5728 = vmatprep.mubr.bf16.mxu0 %v5694
    %5729 = vmatmul.mubr.bf16.gmra.mxu0 %v5559
    %v5730 = vpop.f32.mrf.mxu0
    %v5731 = vadd.f32 %v5586, %v5730
    %v5732 = vpop.f32.mrf.mxu0
    %v5733 = vadd.f32 %v5590, %v5732
    %v5734 = vpop.f32.mrf.mxu0
    %v5735 = vpop.f32.mrf.mxu0
    %5736 = vdwg.mxu0
    %v5737 = vxor.u32 %v5731, 2147483648
    %v5738 = vxor.u32 %v5733, 2147483648
    %v5739 = vmul.f32 %v5737, 1.442695
    %v5740 = vpow.pop %v5739
    %v5741 = vmul.f32 %v5738, 1.442695
    %v5742 = vpow.pop %v5741
    %v5743 = vadd.f32 %v5740, 1.0
    %v5744 = vadd.f32 %v5742, 1.0
    %v5745 = vrcp.pop %v5743
    %v5746 = vmul.f32 1.0, %v5745
    %v5747 = vrcp.pop %v5744
    %v5748 = vmul.f32 1.0, %v5747
    %v5749 = vmul.f32 %v5746, %v4993
    %5751 = vrot.lane.b32.xlu0 %v5749, 32
    %v5752 = vpop.permute.xlu0 %5751
    %v5754 = vsel %vm168, %v5553, %v5752
    %v5755 = vpack.c.bf16 %v5754, %v5754
    %v5756 = vpack.c.bf16 %v5752, %v5752
    %v5757 = vld [vmem:[%s4] sm:$0xf]
    %v5758 = vld [vmem:[%s4 + $0x4] sm:$0xf]
    %v5759 = vld [vmem:[%s4 + $0x8] sm:$0xf]
    %v5760 = vld [vmem:[%s4 + $0xc] sm:$0xf]
    %v5761 = vld [vmem:[%s4 + $0x10] sm:$0xf]
    %v5762 = vld [vmem:[%s4 + $0x14] sm:$0xf]
    %v5763 = vld [vmem:[%s4 + $0x18] sm:$0xf]
    %v5764 = vld [vmem:[%s4 + $0x1c] sm:$0xf]
    %v5765 = vld [vmem:[%s4 + $0x20] sm:$0xf]
    %v5766 = vld [vmem:[%s4 + $0x24] sm:$0xf]
    %v5767 = vld [vmem:[%s4 + $0x28] sm:$0xf]
    %v5768 = vld [vmem:[%s4 + $0x2c] sm:$0xf]
    %v5769 = vld [vmem:[%s4 + $0x30] sm:$0xf]
    %v5770 = vld [vmem:[%s4 + $0x34] sm:$0xf]
    %v5771 = vld [vmem:[%s4 + $0x38] sm:$0xf]
    %v5772 = vld [vmem:[%s4 + $0x3c] sm:$0xf]
    %v5773 = vld [vmem:[%s4 + $0x40] sm:$0xf]
    %v5774 = vld [vmem:[%s4 + $0x44] sm:$0xf]
    %v5775 = vld [vmem:[%s4 + $0x48] sm:$0xf]
    %v5776 = vld [vmem:[%s4 + $0x4c] sm:$0xf]
    %v5777 = vld [vmem:[#allocation10] sm:$0x1]
    %v5779 = vlaneseq
    %v5780 = vshrl.u32 %v5779, 7
    %v5781 = vsub.s32 0, %v5780
    %v5782 = vrot.slane %v5777, %v5781
    %v5804 = vunpack.c.l.b16 %v5757
    %v5805 = vunpack.c.l.b16 %v5758
    %v5806 = vunpack.c.l.b16 %v5759
    %v5807 = vunpack.c.l.b16 %v5760
    %v5808 = vunpack.c.l.b16 %v5761
    %v5809 = vunpack.c.l.b16 %v5762
    %v5810 = vunpack.c.l.b16 %v5763
    %v5811 = vunpack.c.l.b16 %v5764
    %v5812 = vunpack.c.l.b16 %v5765
    %v5813 = vunpack.c.l.b16 %v5766
    %v5814 = vunpack.c.l.b16 %v5767
    %v5815 = vunpack.c.l.b16 %v5768
    %v5816 = vunpack.c.l.b16 %v5769
    %v5817 = vunpack.c.l.b16 %v5770
    %v5818 = vunpack.c.l.b16 %v5771
    %v5819 = vunpack.c.l.b16 %v5772
    %v5820 = vunpack.c.l.b16 %v5773
    %v5821 = vunpack.c.l.b16 %v5774
    %v5822 = vunpack.c.l.b16 %v5775
    %v5823 = vunpack.c.l.b16 %v5776
    %v5824 = vpack.c.b16 %v5805, %v5804
    %v5825 = vpack.c.b16 %v5807, %v5806
    %v5826 = vpack.c.b16 %v5809, %v5808
    %v5827 = vpack.c.b16 %v5811, %v5810
    %v5828 = vpack.c.b16 %v5813, %v5812
    %v5829 = vpack.c.b16 %v5815, %v5814
    %v5830 = vpack.c.b16 %v5817, %v5816
    %v5831 = vpack.c.b16 %v5819, %v5818
    %v5832 = vpack.c.b16 %v5821, %v5820
    %v5833 = vpack.c.b16 %v5823, %v5822
    %v5845 = vsel %vm168, %v5756, 0
    %5847 = vmatprep.subr.bf16.mxu0 0
    %5848 = vmatpush1.bf16.msra.mxu0 %v5831
    %5849 = vmatprep.subr.bf16.mxu0 0
    %5850 = vmatpush1.bf16.msra.mxu0 %v5830
    %5851 = vmatprep.subr.bf16.mxu0 0
    %5852 = vmatpush1.bf16.msra.mxu0 %v5829
    %5853 = vmatprep.subr.bf16.mxu0 0
    %5854 = vmatpush1.bf16.msra.mxu0 %v5828
    %5855 = vmatprep.subr.bf16.mxu0 0
    %5856 = vmatpush1.bf16.msra.mxu0 %v5827
    %5857 = vmatprep.subr.bf16.mxu0 0
    %5858 = vmatpush1.bf16.msra.mxu0 %v5826
    %5859 = vmatprep.subr.bf16.mxu0 0
    %5860 = vmatpush1.bf16.msra.mxu0 %v5825
    %5861 = vmatprep.subr.bf16.mxu0 0
    %5862 = vmatpush1.bf16.msra.mxu0 %v5824
    %5863 = vmatprep.subr.bf16.mxu0 0
    %5864 = vmatpush2.bf16.msra.mxu0 0
    %5865 = vmatprep.subr.bf16.mxu0 0
    %5866 = vmatpush2.bf16.msra.mxu0 0
    %5867 = vmatprep.subr.bf16.mxu0 0
    %5868 = vmatpush2.bf16.msra.mxu0 0
    %5869 = vmatprep.subr.bf16.mxu0 0
    %5870 = vmatpush2.bf16.msra.mxu0 0
    %5871 = vmatprep.subr.bf16.mxu0 0
    %5872 = vmatpush2.bf16.msra.mxu0 0
    %5873 = vmatprep.subr.bf16.mxu0 0
    %5874 = vmatpush2.bf16.msra.mxu0 0
    %5875 = vmatprep.subr.bf16.mxu0 0
    %5876 = vmatpush2.bf16.msra.mxu0 %v5833
    %5877 = vmatprep.subr.bf16.mxu0 0
    %5878 = vmatpush2.bf16.msra.mxu0 %v5832
    %5879 = vmatprep.mubr.bf16.mxu0 %v5845
    %5880 = vmatmul.mubr.bf16.gmra.mxu0 %v5755
    %v5881 = vpop.f32.mrf.mxu0
    %v5882 = vadd.f32 %v5782, %v5881
    %v5883 = vpop.f32.mrf.mxu0
    %v5884 = vpop.f32.mrf.mxu0
    %v5885 = vpop.f32.mrf.mxu0
    %5886 = vdwg.mxu0
    %v5887 = vtanh.pop %v5882
    %v5888 = vmul.f32 %v5748, %v4993
    %v5889 = vsub.f32 1.0, %v5748
    %v5890 = vmul.f32 %v5889, %v5887
    %v5891 = vadd.f32 %v5888, %v5890
    %v5892 = vpack.c.bf16 %v5891, %v5891
    %v5893 = vld [vmem:[#allocation12] sm:$0xff]
    %v5894 = vld [vmem:[#allocation12 + $0x8] sm:$0xff]
    %v5895 = vld [vmem:[#allocation12 + $0x10] sm:$0xff]
    %v5896 = vld [vmem:[#allocation12 + $0x18] sm:$0xff]
    %v5897 = vld [vmem:[#allocation12 + $0x20] sm:$0xff]
    %v5898 = vld [vmem:[#allocation12 + $0x28] sm:$0xff]
    %v5899 = vld [vmem:[#allocation12 + $0x30] sm:$0xff]
    %v5900 = vld [vmem:[#allocation12 + $0x38] sm:$0xff]
    %v5901 = vld [vmem:[#allocation12 + $0x40] sm:$0xff]
    %v5902 = vld [vmem:[#allocation12 + $0x48] sm:$0xff]
    %v5903 = vld [vmem:[#allocation12 + $0x50] sm:$0xff]
    %v5904 = vld [vmem:[#allocation12 + $0x58] sm:$0xff]
    %v5905 = vld [vmem:[#allocation12 + $0x60] sm:$0xff]
    %v5906 = vld [vmem:[#allocation12 + $0x68] sm:$0xff]
    %v5907 = vld [vmem:[#allocation12 + $0x70] sm:$0xff]
    %v5908 = vld [vmem:[#allocation12 + $0x78] sm:$0xff]
    %v5909 = vld [vmem:[#allocation12 + $0x80] sm:$0xff]
    %v5910 = vld [vmem:[#allocation12 + $0x88] sm:$0xff]
    %v5911 = vld [vmem:[#allocation12 + $0x90] sm:$0xff]
    %v5912 = vld [vmem:[#allocation12 + $0x98] sm:$0xff]
    %v5913 = vld [vmem:[#allocation12 + $0xa0] sm:$0xff]
    %v5914 = vld [vmem:[#allocation12 + $0xa8] sm:$0xff]
    %v5915 = vld [vmem:[#allocation12 + $0xb0] sm:$0xff]
    %v5916 = vld [vmem:[#allocation12 + $0xb8] sm:$0xff]
    %v5917 = vld [vmem:[#allocation12 + $0xc0] sm:$0xff]
    %v5918 = vld [vmem:[#allocation12 + $0xc8] sm:$0xff]
    %v5919 = vld [vmem:[#allocation12 + $0xd0] sm:$0xff]
    %v5920 = vld [vmem:[#allocation12 + $0xd8] sm:$0xff]
    %v5921 = vld [vmem:[#allocation12 + $0xe0] sm:$0xff]
    %v5922 = vld [vmem:[#allocation12 + $0xe8] sm:$0xff]
    %v5923 = vld [vmem:[#allocation12 + $0xf0] sm:$0xff]
    %v5924 = vld [vmem:[#allocation12 + $0xf8] sm:$0xff]
    %v5925 = vld [vmem:[#allocation15] sm:$0x3]
    %v5927 = vlaneseq
    %v5928 = vshrl.u32 %v5927, 7
    %v5929 = vsub.s32 0, %v5928
    %v5930 = vrot.slane %v5925, %v5929
    %v5931 = vlaneseq
    %v5932 = vshrl.u32 %v5931, 7
    %v5933 = vsub.s32 1, %v5932
    %v5934 = vrot.slane %v5925, %v5933
    %v5969 = vunpack.c.l.b16 %v5893
    %v5970 = vunpack.c.h.b16 %v5893
    %v5971 = vunpack.c.l.b16 %v5894
    %v5972 = vunpack.c.h.b16 %v5894
    %v5973 = vunpack.c.l.b16 %v5895
    %v5974 = vunpack.c.h.b16 %v5895
    %v5975 = vunpack.c.l.b16 %v5896
    %v5976 = vunpack.c.h.b16 %v5896
    %v5977 = vunpack.c.l.b16 %v5897
    %v5978 = vunpack.c.h.b16 %v5897
    %v5979 = vunpack.c.l.b16 %v5898
    %v5980 = vunpack.c.h.b16 %v5898
    %v5981 = vunpack.c.l.b16 %v5899
    %v5982 = vunpack.c.h.b16 %v5899
    %v5983 = vunpack.c.l.b16 %v5900
    %v5984 = vunpack.c.h.b16 %v5900
    %v5985 = vunpack.c.l.b16 %v5901
    %v5986 = vunpack.c.h.b16 %v5901
    %v5987 = vunpack.c.l.b16 %v5902
    %v5988 = vunpack.c.h.b16 %v5902
    %v5989 = vunpack.c.l.b16 %v5903
    %v5990 = vunpack.c.h.b16 %v5903
    %v5991 = vunpack.c.l.b16 %v5904
    %v5992 = vunpack.c.h.b16 %v5904
    %v5993 = vunpack.c.l.b16 %v5905
    %v5994 = vunpack.c.h.b16 %v5905
    %v5995 = vunpack.c.l.b16 %v5906
    %v5996 = vunpack.c.h.b16 %v5906
    %v5997 = vunpack.c.l.b16 %v5907
    %v5998 = vunpack.c.h.b16 %v5907
    %v5999 = vunpack.c.l.b16 %v5908
    %v6000 = vunpack.c.h.b16 %v5908
    %v6001 = vunpack.c.l.b16 %v5909
    %v6002 = vunpack.c.h.b16 %v5909
    %v6003 = vunpack.c.l.b16 %v5910
    %v6004 = vunpack.c.h.b16 %v5910
    %v6005 = vunpack.c.l.b16 %v5911
    %v6006 = vunpack.c.h.b16 %v5911
    %v6007 = vunpack.c.l.b16 %v5912
    %v6008 = vunpack.c.h.b16 %v5912
    %v6009 = vunpack.c.l.b16 %v5913
    %v6010 = vunpack.c.h.b16 %v5913
    %v6011 = vunpack.c.l.b16 %v5914
    %v6012 = vunpack.c.h.b16 %v5914
    %v6013 = vunpack.c.l.b16 %v5915
    %v6014 = vunpack.c.h.b16 %v5915
    %v6015 = vunpack.c.l.b16 %v5916
    %v6016 = vunpack.c.h.b16 %v5916
    %v6017 = vunpack.c.l.b16 %v5917
    %v6018 = vunpack.c.h.b16 %v5917
    %v6019 = vunpack.c.l.b16 %v5918
    %v6020 = vunpack.c.h.b16 %v5918
    %v6021 = vunpack.c.l.b16 %v5919
    %v6022 = vunpack.c.h.b16 %v5919
    %v6023 = vunpack.c.l.b16 %v5920
    %v6024 = vunpack.c.h.b16 %v5920
    %v6025 = vunpack.c.l.b16 %v5921
    %v6026 = vunpack.c.h.b16 %v5921
    %v6027 = vunpack.c.l.b16 %v5922
    %v6028 = vunpack.c.h.b16 %v5922
    %v6029 = vunpack.c.l.b16 %v5923
    %v6030 = vunpack.c.h.b16 %v5923
    %v6031 = vunpack.c.l.b16 %v5924
    %v6032 = vunpack.c.h.b16 %v5924
    %v6033 = vpack.c.b16 %v5971, %v5969
    %v6034 = vpack.c.b16 %v5972, %v5970
    %v6035 = vpack.c.b16 %v5975, %v5973
    %v6036 = vpack.c.b16 %v5976, %v5974
    %v6037 = vpack.c.b16 %v5979, %v5977
    %v6038 = vpack.c.b16 %v5980, %v5978
    %v6039 = vpack.c.b16 %v5983, %v5981
    %v6040 = vpack.c.b16 %v5984, %v5982
    %v6041 = vpack.c.b16 %v5987, %v5985
    %v6042 = vpack.c.b16 %v5988, %v5986
    %v6043 = vpack.c.b16 %v5991, %v5989
    %v6044 = vpack.c.b16 %v5992, %v5990
    %v6045 = vpack.c.b16 %v5995, %v5993
    %v6046 = vpack.c.b16 %v5996, %v5994
    %v6047 = vpack.c.b16 %v5999, %v5997
    %v6048 = vpack.c.b16 %v6000, %v5998
    %v6049 = vpack.c.b16 %v6003, %v6001
    %v6050 = vpack.c.b16 %v6004, %v6002
    %v6051 = vpack.c.b16 %v6007, %v6005
    %v6052 = vpack.c.b16 %v6008, %v6006
    %v6053 = vpack.c.b16 %v6011, %v6009
    %v6054 = vpack.c.b16 %v6012, %v6010
    %v6055 = vpack.c.b16 %v6015, %v6013
    %v6056 = vpack.c.b16 %v6016, %v6014
    %v6057 = vpack.c.b16 %v6019, %v6017
    %v6058 = vpack.c.b16 %v6020, %v6018
    %v6059 = vpack.c.b16 %v6023, %v6021
    %v6060 = vpack.c.b16 %v6024, %v6022
    %v6061 = vpack.c.b16 %v6027, %v6025
    %v6062 = vpack.c.b16 %v6028, %v6026
    %v6063 = vpack.c.b16 %v6031, %v6029
    %v6064 = vpack.c.b16 %v6032, %v6030
    %6097 = vmatprep.subr.bf16.mxu0 %v6048
    %6098 = vmatpush1.bf16.msra.mxu0 %v6047
    %6099 = vmatprep.subr.bf16.mxu0 %v6046
    %6100 = vmatpush1.bf16.msra.mxu0 %v6045
    %6101 = vmatprep.subr.bf16.mxu0 %v6044
    %6102 = vmatpush1.bf16.msra.mxu0 %v6043
    %6103 = vmatprep.subr.bf16.mxu0 %v6042
    %6104 = vmatpush1.bf16.msra.mxu0 %v6041
    %6105 = vmatprep.subr.bf16.mxu0 %v6040
    %6106 = vmatpush1.bf16.msra.mxu0 %v6039
    %6107 = vmatprep.subr.bf16.mxu0 %v6038
    %6108 = vmatpush1.bf16.msra.mxu0 %v6037
    %6109 = vmatprep.subr.bf16.mxu0 %v6036
    %6110 = vmatpush1.bf16.msra.mxu0 %v6035
    %6111 = vmatprep.subr.bf16.mxu0 %v6034
    %6112 = vmatpush1.bf16.msra.mxu0 %v6033
    %6113 = vmatprep.subr.bf16.mxu0 %v6064
    %6114 = vmatpush2.bf16.msra.mxu0 %v6063
    %6115 = vmatprep.subr.bf16.mxu0 %v6062
    %6116 = vmatpush2.bf16.msra.mxu0 %v6061
    %6117 = vmatprep.subr.bf16.mxu0 %v6060
    %6118 = vmatpush2.bf16.msra.mxu0 %v6059
    %6119 = vmatprep.subr.bf16.mxu0 %v6058
    %6120 = vmatpush2.bf16.msra.mxu0 %v6057
    %6121 = vmatprep.subr.bf16.mxu0 %v6056
    %6122 = vmatpush2.bf16.msra.mxu0 %v6055
    %6123 = vmatprep.subr.bf16.mxu0 %v6054
    %6124 = vmatpush2.bf16.msra.mxu0 %v6053
    %6125 = vmatprep.subr.bf16.mxu0 %v6052
    %6126 = vmatpush2.bf16.msra.mxu0 %v6051
    %6127 = vmatprep.subr.bf16.mxu0 %v6050
    %6128 = vmatpush2.bf16.msra.mxu0 %v6049
    %6129 = vmatprep.mubr.bf16.mxu0 %v5434
    %6130 = vmatmul.mubr.bf16.gmra.mxu0 %v5892
    %v6131 = vpop.f32.mrf.mxu0
    %v6132 = vadd.f32 %v5930, %v6131
    %v6133 = vpop.f32.mrf.mxu0
    %v6134 = vadd.f32 %v5934, %v6133
    %v6135 = vpop.f32.mrf.mxu0
    %v6136 = vpop.f32.mrf.mxu0
    %6137 = vdwg.mxu0
    %v6138 = vxor.u32 %v6132, 2147483648
    %v6139 = vxor.u32 %v6134, 2147483648
    %v6140 = vmul.f32 %v6138, 1.442695
    %v6141 = vpow.pop %v6140
    %v6142 = vmul.f32 %v6139, 1.442695
    %v6143 = vpow.pop %v6142
    %v6144 = vadd.f32 %v6141, 1.0
    %v6145 = vadd.f32 %v6143, 1.0
    %v6146 = vrcp.pop %v6144
    %v6147 = vmul.f32 1.0, %v6146
    %v6148 = vrcp.pop %v6145
    %v6149 = vmul.f32 1.0, %v6148
    %v6150 = vmul.f32 %v6147, %v5433
    %v6151 = vpack.c.bf16 %v6150, %v6150
    %v6152 = vld [vmem:[#allocation13] sm:$0xf]
    %v6153 = vld [vmem:[#allocation13 + $0x4] sm:$0xf]
    %v6154 = vld [vmem:[#allocation13 + $0x8] sm:$0xf]
    %v6155 = vld [vmem:[#allocation13 + $0xc] sm:$0xf]
    %v6156 = vld [vmem:[#allocation13 + $0x10] sm:$0xf]
    %v6157 = vld [vmem:[#allocation13 + $0x14] sm:$0xf]
    %v6158 = vld [vmem:[#allocation13 + $0x18] sm:$0xf]
    %v6159 = vld [vmem:[#allocation13 + $0x1c] sm:$0xf]
    %v6160 = vld [vmem:[#allocation13 + $0x20] sm:$0xf]
    %v6161 = vld [vmem:[#allocation13 + $0x24] sm:$0xf]
    %v6162 = vld [vmem:[#allocation13 + $0x28] sm:$0xf]
    %v6163 = vld [vmem:[#allocation13 + $0x2c] sm:$0xf]
    %v6164 = vld [vmem:[#allocation13 + $0x30] sm:$0xf]
    %v6165 = vld [vmem:[#allocation13 + $0x34] sm:$0xf]
    %v6166 = vld [vmem:[#allocation13 + $0x38] sm:$0xf]
    %v6167 = vld [vmem:[#allocation13 + $0x3c] sm:$0xf]
    %v6168 = vld [vmem:[#allocation13 + $0x40] sm:$0xf]
    %v6169 = vld [vmem:[#allocation13 + $0x44] sm:$0xf]
    %v6170 = vld [vmem:[#allocation13 + $0x48] sm:$0xf]
    %v6171 = vld [vmem:[#allocation13 + $0x4c] sm:$0xf]
    %v6172 = vld [vmem:[#allocation13 + $0x50] sm:$0xf]
    %v6173 = vld [vmem:[#allocation13 + $0x54] sm:$0xf]
    %v6174 = vld [vmem:[#allocation13 + $0x58] sm:$0xf]
    %v6175 = vld [vmem:[#allocation13 + $0x5c] sm:$0xf]
    %v6176 = vld [vmem:[#allocation13 + $0x60] sm:$0xf]
    %v6177 = vld [vmem:[#allocation13 + $0x64] sm:$0xf]
    %v6178 = vld [vmem:[#allocation13 + $0x68] sm:$0xf]
    %v6179 = vld [vmem:[#allocation13 + $0x6c] sm:$0xf]
    %v6180 = vld [vmem:[#allocation13 + $0x70] sm:$0xf]
    %v6181 = vld [vmem:[#allocation13 + $0x74] sm:$0xf]
    %v6182 = vld [vmem:[#allocation13 + $0x78] sm:$0xf]
    %v6183 = vld [vmem:[#allocation13 + $0x7c] sm:$0xf]
    %v6184 = vld [vmem:[#allocation16] sm:$0x1]
    %v6186 = vlaneseq
    %v6187 = vshrl.u32 %v6186, 7
    %v6188 = vsub.s32 0, %v6187
    %v6189 = vrot.slane %v6184, %v6188
    %v6223 = vunpack.c.l.b16 %v6152
    %v6224 = vunpack.c.l.b16 %v6153
    %v6225 = vunpack.c.l.b16 %v6154
    %v6226 = vunpack.c.l.b16 %v6155
    %v6227 = vunpack.c.l.b16 %v6156
    %v6228 = vunpack.c.l.b16 %v6157
    %v6229 = vunpack.c.l.b16 %v6158
    %v6230 = vunpack.c.l.b16 %v6159
    %v6231 = vunpack.c.l.b16 %v6160
    %v6232 = vunpack.c.l.b16 %v6161
    %v6233 = vunpack.c.l.b16 %v6162
    %v6234 = vunpack.c.l.b16 %v6163
    %v6235 = vunpack.c.l.b16 %v6164
    %v6236 = vunpack.c.l.b16 %v6165
    %v6237 = vunpack.c.l.b16 %v6166
    %v6238 = vunpack.c.l.b16 %v6167
    %v6239 = vunpack.c.l.b16 %v6168
    %v6240 = vunpack.c.l.b16 %v6169
    %v6241 = vunpack.c.l.b16 %v6170
    %v6242 = vunpack.c.l.b16 %v6171
    %v6243 = vunpack.c.l.b16 %v6172
    %v6244 = vunpack.c.l.b16 %v6173
    %v6245 = vunpack.c.l.b16 %v6174
    %v6246 = vunpack.c.l.b16 %v6175
    %v6247 = vunpack.c.l.b16 %v6176
    %v6248 = vunpack.c.l.b16 %v6177
    %v6249 = vunpack.c.l.b16 %v6178
    %v6250 = vunpack.c.l.b16 %v6179
    %v6251 = vunpack.c.l.b16 %v6180
    %v6252 = vunpack.c.l.b16 %v6181
    %v6253 = vunpack.c.l.b16 %v6182
    %v6254 = vunpack.c.l.b16 %v6183
    %v6255 = vpack.c.b16 %v6224, %v6223
    %v6256 = vpack.c.b16 %v6226, %v6225
    %v6257 = vpack.c.b16 %v6228, %v6227
    %v6258 = vpack.c.b16 %v6230, %v6229
    %v6259 = vpack.c.b16 %v6232, %v6231
    %v6260 = vpack.c.b16 %v6234, %v6233
    %v6261 = vpack.c.b16 %v6236, %v6235
    %v6262 = vpack.c.b16 %v6238, %v6237
    %v6263 = vpack.c.b16 %v6240, %v6239
    %v6264 = vpack.c.b16 %v6242, %v6241
    %v6265 = vpack.c.b16 %v6244, %v6243
    %v6266 = vpack.c.b16 %v6246, %v6245
    %v6267 = vpack.c.b16 %v6248, %v6247
    %v6268 = vpack.c.b16 %v6250, %v6249
    %v6269 = vpack.c.b16 %v6252, %v6251
    %v6270 = vpack.c.b16 %v6254, %v6253
    %6287 = vmatprep.subr.bf16.mxu0 0
    %6288 = vmatpush1.bf16.msra.mxu0 %v6262
    %6289 = vmatprep.subr.bf16.mxu0 0
    %6290 = vmatpush1.bf16.msra.mxu0 %v6261
    %6291 = vmatprep.subr.bf16.mxu0 0
    %6292 = vmatpush1.bf16.msra.mxu0 %v6260
    %6293 = vmatprep.subr.bf16.mxu0 0
    %6294 = vmatpush1.bf16.msra.mxu0 %v6259
    %6295 = vmatprep.subr.bf16.mxu0 0
    %6296 = vmatpush1.bf16.msra.mxu0 %v6258
    %6297 = vmatprep.subr.bf16.mxu0 0
    %6298 = vmatpush1.bf16.msra.mxu0 %v6257
    %6299 = vmatprep.subr.bf16.mxu0 0
    %6300 = vmatpush1.bf16.msra.mxu0 %v6256
    %6301 = vmatprep.subr.bf16.mxu0 0
    %6302 = vmatpush1.bf16.msra.mxu0 %v6255
    %6303 = vmatprep.subr.bf16.mxu0 0
    %6304 = vmatpush2.bf16.msra.mxu0 %v6270
    %6305 = vmatprep.subr.bf16.mxu0 0
    %6306 = vmatpush2.bf16.msra.mxu0 %v6269
    %6307 = vmatprep.subr.bf16.mxu0 0
    %6308 = vmatpush2.bf16.msra.mxu0 %v6268
    %6309 = vmatprep.subr.bf16.mxu0 0
    %6310 = vmatpush2.bf16.msra.mxu0 %v6267
    %6311 = vmatprep.subr.bf16.mxu0 0
    %6312 = vmatpush2.bf16.msra.mxu0 %v6266
    %6313 = vmatprep.subr.bf16.mxu0 0
    %6314 = vmatpush2.bf16.msra.mxu0 %v6265
    %6315 = vmatprep.subr.bf16.mxu0 0
    %6316 = vmatpush2.bf16.msra.mxu0 %v6264
    %6317 = vmatprep.subr.bf16.mxu0 0
    %6318 = vmatpush2.bf16.msra.mxu0 %v6263
    %6319 = vmatprep.mubr.bf16.mxu0 %v6151
    %6320 = vmatmul.mubr.bf16.gmra.mxu0 %v5892
    %v6321 = vpop.f32.mrf.mxu0
    %v6322 = vadd.f32 %v6189, %v6321
    %v6323 = vpop.f32.mrf.mxu0
    %v6324 = vpop.f32.mrf.mxu0
    %v6325 = vpop.f32.mrf.mxu0
    %6326 = vdwg.mxu0
    %v6327 = vtanh.pop %v6322
    %v6328 = vmul.f32 %v6149, %v5433
    %v6329 = vsub.f32 1.0, %v6149
    %v6330 = vmul.f32 %v6329, %v6327
    %v6331 = vadd.f32 %v6328, %v6330
    %v6332 = vpack.c.bf16 %v6331, %v6331
    %v6333 = vld [vmem:[%s11] sm:$0xf]
    %v6334 = vld [vmem:[%s11 + $0x4] sm:$0xf]
    %v6335 = vld [vmem:[%s11 + $0x8] sm:$0xf]
    %v6336 = vld [vmem:[%s11 + $0xc] sm:$0xf]
    %v6337 = vld [vmem:[%s11 + $0x10] sm:$0xf]
    %v6338 = vld [vmem:[%s11 + $0x14] sm:$0xf]
    %v6339 = vld [vmem:[%s11 + $0x18] sm:$0xf]
    %v6340 = vld [vmem:[%s11 + $0x1c] sm:$0xf]
    %v6341 = vld [vmem:[%s11 + $0x20] sm:$0xf]
    %v6342 = vld [vmem:[%s11 + $0x24] sm:$0xf]
    %v6343 = vld [vmem:[%s11 + $0x28] sm:$0xf]
    %v6344 = vld [vmem:[%s11 + $0x2c] sm:$0xf]
    %v6345 = vld [vmem:[%s11 + $0x30] sm:$0xf]
    %v6346 = vld [vmem:[%s11 + $0x34] sm:$0xf]
    %v6347 = vld [vmem:[%s11 + $0x38] sm:$0xf]
    %v6348 = vld [vmem:[%s11 + $0x3c] sm:$0xf]
    %v6349 = vld [vmem:[%s12] sm:$0x1]
    %v6351 = vlaneseq
    %v6352 = vshrl.u32 %v6351, 7
    %v6353 = vsub.s32 0, %v6352
    %v6354 = vrot.slane %v6349, %v6353
    %v6372 = vunpack.c.l.b16 %v6333
    %v6373 = vunpack.c.l.b16 %v6334
    %v6374 = vunpack.c.l.b16 %v6335
    %v6375 = vunpack.c.l.b16 %v6336
    %v6376 = vunpack.c.l.b16 %v6337
    %v6377 = vunpack.c.l.b16 %v6338
    %v6378 = vunpack.c.l.b16 %v6339
    %v6379 = vunpack.c.l.b16 %v6340
    %v6380 = vunpack.c.l.b16 %v6341
    %v6381 = vunpack.c.l.b16 %v6342
    %v6382 = vunpack.c.l.b16 %v6343
    %v6383 = vunpack.c.l.b16 %v6344
    %v6384 = vunpack.c.l.b16 %v6345
    %v6385 = vunpack.c.l.b16 %v6346
    %v6386 = vunpack.c.l.b16 %v6347
    %v6387 = vunpack.c.l.b16 %v6348
    %v6388 = vpack.c.b16 %v6373, %v6372
    %v6389 = vpack.c.b16 %v6375, %v6374
    %v6390 = vpack.c.b16 %v6377, %v6376
    %v6391 = vpack.c.b16 %v6379, %v6378
    %v6392 = vpack.c.b16 %v6381, %v6380
    %v6393 = vpack.c.b16 %v6383, %v6382
    %v6394 = vpack.c.b16 %v6385, %v6384
    %v6395 = vpack.c.b16 %v6387, %v6386
    %6404 = vmatprep.subr.bf16.mxu0 0
    %6405 = vmatpush1.bf16.msra.mxu0 %v6395
    %6406 = vmatprep.subr.bf16.mxu0 0
    %6407 = vmatpush1.bf16.msra.mxu0 %v6394
    %6408 = vmatprep.subr.bf16.mxu0 0
    %6409 = vmatpush1.bf16.msra.mxu0 %v6393
    %6410 = vmatprep.subr.bf16.mxu0 0
    %6411 = vmatpush1.bf16.msra.mxu0 %v6392
    %6412 = vmatprep.subr.bf16.mxu0 0
    %6413 = vmatpush1.bf16.msra.mxu0 %v6391
    %6414 = vmatprep.subr.bf16.mxu0 0
    %6415 = vmatpush1.bf16.msra.mxu0 %v6390
    %6416 = vmatprep.subr.bf16.mxu0 0
    %6417 = vmatpush1.bf16.msra.mxu0 %v6389
    %6418 = vmatprep.subr.bf16.mxu0 0
    %6419 = vmatpush1.bf16.msra.mxu0 %v6388
    %6420 = vmatprep.subr.bf16.mxu0 0
    %6421 = vmatpush2.bf16.msra.mxu0 0
    %6422 = vmatprep.subr.bf16.mxu0 0
    %6423 = vmatpush2.bf16.msra.mxu0 0
    %6424 = vmatprep.subr.bf16.mxu0 0
    %6425 = vmatpush2.bf16.msra.mxu0 0
    %6426 = vmatprep.subr.bf16.mxu0 0
    %6427 = vmatpush2.bf16.msra.mxu0 0
    %6428 = vmatprep.subr.bf16.mxu0 0
    %6429 = vmatpush2.bf16.msra.mxu0 0
    %6430 = vmatprep.subr.bf16.mxu0 0
    %6431 = vmatpush2.bf16.msra.mxu0 0
    %6432 = vmatprep.subr.bf16.mxu0 0
    %6433 = vmatpush2.bf16.msra.mxu0 0
    %6434 = vmatprep.subr.bf16.mxu0 0
    %6435 = vmatpush2.bf16.msra.mxu0 0
    %6436 = vmatprep.mubr.bf16.mxu0 0
    %6437 = vmatmul.mubr.bf16.gmra.mxu0 %v6332
    %v6438 = vpop.f32.mrf.mxu0
    %v6439 = vadd.f32 %v6354, %v6438
    %v6440 = vpop.f32.mrf.mxu0
    %v6441 = vpop.f32.mrf.mxu0
    %v6442 = vpop.f32.mrf.mxu0
    %6443 = vdwg.mxu0
    %s6444 = scalar_lea.vmem [#allocation18], 14
    %6445 = vst.msk [vmem:[%s6444] sm:$0x3] %vm158, %v6439
    // Predicated region
    $region90: #{tpu_custom_call.1} parent=1 // pred_check
      _
    $region91: #{tpu_custom_call.1} parent=1 // pred_check_branch
      %6447 = sbr.rel (0) target = $region93
    $region92: #{tpu_custom_call.1} parent=1 // pred_region
      %s6449 = ssub.s32 256, 256
      %6450 = vsyncadd [#allocation4], %s6449
      %s6451 = sshll.u32 [#allocation18], 4
      %s6452 = int_to_ptr.vmem [resolvable:$true] %s6451
      %6457 = dma.vmem_to_hbm [thread:$0]  %s6452, 256, %s13, [#allocation4], 32, 32, 2
    $region93: #{tpu_custom_call.1} parent=1 // pred_fallthru
      _
    // Predicated region
    $region94: #{tpu_custom_call.1} parent=1 // pred_check
      _
    $region95: #{tpu_custom_call.1} parent=1 // pred_check_branch
      %6459 = sbr.rel (0) target = $region97
    $region96: #{tpu_custom_call.1} parent=1 // pred_region
      %6460 = dma.done [#allocation4], 256
    $region97: #{tpu_custom_call.1} parent=1 // pred_fallthru
      _
    %6461 = vsyncpa [#allocation3], 1
    %6462 = vsyncpa [#allocation8], 1
    %6463 = vsyncpa [#allocation11], 1
    %6464 = vsyncpa [#allocation14], 1
    %6465 = vsyncpa [#allocation17], 1
    %6466 = vsyncpa [#allocation4], 1
    %6467 = vsyncpa [#allocation5], 1

</llo_original>
